<compile_context>
chip_gen: v5e
topology: v5e:2x2
jax: 0.10.0
libtpu: 0.0.40
codegen_flags: <defaults>
</compile_context>

<pallas_src>
import functools

import jax
import jax.numpy as jnp
from jax.experimental import pallas as pl
from jax.experimental.pallas import tpu as pltpu

MAX_TILE_N = 1024                  # rows of interaction embeddings per grid step
LN_EPS = 1e-5                      # torch.nn.LayerNorm default eps
VMEM_LIMIT_BYTES = 40 * 1024 * 1024


def _round_up(x, m):
    return (x + m - 1) // m * m


def _layer_norm(x, gamma, beta):
    mu = jnp.mean(x, axis=-1, keepdims=True)
    xc = x - mu
    var = jnp.mean(xc * xc, axis=-1, keepdims=True)
    return xc * jax.lax.rsqrt(var + LN_EPS) * gamma + beta


def user_embedding_kernel(*refs, n, tile_n, weighted):
    """Aggregation (every grid step) + MLP (last grid step)."""
    if weighted:
        (w_ref, emb_ref,
         w1_ref, b1_ref, g1_ref, be1_ref,
         w2_ref, b2_ref, g2_ref, be2_ref,
         w3_ref, b3_ref, g3_ref, be3_ref,
         out_ref, acc_ref, wsum_ref) = refs
    else:
        (emb_ref,
         w1_ref, b1_ref, g1_ref, be1_ref,
         w2_ref, b2_ref, g2_ref, be2_ref,
         w3_ref, b3_ref, g3_ref, be3_ref,
         out_ref, acc_ref) = refs

    i = pl.program_id(0)

    @pl.when(i == 0)
    def _init():
        acc_ref[...] = jnp.zeros_like(acc_ref)
        if weighted:
            wsum_ref[...] = jnp.zeros_like(wsum_ref)

    emb = emb_ref[...]                                   # (tile_n, D) f32
    if weighted:
        w = w_ref[...]                                   # (tile_n, 1) f32

    if n % tile_n != 0:
        # Ragged last tile: out-of-range rows of the VMEM block are undefined,
        # so mask with select (0 * garbage could be NaN, so never multiply).
        row = i * tile_n + jax.lax.broadcasted_iota(jnp.int32, (tile_n, 1), 0)
        valid = row < n
        emb = jnp.where(valid, emb, 0.0)
        if weighted:
            w = jnp.where(valid, w, 0.0)

    # VPU multiply + sublane reduce (keeps the MXU out of the streaming phase).
    if weighted:
        acc_ref[...] += jnp.sum(emb * w, axis=0, keepdims=True)     # (1, D)
        wsum_ref[...] += jnp.sum(w, axis=0, keepdims=True)          # (1, 1)
    else:
        acc_ref[...] += jnp.sum(emb, axis=0, keepdims=True)         # (1, D)

    @pl.when(i == pl.num_programs(0) - 1)
    def _finalize():
        if weighted:
            # NOTE: all-zero weights -> Inf/NaN, same as the PyTorch reference.
            agg = acc_ref[...] / wsum_ref[...]
        else:
            agg = acc_ref[...] / n                      # static N -> plain mean

        # MLP on the (1, D) aggregate.  cdt is the stored weight dtype (f32 or
        # bf16); accumulation is always f32 via preferred_element_type.
        cdt = w1_ref.dtype
        h = jnp.dot(agg.astype(cdt), w1_ref[...],
                    preferred_element_type=jnp.float32) + b1_ref[...]
        h = jnp.maximum(_layer_norm(h, g1_ref[...], be1_ref[...]), 0.0)
        # Dropout(0.2) is identity at inference.
        h = jnp.dot(h.astype(cdt), w2_ref[...],
                    preferred_element_type=jnp.float32) + b2_ref[...]
        h = jnp.maximum(_layer_norm(h, g2_ref[...], be2_ref[...]), 0.0)
        y = jnp.dot(h.astype(cdt), w3_ref[...],
                    preferred_element_type=jnp.float32) + b3_ref[...]
        out_ref[...] = _layer_norm(y, g3_ref[...], be3_ref[...])


@functools.partial(jax.jit, static_argnames=("weighted", "single_buffer_resident"))
def _call_kernel(w_col, emb, kp, *, weighted, single_buffer_resident):
    (w1t, b1, g1, be1, w2t, b2, g2, be2, w3t, b3, g3, be3) = kp
    n, d = emb.shape
    h = w1t.shape[1]
    tile_n = min(MAX_TILE_N, _round_up(n, 8))
    num_tiles = pl.cdiv(n, tile_n)

    def resident(shape):
        # Block-invariant input (fetched once).  Single-buffer it to reclaim
        # ~5 MiB of VMEM when the build supports pl.Buffered(1).
        if single_buffer_resident:
            return pl.BlockSpec(shape, lambda i: (0, 0),
                                pipeline_mode=pl.Buffered(1))
        return pl.BlockSpec(shape, lambda i: (0, 0))

    resident_specs = [
        resident((d, h)), resident((1, h)), resident((1, h)), resident((1, h)),
        resident((h, h)), resident((1, h)), resident((1, h)), resident((1, h)),
        resident((h, d)), resident((1, d)), resident((1, d)), resident((1, d)),
    ]
    emb_spec = pl.BlockSpec((tile_n, d), lambda i: (i, 0))

    if weighted:
        in_specs = [pl.BlockSpec((tile_n, 1), lambda i: (i, 0)), emb_spec] + resident_specs
        scratch = [pltpu.VMEM((1, d), jnp.float32),   # weighted-sum accumulator
                   pltpu.VMEM((1, 1), jnp.float32)]   # weight-sum accumulator
        args = (w_col, emb)
    else:
        in_specs = [emb_spec] + resident_specs
        scratch = [pltpu.VMEM((1, d), jnp.float32)]
        args = (emb,)

    grid_spec = pltpu.PrefetchScalarGridSpec(
        num_scalar_prefetch=0,
        grid=(num_tiles,),
        in_specs=in_specs,
        out_specs=pl.BlockSpec((1, d), lambda i: (0, 0)),
        scratch_shapes=scratch,
    )

    kernel = functools.partial(user_embedding_kernel,
                               n=n, tile_n=tile_n, weighted=weighted)

    out = pl.pallas_call(
        kernel,
        out_shape=jax.ShapeDtypeStruct((1, d), jnp.float32),
        grid_spec=grid_spec,
        compiler_params=pltpu.CompilerParams(
            # Reduction over N tiles: accumulator/output resident -> "arbitrary".
            dimension_semantics=("arbitrary",),
            vmem_limit_bytes=VMEM_LIMIT_BYTES,
        ),
    )(*args, w1t, b1, g1, be1, w2t, b2, g2, be2, w3t, b3, g3, be3)
    return out


_SINGLE_BUFFER_OK = None   # lazily probed: does this build accept pl.Buffered(1)?


def user_embedding_forward(interaction_embeddings, kernel_params,
                           interaction_weights=None):
    """interaction_embeddings: (N, D); interaction_weights: optional (N,).
    Returns the (D,) user embedding (f32)."""
    global _SINGLE_BUFFER_OK
    n, d = interaction_embeddings.shape
    if n == 0:
        # Matches the PyTorch early return for empty input (handled host-side).
        return jnp.zeros((d,), jnp.float32)

    emb = jnp.asarray(interaction_embeddings, jnp.float32)
    weighted = interaction_weights is not None
    w_col = (jnp.asarray(interaction_weights, jnp.float32).reshape(n, 1)
             if weighted else None)

    if _SINGLE_BUFFER_OK is None:
        try:
            out = _call_kernel(w_col, emb, kernel_params,
                               weighted=weighted, single_buffer_resident=True)
            jax.block_until_ready(out)
            _SINGLE_BUFFER_OK = True
            return out.reshape(d)
        except Exception:
            _SINGLE_BUFFER_OK = False   # fall back to default double-buffering
    out = _call_kernel(w_col, emb, kernel_params,
                       weighted=weighted, single_buffer_resident=_SINGLE_BUFFER_OK)
    return out.reshape(d)


def prepare_params(params, weight_dtype=jnp.bfloat16):
    """One-time prep: pre-transpose Linear weights (optionally to bf16 to halve
    weight HBM traffic), reshape vectors to lane-dense (1, F) rows (kept f32)."""
    row = lambda x: jnp.asarray(x, jnp.float32).reshape(1, -1)
    wt = lambda x: jnp.asarray(x, jnp.float32).T.astype(weight_dtype)
    return (
        wt(params["w1"]), row(params["b1"]), row(params["g1"]), row(params["beta1"]),
        wt(params["w2"]), row(params["b2"]), row(params["g2"]), row(params["beta2"]),
        wt(params["w3"]), row(params["b3"]), row(params["g3"]), row(params["beta3"]),
    )


# ----------------------------------------------------------------------------
# Parameter init + pure-JAX reference for checking.
# ----------------------------------------------------------------------------
def init_params(key, vector_dim=1024, hidden_dim=512):
    ks = jax.random.split(key, 9)

    def linear(k, out_dim, in_dim):
        scale = 1.0 / jnp.sqrt(in_dim)
        kw, kb = jax.random.split(k)
        w = jax.random.uniform(kw, (out_dim, in_dim), jnp.float32, -scale, scale)
        b = jax.random.uniform(kb, (out_dim,), jnp.float32, -scale, scale)
        return w, b

    w1, b1 = linear(ks[0], hidden_dim, vector_dim)
    w2, b2 = linear(ks[1], hidden_dim, hidden_dim)
    w3, b3 = linear(ks[2], vector_dim, hidden_dim)
    return {
        "w1": w1, "b1": b1,
        "g1": 1.0 + 0.1 * jax.random.normal(ks[3], (hidden_dim,), jnp.float32),
        "beta1": 0.1 * jax.random.normal(ks[4], (hidden_dim,), jnp.float32),
        "w2": w2, "b2": b2,
        "g2": 1.0 + 0.1 * jax.random.normal(ks[5], (hidden_dim,), jnp.float32),
        "beta2": 0.1 * jax.random.normal(ks[6], (hidden_dim,), jnp.float32),
        "w3": w3, "b3": b3,
        "g3": 1.0 + 0.1 * jax.random.normal(ks[7], (vector_dim,), jnp.float32),
        "beta3": 0.1 * jax.random.normal(ks[8], (vector_dim,), jnp.float32),
    }


def reference_forward(emb, params, weights=None):
    if emb.shape[0] == 0:
        return jnp.zeros((params["w1"].shape[1],), jnp.float32)
    if weights is not None:
        w = weights[:, None]
        agg = (emb * w).sum(axis=0) / w.sum()
    else:
        agg = emb.mean(axis=0)

    def ln(x, g, b):
        mu = x.mean()
        var = ((x - mu) ** 2).mean()
        return (x - mu) / jnp.sqrt(var + LN_EPS) * g + b

    dot = functools.partial(jnp.dot, precision=jax.lax.Precision.HIGHEST)
    h = jnp.maximum(ln(dot(agg, params["w1"].T) + params["b1"],
                       params["g1"], params["beta1"]), 0.0)
    h = jnp.maximum(ln(dot(h, params["w2"].T) + params["b2"],
                       params["g2"], params["beta2"]), 0.0)
    return ln(dot(h, params["w3"].T) + params["b3"], params["g3"], params["beta3"])


def _bf16_roundtrip_weights(params):
    q = dict(params)
    for k in ("w1", "w2", "w3"):
        q[k] = params[k].astype(jnp.bfloat16).astype(jnp.float32)
    return q


if __name__ == "__main__":
    key = jax.random.PRNGKey(0)
    pkey, e1, wk1, e2, wk2 = jax.random.split(key, 5)

    VECTOR_DIM, HIDDEN_DIM = 1024, 512   # module defaults
    N1 = 8                               # small seq of interactions
    N2 = 2500                            # multi-tile (grid=3) with ragged tail

    params = init_params(pkey, VECTOR_DIM, HIDDEN_DIM)
    kp_f32 = prepare_params(params, weight_dtype=jnp.float32)   # exact path
    kp_bf16 = prepare_params(params)                            # fast bf16-weight path

    emb1 = jax.random.normal(e1, (N1, VECTOR_DIM), jnp.float32)
    wts1 = jax.random.uniform(wk1, (N1,), jnp.float32, 0.1, 1.0)

    # Weighted and unweighted (mean) aggregation paths, f32 weights.
    out_w = user_embedding_forward(emb1, kp_f32, wts1)
    out_u = user_embedding_forward(emb1, kp_f32, None)
    jax.block_until_ready((out_w, out_u))
    ref_w = reference_forward(emb1, params, wts1)
    ref_u = reference_forward(emb1, params, None)
    assert out_w.shape == (VECTOR_DIM,)
    assert jnp.allclose(out_w, ref_w, atol=2e-3, rtol=2e-3), \
        float(jnp.max(jnp.abs(out_w - ref_w)))
    assert jnp.allclose(out_u, ref_u, atol=2e-3, rtol=2e-3), \
        float(jnp.max(jnp.abs(out_u - ref_u)))

    # Multi-tile ragged path: grid > 1, tail masked in-kernel, no host-side pad.
    emb2 = jax.random.normal(e2, (N2, VECTOR_DIM), jnp.float32)
    wts2 = jax.random.uniform(wk2, (N2,), jnp.float32, 0.1, 1.0)
    out2 = user_embedding_forward(emb2, kp_f32, None)
    jax.block_until_ready(out2)
    ref2 = reference_forward(emb2, params, None)
    assert jnp.allclose(out2, ref2, atol=2e-3, rtol=2e-3), \
        float(jnp.max(jnp.abs(out2 - ref2)))

    # bf16-weight fast path (weighted, multi-tile); compared against a reference
    # that uses the same bf16-quantized weights.
    out3 = user_embedding_forward(emb2, kp_bf16, wts2)
    jax.block_until_ready(out3)
    ref3 = reference_forward(emb2, _bf16_roundtrip_weights(params), wts2)
    assert jnp.allclose(out3, ref3, atol=2e-2, rtol=2e-2), \
        float(jnp.max(jnp.abs(out3 - ref3)))

    print("KERNEL_OK")
</pallas_src>

<mosaic_0001>
module attributes {stable_mosaic.version = 11 : i64} {
  func.func @user_embedding_kernel(%arg0: i32, %arg1: memref<8x1xf32, #tpu.memory_space<vmem>>, %arg2: memref<8x1024xf32, #tpu.memory_space<vmem>>, %arg3: memref<1024x512xf32, #tpu.memory_space<vmem>>, %arg4: memref<1x512xf32, #tpu.memory_space<vmem>>, %arg5: memref<1x512xf32, #tpu.memory_space<vmem>>, %arg6: memref<1x512xf32, #tpu.memory_space<vmem>>, %arg7: memref<512x512xf32, #tpu.memory_space<vmem>>, %arg8: memref<1x512xf32, #tpu.memory_space<vmem>>, %arg9: memref<1x512xf32, #tpu.memory_space<vmem>>, %arg10: memref<1x512xf32, #tpu.memory_space<vmem>>, %arg11: memref<512x1024xf32, #tpu.memory_space<vmem>>, %arg12: memref<1x1024xf32, #tpu.memory_space<vmem>>, %arg13: memref<1x1024xf32, #tpu.memory_space<vmem>>, %arg14: memref<1x1024xf32, #tpu.memory_space<vmem>>, %arg15: memref<1x1024xf32, #tpu.memory_space<vmem>>, %arg16: memref<1x1024xf32, #tpu.memory_space<vmem>>, %arg17: memref<1x1xf32, #tpu.memory_space<vmem>>) attributes {dimension_semantics = [#tpu.dimension_semantics<arbitrary>], iteration_bounds = array<i64: 1>, scalar_prefetch = 0 : i64, scratch_operands = 2 : i64, tpu.core_type = #tpu.core_type<tc>, window_params = [{transform_indices = @transform_0, window_bounds = array<i64: 8, 1>}, {transform_indices = @transform_1, window_bounds = array<i64: 8, 1024>}, {pipeline_mode = #tpu.pipeline_mode<synchronous>, transform_indices = @transform_2, window_bounds = array<i64: 1024, 512>}, {pipeline_mode = #tpu.pipeline_mode<synchronous>, transform_indices = @transform_3, window_bounds = array<i64: 1, 512>}, {pipeline_mode = #tpu.pipeline_mode<synchronous>, transform_indices = @transform_4, window_bounds = array<i64: 1, 512>}, {pipeline_mode = #tpu.pipeline_mode<synchronous>, transform_indices = @transform_5, window_bounds = array<i64: 1, 512>}, {pipeline_mode = #tpu.pipeline_mode<synchronous>, transform_indices = @transform_6, window_bounds = array<i64: 512, 512>}, {pipeline_mode = #tpu.pipeline_mode<synchronous>, transform_indices = @transform_7, window_bounds = array<i64: 1, 512>}, {pipeline_mode = #tpu.pipeline_mode<synchronous>, transform_indices = @transform_8, window_bounds = array<i64: 1, 512>}, {pipeline_mode = #tpu.pipeline_mode<synchronous>, transform_indices = @transform_9, window_bounds = array<i64: 1, 512>}, {pipeline_mode = #tpu.pipeline_mode<synchronous>, transform_indices = @transform_10, window_bounds = array<i64: 512, 1024>}, {pipeline_mode = #tpu.pipeline_mode<synchronous>, transform_indices = @transform_11, window_bounds = array<i64: 1, 1024>}, {pipeline_mode = #tpu.pipeline_mode<synchronous>, transform_indices = @transform_12, window_bounds = array<i64: 1, 1024>}, {pipeline_mode = #tpu.pipeline_mode<synchronous>, transform_indices = @transform_13, window_bounds = array<i64: 1, 1024>}, {pipeline_mode = #tpu.pipeline_mode<synchronous>, transform_indices = @transform_14, window_bounds = array<i64: 1, 1024>}]} {
    %c0_i32 = arith.constant 0 : i32
    %0 = arith.cmpi eq, %arg0, %c0_i32 : i32
    %1 = arith.extui %0 : i1 to i32
    %c0_i32_0 = arith.constant 0 : i32
    %2 = arith.cmpi ne, %1, %c0_i32_0 : i32
    scf.if %2 {
      %cst_15 = arith.constant 0.000000e+00 : f32
      %20 = vector.broadcast %cst_15 : f32 to vector<1x1024xf32>
      %c0_16 = arith.constant 0 : index
      %c0_17 = arith.constant 0 : index
      %21 = vector.load %arg16[%c0_16, %c0_17] : memref<1x1024xf32, #tpu.memory_space<vmem>>, vector<1x1024xf32>
      tpu.vector_store %arg16[%c0_16, %c0_17], %20 {strides = array<i32>} : memref<1x1024xf32, #tpu.memory_space<vmem>>, vector<1x1024xf32>,
      %cst_18 = arith.constant 0.000000e+00 : f32
      %22 = vector.broadcast %cst_18 : f32 to vector<1x1xf32>
      %c0_19 = arith.constant 0 : index
      %c0_20 = arith.constant 0 : index
      %23 = vector.load %arg17[%c0_19, %c0_20] : memref<1x1xf32, #tpu.memory_space<vmem>>, vector<1x1xf32>
      tpu.vector_store %arg17[%c0_19, %c0_20], %22 {strides = array<i32>} : memref<1x1xf32, #tpu.memory_space<vmem>>, vector<1x1xf32>,
    } else {
    }
    %c0 = arith.constant 0 : index
    %c0_1 = arith.constant 0 : index
    %3 = vector.load %arg2[%c0, %c0_1] : memref<8x1024xf32, #tpu.memory_space<vmem>>, vector<8x1024xf32>
    %c0_2 = arith.constant 0 : index
    %c0_3 = arith.constant 0 : index
    %4 = vector.load %arg1[%c0_2, %c0_3] : memref<8x1xf32, #tpu.memory_space<vmem>>, vector<8x1xf32>
    %c0_4 = arith.constant 0 : index
    %c0_5 = arith.constant 0 : index
    %5 = vector.load %arg16[%c0_4, %c0_5] : memref<1x1024xf32, #tpu.memory_space<vmem>>, vector<1x1024xf32>
    %6 = vector.broadcast %4 : vector<8x1xf32> to vector<8x1024xf32>
    %7 = arith.mulf %3, %6 : vector<8x1024xf32>
    %cst = arith.constant dense<0.000000e+00> : vector<1024xf32>
    %8 = vector.multi_reduction <add>, %7, %cst [0] : vector<8x1024xf32> to vector<1024xf32>
    %9 = vector.shape_cast %8 : vector<1024xf32> to vector<1x1024xf32>
    %10 = arith.addf %5, %9 : vector<1x1024xf32>
    %c0_6 = arith.constant 0 : index
    %c0_7 = arith.constant 0 : index
    %11 = vector.load %arg16[%c0_6, %c0_7] : memref<1x1024xf32, #tpu.memory_space<vmem>>, vector<1x1024xf32>
    tpu.vector_store %arg16[%c0_6, %c0_7], %10 {strides = array<i32>} : memref<1x1024xf32, #tpu.memory_space<vmem>>, vector<1x1024xf32>,
    %c0_8 = arith.constant 0 : index
    %c0_9 = arith.constant 0 : index
    %12 = vector.load %arg17[%c0_8, %c0_9] : memref<1x1xf32, #tpu.memory_space<vmem>>, vector<1x1xf32>
    %cst_10 = arith.constant dense<0.000000e+00> : vector<1xf32>
    %13 = vector.multi_reduction <add>, %4, %cst_10 [0] : vector<8x1xf32> to vector<1xf32>
    %14 = vector.shape_cast %13 : vector<1xf32> to vector<1x1xf32>
    %15 = arith.addf %12, %14 : vector<1x1xf32>
    %c0_11 = arith.constant 0 : index
    %c0_12 = arith.constant 0 : index
    %16 = vector.load %arg17[%c0_11, %c0_12] : memref<1x1xf32, #tpu.memory_space<vmem>>, vector<1x1xf32>
    tpu.vector_store %arg17[%c0_11, %c0_12], %15 {strides = array<i32>} : memref<1x1xf32, #tpu.memory_space<vmem>>, vector<1x1xf32>,
    %c0_i32_13 = arith.constant 0 : i32
    %17 = arith.cmpi eq, %arg0, %c0_i32_13 : i32
    %18 = arith.extui %17 : i1 to i32
    %c0_i32_14 = arith.constant 0 : i32
    %19 = arith.cmpi ne, %18, %c0_i32_14 : i32
    scf.if %19 {
      %c0_15 = arith.constant 0 : index
      %c0_16 = arith.constant 0 : index
      %20 = vector.load %arg16[%c0_15, %c0_16] : memref<1x1024xf32, #tpu.memory_space<vmem>>, vector<1x1024xf32>
      %c0_17 = arith.constant 0 : index
      %c0_18 = arith.constant 0 : index
      %21 = vector.load %arg17[%c0_17, %c0_18] : memref<1x1xf32, #tpu.memory_space<vmem>>, vector<1x1xf32>
      %22 = vector.broadcast %21 : vector<1x1xf32> to vector<1x1024xf32>
      %23 = arith.divf %20, %22 : vector<1x1024xf32>
      %c0_19 = arith.constant 0 : index
      %c0_20 = arith.constant 0 : index
      %24 = vector.load %arg3[%c0_19, %c0_20] : memref<1024x512xf32, #tpu.memory_space<vmem>>, vector<1024x512xf32>
      %cst_21 = arith.constant dense<0.000000e+00> : vector<1x512xf32>
      %25 = tpu.matmul %23, %24, %cst_21 {dimension_numbers = #tpu.dot_dimension_numbers<[1], [0], [0], [1], [0, 0, 1, 1], [], []>} : vector<1x1024xf32>, vector<1024x512xf32>, vector<1x512xf32> -> vector<1x512xf32>
      %c0_22 = arith.constant 0 : index
      %c0_23 = arith.constant 0 : index
      %26 = vector.load %arg4[%c0_22, %c0_23] : memref<1x512xf32, #tpu.memory_space<vmem>>, vector<1x512xf32>
      %27 = arith.addf %25, %26 : vector<1x512xf32>
      %c0_24 = arith.constant 0 : index
      %c0_25 = arith.constant 0 : index
      %28 = vector.load %arg5[%c0_24, %c0_25] : memref<1x512xf32, #tpu.memory_space<vmem>>, vector<1x512xf32>
      %c0_26 = arith.constant 0 : index
      %c0_27 = arith.constant 0 : index
      %29 = vector.load %arg6[%c0_26, %c0_27] : memref<1x512xf32, #tpu.memory_space<vmem>>, vector<1x512xf32>
      %cst_28 = arith.constant dense<0.000000e+00> : vector<1xf32>
      %30 = vector.multi_reduction <add>, %27, %cst_28 [1] : vector<1x512xf32> to vector<1xf32>
      %31 = vector.shape_cast %30 : vector<1xf32> to vector<1x1xf32>
      %cst_29 = arith.constant 5.120000e+02 : f32
      %32 = vector.broadcast %cst_29 : f32 to vector<1x1xf32>
      %33 = arith.divf %31, %32 : vector<1x1xf32>
      %34 = vector.broadcast %33 : vector<1x1xf32> to vector<1x512xf32>
      %35 = arith.subf %27, %34 : vector<1x512xf32>
      %36 = arith.mulf %35, %35 : vector<1x512xf32>
      %cst_30 = arith.constant dense<0.000000e+00> : vector<1xf32>
      %37 = vector.multi_reduction <add>, %36, %cst_30 [1] : vector<1x512xf32> to vector<1xf32>
      %38 = vector.shape_cast %37 : vector<1xf32> to vector<1x1xf32>
      %cst_31 = arith.constant 5.120000e+02 : f32
      %39 = vector.broadcast %cst_31 : f32 to vector<1x1xf32>
      %40 = arith.divf %38, %39 : vector<1x1xf32>
      %cst_32 = arith.constant 9.99999974E-6 : f32
      %41 = vector.broadcast %cst_32 : f32 to vector<1x1xf32>
      %42 = arith.addf %40, %41 : vector<1x1xf32>
      %43 = math.rsqrt %42 : vector<1x1xf32>
      %44 = vector.broadcast %43 : vector<1x1xf32> to vector<1x512xf32>
      %45 = arith.mulf %35, %44 : vector<1x512xf32>
      %46 = arith.mulf %45, %28 : vector<1x512xf32>
      %47 = arith.addf %46, %29 : vector<1x512xf32>
      %cst_33 = arith.constant 0.000000e+00 : f32
      %48 = vector.broadcast %cst_33 : f32 to vector<1x512xf32>
      %49 = arith.maximumf %47, %48 : vector<1x512xf32>
      %c0_34 = arith.constant 0 : index
      %c0_35 = arith.constant 0 : index
      %50 = vector.load %arg7[%c0_34, %c0_35] : memref<512x512xf32, #tpu.memory_space<vmem>>, vector<512x512xf32>
      %cst_36 = arith.constant dense<0.000000e+00> : vector<1x512xf32>
      %51 = tpu.matmul %49, %50, %cst_36 {dimension_numbers = #tpu.dot_dimension_numbers<[1], [0], [0], [1], [0, 0, 1, 1], [], []>} : vector<1x512xf32>, vector<512x512xf32>, vector<1x512xf32> -> vector<1x512xf32>
      %c0_37 = arith.constant 0 : index
      %c0_38 = arith.constant 0 : index
      %52 = vector.load %arg8[%c0_37, %c0_38] : memref<1x512xf32, #tpu.memory_space<vmem>>, vector<1x512xf32>
      %53 = arith.addf %51, %52 : vector<1x512xf32>
      %c0_39 = arith.constant 0 : index
      %c0_40 = arith.constant 0 : index
      %54 = vector.load %arg9[%c0_39, %c0_40] : memref<1x512xf32, #tpu.memory_space<vmem>>, vector<1x512xf32>
      %c0_41 = arith.constant 0 : index
      %c0_42 = arith.constant 0 : index
      %55 = vector.load %arg10[%c0_41, %c0_42] : memref<1x512xf32, #tpu.memory_space<vmem>>, vector<1x512xf32>
      %cst_43 = arith.constant dense<0.000000e+00> : vector<1xf32>
      %56 = vector.multi_reduction <add>, %53, %cst_43 [1] : vector<1x512xf32> to vector<1xf32>
      %57 = vector.shape_cast %56 : vector<1xf32> to vector<1x1xf32>
      %cst_44 = arith.constant 5.120000e+02 : f32
      %58 = vector.broadcast %cst_44 : f32 to vector<1x1xf32>
      %59 = arith.divf %57, %58 : vector<1x1xf32>
      %60 = vector.broadcast %59 : vector<1x1xf32> to vector<1x512xf32>
      %61 = arith.subf %53, %60 : vector<1x512xf32>
      %62 = arith.mulf %61, %61 : vector<1x512xf32>
      %cst_45 = arith.constant dense<0.000000e+00> : vector<1xf32>
      %63 = vector.multi_reduction <add>, %62, %cst_45 [1] : vector<1x512xf32> to vector<1xf32>
      %64 = vector.shape_cast %63 : vector<1xf32> to vector<1x1xf32>
      %cst_46 = arith.constant 5.120000e+02 : f32
      %65 = vector.broadcast %cst_46 : f32 to vector<1x1xf32>
      %66 = arith.divf %64, %65 : vector<1x1xf32>
      %cst_47 = arith.constant 9.99999974E-6 : f32
      %67 = vector.broadcast %cst_47 : f32 to vector<1x1xf32>
      %68 = arith.addf %66, %67 : vector<1x1xf32>
      %69 = math.rsqrt %68 : vector<1x1xf32>
      %70 = vector.broadcast %69 : vector<1x1xf32> to vector<1x512xf32>
      %71 = arith.mulf %61, %70 : vector<1x512xf32>
      %72 = arith.mulf %71, %54 : vector<1x512xf32>
      %73 = arith.addf %72, %55 : vector<1x512xf32>
      %cst_48 = arith.constant 0.000000e+00 : f32
      %74 = vector.broadcast %cst_48 : f32 to vector<1x512xf32>
      %75 = arith.maximumf %73, %74 : vector<1x512xf32>
      %c0_49 = arith.constant 0 : index
      %c0_50 = arith.constant 0 : index
      %76 = vector.load %arg11[%c0_49, %c0_50] : memref<512x1024xf32, #tpu.memory_space<vmem>>, vector<512x1024xf32>
      %cst_51 = arith.constant dense<0.000000e+00> : vector<1x1024xf32>
      %77 = tpu.matmul %75, %76, %cst_51 {dimension_numbers = #tpu.dot_dimension_numbers<[1], [0], [0], [1], [0, 0, 1, 1], [], []>} : vector<1x512xf32>, vector<512x1024xf32>, vector<1x1024xf32> -> vector<1x1024xf32>
      %c0_52 = arith.constant 0 : index
      %c0_53 = arith.constant 0 : index
      %78 = vector.load %arg12[%c0_52, %c0_53] : memref<1x1024xf32, #tpu.memory_space<vmem>>, vector<1x1024xf32>
      %79 = arith.addf %77, %78 : vector<1x1024xf32>
      %c0_54 = arith.constant 0 : index
      %c0_55 = arith.constant 0 : index
      %80 = vector.load %arg13[%c0_54, %c0_55] : memref<1x1024xf32, #tpu.memory_space<vmem>>, vector<1x1024xf32>
      %c0_56 = arith.constant 0 : index
      %c0_57 = arith.constant 0 : index
      %81 = vector.load %arg14[%c0_56, %c0_57] : memref<1x1024xf32, #tpu.memory_space<vmem>>, vector<1x1024xf32>
      %cst_58 = arith.constant dense<0.000000e+00> : vector<1xf32>
      %82 = vector.multi_reduction <add>, %79, %cst_58 [1] : vector<1x1024xf32> to vector<1xf32>
      %83 = vector.shape_cast %82 : vector<1xf32> to vector<1x1xf32>
      %cst_59 = arith.constant 1.024000e+03 : f32
      %84 = vector.broadcast %cst_59 : f32 to vector<1x1xf32>
      %85 = arith.divf %83, %84 : vector<1x1xf32>
      %86 = vector.broadcast %85 : vector<1x1xf32> to vector<1x1024xf32>
      %87 = arith.subf %79, %86 : vector<1x1024xf32>
      %88 = arith.mulf %87, %87 : vector<1x1024xf32>
      %cst_60 = arith.constant dense<0.000000e+00> : vector<1xf32>
      %89 = vector.multi_reduction <add>, %88, %cst_60 [1] : vector<1x1024xf32> to vector<1xf32>
      %90 = vector.shape_cast %89 : vector<1xf32> to vector<1x1xf32>
      %cst_61 = arith.constant 1.024000e+03 : f32
      %91 = vector.broadcast %cst_61 : f32 to vector<1x1xf32>
      %92 = arith.divf %90, %91 : vector<1x1xf32>
      %cst_62 = arith.constant 9.99999974E-6 : f32
      %93 = vector.broadcast %cst_62 : f32 to vector<1x1xf32>
      %94 = arith.addf %92, %93 : vector<1x1xf32>
      %95 = math.rsqrt %94 : vector<1x1xf32>
      %96 = vector.broadcast %95 : vector<1x1xf32> to vector<1x1024xf32>
      %97 = arith.mulf %87, %96 : vector<1x1024xf32>
      %98 = arith.mulf %97, %80 : vector<1x1024xf32>
      %99 = arith.addf %98, %81 : vector<1x1024xf32>
      %c0_63 = arith.constant 0 : index
      %c0_64 = arith.constant 0 : index
      %100 = vector.load %arg15[%c0_63, %c0_64] : memref<1x1024xf32, #tpu.memory_space<vmem>>, vector<1x1024xf32>
      tpu.vector_store %arg15[%c0_63, %c0_64], %99 {strides = array<i32>} : memref<1x1024xf32, #tpu.memory_space<vmem>>, vector<1x1024xf32>,
    } else {
    }
    return
  }
  func.func @transform_0(%arg0: i32) -> (i32, i32) {
    %c0_i32 = arith.constant 0 : i32
    %c0_i32_0 = arith.constant 0 : i32
    return %arg0, %c0_i32 : i32, i32
  }
  func.func @transform_1(%arg0: i32) -> (i32, i32) {
    %c0_i32 = arith.constant 0 : i32
    %c0_i32_0 = arith.constant 0 : i32
    return %arg0, %c0_i32 : i32, i32
  }
  func.func @transform_2(%arg0: i32) -> (i32, i32) {
    %c0_i32 = arith.constant 0 : i32
    %c0_i32_0 = arith.constant 0 : i32
    %c0_i32_1 = arith.constant 0 : i32
    return %c0_i32, %c0_i32_0 : i32, i32
  }
  func.func @transform_3(%arg0: i32) -> (i32, i32) {
    %c0_i32 = arith.constant 0 : i32
    %c0_i32_0 = arith.constant 0 : i32
    %c0_i32_1 = arith.constant 0 : i32
    return %c0_i32, %c0_i32_0 : i32, i32
  }
  func.func @transform_4(%arg0: i32) -> (i32, i32) {
    %c0_i32 = arith.constant 0 : i32
    %c0_i32_0 = arith.constant 0 : i32
    %c0_i32_1 = arith.constant 0 : i32
    return %c0_i32, %c0_i32_0 : i32, i32
  }
  func.func @transform_5(%arg0: i32) -> (i32, i32) {
    %c0_i32 = arith.constant 0 : i32
    %c0_i32_0 = arith.constant 0 : i32
    %c0_i32_1 = arith.constant 0 : i32
    return %c0_i32, %c0_i32_0 : i32, i32
  }
  func.func @transform_6(%arg0: i32) -> (i32, i32) {
    %c0_i32 = arith.constant 0 : i32
    %c0_i32_0 = arith.constant 0 : i32
    %c0_i32_1 = arith.constant 0 : i32
    return %c0_i32, %c0_i32_0 : i32, i32
  }
  func.func @transform_7(%arg0: i32) -> (i32, i32) {
    %c0_i32 = arith.constant 0 : i32
    %c0_i32_0 = arith.constant 0 : i32
    %c0_i32_1 = arith.constant 0 : i32
    return %c0_i32, %c0_i32_0 : i32, i32
  }
  func.func @transform_8(%arg0: i32) -> (i32, i32) {
    %c0_i32 = arith.constant 0 : i32
    %c0_i32_0 = arith.constant 0 : i32
    %c0_i32_1 = arith.constant 0 : i32
    return %c0_i32, %c0_i32_0 : i32, i32
  }
  func.func @transform_9(%arg0: i32) -> (i32, i32) {
    %c0_i32 = arith.constant 0 : i32
    %c0_i32_0 = arith.constant 0 : i32
    %c0_i32_1 = arith.constant 0 : i32
    return %c0_i32, %c0_i32_0 : i32, i32
  }
  func.func @transform_10(%arg0: i32) -> (i32, i32) {
    %c0_i32 = arith.constant 0 : i32
    %c0_i32_0 = arith.constant 0 : i32
    %c0_i32_1 = arith.constant 0 : i32
    return %c0_i32, %c0_i32_0 : i32, i32
  }
  func.func @transform_11(%arg0: i32) -> (i32, i32) {
    %c0_i32 = arith.constant 0 : i32
    %c0_i32_0 = arith.constant 0 : i32
    %c0_i32_1 = arith.constant 0 : i32
    return %c0_i32, %c0_i32_0 : i32, i32
  }
  func.func @transform_12(%arg0: i32) -> (i32, i32) {
    %c0_i32 = arith.constant 0 : i32
    %c0_i32_0 = arith.constant 0 : i32
    %c0_i32_1 = arith.constant 0 : i32
    return %c0_i32, %c0_i32_0 : i32, i32
  }
  func.func @transform_13(%arg0: i32) -> (i32, i32) {
    %c0_i32 = arith.constant 0 : i32
    %c0_i32_0 = arith.constant 0 : i32
    %c0_i32_1 = arith.constant 0 : i32
    return %c0_i32, %c0_i32_0 : i32, i32
  }
  func.func @transform_14(%arg0: i32) -> (i32, i32) {
    %c0_i32 = arith.constant 0 : i32
    %c0_i32_0 = arith.constant 0 : i32
    %c0_i32_1 = arith.constant 0 : i32
    return %c0_i32, %c0_i32_0 : i32, i32
  }
}

module attributes {stable_mosaic.version = 11 : i64} {
  func.func @user_embedding_kernel(%arg0: i32, %arg1: memref<8x1xf32, #tpu.memory_space<vmem>>, %arg2: memref<8x1024xf32, #tpu.memory_space<vmem>>, %arg3: memref<1024x512xf32, #tpu.memory_space<vmem>>, %arg4: memref<1x512xf32, #tpu.memory_space<vmem>>, %arg5: memref<1x512xf32, #tpu.memory_space<vmem>>, %arg6: memref<1x512xf32, #tpu.memory_space<vmem>>, %arg7: memref<512x512xf32, #tpu.memory_space<vmem>>, %arg8: memref<1x512xf32, #tpu.memory_space<vmem>>, %arg9: memref<1x512xf32, #tpu.memory_space<vmem>>, %arg10: memref<1x512xf32, #tpu.memory_space<vmem>>, %arg11: memref<512x1024xf32, #tpu.memory_space<vmem>>, %arg12: memref<1x1024xf32, #tpu.memory_space<vmem>>, %arg13: memref<1x1024xf32, #tpu.memory_space<vmem>>, %arg14: memref<1x1024xf32, #tpu.memory_space<vmem>>, %arg15: memref<1x1024xf32, #tpu.memory_space<vmem>>, %arg16: memref<1x1024xf32, #tpu.memory_space<vmem>>, %arg17: memref<1x1xf32, #tpu.memory_space<vmem>>) attributes {dimension_semantics = [#tpu.dimension_semantics<arbitrary>], iteration_bounds = array<i64: 1>, scalar_prefetch = 0 : i64, scratch_operands = 2 : i64, tpu.core_type = #tpu.core_type<tc>, window_params = [{transform_indices = @transform_0, window_bounds = array<i64: 8, 1>}, {transform_indices = @transform_1, window_bounds = array<i64: 8, 1024>}, {pipeline_mode = #tpu.pipeline_mode<synchronous>, transform_indices = @transform_2, window_bounds = array<i64: 1024, 512>}, {pipeline_mode = #tpu.pipeline_mode<synchronous>, transform_indices = @transform_3, window_bounds = array<i64: 1, 512>}, {pipeline_mode = #tpu.pipeline_mode<synchronous>, transform_indices = @transform_4, window_bounds = array<i64: 1, 512>}, {pipeline_mode = #tpu.pipeline_mode<synchronous>, transform_indices = @transform_5, window_bounds = array<i64: 1, 512>}, {pipeline_mode = #tpu.pipeline_mode<synchronous>, transform_indices = @transform_6, window_bounds = array<i64: 512, 512>}, {pipeline_mode = #tpu.pipeline_mode<synchronous>, transform_indices = @transform_7, window_bounds = array<i64: 1, 512>}, {pipeline_mode = #tpu.pipeline_mode<synchronous>, transform_indices = @transform_8, window_bounds = array<i64: 1, 512>}, {pipeline_mode = #tpu.pipeline_mode<synchronous>, transform_indices = @transform_9, window_bounds = array<i64: 1, 512>}, {pipeline_mode = #tpu.pipeline_mode<synchronous>, transform_indices = @transform_10, window_bounds = array<i64: 512, 1024>}, {pipeline_mode = #tpu.pipeline_mode<synchronous>, transform_indices = @transform_11, window_bounds = array<i64: 1, 1024>}, {pipeline_mode = #tpu.pipeline_mode<synchronous>, transform_indices = @transform_12, window_bounds = array<i64: 1, 1024>}, {pipeline_mode = #tpu.pipeline_mode<synchronous>, transform_indices = @transform_13, window_bounds = array<i64: 1, 1024>}, {pipeline_mode = #tpu.pipeline_mode<synchronous>, transform_indices = @transform_14, window_bounds = array<i64: 1, 1024>}]} {
    %c0_i32 = arith.constant 0 : i32
    %0 = arith.cmpi eq, %arg0, %c0_i32 : i32
    %1 = arith.extui %0 : i1 to i32
    %c0_i32_0 = arith.constant 0 : i32
    %2 = arith.cmpi ne, %1, %c0_i32_0 : i32
    scf.if %2 {
      %cst_15 = arith.constant 0.000000e+00 : f32
      %20 = vector.broadcast %cst_15 : f32 to vector<1x1024xf32>
      %c0_16 = arith.constant 0 : index
      %c0_17 = arith.constant 0 : index
      %21 = vector.load %arg16[%c0_16, %c0_17] : memref<1x1024xf32, #tpu.memory_space<vmem>>, vector<1x1024xf32>
      tpu.vector_store %arg16[%c0_16, %c0_17], %20 {strides = array<i32>} : memref<1x1024xf32, #tpu.memory_space<vmem>>, vector<1x1024xf32>,
      %cst_18 = arith.constant 0.000000e+00 : f32
      %22 = vector.broadcast %cst_18 : f32 to vector<1x1xf32>
      %c0_19 = arith.constant 0 : index
      %c0_20 = arith.constant 0 : index
      %23 = vector.load %arg17[%c0_19, %c0_20] : memref<1x1xf32, #tpu.memory_space<vmem>>, vector<1x1xf32>
      tpu.vector_store %arg17[%c0_19, %c0_20], %22 {strides = array<i32>} : memref<1x1xf32, #tpu.memory_space<vmem>>, vector<1x1xf32>,
    } else {
    }
    %c0 = arith.constant 0 : index
    %c0_1 = arith.constant 0 : index
    %3 = vector.load %arg2[%c0, %c0_1] : memref<8x1024xf32, #tpu.memory_space<vmem>>, vector<8x1024xf32>
    %c0_2 = arith.constant 0 : index
    %c0_3 = arith.constant 0 : index
    %4 = vector.load %arg1[%c0_2, %c0_3] : memref<8x1xf32, #tpu.memory_space<vmem>>, vector<8x1xf32>
    %c0_4 = arith.constant 0 : index
    %c0_5 = arith.constant 0 : index
    %5 = vector.load %arg16[%c0_4, %c0_5] : memref<1x1024xf32, #tpu.memory_space<vmem>>, vector<1x1024xf32>
    %6 = vector.broadcast %4 : vector<8x1xf32> to vector<8x1024xf32>
    %7 = arith.mulf %3, %6 : vector<8x1024xf32>
    %cst = arith.constant dense<0.000000e+00> : vector<1024xf32>
    %8 = vector.multi_reduction <add>, %7, %cst [0] : vector<8x1024xf32> to vector<1024xf32>
    %9 = vector.shape_cast %8 : vector<1024xf32> to vector<1x1024xf32>
    %10 = arith.addf %5, %9 : vector<1x1024xf32>
    %c0_6 = arith.constant 0 : index
    %c0_7 = arith.constant 0 : index
    %11 = vector.load %arg16[%c0_6, %c0_7] : memref<1x1024xf32, #tpu.memory_space<vmem>>, vector<1x1024xf32>
    tpu.vector_store %arg16[%c0_6, %c0_7], %10 {strides = array<i32>} : memref<1x1024xf32, #tpu.memory_space<vmem>>, vector<1x1024xf32>,
    %c0_8 = arith.constant 0 : index
    %c0_9 = arith.constant 0 : index
    %12 = vector.load %arg17[%c0_8, %c0_9] : memref<1x1xf32, #tpu.memory_space<vmem>>, vector<1x1xf32>
    %cst_10 = arith.constant dense<0.000000e+00> : vector<1xf32>
    %13 = vector.multi_reduction <add>, %4, %cst_10 [0] : vector<8x1xf32> to vector<1xf32>
    %14 = vector.shape_cast %13 : vector<1xf32> to vector<1x1xf32>
    %15 = arith.addf %12, %14 : vector<1x1xf32>
    %c0_11 = arith.constant 0 : index
    %c0_12 = arith.constant 0 : index
    %16 = vector.load %arg17[%c0_11, %c0_12] : memref<1x1xf32, #tpu.memory_space<vmem>>, vector<1x1xf32>
    tpu.vector_store %arg17[%c0_11, %c0_12], %15 {strides = array<i32>} : memref<1x1xf32, #tpu.memory_space<vmem>>, vector<1x1xf32>,
    %c0_i32_13 = arith.constant 0 : i32
    %17 = arith.cmpi eq, %arg0, %c0_i32_13 : i32
    %18 = arith.extui %17 : i1 to i32
    %c0_i32_14 = arith.constant 0 : i32
    %19 = arith.cmpi ne, %18, %c0_i32_14 : i32
    scf.if %19 {
      %c0_15 = arith.constant 0 : index
      %c0_16 = arith.constant 0 : index
      %20 = vector.load %arg16[%c0_15, %c0_16] : memref<1x1024xf32, #tpu.memory_space<vmem>>, vector<1x1024xf32>
      %c0_17 = arith.constant 0 : index
      %c0_18 = arith.constant 0 : index
      %21 = vector.load %arg17[%c0_17, %c0_18] : memref<1x1xf32, #tpu.memory_space<vmem>>, vector<1x1xf32>
      %22 = vector.broadcast %21 : vector<1x1xf32> to vector<1x1024xf32>
      %23 = arith.divf %20, %22 : vector<1x1024xf32>
      %c0_19 = arith.constant 0 : index
      %c0_20 = arith.constant 0 : index
      %24 = vector.load %arg3[%c0_19, %c0_20] : memref<1024x512xf32, #tpu.memory_space<vmem>>, vector<1024x512xf32>
      %cst_21 = arith.constant dense<0.000000e+00> : vector<1x512xf32>
      %25 = tpu.matmul %23, %24, %cst_21 {dimension_numbers = #tpu.dot_dimension_numbers<[1], [0], [0], [1], [0, 0, 1, 1], [], []>} : vector<1x1024xf32>, vector<1024x512xf32>, vector<1x512xf32> -> vector<1x512xf32>
      %c0_22 = arith.constant 0 : index
      %c0_23 = arith.constant 0 : index
      %26 = vector.load %arg4[%c0_22, %c0_23] : memref<1x512xf32, #tpu.memory_space<vmem>>, vector<1x512xf32>
      %27 = arith.addf %25, %26 : vector<1x512xf32>
      %c0_24 = arith.constant 0 : index
      %c0_25 = arith.constant 0 : index
      %28 = vector.load %arg5[%c0_24, %c0_25] : memref<1x512xf32, #tpu.memory_space<vmem>>, vector<1x512xf32>
      %c0_26 = arith.constant 0 : index
      %c0_27 = arith.constant 0 : index
      %29 = vector.load %arg6[%c0_26, %c0_27] : memref<1x512xf32, #tpu.memory_space<vmem>>, vector<1x512xf32>
      %cst_28 = arith.constant dense<0.000000e+00> : vector<1xf32>
      %30 = vector.multi_reduction <add>, %27, %cst_28 [1] : vector<1x512xf32> to vector<1xf32>
      %31 = vector.shape_cast %30 : vector<1xf32> to vector<1x1xf32>
      %cst_29 = arith.constant 5.120000e+02 : f32
      %32 = vector.broadcast %cst_29 : f32 to vector<1x1xf32>
      %33 = arith.divf %31, %32 : vector<1x1xf32>
      %34 = vector.broadcast %33 : vector<1x1xf32> to vector<1x512xf32>
      %35 = arith.subf %27, %34 : vector<1x512xf32>
      %36 = arith.mulf %35, %35 : vector<1x512xf32>
      %cst_30 = arith.constant dense<0.000000e+00> : vector<1xf32>
      %37 = vector.multi_reduction <add>, %36, %cst_30 [1] : vector<1x512xf32> to vector<1xf32>
      %38 = vector.shape_cast %37 : vector<1xf32> to vector<1x1xf32>
      %cst_31 = arith.constant 5.120000e+02 : f32
      %39 = vector.broadcast %cst_31 : f32 to vector<1x1xf32>
      %40 = arith.divf %38, %39 : vector<1x1xf32>
      %cst_32 = arith.constant 9.99999974E-6 : f32
      %41 = vector.broadcast %cst_32 : f32 to vector<1x1xf32>
      %42 = arith.addf %40, %41 : vector<1x1xf32>
      %43 = math.rsqrt %42 : vector<1x1xf32>
      %44 = vector.broadcast %43 : vector<1x1xf32> to vector<1x512xf32>
      %45 = arith.mulf %35, %44 : vector<1x512xf32>
      %46 = arith.mulf %45, %28 : vector<1x512xf32>
      %47 = arith.addf %46, %29 : vector<1x512xf32>
      %cst_33 = arith.constant 0.000000e+00 : f32
      %48 = vector.broadcast %cst_33 : f32 to vector<1x512xf32>
      %49 = arith.maximumf %47, %48 : vector<1x512xf32>
      %c0_34 = arith.constant 0 : index
      %c0_35 = arith.constant 0 : index
      %50 = vector.load %arg7[%c0_34, %c0_35] : memref<512x512xf32, #tpu.memory_space<vmem>>, vector<512x512xf32>
      %cst_36 = arith.constant dense<0.000000e+00> : vector<1x512xf32>
      %51 = tpu.matmul %49, %50, %cst_36 {dimension_numbers = #tpu.dot_dimension_numbers<[1], [0], [0], [1], [0, 0, 1, 1], [], []>} : vector<1x512xf32>, vector<512x512xf32>, vector<1x512xf32> -> vector<1x512xf32>
      %c0_37 = arith.constant 0 : index
      %c0_38 = arith.constant 0 : index
      %52 = vector.load %arg8[%c0_37, %c0_38] : memref<1x512xf32, #tpu.memory_space<vmem>>, vector<1x512xf32>
      %53 = arith.addf %51, %52 : vector<1x512xf32>
      %c0_39 = arith.constant 0 : index
      %c0_40 = arith.constant 0 : index
      %54 = vector.load %arg9[%c0_39, %c0_40] : memref<1x512xf32, #tpu.memory_space<vmem>>, vector<1x512xf32>
      %c0_41 = arith.constant 0 : index
      %c0_42 = arith.constant 0 : index
      %55 = vector.load %arg10[%c0_41, %c0_42] : memref<1x512xf32, #tpu.memory_space<vmem>>, vector<1x512xf32>
      %cst_43 = arith.constant dense<0.000000e+00> : vector<1xf32>
      %56 = vector.multi_reduction <add>, %53, %cst_43 [1] : vector<1x512xf32> to vector<1xf32>
      %57 = vector.shape_cast %56 : vector<1xf32> to vector<1x1xf32>
      %cst_44 = arith.constant 5.120000e+02 : f32
      %58 = vector.broadcast %cst_44 : f32 to vector<1x1xf32>
      %59 = arith.divf %57, %58 : vector<1x1xf32>
      %60 = vector.broadcast %59 : vector<1x1xf32> to vector<1x512xf32>
      %61 = arith.subf %53, %60 : vector<1x512xf32>
      %62 = arith.mulf %61, %61 : vector<1x512xf32>
      %cst_45 = arith.constant dense<0.000000e+00> : vector<1xf32>
      %63 = vector.multi_reduction <add>, %62, %cst_45 [1] : vector<1x512xf32> to vector<1xf32>
      %64 = vector.shape_cast %63 : vector<1xf32> to vector<1x1xf32>
      %cst_46 = arith.constant 5.120000e+02 : f32
      %65 = vector.broadcast %cst_46 : f32 to vector<1x1xf32>
      %66 = arith.divf %64, %65 : vector<1x1xf32>
      %cst_47 = arith.constant 9.99999974E-6 : f32
      %67 = vector.broadcast %cst_47 : f32 to vector<1x1xf32>
      %68 = arith.addf %66, %67 : vector<1x1xf32>
      %69 = math.rsqrt %68 : vector<1x1xf32>
      %70 = vector.broadcast %69 : vector<1x1xf32> to vector<1x512xf32>
      %71 = arith.mulf %61, %70 : vector<1x512xf32>
      %72 = arith.mulf %71, %54 : vector<1x512xf32>
      %73 = arith.addf %72, %55 : vector<1x512xf32>
      %cst_48 = arith.constant 0.000000e+00 : f32
      %74 = vector.broadcast %cst_48 : f32 to vector<1x512xf32>
      %75 = arith.maximumf %73, %74 : vector<1x512xf32>
      %c0_49 = arith.constant 0 : index
      %c0_50 = arith.constant 0 : index
      %76 = vector.load %arg11[%c0_49, %c0_50] : memref<512x1024xf32, #tpu.memory_space<vmem>>, vector<512x1024xf32>
      %cst_51 = arith.constant dense<0.000000e+00> : vector<1x1024xf32>
      %77 = tpu.matmul %75, %76, %cst_51 {dimension_numbers = #tpu.dot_dimension_numbers<[1], [0], [0], [1], [0, 0, 1, 1], [], []>} : vector<1x512xf32>, vector<512x1024xf32>, vector<1x1024xf32> -> vector<1x1024xf32>
      %c0_52 = arith.constant 0 : index
      %c0_53 = arith.constant 0 : index
      %78 = vector.load %arg12[%c0_52, %c0_53] : memref<1x1024xf32, #tpu.memory_space<vmem>>, vector<1x1024xf32>
      %79 = arith.addf %77, %78 : vector<1x1024xf32>
      %c0_54 = arith.constant 0 : index
      %c0_55 = arith.constant 0 : index
      %80 = vector.load %arg13[%c0_54, %c0_55] : memref<1x1024xf32, #tpu.memory_space<vmem>>, vector<1x1024xf32>
      %c0_56 = arith.constant 0 : index
      %c0_57 = arith.constant 0 : index
      %81 = vector.load %arg14[%c0_56, %c0_57] : memref<1x1024xf32, #tpu.memory_space<vmem>>, vector<1x1024xf32>
      %cst_58 = arith.constant dense<0.000000e+00> : vector<1xf32>
      %82 = vector.multi_reduction <add>, %79, %cst_58 [1] : vector<1x1024xf32> to vector<1xf32>
      %83 = vector.shape_cast %82 : vector<1xf32> to vector<1x1xf32>
      %cst_59 = arith.constant 1.024000e+03 : f32
      %84 = vector.broadcast %cst_59 : f32 to vector<1x1xf32>
      %85 = arith.divf %83, %84 : vector<1x1xf32>
      %86 = vector.broadcast %85 : vector<1x1xf32> to vector<1x1024xf32>
      %87 = arith.subf %79, %86 : vector<1x1024xf32>
      %88 = arith.mulf %87, %87 : vector<1x1024xf32>
      %cst_60 = arith.constant dense<0.000000e+00> : vector<1xf32>
      %89 = vector.multi_reduction <add>, %88, %cst_60 [1] : vector<1x1024xf32> to vector<1xf32>
      %90 = vector.shape_cast %89 : vector<1xf32> to vector<1x1xf32>
      %cst_61 = arith.constant 1.024000e+03 : f32
      %91 = vector.broadcast %cst_61 : f32 to vector<1x1xf32>
      %92 = arith.divf %90, %91 : vector<1x1xf32>
      %cst_62 = arith.constant 9.99999974E-6 : f32
      %93 = vector.broadcast %cst_62 : f32 to vector<1x1xf32>
      %94 = arith.addf %92, %93 : vector<1x1xf32>
      %95 = math.rsqrt %94 : vector<1x1xf32>
      %96 = vector.broadcast %95 : vector<1x1xf32> to vector<1x1024xf32>
      %97 = arith.mulf %87, %96 : vector<1x1024xf32>
      %98 = arith.mulf %97, %80 : vector<1x1024xf32>
      %99 = arith.addf %98, %81 : vector<1x1024xf32>
      %c0_63 = arith.constant 0 : index
      %c0_64 = arith.constant 0 : index
      %100 = vector.load %arg15[%c0_63, %c0_64] : memref<1x1024xf32, #tpu.memory_space<vmem>>, vector<1x1024xf32>
      tpu.vector_store %arg15[%c0_63, %c0_64], %99 {strides = array<i32>} : memref<1x1024xf32, #tpu.memory_space<vmem>>, vector<1x1024xf32>,
    } else {
    }
    return
  }
  func.func @transform_0(%arg0: i32) -> (i32, i32) {
    %c0_i32 = arith.constant 0 : i32
    %c0_i32_0 = arith.constant 0 : i32
    return %arg0, %c0_i32 : i32, i32
  }
  func.func @transform_1(%arg0: i32) -> (i32, i32) {
    %c0_i32 = arith.constant 0 : i32
    %c0_i32_0 = arith.constant 0 : i32
    return %arg0, %c0_i32 : i32, i32
  }
  func.func @transform_2(%arg0: i32) -> (i32, i32) {
    %c0_i32 = arith.constant 0 : i32
    %c0_i32_0 = arith.constant 0 : i32
    %c0_i32_1 = arith.constant 0 : i32
    return %c0_i32, %c0_i32_0 : i32, i32
  }
  func.func @transform_3(%arg0: i32) -> (i32, i32) {
    %c0_i32 = arith.constant 0 : i32
    %c0_i32_0 = arith.constant 0 : i32
    %c0_i32_1 = arith.constant 0 : i32
    return %c0_i32, %c0_i32_0 : i32, i32
  }
  func.func @transform_4(%arg0: i32) -> (i32, i32) {
    %c0_i32 = arith.constant 0 : i32
    %c0_i32_0 = arith.constant 0 : i32
    %c0_i32_1 = arith.constant 0 : i32
    return %c0_i32, %c0_i32_0 : i32, i32
  }
  func.func @transform_5(%arg0: i32) -> (i32, i32) {
    %c0_i32 = arith.constant 0 : i32
    %c0_i32_0 = arith.constant 0 : i32
    %c0_i32_1 = arith.constant 0 : i32
    return %c0_i32, %c0_i32_0 : i32, i32
  }
  func.func @transform_6(%arg0: i32) -> (i32, i32) {
    %c0_i32 = arith.constant 0 : i32
    %c0_i32_0 = arith.constant 0 : i32
    %c0_i32_1 = arith.constant 0 : i32
    return %c0_i32, %c0_i32_0 : i32, i32
  }
  func.func @transform_7(%arg0: i32) -> (i32, i32) {
    %c0_i32 = arith.constant 0 : i32
    %c0_i32_0 = arith.constant 0 : i32
    %c0_i32_1 = arith.constant 0 : i32
    return %c0_i32, %c0_i32_0 : i32, i32
  }
  func.func @transform_8(%arg0: i32) -> (i32, i32) {
    %c0_i32 = arith.constant 0 : i32
    %c0_i32_0 = arith.constant 0 : i32
    %c0_i32_1 = arith.constant 0 : i32
    return %c0_i32, %c0_i32_0 : i32, i32
  }
  func.func @transform_9(%arg0: i32) -> (i32, i32) {
    %c0_i32 = arith.constant 0 : i32
    %c0_i32_0 = arith.constant 0 : i32
    %c0_i32_1 = arith.constant 0 : i32
    return %c0_i32, %c0_i32_0 : i32, i32
  }
  func.func @transform_10(%arg0: i32) -> (i32, i32) {
    %c0_i32 = arith.constant 0 : i32
    %c0_i32_0 = arith.constant 0 : i32
    %c0_i32_1 = arith.constant 0 : i32
    return %c0_i32, %c0_i32_0 : i32, i32
  }
  func.func @transform_11(%arg0: i32) -> (i32, i32) {
    %c0_i32 = arith.constant 0 : i32
    %c0_i32_0 = arith.constant 0 : i32
    %c0_i32_1 = arith.constant 0 : i32
    return %c0_i32, %c0_i32_0 : i32, i32
  }
  func.func @transform_12(%arg0: i32) -> (i32, i32) {
    %c0_i32 = arith.constant 0 : i32
    %c0_i32_0 = arith.constant 0 : i32
    %c0_i32_1 = arith.constant 0 : i32
    return %c0_i32, %c0_i32_0 : i32, i32
  }
  func.func @transform_13(%arg0: i32) -> (i32, i32) {
    %c0_i32 = arith.constant 0 : i32
    %c0_i32_0 = arith.constant 0 : i32
    %c0_i32_1 = arith.constant 0 : i32
    return %c0_i32, %c0_i32_0 : i32, i32
  }
  func.func @transform_14(%arg0: i32) -> (i32, i32) {
    %c0_i32 = arith.constant 0 : i32
    %c0_i32_0 = arith.constant 0 : i32
    %c0_i32_1 = arith.constant 0 : i32
    return %c0_i32, %c0_i32_0 : i32, i32
  }
}

</mosaic_0001>

<llo_original>
// kernel: _call_kernel.1
$region0: #{_call_kernel.1}
  #allocation0 [shape = 'u32[]', space=smem, size = 0x4, offset = 0x4, fixed_abs, tag = 'smem constant byte address 0x4 - core index']
  #allocation1 [shape = 'u32[72,128]{1,0:T(1,128)}', space=vmem, size = 0x9000, scoped, tag = 'internal scratch']
  #allocation2 [shape = 'f32[1,1024]{1,0:T(1,128)}', space=vmem, size = 0x1000, scoped, tag = 'scratch operand']
  #allocation3 [shape = 'f32[1,1]{1,0:T(1,128)}', space=vmem, size = 0x200, scoped, tag = 'scratch operand']
  %s0 = inlined_call_operand.vmem [shape: f32[8,1], index: 0, kind: input, shape index: {}]
  %s1 = inlined_call_operand.hbm [shape: f32[8,1024], index: 1, kind: input, shape index: {}]
  %s2 = inlined_call_operand.hbm [shape: f32[1024,512], index: 2, kind: input, shape index: {}]
  %s3 = inlined_call_operand.hbm [shape: f32[1,512], index: 3, kind: input, shape index: {}]
  %s4 = inlined_call_operand.hbm [shape: f32[1,512], index: 4, kind: input, shape index: {}]
  %s5 = inlined_call_operand.hbm [shape: f32[1,512], index: 5, kind: input, shape index: {}]
  %s6 = inlined_call_operand.hbm [shape: f32[512,512], index: 6, kind: input, shape index: {}]
  %s7 = inlined_call_operand.hbm [shape: f32[1,512], index: 7, kind: input, shape index: {}]
  %s8 = inlined_call_operand.hbm [shape: f32[1,512], index: 8, kind: input, shape index: {}]
  %s9 = inlined_call_operand.hbm [shape: f32[1,512], index: 9, kind: input, shape index: {}]
  %s10 = inlined_call_operand.hbm [shape: f32[512,1024], index: 10, kind: input, shape index: {}]
  %s11 = inlined_call_operand.hbm [shape: f32[1,1024], index: 11, kind: input, shape index: {}]
  %s12 = inlined_call_operand.hbm [shape: f32[1,1024], index: 12, kind: input, shape index: {}]
  %s13 = inlined_call_operand.hbm [shape: f32[1,1024], index: 13, kind: input, shape index: {}]
  %s14 = inlined_call_operand.hbm [shape: f32[1,1024], index: 14, kind: output, shape index: {}]
  %s15 = sld [smem:[#allocation0]]
  $region126: #{_call_kernel.1} parent=0
    _
  %s17 = ssub.s32 1, %s15
  %s18 = scalar_select 0, %s17, %s15
  $region1: #{_call_kernel.1} parent=0
    #allocation4 [shape = 'u8[32768]{0}', space=vmem, size = 0x8000, scoped, tag = 'input window, operand 1, single buffered']
    #allocation5 [shape = 's32[1]{0}', space=sflag, size = 0x4, scoped, tag = 'scoped memory for _call_kernel.1']
    #allocation6 [shape = 's32[1]{0}', space=sflag, size = 0x4, scoped, tag = 'scoped memory for _call_kernel.1']
    #allocation7 [shape = 'u8[2097152]{0}', space=vmem, size = 0x200000, scoped, tag = 'input window, operand 2, single buffered']
    #allocation8 [shape = 's32[1]{0}', space=sflag, size = 0x4, scoped, tag = 'scoped memory for _call_kernel.1']
    #allocation9 [shape = 'u8[2048]{0}', space=vmem, size = 0x800, scoped, tag = 'input window, operand 3, single buffered']
    #allocation10 [shape = 'u8[2048]{0}', space=vmem, size = 0x800, scoped, tag = 'input window, operand 4, single buffered']
    #allocation11 [shape = 's32[1]{0}', space=sflag, size = 0x4, scoped, tag = 'scoped memory for _call_kernel.1']
    #allocation12 [shape = 'u8[2048]{0}', space=vmem, size = 0x800, scoped, tag = 'input window, operand 5, single buffered']
    #allocation13 [shape = 'u8[1048576]{0}', space=vmem, size = 0x100000, scoped, tag = 'input window, operand 6, single buffered']
    #allocation14 [shape = 's32[1]{0}', space=sflag, size = 0x4, scoped, tag = 'scoped memory for _call_kernel.1']
    #allocation15 [shape = 'u8[2048]{0}', space=vmem, size = 0x800, scoped, tag = 'input window, operand 7, single buffered']
    #allocation16 [shape = 'u8[2048]{0}', space=vmem, size = 0x800, scoped, tag = 'input window, operand 8, single buffered']
    #allocation17 [shape = 's32[1]{0}', space=sflag, size = 0x4, scoped, tag = 'scoped memory for _call_kernel.1']
    #allocation18 [shape = 'u8[2048]{0}', space=vmem, size = 0x800, scoped, tag = 'input window, operand 9, single buffered']
    #allocation19 [shape = 'u8[2097152]{0}', space=vmem, size = 0x200000, scoped, tag = 'input window, operand 10, single buffered']
    #allocation20 [shape = 's32[1]{0}', space=sflag, size = 0x4, scoped, tag = 'scoped memory for _call_kernel.1']
    #allocation21 [shape = 'u8[4096]{0}', space=vmem, size = 0x1000, scoped, tag = 'input window, operand 11, single buffered']
    #allocation22 [shape = 'u8[4096]{0}', space=vmem, size = 0x1000, scoped, tag = 'input window, operand 12, single buffered']
    #allocation23 [shape = 's32[1]{0}', space=sflag, size = 0x4, scoped, tag = 'scoped memory for _call_kernel.1']
    #allocation24 [shape = 'u8[4096]{0}', space=vmem, size = 0x1000, scoped, tag = 'input window, operand 13, single buffered']
    #allocation25 [shape = 'u8[4096]{0}', space=vmem, size = 0x1000, scoped, tag = 'output window, operand 0, single buffered']
    %19 = vsyncpa [#allocation5], 0
    %20 = vsyncpa [#allocation8], 0
    %21 = vsyncpa [#allocation11], 0
    %22 = vsyncpa [#allocation14], 0
    %23 = vsyncpa [#allocation17], 0
    %24 = vsyncpa [#allocation20], 0
    %25 = vsyncpa [#allocation23], 0
    %26 = vsyncpa [#allocation6], 0
    // Predicated region
    $region2: #{_call_kernel.1} parent=1 // pred_check
      _
    $region3: #{_call_kernel.1} parent=1 // pred_check_branch
      %28 = sbr.rel (0) target = $region5
    $region4: #{_call_kernel.1} parent=1 // pred_region
      _
    $region5: #{_call_kernel.1} parent=1 // pred_fallthru
      _
    // Predicated region
    $region6: #{_call_kernel.1} parent=1 // pred_check
      _
    $region7: #{_call_kernel.1} parent=1 // pred_check_branch
      %30 = sbr.rel (0) target = $region9
    $region8: #{_call_kernel.1} parent=1 // pred_region
      %32 = vsyncadd [#allocation5], 0
      %s34 = sshll.u32 %s1, 4
      %s35 = int_to_ptr.hbm [resolvable:$true] %s34
      %s36 = sshll.u32 [#allocation4], 4
      %s37 = int_to_ptr.vmem [resolvable:$true] %s36
      %39 = dma.hbm_to_vmem [thread:$0]  %s35, 1024, %s37, [#allocation5]
    $region9: #{_call_kernel.1} parent=1 // pred_fallthru
      _
    // Predicated region
    $region10: #{_call_kernel.1} parent=1 // pred_check
      _
    $region11: #{_call_kernel.1} parent=1 // pred_check_branch
      %41 = sbr.rel (0) target = $region13
    $region12: #{_call_kernel.1} parent=1 // pred_region
      %43 = vsyncadd [#allocation8], 0
      %s44 = sshll.u32 %s2, 4
      %s45 = int_to_ptr.hbm [resolvable:$true] %s44
      %s46 = sshll.u32 [#allocation7], 4
      %s47 = int_to_ptr.vmem [resolvable:$true] %s46
      %52 = dma.hbm_to_vmem [thread:$0]  %s45, 65536, %s47, [#allocation8], 512, 512, 32
    $region13: #{_call_kernel.1} parent=1 // pred_fallthru
      _
    // Predicated region
    $region14: #{_call_kernel.1} parent=1 // pred_check
      _
    $region15: #{_call_kernel.1} parent=1 // pred_check_branch
      %54 = sbr.rel (0) target = $region17
    $region16: #{_call_kernel.1} parent=1 // pred_region
      %56 = vsyncadd [#allocation8], 0
      %s58 = sshll.u32 %s3, 4
      %s59 = int_to_ptr.hbm [resolvable:$true] %s58
      %s60 = sshll.u32 [#allocation9], 4
      %s61 = int_to_ptr.vmem [resolvable:$true] %s60
      %63 = dma.hbm_to_vmem [thread:$0]  %s59, 64, %s61, [#allocation8]
    $region17: #{_call_kernel.1} parent=1 // pred_fallthru
      _
    // Predicated region
    $region18: #{_call_kernel.1} parent=1 // pred_check
      _
    $region19: #{_call_kernel.1} parent=1 // pred_check_branch
      %65 = sbr.rel (0) target = $region21
    $region20: #{_call_kernel.1} parent=1 // pred_region
      %67 = vsyncadd [#allocation11], 0
      %s69 = sshll.u32 %s4, 4
      %s70 = int_to_ptr.hbm [resolvable:$true] %s69
      %s71 = sshll.u32 [#allocation10], 4
      %s72 = int_to_ptr.vmem [resolvable:$true] %s71
      %74 = dma.hbm_to_vmem [thread:$0]  %s70, 64, %s72, [#allocation11]
    $region21: #{_call_kernel.1} parent=1 // pred_fallthru
      _
    // Predicated region
    $region22: #{_call_kernel.1} parent=1 // pred_check
      _
    $region23: #{_call_kernel.1} parent=1 // pred_check_branch
      %76 = sbr.rel (0) target = $region25
    $region24: #{_call_kernel.1} parent=1 // pred_region
      %78 = vsyncadd [#allocation11], 0
      %s80 = sshll.u32 %s5, 4
      %s81 = int_to_ptr.hbm [resolvable:$true] %s80
      %s82 = sshll.u32 [#allocation12], 4
      %s83 = int_to_ptr.vmem [resolvable:$true] %s82
      %85 = dma.hbm_to_vmem [thread:$0]  %s81, 64, %s83, [#allocation11]
    $region25: #{_call_kernel.1} parent=1 // pred_fallthru
      _
    // Predicated region
    $region26: #{_call_kernel.1} parent=1 // pred_check
      _
    $region27: #{_call_kernel.1} parent=1 // pred_check_branch
      %87 = sbr.rel (0) target = $region29
    $region28: #{_call_kernel.1} parent=1 // pred_region
      %89 = vsyncadd [#allocation14], 0
      %s90 = sshll.u32 %s6, 4
      %s91 = int_to_ptr.hbm [resolvable:$true] %s90
      %s92 = sshll.u32 [#allocation13], 4
      %s93 = int_to_ptr.vmem [resolvable:$true] %s92
      %98 = dma.hbm_to_vmem [thread:$0]  %s91, 32768, %s93, [#allocation14], 512, 512, 32
    $region29: #{_call_kernel.1} parent=1 // pred_fallthru
      _
    // Predicated region
    $region30: #{_call_kernel.1} parent=1 // pred_check
      _
    $region31: #{_call_kernel.1} parent=1 // pred_check_branch
      %100 = sbr.rel (0) target = $region33
    $region32: #{_call_kernel.1} parent=1 // pred_region
      %102 = vsyncadd [#allocation14], 0
      %s104 = sshll.u32 %s7, 4
      %s105 = int_to_ptr.hbm [resolvable:$true] %s104
      %s106 = sshll.u32 [#allocation15], 4
      %s107 = int_to_ptr.vmem [resolvable:$true] %s106
      %109 = dma.hbm_to_vmem [thread:$0]  %s105, 64, %s107, [#allocation14]
    $region33: #{_call_kernel.1} parent=1 // pred_fallthru
      _
    // Predicated region
    $region34: #{_call_kernel.1} parent=1 // pred_check
      _
    $region35: #{_call_kernel.1} parent=1 // pred_check_branch
      %111 = sbr.rel (0) target = $region37
    $region36: #{_call_kernel.1} parent=1 // pred_region
      %113 = vsyncadd [#allocation17], 0
      %s115 = sshll.u32 %s8, 4
      %s116 = int_to_ptr.hbm [resolvable:$true] %s115
      %s117 = sshll.u32 [#allocation16], 4
      %s118 = int_to_ptr.vmem [resolvable:$true] %s117
      %120 = dma.hbm_to_vmem [thread:$0]  %s116, 64, %s118, [#allocation17]
    $region37: #{_call_kernel.1} parent=1 // pred_fallthru
      _
    // Predicated region
    $region38: #{_call_kernel.1} parent=1 // pred_check
      _
    $region39: #{_call_kernel.1} parent=1 // pred_check_branch
      %122 = sbr.rel (0) target = $region41
    $region40: #{_call_kernel.1} parent=1 // pred_region
      %124 = vsyncadd [#allocation17], 0
      %s126 = sshll.u32 %s9, 4
      %s127 = int_to_ptr.hbm [resolvable:$true] %s126
      %s128 = sshll.u32 [#allocation18], 4
      %s129 = int_to_ptr.vmem [resolvable:$true] %s128
      %131 = dma.hbm_to_vmem [thread:$0]  %s127, 64, %s129, [#allocation17]
    $region41: #{_call_kernel.1} parent=1 // pred_fallthru
      _
    // Predicated region
    $region42: #{_call_kernel.1} parent=1 // pred_check
      _
    $region43: #{_call_kernel.1} parent=1 // pred_check_branch
      %133 = sbr.rel (0) target = $region45
    $region44: #{_call_kernel.1} parent=1 // pred_region
      %135 = vsyncadd [#allocation20], 0
      %s136 = sshll.u32 %s10, 4
      %s137 = int_to_ptr.hbm [resolvable:$true] %s136
      %s138 = sshll.u32 [#allocation19], 4
      %s139 = int_to_ptr.vmem [resolvable:$true] %s138
      %144 = dma.hbm_to_vmem [thread:$0]  %s137, 65536, %s139, [#allocation20], 1024, 1024, 64
    $region45: #{_call_kernel.1} parent=1 // pred_fallthru
      _
    // Predicated region
    $region46: #{_call_kernel.1} parent=1 // pred_check
      _
    $region47: #{_call_kernel.1} parent=1 // pred_check_branch
      %146 = sbr.rel (0) target = $region49
    $region48: #{_call_kernel.1} parent=1 // pred_region
      %148 = vsyncadd [#allocation20], 0
      %s150 = sshll.u32 %s11, 4
      %s151 = int_to_ptr.hbm [resolvable:$true] %s150
      %s152 = sshll.u32 [#allocation21], 4
      %s153 = int_to_ptr.vmem [resolvable:$true] %s152
      %155 = dma.hbm_to_vmem [thread:$0]  %s151, 128, %s153, [#allocation20]
    $region49: #{_call_kernel.1} parent=1 // pred_fallthru
      _
    // Predicated region
    $region50: #{_call_kernel.1} parent=1 // pred_check
      _
    $region51: #{_call_kernel.1} parent=1 // pred_check_branch
      %157 = sbr.rel (0) target = $region53
    $region52: #{_call_kernel.1} parent=1 // pred_region
      %159 = vsyncadd [#allocation23], 0
      %s161 = sshll.u32 %s12, 4
      %s162 = int_to_ptr.hbm [resolvable:$true] %s161
      %s163 = sshll.u32 [#allocation22], 4
      %s164 = int_to_ptr.vmem [resolvable:$true] %s163
      %166 = dma.hbm_to_vmem [thread:$0]  %s162, 128, %s164, [#allocation23]
    $region53: #{_call_kernel.1} parent=1 // pred_fallthru
      _
    // Predicated region
    $region54: #{_call_kernel.1} parent=1 // pred_check
      _
    $region55: #{_call_kernel.1} parent=1 // pred_check_branch
      %168 = sbr.rel (0) target = $region57
    $region56: #{_call_kernel.1} parent=1 // pred_region
      %170 = vsyncadd [#allocation23], 0
      %s172 = sshll.u32 %s13, 4
      %s173 = int_to_ptr.hbm [resolvable:$true] %s172
      %s174 = sshll.u32 [#allocation24], 4
      %s175 = int_to_ptr.vmem [resolvable:$true] %s174
      %177 = dma.hbm_to_vmem [thread:$0]  %s173, 128, %s175, [#allocation23]
    $region57: #{_call_kernel.1} parent=1 // pred_fallthru
      _
    // Predicated region
    $region58: #{_call_kernel.1} parent=1 // pred_check
      _
    $region59: #{_call_kernel.1} parent=1 // pred_check_branch
      %179 = sbr.rel (0) target = $region61
    $region60: #{_call_kernel.1} parent=1 // pred_region
      %181 = dma.done [#allocation5], 1024
    $region61: #{_call_kernel.1} parent=1 // pred_fallthru
      _
    // Predicated region
    $region62: #{_call_kernel.1} parent=1 // pred_check
      _
    $region63: #{_call_kernel.1} parent=1 // pred_check_branch
      %183 = sbr.rel (0) target = $region65
    $region64: #{_call_kernel.1} parent=1 // pred_region
      %185 = dma.done [#allocation8], 65536
    $region65: #{_call_kernel.1} parent=1 // pred_fallthru
      _
    // Predicated region
    $region66: #{_call_kernel.1} parent=1 // pred_check
      _
    $region67: #{_call_kernel.1} parent=1 // pred_check_branch
      %187 = sbr.rel (0) target = $region69
    $region68: #{_call_kernel.1} parent=1 // pred_region
      %189 = dma.done [#allocation8], 64
    $region69: #{_call_kernel.1} parent=1 // pred_fallthru
      _
    // Predicated region
    $region70: #{_call_kernel.1} parent=1 // pred_check
      _
    $region71: #{_call_kernel.1} parent=1 // pred_check_branch
      %191 = sbr.rel (0) target = $region73
    $region72: #{_call_kernel.1} parent=1 // pred_region
      %193 = dma.done [#allocation11], 64
    $region73: #{_call_kernel.1} parent=1 // pred_fallthru
      _
    // Predicated region
    $region74: #{_call_kernel.1} parent=1 // pred_check
      _
    $region75: #{_call_kernel.1} parent=1 // pred_check_branch
      %195 = sbr.rel (0) target = $region77
    $region76: #{_call_kernel.1} parent=1 // pred_region
      %197 = dma.done [#allocation11], 64
    $region77: #{_call_kernel.1} parent=1 // pred_fallthru
      _
    // Predicated region
    $region78: #{_call_kernel.1} parent=1 // pred_check
      _
    $region79: #{_call_kernel.1} parent=1 // pred_check_branch
      %199 = sbr.rel (0) target = $region81
    $region80: #{_call_kernel.1} parent=1 // pred_region
      %201 = dma.done [#allocation14], 32768
    $region81: #{_call_kernel.1} parent=1 // pred_fallthru
      _
    // Predicated region
    $region82: #{_call_kernel.1} parent=1 // pred_check
      _
    $region83: #{_call_kernel.1} parent=1 // pred_check_branch
      %203 = sbr.rel (0) target = $region85
    $region84: #{_call_kernel.1} parent=1 // pred_region
      %205 = dma.done [#allocation14], 64
    $region85: #{_call_kernel.1} parent=1 // pred_fallthru
      _
    // Predicated region
    $region86: #{_call_kernel.1} parent=1 // pred_check
      _
    $region87: #{_call_kernel.1} parent=1 // pred_check_branch
      %207 = sbr.rel (0) target = $region89
    $region88: #{_call_kernel.1} parent=1 // pred_region
      %209 = dma.done [#allocation17], 64
    $region89: #{_call_kernel.1} parent=1 // pred_fallthru
      _
    // Predicated region
    $region90: #{_call_kernel.1} parent=1 // pred_check
      _
    $region91: #{_call_kernel.1} parent=1 // pred_check_branch
      %211 = sbr.rel (0) target = $region93
    $region92: #{_call_kernel.1} parent=1 // pred_region
      %213 = dma.done [#allocation17], 64
    $region93: #{_call_kernel.1} parent=1 // pred_fallthru
      _
    // Predicated region
    $region94: #{_call_kernel.1} parent=1 // pred_check
      _
    $region95: #{_call_kernel.1} parent=1 // pred_check_branch
      %215 = sbr.rel (0) target = $region97
    $region96: #{_call_kernel.1} parent=1 // pred_region
      %217 = dma.done [#allocation20], 65536
    $region97: #{_call_kernel.1} parent=1 // pred_fallthru
      _
    // Predicated region
    $region98: #{_call_kernel.1} parent=1 // pred_check
      _
    $region99: #{_call_kernel.1} parent=1 // pred_check_branch
      %219 = sbr.rel (0) target = $region101
    $region100: #{_call_kernel.1} parent=1 // pred_region
      %221 = dma.done [#allocation20], 128
    $region101: #{_call_kernel.1} parent=1 // pred_fallthru
      _
    // Predicated region
    $region102: #{_call_kernel.1} parent=1 // pred_check
      _
    $region103: #{_call_kernel.1} parent=1 // pred_check_branch
      %223 = sbr.rel (0) target = $region105
    $region104: #{_call_kernel.1} parent=1 // pred_region
      %225 = dma.done [#allocation23], 128
    $region105: #{_call_kernel.1} parent=1 // pred_fallthru
      _
    // Predicated region
    $region106: #{_call_kernel.1} parent=1 // pred_check
      _
    $region107: #{_call_kernel.1} parent=1 // pred_check_branch
      %227 = sbr.rel (0) target = $region109
    $region108: #{_call_kernel.1} parent=1 // pred_region
      %229 = dma.done [#allocation23], 128
    $region109: #{_call_kernel.1} parent=1 // pred_fallthru
      _
    %p230 = scmp.eq.s32.totalorder 0, 0
    // Predicated region
    $region110: #{_call_kernel.1} parent=1 // pred_check
      %p231 = pneg %p230
    $region111: #{_call_kernel.1} parent=1 // pred_check_branch
      %233 = sbr.rel (%p231) target = $region113
    $region112: #{_call_kernel.1} parent=1 // pred_region
      %234 = vst [vmem:[#allocation2] sm:$0xff] 0.0
      %vm235 = vcmask 0
      %236 = vst.msk [vmem:[#allocation3] sm:$0x1] %vm235, 0.0
    $region113: #{_call_kernel.1} parent=1 // pred_fallthru
      _
    %v237 = vld [vmem:[#allocation4] sm:$0xff]
    %v238 = vld [vmem:[#allocation4 + $0x8] sm:$0xff]
    %v239 = vld [vmem:[#allocation4 + $0x10] sm:$0xff]
    %v240 = vld [vmem:[#allocation4 + $0x18] sm:$0xff]
    %v241 = vld [vmem:[#allocation4 + $0x20] sm:$0xff]
    %v242 = vld [vmem:[#allocation4 + $0x28] sm:$0xff]
    %v243 = vld [vmem:[#allocation4 + $0x30] sm:$0xff]
    %v244 = vld [vmem:[#allocation4 + $0x38] sm:$0xff]
    %v245 = vld [vmem:[%s0] sm:$0xff]
    %v246 = vld [vmem:[#allocation2] sm:$0xff]
    %248 = vset.pattern.permute.xlu0 0
    %249 = vperm.xlu0 %248, %v245
    %v250 = vpop.permute.xlu0 %249
    %v252 = vmul.f32 %v237, %v250
    %v253 = vmul.f32 %v238, %v250
    %v254 = vmul.f32 %v239, %v250
    %v255 = vmul.f32 %v240, %v250
    %v256 = vmul.f32 %v241, %v250
    %v257 = vmul.f32 %v242, %v250
    %v258 = vmul.f32 %v243, %v250
    %v259 = vmul.f32 %v244, %v250
    %v260 = vrot.slane %v252, 4
    %v261 = vadd.f32 %v252, %v260
    %v262 = vrot.slane %v261, 2
    %v263 = vadd.f32 %v261, %v262
    %v264 = vrot.slane %v263, 1
    %v265 = vadd.f32 %v263, %v264
    %v266 = vrot.slane %v253, 4
    %v267 = vadd.f32 %v253, %v266
    %v268 = vrot.slane %v267, 2
    %v269 = vadd.f32 %v267, %v268
    %v270 = vrot.slane %v269, 1
    %v271 = vadd.f32 %v269, %v270
    %v272 = vrot.slane %v254, 4
    %v273 = vadd.f32 %v254, %v272
    %v274 = vrot.slane %v273, 2
    %v275 = vadd.f32 %v273, %v274
    %v276 = vrot.slane %v275, 1
    %v277 = vadd.f32 %v275, %v276
    %v278 = vrot.slane %v255, 4
    %v279 = vadd.f32 %v255, %v278
    %v280 = vrot.slane %v279, 2
    %v281 = vadd.f32 %v279, %v280
    %v282 = vrot.slane %v281, 1
    %v283 = vadd.f32 %v281, %v282
    %v284 = vrot.slane %v256, 4
    %v285 = vadd.f32 %v256, %v284
    %v286 = vrot.slane %v285, 2
    %v287 = vadd.f32 %v285, %v286
    %v288 = vrot.slane %v287, 1
    %v289 = vadd.f32 %v287, %v288
    %v290 = vrot.slane %v257, 4
    %v291 = vadd.f32 %v257, %v290
    %v292 = vrot.slane %v291, 2
    %v293 = vadd.f32 %v291, %v292
    %v294 = vrot.slane %v293, 1
    %v295 = vadd.f32 %v293, %v294
    %v296 = vrot.slane %v258, 4
    %v297 = vadd.f32 %v258, %v296
    %v298 = vrot.slane %v297, 2
    %v299 = vadd.f32 %v297, %v298
    %v300 = vrot.slane %v299, 1
    %v301 = vadd.f32 %v299, %v300
    %v302 = vrot.slane %v259, 4
    %v303 = vadd.f32 %v259, %v302
    %v304 = vrot.slane %v303, 2
    %v305 = vadd.f32 %v303, %v304
    %v306 = vrot.slane %v305, 1
    %v307 = vadd.f32 %v305, %v306
    %v316 = vrot.slane %v271, 7
    %v317 = vrot.slane %v277, 6
    %v318 = vrot.slane %v283, 5
    %v319 = vrot.slane %v289, 4
    %v320 = vrot.slane %v295, 3
    %v321 = vrot.slane %v301, 2
    %v322 = vrot.slane %v307, 1
    %vm323 = vcmask 1040384
    %v324 = vsel %vm323, %v265, %v316
    %vm325 = vcmask 1042434
    %v326 = vsel %vm325, %v317, %v318
    %vm327 = vcmask 1041408
    %v328 = vsel %vm327, %v324, %v326
    %vm329 = vcmask 1044484
    %v330 = vsel %vm329, %v319, %v320
    %vm331 = vcmask 1046534
    %v332 = vsel %vm331, %v321, %v322
    %vm333 = vcmask 1045508
    %v334 = vsel %vm333, %v330, %v332
    %vm335 = vcmask 1043456
    %v336 = vsel %vm335, %v328, %v334
    %v338 = vadd.f32 %v246, %v336
    %339 = vst [vmem:[#allocation2] sm:$0xff] %v338
    %v340 = vld [vmem:[#allocation3] sm:$0x1]
    %vm341 = vcmask 7168
    %v342 = vsel %vm341, %v245, 0.0
    %v343 = vrot.slane %v342, 4
    %v344 = vadd.f32 %v342, %v343
    %v345 = vrot.slane %v344, 2
    %v346 = vadd.f32 %v344, %v345
    %v347 = vrot.slane %v346, 1
    %v348 = vadd.f32 %v346, %v347
    %v349 = vadd.f32 %v340, %v348
    %vm350 = vcmask 0
    %351 = vst.msk [vmem:[#allocation3] sm:$0x1] %vm350, %v349
    // Predicated region
    $region114: #{_call_kernel.1} parent=1 // pred_check
      %p352 = pneg %p230
    $region115: #{_call_kernel.1} parent=1 // pred_check_branch
      %354 = sbr.rel (%p352) target = $region117
    $region116: #{_call_kernel.1} parent=1 // pred_region
      %v355 = vld [vmem:[#allocation2] sm:$0xff]
      %v356 = vld [vmem:[#allocation3] sm:$0x1]
      %358 = vset.pattern.permute.xlu0 0
      %359 = vperm.xlu0 %358, %v356
      %v360 = vpop.permute.xlu0 %359
      %v362 = vperm.slane %v360, 0
      %v363 = vrcp.pop %v362
      %v364 = vmul.f32 %v362, %v363
      %v365 = vsub.f32 1.0, %v364
      %v366 = vmul.f32 %v363, %v365
      %v367 = vadd.f32 %v363, %v366
      %vm368 = vweird.f32 %v362
      %vm369 = vweird.f32 %v363
      %vm370 = vmor %vm368, %vm369
      %v371 = vsel %vm370, %v363, %v367
      %v372 = vand.u32 2147483647, %v362
      %vm373 = vcmp.eq.f32.partialorder %v372, 8.507059e+37
      %v374 = vand.u32 %v362, 2147483648
      %v375 = vor.u32 1.1754944e-38, %v374
      %v376 = vsel %vm373, %v375, %v371
      %v377 = vmul.f32 %v355, %v376
      %v378 = vld [vmem:[#allocation7] sm:$0xff]
      %v379 = vld [vmem:[#allocation7 + $0x8] sm:$0xff]
      %v380 = vld [vmem:[#allocation7 + $0x10] sm:$0xff]
      %v381 = vld [vmem:[#allocation7 + $0x18] sm:$0xff]
      %v382 = vld [vmem:[#allocation7 + $0x20] sm:$0xff]
      %v383 = vld [vmem:[#allocation7 + $0x28] sm:$0xff]
      %v384 = vld [vmem:[#allocation7 + $0x30] sm:$0xff]
      %v385 = vld [vmem:[#allocation7 + $0x38] sm:$0xff]
      %v386 = vld [vmem:[#allocation7 + $0x40] sm:$0xff]
      %v387 = vld [vmem:[#allocation7 + $0x48] sm:$0xff]
      %v388 = vld [vmem:[#allocation7 + $0x50] sm:$0xff]
      %v389 = vld [vmem:[#allocation7 + $0x58] sm:$0xff]
      %v390 = vld [vmem:[#allocation7 + $0x60] sm:$0xff]
      %v391 = vld [vmem:[#allocation7 + $0x68] sm:$0xff]
      %v392 = vld [vmem:[#allocation7 + $0x70] sm:$0xff]
      %v393 = vld [vmem:[#allocation7 + $0x78] sm:$0xff]
      %v394 = vld [vmem:[#allocation7 + $0x80] sm:$0xff]
      %v395 = vld [vmem:[#allocation7 + $0x88] sm:$0xff]
      %v396 = vld [vmem:[#allocation7 + $0x90] sm:$0xff]
      %v397 = vld [vmem:[#allocation7 + $0x98] sm:$0xff]
      %v398 = vld [vmem:[#allocation7 + $0xa0] sm:$0xff]
      %v399 = vld [vmem:[#allocation7 + $0xa8] sm:$0xff]
      %v400 = vld [vmem:[#allocation7 + $0xb0] sm:$0xff]
      %v401 = vld [vmem:[#allocation7 + $0xb8] sm:$0xff]
      %v402 = vld [vmem:[#allocation7 + $0xc0] sm:$0xff]
      %v403 = vld [vmem:[#allocation7 + $0xc8] sm:$0xff]
      %v404 = vld [vmem:[#allocation7 + $0xd0] sm:$0xff]
      %v405 = vld [vmem:[#allocation7 + $0xd8] sm:$0xff]
      %v406 = vld [vmem:[#allocation7 + $0xe0] sm:$0xff]
      %v407 = vld [vmem:[#allocation7 + $0xe8] sm:$0xff]
      %v408 = vld [vmem:[#allocation7 + $0xf0] sm:$0xff]
      %v409 = vld [vmem:[#allocation7 + $0xf8] sm:$0xff]
      %v410 = vld [vmem:[#allocation7 + $0x100] sm:$0xff]
      %v411 = vld [vmem:[#allocation7 + $0x108] sm:$0xff]
      %v412 = vld [vmem:[#allocation7 + $0x110] sm:$0xff]
      %v413 = vld [vmem:[#allocation7 + $0x118] sm:$0xff]
      %v414 = vld [vmem:[#allocation7 + $0x120] sm:$0xff]
      %v415 = vld [vmem:[#allocation7 + $0x128] sm:$0xff]
      %v416 = vld [vmem:[#allocation7 + $0x130] sm:$0xff]
      %v417 = vld [vmem:[#allocation7 + $0x138] sm:$0xff]
      %v418 = vld [vmem:[#allocation7 + $0x140] sm:$0xff]
      %v419 = vld [vmem:[#allocation7 + $0x148] sm:$0xff]
      %v420 = vld [vmem:[#allocation7 + $0x150] sm:$0xff]
      %v421 = vld [vmem:[#allocation7 + $0x158] sm:$0xff]
      %v422 = vld [vmem:[#allocation7 + $0x160] sm:$0xff]
      %v423 = vld [vmem:[#allocation7 + $0x168] sm:$0xff]
      %v424 = vld [vmem:[#allocation7 + $0x170] sm:$0xff]
      %v425 = vld [vmem:[#allocation7 + $0x178] sm:$0xff]
      %v426 = vld [vmem:[#allocation7 + $0x180] sm:$0xff]
      %v427 = vld [vmem:[#allocation7 + $0x188] sm:$0xff]
      %v428 = vld [vmem:[#allocation7 + $0x190] sm:$0xff]
      %v429 = vld [vmem:[#allocation7 + $0x198] sm:$0xff]
      %v430 = vld [vmem:[#allocation7 + $0x1a0] sm:$0xff]
      %v431 = vld [vmem:[#allocation7 + $0x1a8] sm:$0xff]
      %v432 = vld [vmem:[#allocation7 + $0x1b0] sm:$0xff]
      %v433 = vld [vmem:[#allocation7 + $0x1b8] sm:$0xff]
      %v434 = vld [vmem:[#allocation7 + $0x1c0] sm:$0xff]
      %v435 = vld [vmem:[#allocation7 + $0x1c8] sm:$0xff]
      %v436 = vld [vmem:[#allocation7 + $0x1d0] sm:$0xff]
      %v437 = vld [vmem:[#allocation7 + $0x1d8] sm:$0xff]
      %v438 = vld [vmem:[#allocation7 + $0x1e0] sm:$0xff]
      %v439 = vld [vmem:[#allocation7 + $0x1e8] sm:$0xff]
      %v440 = vld [vmem:[#allocation7 + $0x1f0] sm:$0xff]
      %v441 = vld [vmem:[#allocation7 + $0x1f8] sm:$0xff]
      %v442 = vld [vmem:[#allocation7 + $0x200] sm:$0xff]
      %v443 = vld [vmem:[#allocation7 + $0x208] sm:$0xff]
      %v444 = vld [vmem:[#allocation7 + $0x210] sm:$0xff]
      %v445 = vld [vmem:[#allocation7 + $0x218] sm:$0xff]
      %v446 = vld [vmem:[#allocation7 + $0x220] sm:$0xff]
      %v447 = vld [vmem:[#allocation7 + $0x228] sm:$0xff]
      %v448 = vld [vmem:[#allocation7 + $0x230] sm:$0xff]
      %v449 = vld [vmem:[#allocation7 + $0x238] sm:$0xff]
      %v450 = vld [vmem:[#allocation7 + $0x240] sm:$0xff]
      %v451 = vld [vmem:[#allocation7 + $0x248] sm:$0xff]
      %v452 = vld [vmem:[#allocation7 + $0x250] sm:$0xff]
      %v453 = vld [vmem:[#allocation7 + $0x258] sm:$0xff]
      %v454 = vld [vmem:[#allocation7 + $0x260] sm:$0xff]
      %v455 = vld [vmem:[#allocation7 + $0x268] sm:$0xff]
      %v456 = vld [vmem:[#allocation7 + $0x270] sm:$0xff]
      %v457 = vld [vmem:[#allocation7 + $0x278] sm:$0xff]
      %v458 = vld [vmem:[#allocation7 + $0x280] sm:$0xff]
      %v459 = vld [vmem:[#allocation7 + $0x288] sm:$0xff]
      %v460 = vld [vmem:[#allocation7 + $0x290] sm:$0xff]
      %v461 = vld [vmem:[#allocation7 + $0x298] sm:$0xff]
      %v462 = vld [vmem:[#allocation7 + $0x2a0] sm:$0xff]
      %v463 = vld [vmem:[#allocation7 + $0x2a8] sm:$0xff]
      %v464 = vld [vmem:[#allocation7 + $0x2b0] sm:$0xff]
      %v465 = vld [vmem:[#allocation7 + $0x2b8] sm:$0xff]
      %v466 = vld [vmem:[#allocation7 + $0x2c0] sm:$0xff]
      %v467 = vld [vmem:[#allocation7 + $0x2c8] sm:$0xff]
      %v468 = vld [vmem:[#allocation7 + $0x2d0] sm:$0xff]
      %v469 = vld [vmem:[#allocation7 + $0x2d8] sm:$0xff]
      %v470 = vld [vmem:[#allocation7 + $0x2e0] sm:$0xff]
      %v471 = vld [vmem:[#allocation7 + $0x2e8] sm:$0xff]
      %v472 = vld [vmem:[#allocation7 + $0x2f0] sm:$0xff]
      %v473 = vld [vmem:[#allocation7 + $0x2f8] sm:$0xff]
      %v474 = vld [vmem:[#allocation7 + $0x300] sm:$0xff]
      %v475 = vld [vmem:[#allocation7 + $0x308] sm:$0xff]
      %v476 = vld [vmem:[#allocation7 + $0x310] sm:$0xff]
      %v477 = vld [vmem:[#allocation7 + $0x318] sm:$0xff]
      %v478 = vld [vmem:[#allocation7 + $0x320] sm:$0xff]
      %v479 = vld [vmem:[#allocation7 + $0x328] sm:$0xff]
      %v480 = vld [vmem:[#allocation7 + $0x330] sm:$0xff]
      %v481 = vld [vmem:[#allocation7 + $0x338] sm:$0xff]
      %v482 = vld [vmem:[#allocation7 + $0x340] sm:$0xff]
      %v483 = vld [vmem:[#allocation7 + $0x348] sm:$0xff]
      %v484 = vld [vmem:[#allocation7 + $0x350] sm:$0xff]
      %v485 = vld [vmem:[#allocation7 + $0x358] sm:$0xff]
      %v486 = vld [vmem:[#allocation7 + $0x360] sm:$0xff]
      %v487 = vld [vmem:[#allocation7 + $0x368] sm:$0xff]
      %v488 = vld [vmem:[#allocation7 + $0x370] sm:$0xff]
      %v489 = vld [vmem:[#allocation7 + $0x378] sm:$0xff]
      %v490 = vld [vmem:[#allocation7 + $0x380] sm:$0xff]
      %v491 = vld [vmem:[#allocation7 + $0x388] sm:$0xff]
      %v492 = vld [vmem:[#allocation7 + $0x390] sm:$0xff]
      %v493 = vld [vmem:[#allocation7 + $0x398] sm:$0xff]
      %v494 = vld [vmem:[#allocation7 + $0x3a0] sm:$0xff]
      %v495 = vld [vmem:[#allocation7 + $0x3a8] sm:$0xff]
      %v496 = vld [vmem:[#allocation7 + $0x3b0] sm:$0xff]
      %v497 = vld [vmem:[#allocation7 + $0x3b8] sm:$0xff]
      %v498 = vld [vmem:[#allocation7 + $0x3c0] sm:$0xff]
      %v499 = vld [vmem:[#allocation7 + $0x3c8] sm:$0xff]
      %v500 = vld [vmem:[#allocation7 + $0x3d0] sm:$0xff]
      %v501 = vld [vmem:[#allocation7 + $0x3d8] sm:$0xff]
      %v502 = vld [vmem:[#allocation7 + $0x3e0] sm:$0xff]
      %v503 = vld [vmem:[#allocation7 + $0x3e8] sm:$0xff]
      %v504 = vld [vmem:[#allocation7 + $0x3f0] sm:$0xff]
      %v505 = vld [vmem:[#allocation7 + $0x3f8] sm:$0xff]
      %v506 = vld [vmem:[#allocation7 + $0x400] sm:$0xff]
      %v507 = vld [vmem:[#allocation7 + $0x408] sm:$0xff]
      %v508 = vld [vmem:[#allocation7 + $0x410] sm:$0xff]
      %v509 = vld [vmem:[#allocation7 + $0x418] sm:$0xff]
      %v510 = vld [vmem:[#allocation7 + $0x420] sm:$0xff]
      %v511 = vld [vmem:[#allocation7 + $0x428] sm:$0xff]
      %v512 = vld [vmem:[#allocation7 + $0x430] sm:$0xff]
      %v513 = vld [vmem:[#allocation7 + $0x438] sm:$0xff]
      %v514 = vld [vmem:[#allocation7 + $0x440] sm:$0xff]
      %v515 = vld [vmem:[#allocation7 + $0x448] sm:$0xff]
      %v516 = vld [vmem:[#allocation7 + $0x450] sm:$0xff]
      %v517 = vld [vmem:[#allocation7 + $0x458] sm:$0xff]
      %v518 = vld [vmem:[#allocation7 + $0x460] sm:$0xff]
      %v519 = vld [vmem:[#allocation7 + $0x468] sm:$0xff]
      %v520 = vld [vmem:[#allocation7 + $0x470] sm:$0xff]
      %v521 = vld [vmem:[#allocation7 + $0x478] sm:$0xff]
      %v522 = vld [vmem:[#allocation7 + $0x480] sm:$0xff]
      %v523 = vld [vmem:[#allocation7 + $0x488] sm:$0xff]
      %v524 = vld [vmem:[#allocation7 + $0x490] sm:$0xff]
      %v525 = vld [vmem:[#allocation7 + $0x498] sm:$0xff]
      %v526 = vld [vmem:[#allocation7 + $0x4a0] sm:$0xff]
      %v527 = vld [vmem:[#allocation7 + $0x4a8] sm:$0xff]
      %v528 = vld [vmem:[#allocation7 + $0x4b0] sm:$0xff]
      %v529 = vld [vmem:[#allocation7 + $0x4b8] sm:$0xff]
      %v530 = vld [vmem:[#allocation7 + $0x4c0] sm:$0xff]
      %v531 = vld [vmem:[#allocation7 + $0x4c8] sm:$0xff]
      %v532 = vld [vmem:[#allocation7 + $0x4d0] sm:$0xff]
      %v533 = vld [vmem:[#allocation7 + $0x4d8] sm:$0xff]
      %v534 = vld [vmem:[#allocation7 + $0x4e0] sm:$0xff]
      %v535 = vld [vmem:[#allocation7 + $0x4e8] sm:$0xff]
      %v536 = vld [vmem:[#allocation7 + $0x4f0] sm:$0xff]
      %v537 = vld [vmem:[#allocation7 + $0x4f8] sm:$0xff]
      %v538 = vld [vmem:[#allocation7 + $0x500] sm:$0xff]
      %v539 = vld [vmem:[#allocation7 + $0x508] sm:$0xff]
      %v540 = vld [vmem:[#allocation7 + $0x510] sm:$0xff]
      %v541 = vld [vmem:[#allocation7 + $0x518] sm:$0xff]
      %v542 = vld [vmem:[#allocation7 + $0x520] sm:$0xff]
      %v543 = vld [vmem:[#allocation7 + $0x528] sm:$0xff]
      %v544 = vld [vmem:[#allocation7 + $0x530] sm:$0xff]
      %v545 = vld [vmem:[#allocation7 + $0x538] sm:$0xff]
      %v546 = vld [vmem:[#allocation7 + $0x540] sm:$0xff]
      %v547 = vld [vmem:[#allocation7 + $0x548] sm:$0xff]
      %v548 = vld [vmem:[#allocation7 + $0x550] sm:$0xff]
      %v549 = vld [vmem:[#allocation7 + $0x558] sm:$0xff]
      %v550 = vld [vmem:[#allocation7 + $0x560] sm:$0xff]
      %v551 = vld [vmem:[#allocation7 + $0x568] sm:$0xff]
      %v552 = vld [vmem:[#allocation7 + $0x570] sm:$0xff]
      %v553 = vld [vmem:[#allocation7 + $0x578] sm:$0xff]
      %v554 = vld [vmem:[#allocation7 + $0x580] sm:$0xff]
      %v555 = vld [vmem:[#allocation7 + $0x588] sm:$0xff]
      %v556 = vld [vmem:[#allocation7 + $0x590] sm:$0xff]
      %v557 = vld [vmem:[#allocation7 + $0x598] sm:$0xff]
      %v558 = vld [vmem:[#allocation7 + $0x5a0] sm:$0xff]
      %v559 = vld [vmem:[#allocation7 + $0x5a8] sm:$0xff]
      %v560 = vld [vmem:[#allocation7 + $0x5b0] sm:$0xff]
      %v561 = vld [vmem:[#allocation7 + $0x5b8] sm:$0xff]
      %v562 = vld [vmem:[#allocation7 + $0x5c0] sm:$0xff]
      %v563 = vld [vmem:[#allocation7 + $0x5c8] sm:$0xff]
      %v564 = vld [vmem:[#allocation7 + $0x5d0] sm:$0xff]
      %v565 = vld [vmem:[#allocation7 + $0x5d8] sm:$0xff]
      %v566 = vld [vmem:[#allocation7 + $0x5e0] sm:$0xff]
      %v567 = vld [vmem:[#allocation7 + $0x5e8] sm:$0xff]
      %v568 = vld [vmem:[#allocation7 + $0x5f0] sm:$0xff]
      %v569 = vld [vmem:[#allocation7 + $0x5f8] sm:$0xff]
      %v570 = vld [vmem:[#allocation7 + $0x600] sm:$0xff]
      %v571 = vld [vmem:[#allocation7 + $0x608] sm:$0xff]
      %v572 = vld [vmem:[#allocation7 + $0x610] sm:$0xff]
      %v573 = vld [vmem:[#allocation7 + $0x618] sm:$0xff]
      %v574 = vld [vmem:[#allocation7 + $0x620] sm:$0xff]
      %v575 = vld [vmem:[#allocation7 + $0x628] sm:$0xff]
      %v576 = vld [vmem:[#allocation7 + $0x630] sm:$0xff]
      %v577 = vld [vmem:[#allocation7 + $0x638] sm:$0xff]
      %v578 = vld [vmem:[#allocation7 + $0x640] sm:$0xff]
      %v579 = vld [vmem:[#allocation7 + $0x648] sm:$0xff]
      %v580 = vld [vmem:[#allocation7 + $0x650] sm:$0xff]
      %v581 = vld [vmem:[#allocation7 + $0x658] sm:$0xff]
      %v582 = vld [vmem:[#allocation7 + $0x660] sm:$0xff]
      %v583 = vld [vmem:[#allocation7 + $0x668] sm:$0xff]
      %v584 = vld [vmem:[#allocation7 + $0x670] sm:$0xff]
      %v585 = vld [vmem:[#allocation7 + $0x678] sm:$0xff]
      %v586 = vld [vmem:[#allocation7 + $0x680] sm:$0xff]
      %v587 = vld [vmem:[#allocation7 + $0x688] sm:$0xff]
      %v588 = vld [vmem:[#allocation7 + $0x690] sm:$0xff]
      %v589 = vld [vmem:[#allocation7 + $0x698] sm:$0xff]
      %v590 = vld [vmem:[#allocation7 + $0x6a0] sm:$0xff]
      %v591 = vld [vmem:[#allocation7 + $0x6a8] sm:$0xff]
      %v592 = vld [vmem:[#allocation7 + $0x6b0] sm:$0xff]
      %v593 = vld [vmem:[#allocation7 + $0x6b8] sm:$0xff]
      %v594 = vld [vmem:[#allocation7 + $0x6c0] sm:$0xff]
      %v595 = vld [vmem:[#allocation7 + $0x6c8] sm:$0xff]
      %v596 = vld [vmem:[#allocation7 + $0x6d0] sm:$0xff]
      %v597 = vld [vmem:[#allocation7 + $0x6d8] sm:$0xff]
      %v598 = vld [vmem:[#allocation7 + $0x6e0] sm:$0xff]
      %v599 = vld [vmem:[#allocation7 + $0x6e8] sm:$0xff]
      %v600 = vld [vmem:[#allocation7 + $0x6f0] sm:$0xff]
      %v601 = vld [vmem:[#allocation7 + $0x6f8] sm:$0xff]
      %v602 = vld [vmem:[#allocation7 + $0x700] sm:$0xff]
      %v603 = vld [vmem:[#allocation7 + $0x708] sm:$0xff]
      %v604 = vld [vmem:[#allocation7 + $0x710] sm:$0xff]
      %v605 = vld [vmem:[#allocation7 + $0x718] sm:$0xff]
      %v606 = vld [vmem:[#allocation7 + $0x720] sm:$0xff]
      %v607 = vld [vmem:[#allocation7 + $0x728] sm:$0xff]
      %v608 = vld [vmem:[#allocation7 + $0x730] sm:$0xff]
      %v609 = vld [vmem:[#allocation7 + $0x738] sm:$0xff]
      %v610 = vld [vmem:[#allocation7 + $0x740] sm:$0xff]
      %v611 = vld [vmem:[#allocation7 + $0x748] sm:$0xff]
      %v612 = vld [vmem:[#allocation7 + $0x750] sm:$0xff]
      %v613 = vld [vmem:[#allocation7 + $0x758] sm:$0xff]
      %v614 = vld [vmem:[#allocation7 + $0x760] sm:$0xff]
      %v615 = vld [vmem:[#allocation7 + $0x768] sm:$0xff]
      %v616 = vld [vmem:[#allocation7 + $0x770] sm:$0xff]
      %v617 = vld [vmem:[#allocation7 + $0x778] sm:$0xff]
      %v618 = vld [vmem:[#allocation7 + $0x780] sm:$0xff]
      %v619 = vld [vmem:[#allocation7 + $0x788] sm:$0xff]
      %v620 = vld [vmem:[#allocation7 + $0x790] sm:$0xff]
      %v621 = vld [vmem:[#allocation7 + $0x798] sm:$0xff]
      %v622 = vld [vmem:[#allocation7 + $0x7a0] sm:$0xff]
      %v623 = vld [vmem:[#allocation7 + $0x7a8] sm:$0xff]
      %v624 = vld [vmem:[#allocation7 + $0x7b0] sm:$0xff]
      %v625 = vld [vmem:[#allocation7 + $0x7b8] sm:$0xff]
      %v626 = vld [vmem:[#allocation7 + $0x7c0] sm:$0xff]
      %v627 = vld [vmem:[#allocation7 + $0x7c8] sm:$0xff]
      %v628 = vld [vmem:[#allocation7 + $0x7d0] sm:$0xff]
      %v629 = vld [vmem:[#allocation7 + $0x7d8] sm:$0xff]
      %v630 = vld [vmem:[#allocation7 + $0x7e0] sm:$0xff]
      %v631 = vld [vmem:[#allocation7 + $0x7e8] sm:$0xff]
      %v632 = vld [vmem:[#allocation7 + $0x7f0] sm:$0xff]
      %v633 = vld [vmem:[#allocation7 + $0x7f8] sm:$0xff]
      %v634 = vld [vmem:[#allocation7 + $0x800] sm:$0xff]
      %v635 = vld [vmem:[#allocation7 + $0x808] sm:$0xff]
      %v636 = vld [vmem:[#allocation7 + $0x810] sm:$0xff]
      %v637 = vld [vmem:[#allocation7 + $0x818] sm:$0xff]
      %v638 = vld [vmem:[#allocation7 + $0x820] sm:$0xff]
      %v639 = vld [vmem:[#allocation7 + $0x828] sm:$0xff]
      %v640 = vld [vmem:[#allocation7 + $0x830] sm:$0xff]
      %v641 = vld [vmem:[#allocation7 + $0x838] sm:$0xff]
      %v642 = vld [vmem:[#allocation7 + $0x840] sm:$0xff]
      %v643 = vld [vmem:[#allocation7 + $0x848] sm:$0xff]
      %v644 = vld [vmem:[#allocation7 + $0x850] sm:$0xff]
      %v645 = vld [vmem:[#allocation7 + $0x858] sm:$0xff]
      %v646 = vld [vmem:[#allocation7 + $0x860] sm:$0xff]
      %v647 = vld [vmem:[#allocation7 + $0x868] sm:$0xff]
      %v648 = vld [vmem:[#allocation7 + $0x870] sm:$0xff]
      %v649 = vld [vmem:[#allocation7 + $0x878] sm:$0xff]
      %v650 = vld [vmem:[#allocation7 + $0x880] sm:$0xff]
      %v651 = vld [vmem:[#allocation7 + $0x888] sm:$0xff]
      %v652 = vld [vmem:[#allocation7 + $0x890] sm:$0xff]
      %v653 = vld [vmem:[#allocation7 + $0x898] sm:$0xff]
      %v654 = vld [vmem:[#allocation7 + $0x8a0] sm:$0xff]
      %v655 = vld [vmem:[#allocation7 + $0x8a8] sm:$0xff]
      %v656 = vld [vmem:[#allocation7 + $0x8b0] sm:$0xff]
      %v657 = vld [vmem:[#allocation7 + $0x8b8] sm:$0xff]
      %v658 = vld [vmem:[#allocation7 + $0x8c0] sm:$0xff]
      %v659 = vld [vmem:[#allocation7 + $0x8c8] sm:$0xff]
      %v660 = vld [vmem:[#allocation7 + $0x8d0] sm:$0xff]
      %v661 = vld [vmem:[#allocation7 + $0x8d8] sm:$0xff]
      %v662 = vld [vmem:[#allocation7 + $0x8e0] sm:$0xff]
      %v663 = vld [vmem:[#allocation7 + $0x8e8] sm:$0xff]
      %v664 = vld [vmem:[#allocation7 + $0x8f0] sm:$0xff]
      %v665 = vld [vmem:[#allocation7 + $0x8f8] sm:$0xff]
      %v666 = vld [vmem:[#allocation7 + $0x900] sm:$0xff]
      %v667 = vld [vmem:[#allocation7 + $0x908] sm:$0xff]
      %v668 = vld [vmem:[#allocation7 + $0x910] sm:$0xff]
      %v669 = vld [vmem:[#allocation7 + $0x918] sm:$0xff]
      %v670 = vld [vmem:[#allocation7 + $0x920] sm:$0xff]
      %v671 = vld [vmem:[#allocation7 + $0x928] sm:$0xff]
      %v672 = vld [vmem:[#allocation7 + $0x930] sm:$0xff]
      %v673 = vld [vmem:[#allocation7 + $0x938] sm:$0xff]
      %v674 = vld [vmem:[#allocation7 + $0x940] sm:$0xff]
      %v675 = vld [vmem:[#allocation7 + $0x948] sm:$0xff]
      %v676 = vld [vmem:[#allocation7 + $0x950] sm:$0xff]
      %v677 = vld [vmem:[#allocation7 + $0x958] sm:$0xff]
      %v678 = vld [vmem:[#allocation7 + $0x960] sm:$0xff]
      %v679 = vld [vmem:[#allocation7 + $0x968] sm:$0xff]
      %v680 = vld [vmem:[#allocation7 + $0x970] sm:$0xff]
      %v681 = vld [vmem:[#allocation7 + $0x978] sm:$0xff]
      %v682 = vld [vmem:[#allocation7 + $0x980] sm:$0xff]
      %v683 = vld [vmem:[#allocation7 + $0x988] sm:$0xff]
      %v684 = vld [vmem:[#allocation7 + $0x990] sm:$0xff]
      %v685 = vld [vmem:[#allocation7 + $0x998] sm:$0xff]
      %v686 = vld [vmem:[#allocation7 + $0x9a0] sm:$0xff]
      %v687 = vld [vmem:[#allocation7 + $0x9a8] sm:$0xff]
      %v688 = vld [vmem:[#allocation7 + $0x9b0] sm:$0xff]
      %v689 = vld [vmem:[#allocation7 + $0x9b8] sm:$0xff]
      %v690 = vld [vmem:[#allocation7 + $0x9c0] sm:$0xff]
      %v691 = vld [vmem:[#allocation7 + $0x9c8] sm:$0xff]
      %v692 = vld [vmem:[#allocation7 + $0x9d0] sm:$0xff]
      %v693 = vld [vmem:[#allocation7 + $0x9d8] sm:$0xff]
      %v694 = vld [vmem:[#allocation7 + $0x9e0] sm:$0xff]
      %v695 = vld [vmem:[#allocation7 + $0x9e8] sm:$0xff]
      %v696 = vld [vmem:[#allocation7 + $0x9f0] sm:$0xff]
      %v697 = vld [vmem:[#allocation7 + $0x9f8] sm:$0xff]
      %v698 = vld [vmem:[#allocation7 + $0xa00] sm:$0xff]
      %v699 = vld [vmem:[#allocation7 + $0xa08] sm:$0xff]
      %v700 = vld [vmem:[#allocation7 + $0xa10] sm:$0xff]
      %v701 = vld [vmem:[#allocation7 + $0xa18] sm:$0xff]
      %v702 = vld [vmem:[#allocation7 + $0xa20] sm:$0xff]
      %v703 = vld [vmem:[#allocation7 + $0xa28] sm:$0xff]
      %v704 = vld [vmem:[#allocation7 + $0xa30] sm:$0xff]
      %v705 = vld [vmem:[#allocation7 + $0xa38] sm:$0xff]
      %v706 = vld [vmem:[#allocation7 + $0xa40] sm:$0xff]
      %v707 = vld [vmem:[#allocation7 + $0xa48] sm:$0xff]
      %v708 = vld [vmem:[#allocation7 + $0xa50] sm:$0xff]
      %v709 = vld [vmem:[#allocation7 + $0xa58] sm:$0xff]
      %v710 = vld [vmem:[#allocation7 + $0xa60] sm:$0xff]
      %v711 = vld [vmem:[#allocation7 + $0xa68] sm:$0xff]
      %v712 = vld [vmem:[#allocation7 + $0xa70] sm:$0xff]
      %v713 = vld [vmem:[#allocation7 + $0xa78] sm:$0xff]
      %v714 = vld [vmem:[#allocation7 + $0xa80] sm:$0xff]
      %v715 = vld [vmem:[#allocation7 + $0xa88] sm:$0xff]
      %v716 = vld [vmem:[#allocation7 + $0xa90] sm:$0xff]
      %v717 = vld [vmem:[#allocation7 + $0xa98] sm:$0xff]
      %v718 = vld [vmem:[#allocation7 + $0xaa0] sm:$0xff]
      %v719 = vld [vmem:[#allocation7 + $0xaa8] sm:$0xff]
      %v720 = vld [vmem:[#allocation7 + $0xab0] sm:$0xff]
      %v721 = vld [vmem:[#allocation7 + $0xab8] sm:$0xff]
      %v722 = vld [vmem:[#allocation7 + $0xac0] sm:$0xff]
      %v723 = vld [vmem:[#allocation7 + $0xac8] sm:$0xff]
      %v724 = vld [vmem:[#allocation7 + $0xad0] sm:$0xff]
      %v725 = vld [vmem:[#allocation7 + $0xad8] sm:$0xff]
      %v726 = vld [vmem:[#allocation7 + $0xae0] sm:$0xff]
      %v727 = vld [vmem:[#allocation7 + $0xae8] sm:$0xff]
      %v728 = vld [vmem:[#allocation7 + $0xaf0] sm:$0xff]
      %v729 = vld [vmem:[#allocation7 + $0xaf8] sm:$0xff]
      %v730 = vld [vmem:[#allocation7 + $0xb00] sm:$0xff]
      %v731 = vld [vmem:[#allocation7 + $0xb08] sm:$0xff]
      %v732 = vld [vmem:[#allocation7 + $0xb10] sm:$0xff]
      %v733 = vld [vmem:[#allocation7 + $0xb18] sm:$0xff]
      %v734 = vld [vmem:[#allocation7 + $0xb20] sm:$0xff]
      %v735 = vld [vmem:[#allocation7 + $0xb28] sm:$0xff]
      %v736 = vld [vmem:[#allocation7 + $0xb30] sm:$0xff]
      %v737 = vld [vmem:[#allocation7 + $0xb38] sm:$0xff]
      %v738 = vld [vmem:[#allocation7 + $0xb40] sm:$0xff]
      %v739 = vld [vmem:[#allocation7 + $0xb48] sm:$0xff]
      %v740 = vld [vmem:[#allocation7 + $0xb50] sm:$0xff]
      %v741 = vld [vmem:[#allocation7 + $0xb58] sm:$0xff]
      %v742 = vld [vmem:[#allocation7 + $0xb60] sm:$0xff]
      %v743 = vld [vmem:[#allocation7 + $0xb68] sm:$0xff]
      %v744 = vld [vmem:[#allocation7 + $0xb70] sm:$0xff]
      %v745 = vld [vmem:[#allocation7 + $0xb78] sm:$0xff]
      %v746 = vld [vmem:[#allocation7 + $0xb80] sm:$0xff]
      %v747 = vld [vmem:[#allocation7 + $0xb88] sm:$0xff]
      %v748 = vld [vmem:[#allocation7 + $0xb90] sm:$0xff]
      %v749 = vld [vmem:[#allocation7 + $0xb98] sm:$0xff]
      %v750 = vld [vmem:[#allocation7 + $0xba0] sm:$0xff]
      %v751 = vld [vmem:[#allocation7 + $0xba8] sm:$0xff]
      %v752 = vld [vmem:[#allocation7 + $0xbb0] sm:$0xff]
      %v753 = vld [vmem:[#allocation7 + $0xbb8] sm:$0xff]
      %v754 = vld [vmem:[#allocation7 + $0xbc0] sm:$0xff]
      %v755 = vld [vmem:[#allocation7 + $0xbc8] sm:$0xff]
      %v756 = vld [vmem:[#allocation7 + $0xbd0] sm:$0xff]
      %v757 = vld [vmem:[#allocation7 + $0xbd8] sm:$0xff]
      %v758 = vld [vmem:[#allocation7 + $0xbe0] sm:$0xff]
      %v759 = vld [vmem:[#allocation7 + $0xbe8] sm:$0xff]
      %v760 = vld [vmem:[#allocation7 + $0xbf0] sm:$0xff]
      %v761 = vld [vmem:[#allocation7 + $0xbf8] sm:$0xff]
      %v762 = vld [vmem:[#allocation7 + $0xc00] sm:$0xff]
      %v763 = vld [vmem:[#allocation7 + $0xc08] sm:$0xff]
      %v764 = vld [vmem:[#allocation7 + $0xc10] sm:$0xff]
      %v765 = vld [vmem:[#allocation7 + $0xc18] sm:$0xff]
      %v766 = vld [vmem:[#allocation7 + $0xc20] sm:$0xff]
      %v767 = vld [vmem:[#allocation7 + $0xc28] sm:$0xff]
      %v768 = vld [vmem:[#allocation7 + $0xc30] sm:$0xff]
      %v769 = vld [vmem:[#allocation7 + $0xc38] sm:$0xff]
      %v770 = vld [vmem:[#allocation7 + $0xc40] sm:$0xff]
      %v771 = vld [vmem:[#allocation7 + $0xc48] sm:$0xff]
      %v772 = vld [vmem:[#allocation7 + $0xc50] sm:$0xff]
      %v773 = vld [vmem:[#allocation7 + $0xc58] sm:$0xff]
      %v774 = vld [vmem:[#allocation7 + $0xc60] sm:$0xff]
      %v775 = vld [vmem:[#allocation7 + $0xc68] sm:$0xff]
      %v776 = vld [vmem:[#allocation7 + $0xc70] sm:$0xff]
      %v777 = vld [vmem:[#allocation7 + $0xc78] sm:$0xff]
      %v778 = vld [vmem:[#allocation7 + $0xc80] sm:$0xff]
      %v779 = vld [vmem:[#allocation7 + $0xc88] sm:$0xff]
      %v780 = vld [vmem:[#allocation7 + $0xc90] sm:$0xff]
      %v781 = vld [vmem:[#allocation7 + $0xc98] sm:$0xff]
      %v782 = vld [vmem:[#allocation7 + $0xca0] sm:$0xff]
      %v783 = vld [vmem:[#allocation7 + $0xca8] sm:$0xff]
      %v784 = vld [vmem:[#allocation7 + $0xcb0] sm:$0xff]
      %v785 = vld [vmem:[#allocation7 + $0xcb8] sm:$0xff]
      %v786 = vld [vmem:[#allocation7 + $0xcc0] sm:$0xff]
      %v787 = vld [vmem:[#allocation7 + $0xcc8] sm:$0xff]
      %v788 = vld [vmem:[#allocation7 + $0xcd0] sm:$0xff]
      %v789 = vld [vmem:[#allocation7 + $0xcd8] sm:$0xff]
      %v790 = vld [vmem:[#allocation7 + $0xce0] sm:$0xff]
      %v791 = vld [vmem:[#allocation7 + $0xce8] sm:$0xff]
      %v792 = vld [vmem:[#allocation7 + $0xcf0] sm:$0xff]
      %v793 = vld [vmem:[#allocation7 + $0xcf8] sm:$0xff]
      %v794 = vld [vmem:[#allocation7 + $0xd00] sm:$0xff]
      %v795 = vld [vmem:[#allocation7 + $0xd08] sm:$0xff]
      %v796 = vld [vmem:[#allocation7 + $0xd10] sm:$0xff]
      %v797 = vld [vmem:[#allocation7 + $0xd18] sm:$0xff]
      %v798 = vld [vmem:[#allocation7 + $0xd20] sm:$0xff]
      %v799 = vld [vmem:[#allocation7 + $0xd28] sm:$0xff]
      %v800 = vld [vmem:[#allocation7 + $0xd30] sm:$0xff]
      %v801 = vld [vmem:[#allocation7 + $0xd38] sm:$0xff]
      %v802 = vld [vmem:[#allocation7 + $0xd40] sm:$0xff]
      %v803 = vld [vmem:[#allocation7 + $0xd48] sm:$0xff]
      %v804 = vld [vmem:[#allocation7 + $0xd50] sm:$0xff]
      %v805 = vld [vmem:[#allocation7 + $0xd58] sm:$0xff]
      %v806 = vld [vmem:[#allocation7 + $0xd60] sm:$0xff]
      %v807 = vld [vmem:[#allocation7 + $0xd68] sm:$0xff]
      %v808 = vld [vmem:[#allocation7 + $0xd70] sm:$0xff]
      %v809 = vld [vmem:[#allocation7 + $0xd78] sm:$0xff]
      %v810 = vld [vmem:[#allocation7 + $0xd80] sm:$0xff]
      %v811 = vld [vmem:[#allocation7 + $0xd88] sm:$0xff]
      %v812 = vld [vmem:[#allocation7 + $0xd90] sm:$0xff]
      %v813 = vld [vmem:[#allocation7 + $0xd98] sm:$0xff]
      %v814 = vld [vmem:[#allocation7 + $0xda0] sm:$0xff]
      %v815 = vld [vmem:[#allocation7 + $0xda8] sm:$0xff]
      %v816 = vld [vmem:[#allocation7 + $0xdb0] sm:$0xff]
      %v817 = vld [vmem:[#allocation7 + $0xdb8] sm:$0xff]
      %v818 = vld [vmem:[#allocation7 + $0xdc0] sm:$0xff]
      %v819 = vld [vmem:[#allocation7 + $0xdc8] sm:$0xff]
      %v820 = vld [vmem:[#allocation7 + $0xdd0] sm:$0xff]
      %v821 = vld [vmem:[#allocation7 + $0xdd8] sm:$0xff]
      %v822 = vld [vmem:[#allocation7 + $0xde0] sm:$0xff]
      %v823 = vld [vmem:[#allocation7 + $0xde8] sm:$0xff]
      %v824 = vld [vmem:[#allocation7 + $0xdf0] sm:$0xff]
      %v825 = vld [vmem:[#allocation7 + $0xdf8] sm:$0xff]
      %v826 = vld [vmem:[#allocation7 + $0xe00] sm:$0xff]
      %v827 = vld [vmem:[#allocation7 + $0xe08] sm:$0xff]
      %v828 = vld [vmem:[#allocation7 + $0xe10] sm:$0xff]
      %v829 = vld [vmem:[#allocation7 + $0xe18] sm:$0xff]
      %v830 = vld [vmem:[#allocation7 + $0xe20] sm:$0xff]
      %v831 = vld [vmem:[#allocation7 + $0xe28] sm:$0xff]
      %v832 = vld [vmem:[#allocation7 + $0xe30] sm:$0xff]
      %v833 = vld [vmem:[#allocation7 + $0xe38] sm:$0xff]
      %v834 = vld [vmem:[#allocation7 + $0xe40] sm:$0xff]
      %v835 = vld [vmem:[#allocation7 + $0xe48] sm:$0xff]
      %v836 = vld [vmem:[#allocation7 + $0xe50] sm:$0xff]
      %v837 = vld [vmem:[#allocation7 + $0xe58] sm:$0xff]
      %v838 = vld [vmem:[#allocation7 + $0xe60] sm:$0xff]
      %v839 = vld [vmem:[#allocation7 + $0xe68] sm:$0xff]
      %v840 = vld [vmem:[#allocation7 + $0xe70] sm:$0xff]
      %v841 = vld [vmem:[#allocation7 + $0xe78] sm:$0xff]
      %v842 = vld [vmem:[#allocation7 + $0xe80] sm:$0xff]
      %v843 = vld [vmem:[#allocation7 + $0xe88] sm:$0xff]
      %v844 = vld [vmem:[#allocation7 + $0xe90] sm:$0xff]
      %v845 = vld [vmem:[#allocation7 + $0xe98] sm:$0xff]
      %v846 = vld [vmem:[#allocation7 + $0xea0] sm:$0xff]
      %v847 = vld [vmem:[#allocation7 + $0xea8] sm:$0xff]
      %v848 = vld [vmem:[#allocation7 + $0xeb0] sm:$0xff]
      %v849 = vld [vmem:[#allocation7 + $0xeb8] sm:$0xff]
      %v850 = vld [vmem:[#allocation7 + $0xec0] sm:$0xff]
      %v851 = vld [vmem:[#allocation7 + $0xec8] sm:$0xff]
      %v852 = vld [vmem:[#allocation7 + $0xed0] sm:$0xff]
      %v853 = vld [vmem:[#allocation7 + $0xed8] sm:$0xff]
      %v854 = vld [vmem:[#allocation7 + $0xee0] sm:$0xff]
      %v855 = vld [vmem:[#allocation7 + $0xee8] sm:$0xff]
      %v856 = vld [vmem:[#allocation7 + $0xef0] sm:$0xff]
      %v857 = vld [vmem:[#allocation7 + $0xef8] sm:$0xff]
      %v858 = vld [vmem:[#allocation7 + $0xf00] sm:$0xff]
      %v859 = vld [vmem:[#allocation7 + $0xf08] sm:$0xff]
      %v860 = vld [vmem:[#allocation7 + $0xf10] sm:$0xff]
      %v861 = vld [vmem:[#allocation7 + $0xf18] sm:$0xff]
      %v862 = vld [vmem:[#allocation7 + $0xf20] sm:$0xff]
      %v863 = vld [vmem:[#allocation7 + $0xf28] sm:$0xff]
      %v864 = vld [vmem:[#allocation7 + $0xf30] sm:$0xff]
      %v865 = vld [vmem:[#allocation7 + $0xf38] sm:$0xff]
      %v866 = vld [vmem:[#allocation7 + $0xf40] sm:$0xff]
      %v867 = vld [vmem:[#allocation7 + $0xf48] sm:$0xff]
      %v868 = vld [vmem:[#allocation7 + $0xf50] sm:$0xff]
      %v869 = vld [vmem:[#allocation7 + $0xf58] sm:$0xff]
      %v870 = vld [vmem:[#allocation7 + $0xf60] sm:$0xff]
      %v871 = vld [vmem:[#allocation7 + $0xf68] sm:$0xff]
      %v872 = vld [vmem:[#allocation7 + $0xf70] sm:$0xff]
      %v873 = vld [vmem:[#allocation7 + $0xf78] sm:$0xff]
      %v874 = vld [vmem:[#allocation7 + $0xf80] sm:$0xff]
      %v875 = vld [vmem:[#allocation7 + $0xf88] sm:$0xff]
      %v876 = vld [vmem:[#allocation7 + $0xf90] sm:$0xff]
      %v877 = vld [vmem:[#allocation7 + $0xf98] sm:$0xff]
      %v878 = vld [vmem:[#allocation7 + $0xfa0] sm:$0xff]
      %v879 = vld [vmem:[#allocation7 + $0xfa8] sm:$0xff]
      %v880 = vld [vmem:[#allocation7 + $0xfb0] sm:$0xff]
      %v881 = vld [vmem:[#allocation7 + $0xfb8] sm:$0xff]
      %v882 = vld [vmem:[#allocation7 + $0xfc0] sm:$0xff]
      %v883 = vld [vmem:[#allocation7 + $0xfc8] sm:$0xff]
      %v884 = vld [vmem:[#allocation7 + $0xfd0] sm:$0xff]
      %v885 = vld [vmem:[#allocation7 + $0xfd8] sm:$0xff]
      %v886 = vld [vmem:[#allocation7 + $0xfe0] sm:$0xff]
      %v887 = vld [vmem:[#allocation7 + $0xfe8] sm:$0xff]
      %v888 = vld [vmem:[#allocation7 + $0xff0] sm:$0xff]
      %v889 = vld [vmem:[#allocation7 + $0xff8] sm:$0xff]
      %v890 = vld [vmem:[#allocation9] sm:$0xf]
      %v892 = vperm.slane %v377, 0
      %v893 = vperm.slane %v377, 1
      %v894 = vperm.slane %v377, 2
      %v895 = vperm.slane %v377, 3
      %v896 = vperm.slane %v377, 4
      %v897 = vperm.slane %v377, 5
      %v898 = vperm.slane %v377, 6
      %v899 = vperm.slane %v377, 7
      %v909 = vperm.slane %v890, 0
      %v910 = vperm.slane %v890, 1
      %v911 = vperm.slane %v890, 2
      %v912 = vperm.slane %v890, 3
      %917 = vmatpush.msra.mxu0 %v438
      %918 = vmatpush.msra.mxu0 %v434
      %919 = vmatpush.msra.mxu0 %v430
      %920 = vmatpush.msra.mxu0 %v426
      %921 = vmatpush.msra.mxu0 %v422
      %922 = vmatpush.msra.mxu0 %v418
      %923 = vmatpush.msra.mxu0 %v414
      %924 = vmatpush.msra.mxu0 %v410
      %925 = vmatpush.msra.mxu0 %v406
      %926 = vmatpush.msra.mxu0 %v402
      %927 = vmatpush.msra.mxu0 %v398
      %928 = vmatpush.msra.mxu0 %v394
      %929 = vmatpush.msra.mxu0 %v390
      %930 = vmatpush.msra.mxu0 %v386
      %931 = vmatpush.msra.mxu0 %v382
      %932 = vmatpush.msra.mxu0 %v378
      %933 = vmatmul.f32.gmra.mxu0 %v892
      %v934 = vpop.f32.mrf.mxu0
      %v935 = vadd.f32 %v909, %v934
      %936 = vdwg.mxu0
      %937 = vmatpush.msra.mxu0 %v502
      %938 = vmatpush.msra.mxu0 %v498
      %939 = vmatpush.msra.mxu0 %v494
      %940 = vmatpush.msra.mxu0 %v490
      %941 = vmatpush.msra.mxu0 %v486
      %942 = vmatpush.msra.mxu0 %v482
      %943 = vmatpush.msra.mxu0 %v478
      %944 = vmatpush.msra.mxu0 %v474
      %945 = vmatpush.msra.mxu0 %v470
      %946 = vmatpush.msra.mxu0 %v466
      %947 = vmatpush.msra.mxu0 %v462
      %948 = vmatpush.msra.mxu0 %v458
      %949 = vmatpush.msra.mxu0 %v454
      %950 = vmatpush.msra.mxu0 %v450
      %951 = vmatpush.msra.mxu0 %v446
      %952 = vmatpush.msra.mxu0 %v442
      %953 = vmatmul.f32.gmra.mxu0 %v893
      %v954 = vpop.f32.mrf.mxu0
      %v955 = vadd.f32 %v935, %v954
      %956 = vdwg.mxu0
      %957 = vmatpush.msra.mxu0 %v566
      %958 = vmatpush.msra.mxu0 %v562
      %959 = vmatpush.msra.mxu0 %v558
      %960 = vmatpush.msra.mxu0 %v554
      %961 = vmatpush.msra.mxu0 %v550
      %962 = vmatpush.msra.mxu0 %v546
      %963 = vmatpush.msra.mxu0 %v542
      %964 = vmatpush.msra.mxu0 %v538
      %965 = vmatpush.msra.mxu0 %v534
      %966 = vmatpush.msra.mxu0 %v530
      %967 = vmatpush.msra.mxu0 %v526
      %968 = vmatpush.msra.mxu0 %v522
      %969 = vmatpush.msra.mxu0 %v518
      %970 = vmatpush.msra.mxu0 %v514
      %971 = vmatpush.msra.mxu0 %v510
      %972 = vmatpush.msra.mxu0 %v506
      %973 = vmatmul.f32.gmra.mxu0 %v894
      %v974 = vpop.f32.mrf.mxu0
      %v975 = vadd.f32 %v955, %v974
      %976 = vdwg.mxu0
      %977 = vmatpush.msra.mxu0 %v630
      %978 = vmatpush.msra.mxu0 %v626
      %979 = vmatpush.msra.mxu0 %v622
      %980 = vmatpush.msra.mxu0 %v618
      %981 = vmatpush.msra.mxu0 %v614
      %982 = vmatpush.msra.mxu0 %v610
      %983 = vmatpush.msra.mxu0 %v606
      %984 = vmatpush.msra.mxu0 %v602
      %985 = vmatpush.msra.mxu0 %v598
      %986 = vmatpush.msra.mxu0 %v594
      %987 = vmatpush.msra.mxu0 %v590
      %988 = vmatpush.msra.mxu0 %v586
      %989 = vmatpush.msra.mxu0 %v582
      %990 = vmatpush.msra.mxu0 %v578
      %991 = vmatpush.msra.mxu0 %v574
      %992 = vmatpush.msra.mxu0 %v570
      %993 = vmatmul.f32.gmra.mxu0 %v895
      %v994 = vpop.f32.mrf.mxu0
      %v995 = vadd.f32 %v975, %v994
      %996 = vdwg.mxu0
      %997 = vmatpush.msra.mxu0 %v694
      %998 = vmatpush.msra.mxu0 %v690
      %999 = vmatpush.msra.mxu0 %v686
      %1000 = vmatpush.msra.mxu0 %v682
      %1001 = vmatpush.msra.mxu0 %v678
      %1002 = vmatpush.msra.mxu0 %v674
      %1003 = vmatpush.msra.mxu0 %v670
      %1004 = vmatpush.msra.mxu0 %v666
      %1005 = vmatpush.msra.mxu0 %v662
      %1006 = vmatpush.msra.mxu0 %v658
      %1007 = vmatpush.msra.mxu0 %v654
      %1008 = vmatpush.msra.mxu0 %v650
      %1009 = vmatpush.msra.mxu0 %v646
      %1010 = vmatpush.msra.mxu0 %v642
      %1011 = vmatpush.msra.mxu0 %v638
      %1012 = vmatpush.msra.mxu0 %v634
      %1013 = vmatmul.f32.gmra.mxu0 %v896
      %v1014 = vpop.f32.mrf.mxu0
      %v1015 = vadd.f32 %v995, %v1014
      %1016 = vdwg.mxu0
      %1017 = vmatpush.msra.mxu0 %v758
      %1018 = vmatpush.msra.mxu0 %v754
      %1019 = vmatpush.msra.mxu0 %v750
      %1020 = vmatpush.msra.mxu0 %v746
      %1021 = vmatpush.msra.mxu0 %v742
      %1022 = vmatpush.msra.mxu0 %v738
      %1023 = vmatpush.msra.mxu0 %v734
      %1024 = vmatpush.msra.mxu0 %v730
      %1025 = vmatpush.msra.mxu0 %v726
      %1026 = vmatpush.msra.mxu0 %v722
      %1027 = vmatpush.msra.mxu0 %v718
      %1028 = vmatpush.msra.mxu0 %v714
      %1029 = vmatpush.msra.mxu0 %v710
      %1030 = vmatpush.msra.mxu0 %v706
      %1031 = vmatpush.msra.mxu0 %v702
      %1032 = vmatpush.msra.mxu0 %v698
      %1033 = vmatmul.f32.gmra.mxu0 %v897
      %v1034 = vpop.f32.mrf.mxu0
      %v1035 = vadd.f32 %v1015, %v1034
      %1036 = vdwg.mxu0
      %1037 = vmatpush.msra.mxu0 %v822
      %1038 = vmatpush.msra.mxu0 %v818
      %1039 = vmatpush.msra.mxu0 %v814
      %1040 = vmatpush.msra.mxu0 %v810
      %1041 = vmatpush.msra.mxu0 %v806
      %1042 = vmatpush.msra.mxu0 %v802
      %1043 = vmatpush.msra.mxu0 %v798
      %1044 = vmatpush.msra.mxu0 %v794
      %1045 = vmatpush.msra.mxu0 %v790
      %1046 = vmatpush.msra.mxu0 %v786
      %1047 = vmatpush.msra.mxu0 %v782
      %1048 = vmatpush.msra.mxu0 %v778
      %1049 = vmatpush.msra.mxu0 %v774
      %1050 = vmatpush.msra.mxu0 %v770
      %1051 = vmatpush.msra.mxu0 %v766
      %1052 = vmatpush.msra.mxu0 %v762
      %1053 = vmatmul.f32.gmra.mxu0 %v898
      %v1054 = vpop.f32.mrf.mxu0
      %v1055 = vadd.f32 %v1035, %v1054
      %1056 = vdwg.mxu0
      %1057 = vmatpush.msra.mxu0 %v886
      %1058 = vmatpush.msra.mxu0 %v882
      %1059 = vmatpush.msra.mxu0 %v878
      %1060 = vmatpush.msra.mxu0 %v874
      %1061 = vmatpush.msra.mxu0 %v870
      %1062 = vmatpush.msra.mxu0 %v866
      %1063 = vmatpush.msra.mxu0 %v862
      %1064 = vmatpush.msra.mxu0 %v858
      %1065 = vmatpush.msra.mxu0 %v854
      %1066 = vmatpush.msra.mxu0 %v850
      %1067 = vmatpush.msra.mxu0 %v846
      %1068 = vmatpush.msra.mxu0 %v842
      %1069 = vmatpush.msra.mxu0 %v838
      %1070 = vmatpush.msra.mxu0 %v834
      %1071 = vmatpush.msra.mxu0 %v830
      %1072 = vmatpush.msra.mxu0 %v826
      %1073 = vmatmul.f32.gmra.mxu0 %v899
      %v1074 = vpop.f32.mrf.mxu0
      %v1075 = vadd.f32 %v1055, %v1074
      %1076 = vdwg.mxu0
      %1077 = vmatpush.msra.mxu0 %v439
      %1078 = vmatpush.msra.mxu0 %v435
      %1079 = vmatpush.msra.mxu0 %v431
      %1080 = vmatpush.msra.mxu0 %v427
      %1081 = vmatpush.msra.mxu0 %v423
      %1082 = vmatpush.msra.mxu0 %v419
      %1083 = vmatpush.msra.mxu0 %v415
      %1084 = vmatpush.msra.mxu0 %v411
      %1085 = vmatpush.msra.mxu0 %v407
      %1086 = vmatpush.msra.mxu0 %v403
      %1087 = vmatpush.msra.mxu0 %v399
      %1088 = vmatpush.msra.mxu0 %v395
      %1089 = vmatpush.msra.mxu0 %v391
      %1090 = vmatpush.msra.mxu0 %v387
      %1091 = vmatpush.msra.mxu0 %v383
      %1092 = vmatpush.msra.mxu0 %v379
      %1093 = vmatmul.f32.gmra.mxu0 %v892
      %v1094 = vpop.f32.mrf.mxu0
      %v1095 = vadd.f32 %v910, %v1094
      %1096 = vdwg.mxu0
      %1097 = vmatpush.msra.mxu0 %v503
      %1098 = vmatpush.msra.mxu0 %v499
      %1099 = vmatpush.msra.mxu0 %v495
      %1100 = vmatpush.msra.mxu0 %v491
      %1101 = vmatpush.msra.mxu0 %v487
      %1102 = vmatpush.msra.mxu0 %v483
      %1103 = vmatpush.msra.mxu0 %v479
      %1104 = vmatpush.msra.mxu0 %v475
      %1105 = vmatpush.msra.mxu0 %v471
      %1106 = vmatpush.msra.mxu0 %v467
      %1107 = vmatpush.msra.mxu0 %v463
      %1108 = vmatpush.msra.mxu0 %v459
      %1109 = vmatpush.msra.mxu0 %v455
      %1110 = vmatpush.msra.mxu0 %v451
      %1111 = vmatpush.msra.mxu0 %v447
      %1112 = vmatpush.msra.mxu0 %v443
      %1113 = vmatmul.f32.gmra.mxu0 %v893
      %v1114 = vpop.f32.mrf.mxu0
      %v1115 = vadd.f32 %v1095, %v1114
      %1116 = vdwg.mxu0
      %1117 = vmatpush.msra.mxu0 %v567
      %1118 = vmatpush.msra.mxu0 %v563
      %1119 = vmatpush.msra.mxu0 %v559
      %1120 = vmatpush.msra.mxu0 %v555
      %1121 = vmatpush.msra.mxu0 %v551
      %1122 = vmatpush.msra.mxu0 %v547
      %1123 = vmatpush.msra.mxu0 %v543
      %1124 = vmatpush.msra.mxu0 %v539
      %1125 = vmatpush.msra.mxu0 %v535
      %1126 = vmatpush.msra.mxu0 %v531
      %1127 = vmatpush.msra.mxu0 %v527
      %1128 = vmatpush.msra.mxu0 %v523
      %1129 = vmatpush.msra.mxu0 %v519
      %1130 = vmatpush.msra.mxu0 %v515
      %1131 = vmatpush.msra.mxu0 %v511
      %1132 = vmatpush.msra.mxu0 %v507
      %1133 = vmatmul.f32.gmra.mxu0 %v894
      %v1134 = vpop.f32.mrf.mxu0
      %v1135 = vadd.f32 %v1115, %v1134
      %1136 = vdwg.mxu0
      %1137 = vmatpush.msra.mxu0 %v631
      %1138 = vmatpush.msra.mxu0 %v627
      %1139 = vmatpush.msra.mxu0 %v623
      %1140 = vmatpush.msra.mxu0 %v619
      %1141 = vmatpush.msra.mxu0 %v615
      %1142 = vmatpush.msra.mxu0 %v611
      %1143 = vmatpush.msra.mxu0 %v607
      %1144 = vmatpush.msra.mxu0 %v603
      %1145 = vmatpush.msra.mxu0 %v599
      %1146 = vmatpush.msra.mxu0 %v595
      %1147 = vmatpush.msra.mxu0 %v591
      %1148 = vmatpush.msra.mxu0 %v587
      %1149 = vmatpush.msra.mxu0 %v583
      %1150 = vmatpush.msra.mxu0 %v579
      %1151 = vmatpush.msra.mxu0 %v575
      %1152 = vmatpush.msra.mxu0 %v571
      %1153 = vmatmul.f32.gmra.mxu0 %v895
      %v1154 = vpop.f32.mrf.mxu0
      %v1155 = vadd.f32 %v1135, %v1154
      %1156 = vdwg.mxu0
      %1157 = vmatpush.msra.mxu0 %v695
      %1158 = vmatpush.msra.mxu0 %v691
      %1159 = vmatpush.msra.mxu0 %v687
      %1160 = vmatpush.msra.mxu0 %v683
      %1161 = vmatpush.msra.mxu0 %v679
      %1162 = vmatpush.msra.mxu0 %v675
      %1163 = vmatpush.msra.mxu0 %v671
      %1164 = vmatpush.msra.mxu0 %v667
      %1165 = vmatpush.msra.mxu0 %v663
      %1166 = vmatpush.msra.mxu0 %v659
      %1167 = vmatpush.msra.mxu0 %v655
      %1168 = vmatpush.msra.mxu0 %v651
      %1169 = vmatpush.msra.mxu0 %v647
      %1170 = vmatpush.msra.mxu0 %v643
      %1171 = vmatpush.msra.mxu0 %v639
      %1172 = vmatpush.msra.mxu0 %v635
      %1173 = vmatmul.f32.gmra.mxu0 %v896
      %v1174 = vpop.f32.mrf.mxu0
      %v1175 = vadd.f32 %v1155, %v1174
      %1176 = vdwg.mxu0
      %1177 = vmatpush.msra.mxu0 %v759
      %1178 = vmatpush.msra.mxu0 %v755
      %1179 = vmatpush.msra.mxu0 %v751
      %1180 = vmatpush.msra.mxu0 %v747
      %1181 = vmatpush.msra.mxu0 %v743
      %1182 = vmatpush.msra.mxu0 %v739
      %1183 = vmatpush.msra.mxu0 %v735
      %1184 = vmatpush.msra.mxu0 %v731
      %1185 = vmatpush.msra.mxu0 %v727
      %1186 = vmatpush.msra.mxu0 %v723
      %1187 = vmatpush.msra.mxu0 %v719
      %1188 = vmatpush.msra.mxu0 %v715
      %1189 = vmatpush.msra.mxu0 %v711
      %1190 = vmatpush.msra.mxu0 %v707
      %1191 = vmatpush.msra.mxu0 %v703
      %1192 = vmatpush.msra.mxu0 %v699
      %1193 = vmatmul.f32.gmra.mxu0 %v897
      %v1194 = vpop.f32.mrf.mxu0
      %v1195 = vadd.f32 %v1175, %v1194
      %1196 = vdwg.mxu0
      %1197 = vmatpush.msra.mxu0 %v823
      %1198 = vmatpush.msra.mxu0 %v819
      %1199 = vmatpush.msra.mxu0 %v815
      %1200 = vmatpush.msra.mxu0 %v811
      %1201 = vmatpush.msra.mxu0 %v807
      %1202 = vmatpush.msra.mxu0 %v803
      %1203 = vmatpush.msra.mxu0 %v799
      %1204 = vmatpush.msra.mxu0 %v795
      %1205 = vmatpush.msra.mxu0 %v791
      %1206 = vmatpush.msra.mxu0 %v787
      %1207 = vmatpush.msra.mxu0 %v783
      %1208 = vmatpush.msra.mxu0 %v779
      %1209 = vmatpush.msra.mxu0 %v775
      %1210 = vmatpush.msra.mxu0 %v771
      %1211 = vmatpush.msra.mxu0 %v767
      %1212 = vmatpush.msra.mxu0 %v763
      %1213 = vmatmul.f32.gmra.mxu0 %v898
      %v1214 = vpop.f32.mrf.mxu0
      %v1215 = vadd.f32 %v1195, %v1214
      %1216 = vdwg.mxu0
      %1217 = vmatpush.msra.mxu0 %v887
      %1218 = vmatpush.msra.mxu0 %v883
      %1219 = vmatpush.msra.mxu0 %v879
      %1220 = vmatpush.msra.mxu0 %v875
      %1221 = vmatpush.msra.mxu0 %v871
      %1222 = vmatpush.msra.mxu0 %v867
      %1223 = vmatpush.msra.mxu0 %v863
      %1224 = vmatpush.msra.mxu0 %v859
      %1225 = vmatpush.msra.mxu0 %v855
      %1226 = vmatpush.msra.mxu0 %v851
      %1227 = vmatpush.msra.mxu0 %v847
      %1228 = vmatpush.msra.mxu0 %v843
      %1229 = vmatpush.msra.mxu0 %v839
      %1230 = vmatpush.msra.mxu0 %v835
      %1231 = vmatpush.msra.mxu0 %v831
      %1232 = vmatpush.msra.mxu0 %v827
      %1233 = vmatmul.f32.gmra.mxu0 %v899
      %v1234 = vpop.f32.mrf.mxu0
      %v1235 = vadd.f32 %v1215, %v1234
      %1236 = vdwg.mxu0
      %1237 = vmatpush.msra.mxu0 %v440
      %1238 = vmatpush.msra.mxu0 %v436
      %1239 = vmatpush.msra.mxu0 %v432
      %1240 = vmatpush.msra.mxu0 %v428
      %1241 = vmatpush.msra.mxu0 %v424
      %1242 = vmatpush.msra.mxu0 %v420
      %1243 = vmatpush.msra.mxu0 %v416
      %1244 = vmatpush.msra.mxu0 %v412
      %1245 = vmatpush.msra.mxu0 %v408
      %1246 = vmatpush.msra.mxu0 %v404
      %1247 = vmatpush.msra.mxu0 %v400
      %1248 = vmatpush.msra.mxu0 %v396
      %1249 = vmatpush.msra.mxu0 %v392
      %1250 = vmatpush.msra.mxu0 %v388
      %1251 = vmatpush.msra.mxu0 %v384
      %1252 = vmatpush.msra.mxu0 %v380
      %1253 = vmatmul.f32.gmra.mxu0 %v892
      %v1254 = vpop.f32.mrf.mxu0
      %v1255 = vadd.f32 %v911, %v1254
      %1256 = vdwg.mxu0
      %1257 = vmatpush.msra.mxu0 %v504
      %1258 = vmatpush.msra.mxu0 %v500
      %1259 = vmatpush.msra.mxu0 %v496
      %1260 = vmatpush.msra.mxu0 %v492
      %1261 = vmatpush.msra.mxu0 %v488
      %1262 = vmatpush.msra.mxu0 %v484
      %1263 = vmatpush.msra.mxu0 %v480
      %1264 = vmatpush.msra.mxu0 %v476
      %1265 = vmatpush.msra.mxu0 %v472
      %1266 = vmatpush.msra.mxu0 %v468
      %1267 = vmatpush.msra.mxu0 %v464
      %1268 = vmatpush.msra.mxu0 %v460
      %1269 = vmatpush.msra.mxu0 %v456
      %1270 = vmatpush.msra.mxu0 %v452
      %1271 = vmatpush.msra.mxu0 %v448
      %1272 = vmatpush.msra.mxu0 %v444
      %1273 = vmatmul.f32.gmra.mxu0 %v893
      %v1274 = vpop.f32.mrf.mxu0
      %v1275 = vadd.f32 %v1255, %v1274
      %1276 = vdwg.mxu0
      %1277 = vmatpush.msra.mxu0 %v568
      %1278 = vmatpush.msra.mxu0 %v564
      %1279 = vmatpush.msra.mxu0 %v560
      %1280 = vmatpush.msra.mxu0 %v556
      %1281 = vmatpush.msra.mxu0 %v552
      %1282 = vmatpush.msra.mxu0 %v548
      %1283 = vmatpush.msra.mxu0 %v544
      %1284 = vmatpush.msra.mxu0 %v540
      %1285 = vmatpush.msra.mxu0 %v536
      %1286 = vmatpush.msra.mxu0 %v532
      %1287 = vmatpush.msra.mxu0 %v528
      %1288 = vmatpush.msra.mxu0 %v524
      %1289 = vmatpush.msra.mxu0 %v520
      %1290 = vmatpush.msra.mxu0 %v516
      %1291 = vmatpush.msra.mxu0 %v512
      %1292 = vmatpush.msra.mxu0 %v508
      %1293 = vmatmul.f32.gmra.mxu0 %v894
      %v1294 = vpop.f32.mrf.mxu0
      %v1295 = vadd.f32 %v1275, %v1294
      %1296 = vdwg.mxu0
      %1297 = vmatpush.msra.mxu0 %v632
      %1298 = vmatpush.msra.mxu0 %v628
      %1299 = vmatpush.msra.mxu0 %v624
      %1300 = vmatpush.msra.mxu0 %v620
      %1301 = vmatpush.msra.mxu0 %v616
      %1302 = vmatpush.msra.mxu0 %v612
      %1303 = vmatpush.msra.mxu0 %v608
      %1304 = vmatpush.msra.mxu0 %v604
      %1305 = vmatpush.msra.mxu0 %v600
      %1306 = vmatpush.msra.mxu0 %v596
      %1307 = vmatpush.msra.mxu0 %v592
      %1308 = vmatpush.msra.mxu0 %v588
      %1309 = vmatpush.msra.mxu0 %v584
      %1310 = vmatpush.msra.mxu0 %v580
      %1311 = vmatpush.msra.mxu0 %v576
      %1312 = vmatpush.msra.mxu0 %v572
      %1313 = vmatmul.f32.gmra.mxu0 %v895
      %v1314 = vpop.f32.mrf.mxu0
      %v1315 = vadd.f32 %v1295, %v1314
      %1316 = vdwg.mxu0
      %1317 = vmatpush.msra.mxu0 %v696
      %1318 = vmatpush.msra.mxu0 %v692
      %1319 = vmatpush.msra.mxu0 %v688
      %1320 = vmatpush.msra.mxu0 %v684
      %1321 = vmatpush.msra.mxu0 %v680
      %1322 = vmatpush.msra.mxu0 %v676
      %1323 = vmatpush.msra.mxu0 %v672
      %1324 = vmatpush.msra.mxu0 %v668
      %1325 = vmatpush.msra.mxu0 %v664
      %1326 = vmatpush.msra.mxu0 %v660
      %1327 = vmatpush.msra.mxu0 %v656
      %1328 = vmatpush.msra.mxu0 %v652
      %1329 = vmatpush.msra.mxu0 %v648
      %1330 = vmatpush.msra.mxu0 %v644
      %1331 = vmatpush.msra.mxu0 %v640
      %1332 = vmatpush.msra.mxu0 %v636
      %1333 = vmatmul.f32.gmra.mxu0 %v896
      %v1334 = vpop.f32.mrf.mxu0
      %v1335 = vadd.f32 %v1315, %v1334
      %1336 = vdwg.mxu0
      %1337 = vmatpush.msra.mxu0 %v760
      %1338 = vmatpush.msra.mxu0 %v756
      %1339 = vmatpush.msra.mxu0 %v752
      %1340 = vmatpush.msra.mxu0 %v748
      %1341 = vmatpush.msra.mxu0 %v744
      %1342 = vmatpush.msra.mxu0 %v740
      %1343 = vmatpush.msra.mxu0 %v736
      %1344 = vmatpush.msra.mxu0 %v732
      %1345 = vmatpush.msra.mxu0 %v728
      %1346 = vmatpush.msra.mxu0 %v724
      %1347 = vmatpush.msra.mxu0 %v720
      %1348 = vmatpush.msra.mxu0 %v716
      %1349 = vmatpush.msra.mxu0 %v712
      %1350 = vmatpush.msra.mxu0 %v708
      %1351 = vmatpush.msra.mxu0 %v704
      %1352 = vmatpush.msra.mxu0 %v700
      %1353 = vmatmul.f32.gmra.mxu0 %v897
      %v1354 = vpop.f32.mrf.mxu0
      %v1355 = vadd.f32 %v1335, %v1354
      %1356 = vdwg.mxu0
      %1357 = vmatpush.msra.mxu0 %v824
      %1358 = vmatpush.msra.mxu0 %v820
      %1359 = vmatpush.msra.mxu0 %v816
      %1360 = vmatpush.msra.mxu0 %v812
      %1361 = vmatpush.msra.mxu0 %v808
      %1362 = vmatpush.msra.mxu0 %v804
      %1363 = vmatpush.msra.mxu0 %v800
      %1364 = vmatpush.msra.mxu0 %v796
      %1365 = vmatpush.msra.mxu0 %v792
      %1366 = vmatpush.msra.mxu0 %v788
      %1367 = vmatpush.msra.mxu0 %v784
      %1368 = vmatpush.msra.mxu0 %v780
      %1369 = vmatpush.msra.mxu0 %v776
      %1370 = vmatpush.msra.mxu0 %v772
      %1371 = vmatpush.msra.mxu0 %v768
      %1372 = vmatpush.msra.mxu0 %v764
      %1373 = vmatmul.f32.gmra.mxu0 %v898
      %v1374 = vpop.f32.mrf.mxu0
      %v1375 = vadd.f32 %v1355, %v1374
      %1376 = vdwg.mxu0
      %1377 = vmatpush.msra.mxu0 %v888
      %1378 = vmatpush.msra.mxu0 %v884
      %1379 = vmatpush.msra.mxu0 %v880
      %1380 = vmatpush.msra.mxu0 %v876
      %1381 = vmatpush.msra.mxu0 %v872
      %1382 = vmatpush.msra.mxu0 %v868
      %1383 = vmatpush.msra.mxu0 %v864
      %1384 = vmatpush.msra.mxu0 %v860
      %1385 = vmatpush.msra.mxu0 %v856
      %1386 = vmatpush.msra.mxu0 %v852
      %1387 = vmatpush.msra.mxu0 %v848
      %1388 = vmatpush.msra.mxu0 %v844
      %1389 = vmatpush.msra.mxu0 %v840
      %1390 = vmatpush.msra.mxu0 %v836
      %1391 = vmatpush.msra.mxu0 %v832
      %1392 = vmatpush.msra.mxu0 %v828
      %1393 = vmatmul.f32.gmra.mxu0 %v899
      %v1394 = vpop.f32.mrf.mxu0
      %v1395 = vadd.f32 %v1375, %v1394
      %1396 = vdwg.mxu0
      %1397 = vmatpush.msra.mxu0 %v441
      %1398 = vmatpush.msra.mxu0 %v437
      %1399 = vmatpush.msra.mxu0 %v433
      %1400 = vmatpush.msra.mxu0 %v429
      %1401 = vmatpush.msra.mxu0 %v425
      %1402 = vmatpush.msra.mxu0 %v421
      %1403 = vmatpush.msra.mxu0 %v417
      %1404 = vmatpush.msra.mxu0 %v413
      %1405 = vmatpush.msra.mxu0 %v409
      %1406 = vmatpush.msra.mxu0 %v405
      %1407 = vmatpush.msra.mxu0 %v401
      %1408 = vmatpush.msra.mxu0 %v397
      %1409 = vmatpush.msra.mxu0 %v393
      %1410 = vmatpush.msra.mxu0 %v389
      %1411 = vmatpush.msra.mxu0 %v385
      %1412 = vmatpush.msra.mxu0 %v381
      %1413 = vmatmul.f32.gmra.mxu0 %v892
      %v1414 = vpop.f32.mrf.mxu0
      %v1415 = vadd.f32 %v912, %v1414
      %1416 = vdwg.mxu0
      %1417 = vmatpush.msra.mxu0 %v505
      %1418 = vmatpush.msra.mxu0 %v501
      %1419 = vmatpush.msra.mxu0 %v497
      %1420 = vmatpush.msra.mxu0 %v493
      %1421 = vmatpush.msra.mxu0 %v489
      %1422 = vmatpush.msra.mxu0 %v485
      %1423 = vmatpush.msra.mxu0 %v481
      %1424 = vmatpush.msra.mxu0 %v477
      %1425 = vmatpush.msra.mxu0 %v473
      %1426 = vmatpush.msra.mxu0 %v469
      %1427 = vmatpush.msra.mxu0 %v465
      %1428 = vmatpush.msra.mxu0 %v461
      %1429 = vmatpush.msra.mxu0 %v457
      %1430 = vmatpush.msra.mxu0 %v453
      %1431 = vmatpush.msra.mxu0 %v449
      %1432 = vmatpush.msra.mxu0 %v445
      %1433 = vmatmul.f32.gmra.mxu0 %v893
      %v1434 = vpop.f32.mrf.mxu0
      %v1435 = vadd.f32 %v1415, %v1434
      %1436 = vdwg.mxu0
      %1437 = vmatpush.msra.mxu0 %v569
      %1438 = vmatpush.msra.mxu0 %v565
      %1439 = vmatpush.msra.mxu0 %v561
      %1440 = vmatpush.msra.mxu0 %v557
      %1441 = vmatpush.msra.mxu0 %v553
      %1442 = vmatpush.msra.mxu0 %v549
      %1443 = vmatpush.msra.mxu0 %v545
      %1444 = vmatpush.msra.mxu0 %v541
      %1445 = vmatpush.msra.mxu0 %v537
      %1446 = vmatpush.msra.mxu0 %v533
      %1447 = vmatpush.msra.mxu0 %v529
      %1448 = vmatpush.msra.mxu0 %v525
      %1449 = vmatpush.msra.mxu0 %v521
      %1450 = vmatpush.msra.mxu0 %v517
      %1451 = vmatpush.msra.mxu0 %v513
      %1452 = vmatpush.msra.mxu0 %v509
      %1453 = vmatmul.f32.gmra.mxu0 %v894
      %v1454 = vpop.f32.mrf.mxu0
      %v1455 = vadd.f32 %v1435, %v1454
      %1456 = vdwg.mxu0
      %1457 = vmatpush.msra.mxu0 %v633
      %1458 = vmatpush.msra.mxu0 %v629
      %1459 = vmatpush.msra.mxu0 %v625
      %1460 = vmatpush.msra.mxu0 %v621
      %1461 = vmatpush.msra.mxu0 %v617
      %1462 = vmatpush.msra.mxu0 %v613
      %1463 = vmatpush.msra.mxu0 %v609
      %1464 = vmatpush.msra.mxu0 %v605
      %1465 = vmatpush.msra.mxu0 %v601
      %1466 = vmatpush.msra.mxu0 %v597
      %1467 = vmatpush.msra.mxu0 %v593
      %1468 = vmatpush.msra.mxu0 %v589
      %1469 = vmatpush.msra.mxu0 %v585
      %1470 = vmatpush.msra.mxu0 %v581
      %1471 = vmatpush.msra.mxu0 %v577
      %1472 = vmatpush.msra.mxu0 %v573
      %1473 = vmatmul.f32.gmra.mxu0 %v895
      %v1474 = vpop.f32.mrf.mxu0
      %v1475 = vadd.f32 %v1455, %v1474
      %1476 = vdwg.mxu0
      %1477 = vmatpush.msra.mxu0 %v697
      %1478 = vmatpush.msra.mxu0 %v693
      %1479 = vmatpush.msra.mxu0 %v689
      %1480 = vmatpush.msra.mxu0 %v685
      %1481 = vmatpush.msra.mxu0 %v681
      %1482 = vmatpush.msra.mxu0 %v677
      %1483 = vmatpush.msra.mxu0 %v673
      %1484 = vmatpush.msra.mxu0 %v669
      %1485 = vmatpush.msra.mxu0 %v665
      %1486 = vmatpush.msra.mxu0 %v661
      %1487 = vmatpush.msra.mxu0 %v657
      %1488 = vmatpush.msra.mxu0 %v653
      %1489 = vmatpush.msra.mxu0 %v649
      %1490 = vmatpush.msra.mxu0 %v645
      %1491 = vmatpush.msra.mxu0 %v641
      %1492 = vmatpush.msra.mxu0 %v637
      %1493 = vmatmul.f32.gmra.mxu0 %v896
      %v1494 = vpop.f32.mrf.mxu0
      %v1495 = vadd.f32 %v1475, %v1494
      %1496 = vdwg.mxu0
      %1497 = vmatpush.msra.mxu0 %v761
      %1498 = vmatpush.msra.mxu0 %v757
      %1499 = vmatpush.msra.mxu0 %v753
      %1500 = vmatpush.msra.mxu0 %v749
      %1501 = vmatpush.msra.mxu0 %v745
      %1502 = vmatpush.msra.mxu0 %v741
      %1503 = vmatpush.msra.mxu0 %v737
      %1504 = vmatpush.msra.mxu0 %v733
      %1505 = vmatpush.msra.mxu0 %v729
      %1506 = vmatpush.msra.mxu0 %v725
      %1507 = vmatpush.msra.mxu0 %v721
      %1508 = vmatpush.msra.mxu0 %v717
      %1509 = vmatpush.msra.mxu0 %v713
      %1510 = vmatpush.msra.mxu0 %v709
      %1511 = vmatpush.msra.mxu0 %v705
      %1512 = vmatpush.msra.mxu0 %v701
      %1513 = vmatmul.f32.gmra.mxu0 %v897
      %v1514 = vpop.f32.mrf.mxu0
      %v1515 = vadd.f32 %v1495, %v1514
      %1516 = vdwg.mxu0
      %1517 = vmatpush.msra.mxu0 %v825
      %1518 = vmatpush.msra.mxu0 %v821
      %1519 = vmatpush.msra.mxu0 %v817
      %1520 = vmatpush.msra.mxu0 %v813
      %1521 = vmatpush.msra.mxu0 %v809
      %1522 = vmatpush.msra.mxu0 %v805
      %1523 = vmatpush.msra.mxu0 %v801
      %1524 = vmatpush.msra.mxu0 %v797
      %1525 = vmatpush.msra.mxu0 %v793
      %1526 = vmatpush.msra.mxu0 %v789
      %1527 = vmatpush.msra.mxu0 %v785
      %1528 = vmatpush.msra.mxu0 %v781
      %1529 = vmatpush.msra.mxu0 %v777
      %1530 = vmatpush.msra.mxu0 %v773
      %1531 = vmatpush.msra.mxu0 %v769
      %1532 = vmatpush.msra.mxu0 %v765
      %1533 = vmatmul.f32.gmra.mxu0 %v898
      %v1534 = vpop.f32.mrf.mxu0
      %v1535 = vadd.f32 %v1515, %v1534
      %1536 = vdwg.mxu0
      %1537 = vmatpush.msra.mxu0 %v889
      %1538 = vmatpush.msra.mxu0 %v885
      %1539 = vmatpush.msra.mxu0 %v881
      %1540 = vmatpush.msra.mxu0 %v877
      %1541 = vmatpush.msra.mxu0 %v873
      %1542 = vmatpush.msra.mxu0 %v869
      %1543 = vmatpush.msra.mxu0 %v865
      %1544 = vmatpush.msra.mxu0 %v861
      %1545 = vmatpush.msra.mxu0 %v857
      %1546 = vmatpush.msra.mxu0 %v853
      %1547 = vmatpush.msra.mxu0 %v849
      %1548 = vmatpush.msra.mxu0 %v845
      %1549 = vmatpush.msra.mxu0 %v841
      %1550 = vmatpush.msra.mxu0 %v837
      %1551 = vmatpush.msra.mxu0 %v833
      %1552 = vmatpush.msra.mxu0 %v829
      %1553 = vmatmul.f32.gmra.mxu0 %v899
      %v1554 = vpop.f32.mrf.mxu0
      %v1555 = vadd.f32 %v1535, %v1554
      %1556 = vdwg.mxu0
      %v1557 = vld [vmem:[#allocation10] sm:$0xf]
      %v1558 = vld [vmem:[#allocation12] sm:$0xf]
      %v1559 = vsel %vm323, %v1075, 0.0
      %v1560 = vsel %vm323, %v1235, 0.0
      %v1561 = vadd.f32 %v1559, %v1560
      %v1562 = vsel %vm323, %v1395, 0.0
      %v1563 = vadd.f32 %v1561, %v1562
      %v1564 = vsel %vm323, %v1555, 0.0
      %v1565 = vadd.f32 %v1563, %v1564
      %1566 = vadd.xlane.f32.xlu0 %v1565
      %v1567 = vpop.xlane.xlu0 %1566
      %v1568 = vrcp.pop 512.0
      %v1569 = vmul.f32 512.0, %v1568
      %v1570 = vsub.f32 1.0, %v1569
      %v1571 = vmul.f32 %v1568, %v1570
      %v1572 = vadd.f32 %v1568, %v1571
      %vm1573 = vweird.f32 %v1568
      %v1574 = vsel %vm1573, %v1568, %v1572
      %v1575 = vmul.f32 %v1567, %v1574
      %v1576 = vsub.f32 %v1075, %v1575
      %v1577 = vsub.f32 %v1235, %v1575
      %v1578 = vsub.f32 %v1395, %v1575
      %v1579 = vsub.f32 %v1555, %v1575
      %v1580 = vmul.f32 %v1576, %v1576
      %v1581 = vmul.f32 %v1577, %v1577
      %v1582 = vmul.f32 %v1578, %v1578
      %v1583 = vmul.f32 %v1579, %v1579
      %v1584 = vsel %vm323, %v1580, 0.0
      %v1585 = vsel %vm323, %v1581, 0.0
      %v1586 = vadd.f32 %v1584, %v1585
      %v1587 = vsel %vm323, %v1582, 0.0
      %v1588 = vadd.f32 %v1586, %v1587
      %v1589 = vsel %vm323, %v1583, 0.0
      %v1590 = vadd.f32 %v1588, %v1589
      %1591 = vadd.xlane.f32.xlu0 %v1590
      %v1592 = vpop.xlane.xlu0 %1591
      %v1593 = vmul.f32 %v1592, %v1574
      %v1594 = vadd.f32 %v1593, 1e-05
      %v1595 = vrsqrt.pop %v1594
      %v1596 = vmul.f32 %v1595, %v1594
      %v1597 = vmul.f32 %v1596, %v1595
      %v1598 = vmul.f32 0.5, %v1597
      %v1599 = vsub.f32 1.5, %v1598
      %v1600 = vmul.f32 %v1595, %v1599
      %vm1601 = vweird.f32 %v1594
      %vm1602 = vweird.f32 %v1595
      %vm1603 = vmor %vm1601, %vm1602
      %v1604 = vsel %vm1603, %v1595, %v1600
      %v1605 = vmul.f32 %v1576, %v1604
      %v1606 = vmul.f32 %v1577, %v1604
      %v1607 = vmul.f32 %v1578, %v1604
      %v1608 = vmul.f32 %v1579, %v1604
      %v1610 = vperm.slane %v1557, 0
      %v1611 = vperm.slane %v1557, 1
      %v1612 = vperm.slane %v1557, 2
      %v1613 = vperm.slane %v1557, 3
      %v1618 = vmul.f32 %v1605, %v1610
      %v1619 = vmul.f32 %v1606, %v1611
      %v1620 = vmul.f32 %v1607, %v1612
      %v1621 = vmul.f32 %v1608, %v1613
      %v1623 = vperm.slane %v1558, 0
      %v1624 = vperm.slane %v1558, 1
      %v1625 = vperm.slane %v1558, 2
      %v1626 = vperm.slane %v1558, 3
      %v1631 = vadd.f32 %v1618, %v1623
      %v1632 = vadd.f32 %v1619, %v1624
      %v1633 = vadd.f32 %v1620, %v1625
      %v1634 = vadd.f32 %v1621, %v1626
      %v1635 = vmax.f32 %v1631, 0.0
      %v1636 = vmax.f32 %v1632, 0.0
      %v1637 = vmax.f32 %v1633, 0.0
      %v1638 = vmax.f32 %v1634, 0.0
      %v1639 = vld [vmem:[#allocation13] sm:$0xff]
      %v1640 = vld [vmem:[#allocation13 + $0x8] sm:$0xff]
      %v1641 = vld [vmem:[#allocation13 + $0x10] sm:$0xff]
      %v1642 = vld [vmem:[#allocation13 + $0x18] sm:$0xff]
      %v1643 = vld [vmem:[#allocation13 + $0x20] sm:$0xff]
      %v1644 = vld [vmem:[#allocation13 + $0x28] sm:$0xff]
      %v1645 = vld [vmem:[#allocation13 + $0x30] sm:$0xff]
      %v1646 = vld [vmem:[#allocation13 + $0x38] sm:$0xff]
      %v1647 = vld [vmem:[#allocation13 + $0x40] sm:$0xff]
      %v1648 = vld [vmem:[#allocation13 + $0x48] sm:$0xff]
      %v1649 = vld [vmem:[#allocation13 + $0x50] sm:$0xff]
      %v1650 = vld [vmem:[#allocation13 + $0x58] sm:$0xff]
      %v1651 = vld [vmem:[#allocation13 + $0x60] sm:$0xff]
      %v1652 = vld [vmem:[#allocation13 + $0x68] sm:$0xff]
      %v1653 = vld [vmem:[#allocation13 + $0x70] sm:$0xff]
      %v1654 = vld [vmem:[#allocation13 + $0x78] sm:$0xff]
      %v1655 = vld [vmem:[#allocation13 + $0x80] sm:$0xff]
      %v1656 = vld [vmem:[#allocation13 + $0x88] sm:$0xff]
      %v1657 = vld [vmem:[#allocation13 + $0x90] sm:$0xff]
      %v1658 = vld [vmem:[#allocation13 + $0x98] sm:$0xff]
      %v1659 = vld [vmem:[#allocation13 + $0xa0] sm:$0xff]
      %v1660 = vld [vmem:[#allocation13 + $0xa8] sm:$0xff]
      %v1661 = vld [vmem:[#allocation13 + $0xb0] sm:$0xff]
      %v1662 = vld [vmem:[#allocation13 + $0xb8] sm:$0xff]
      %v1663 = vld [vmem:[#allocation13 + $0xc0] sm:$0xff]
      %v1664 = vld [vmem:[#allocation13 + $0xc8] sm:$0xff]
      %v1665 = vld [vmem:[#allocation13 + $0xd0] sm:$0xff]
      %v1666 = vld [vmem:[#allocation13 + $0xd8] sm:$0xff]
      %v1667 = vld [vmem:[#allocation13 + $0xe0] sm:$0xff]
      %v1668 = vld [vmem:[#allocation13 + $0xe8] sm:$0xff]
      %v1669 = vld [vmem:[#allocation13 + $0xf0] sm:$0xff]
      %v1670 = vld [vmem:[#allocation13 + $0xf8] sm:$0xff]
      %v1671 = vld [vmem:[#allocation13 + $0x100] sm:$0xff]
      %v1672 = vld [vmem:[#allocation13 + $0x108] sm:$0xff]
      %v1673 = vld [vmem:[#allocation13 + $0x110] sm:$0xff]
      %v1674 = vld [vmem:[#allocation13 + $0x118] sm:$0xff]
      %v1675 = vld [vmem:[#allocation13 + $0x120] sm:$0xff]
      %v1676 = vld [vmem:[#allocation13 + $0x128] sm:$0xff]
      %v1677 = vld [vmem:[#allocation13 + $0x130] sm:$0xff]
      %v1678 = vld [vmem:[#allocation13 + $0x138] sm:$0xff]
      %v1679 = vld [vmem:[#allocation13 + $0x140] sm:$0xff]
      %v1680 = vld [vmem:[#allocation13 + $0x148] sm:$0xff]
      %v1681 = vld [vmem:[#allocation13 + $0x150] sm:$0xff]
      %v1682 = vld [vmem:[#allocation13 + $0x158] sm:$0xff]
      %v1683 = vld [vmem:[#allocation13 + $0x160] sm:$0xff]
      %v1684 = vld [vmem:[#allocation13 + $0x168] sm:$0xff]
      %v1685 = vld [vmem:[#allocation13 + $0x170] sm:$0xff]
      %v1686 = vld [vmem:[#allocation13 + $0x178] sm:$0xff]
      %v1687 = vld [vmem:[#allocation13 + $0x180] sm:$0xff]
      %v1688 = vld [vmem:[#allocation13 + $0x188] sm:$0xff]
      %v1689 = vld [vmem:[#allocation13 + $0x190] sm:$0xff]
      %v1690 = vld [vmem:[#allocation13 + $0x198] sm:$0xff]
      %v1691 = vld [vmem:[#allocation13 + $0x1a0] sm:$0xff]
      %v1692 = vld [vmem:[#allocation13 + $0x1a8] sm:$0xff]
      %v1693 = vld [vmem:[#allocation13 + $0x1b0] sm:$0xff]
      %v1694 = vld [vmem:[#allocation13 + $0x1b8] sm:$0xff]
      %v1695 = vld [vmem:[#allocation13 + $0x1c0] sm:$0xff]
      %v1696 = vld [vmem:[#allocation13 + $0x1c8] sm:$0xff]
      %v1697 = vld [vmem:[#allocation13 + $0x1d0] sm:$0xff]
      %v1698 = vld [vmem:[#allocation13 + $0x1d8] sm:$0xff]
      %v1699 = vld [vmem:[#allocation13 + $0x1e0] sm:$0xff]
      %v1700 = vld [vmem:[#allocation13 + $0x1e8] sm:$0xff]
      %v1701 = vld [vmem:[#allocation13 + $0x1f0] sm:$0xff]
      %v1702 = vld [vmem:[#allocation13 + $0x1f8] sm:$0xff]
      %v1703 = vld [vmem:[#allocation13 + $0x200] sm:$0xff]
      %v1704 = vld [vmem:[#allocation13 + $0x208] sm:$0xff]
      %v1705 = vld [vmem:[#allocation13 + $0x210] sm:$0xff]
      %v1706 = vld [vmem:[#allocation13 + $0x218] sm:$0xff]
      %v1707 = vld [vmem:[#allocation13 + $0x220] sm:$0xff]
      %v1708 = vld [vmem:[#allocation13 + $0x228] sm:$0xff]
      %v1709 = vld [vmem:[#allocation13 + $0x230] sm:$0xff]
      %v1710 = vld [vmem:[#allocation13 + $0x238] sm:$0xff]
      %v1711 = vld [vmem:[#allocation13 + $0x240] sm:$0xff]
      %v1712 = vld [vmem:[#allocation13 + $0x248] sm:$0xff]
      %v1713 = vld [vmem:[#allocation13 + $0x250] sm:$0xff]
      %v1714 = vld [vmem:[#allocation13 + $0x258] sm:$0xff]
      %v1715 = vld [vmem:[#allocation13 + $0x260] sm:$0xff]
      %v1716 = vld [vmem:[#allocation13 + $0x268] sm:$0xff]
      %v1717 = vld [vmem:[#allocation13 + $0x270] sm:$0xff]
      %v1718 = vld [vmem:[#allocation13 + $0x278] sm:$0xff]
      %v1719 = vld [vmem:[#allocation13 + $0x280] sm:$0xff]
      %v1720 = vld [vmem:[#allocation13 + $0x288] sm:$0xff]
      %v1721 = vld [vmem:[#allocation13 + $0x290] sm:$0xff]
      %v1722 = vld [vmem:[#allocation13 + $0x298] sm:$0xff]
      %v1723 = vld [vmem:[#allocation13 + $0x2a0] sm:$0xff]
      %v1724 = vld [vmem:[#allocation13 + $0x2a8] sm:$0xff]
      %v1725 = vld [vmem:[#allocation13 + $0x2b0] sm:$0xff]
      %v1726 = vld [vmem:[#allocation13 + $0x2b8] sm:$0xff]
      %v1727 = vld [vmem:[#allocation13 + $0x2c0] sm:$0xff]
      %v1728 = vld [vmem:[#allocation13 + $0x2c8] sm:$0xff]
      %v1729 = vld [vmem:[#allocation13 + $0x2d0] sm:$0xff]
      %v1730 = vld [vmem:[#allocation13 + $0x2d8] sm:$0xff]
      %v1731 = vld [vmem:[#allocation13 + $0x2e0] sm:$0xff]
      %v1732 = vld [vmem:[#allocation13 + $0x2e8] sm:$0xff]
      %v1733 = vld [vmem:[#allocation13 + $0x2f0] sm:$0xff]
      %v1734 = vld [vmem:[#allocation13 + $0x2f8] sm:$0xff]
      %v1735 = vld [vmem:[#allocation13 + $0x300] sm:$0xff]
      %v1736 = vld [vmem:[#allocation13 + $0x308] sm:$0xff]
      %v1737 = vld [vmem:[#allocation13 + $0x310] sm:$0xff]
      %v1738 = vld [vmem:[#allocation13 + $0x318] sm:$0xff]
      %v1739 = vld [vmem:[#allocation13 + $0x320] sm:$0xff]
      %v1740 = vld [vmem:[#allocation13 + $0x328] sm:$0xff]
      %v1741 = vld [vmem:[#allocation13 + $0x330] sm:$0xff]
      %v1742 = vld [vmem:[#allocation13 + $0x338] sm:$0xff]
      %v1743 = vld [vmem:[#allocation13 + $0x340] sm:$0xff]
      %v1744 = vld [vmem:[#allocation13 + $0x348] sm:$0xff]
      %v1745 = vld [vmem:[#allocation13 + $0x350] sm:$0xff]
      %v1746 = vld [vmem:[#allocation13 + $0x358] sm:$0xff]
      %v1747 = vld [vmem:[#allocation13 + $0x360] sm:$0xff]
      %v1748 = vld [vmem:[#allocation13 + $0x368] sm:$0xff]
      %v1749 = vld [vmem:[#allocation13 + $0x370] sm:$0xff]
      %v1750 = vld [vmem:[#allocation13 + $0x378] sm:$0xff]
      %v1751 = vld [vmem:[#allocation13 + $0x380] sm:$0xff]
      %v1752 = vld [vmem:[#allocation13 + $0x388] sm:$0xff]
      %v1753 = vld [vmem:[#allocation13 + $0x390] sm:$0xff]
      %v1754 = vld [vmem:[#allocation13 + $0x398] sm:$0xff]
      %v1755 = vld [vmem:[#allocation13 + $0x3a0] sm:$0xff]
      %v1756 = vld [vmem:[#allocation13 + $0x3a8] sm:$0xff]
      %v1757 = vld [vmem:[#allocation13 + $0x3b0] sm:$0xff]
      %v1758 = vld [vmem:[#allocation13 + $0x3b8] sm:$0xff]
      %v1759 = vld [vmem:[#allocation13 + $0x3c0] sm:$0xff]
      %v1760 = vld [vmem:[#allocation13 + $0x3c8] sm:$0xff]
      %v1761 = vld [vmem:[#allocation13 + $0x3d0] sm:$0xff]
      %v1762 = vld [vmem:[#allocation13 + $0x3d8] sm:$0xff]
      %v1763 = vld [vmem:[#allocation13 + $0x3e0] sm:$0xff]
      %v1764 = vld [vmem:[#allocation13 + $0x3e8] sm:$0xff]
      %v1765 = vld [vmem:[#allocation13 + $0x3f0] sm:$0xff]
      %v1766 = vld [vmem:[#allocation13 + $0x3f8] sm:$0xff]
      %v1767 = vld [vmem:[#allocation13 + $0x400] sm:$0xff]
      %v1768 = vld [vmem:[#allocation13 + $0x408] sm:$0xff]
      %v1769 = vld [vmem:[#allocation13 + $0x410] sm:$0xff]
      %v1770 = vld [vmem:[#allocation13 + $0x418] sm:$0xff]
      %v1771 = vld [vmem:[#allocation13 + $0x420] sm:$0xff]
      %v1772 = vld [vmem:[#allocation13 + $0x428] sm:$0xff]
      %v1773 = vld [vmem:[#allocation13 + $0x430] sm:$0xff]
      %v1774 = vld [vmem:[#allocation13 + $0x438] sm:$0xff]
      %v1775 = vld [vmem:[#allocation13 + $0x440] sm:$0xff]
      %v1776 = vld [vmem:[#allocation13 + $0x448] sm:$0xff]
      %v1777 = vld [vmem:[#allocation13 + $0x450] sm:$0xff]
      %v1778 = vld [vmem:[#allocation13 + $0x458] sm:$0xff]
      %v1779 = vld [vmem:[#allocation13 + $0x460] sm:$0xff]
      %v1780 = vld [vmem:[#allocation13 + $0x468] sm:$0xff]
      %v1781 = vld [vmem:[#allocation13 + $0x470] sm:$0xff]
      %v1782 = vld [vmem:[#allocation13 + $0x478] sm:$0xff]
      %v1783 = vld [vmem:[#allocation13 + $0x480] sm:$0xff]
      %v1784 = vld [vmem:[#allocation13 + $0x488] sm:$0xff]
      %v1785 = vld [vmem:[#allocation13 + $0x490] sm:$0xff]
      %v1786 = vld [vmem:[#allocation13 + $0x498] sm:$0xff]
      %v1787 = vld [vmem:[#allocation13 + $0x4a0] sm:$0xff]
      %v1788 = vld [vmem:[#allocation13 + $0x4a8] sm:$0xff]
      %v1789 = vld [vmem:[#allocation13 + $0x4b0] sm:$0xff]
      %v1790 = vld [vmem:[#allocation13 + $0x4b8] sm:$0xff]
      %v1791 = vld [vmem:[#allocation13 + $0x4c0] sm:$0xff]
      %v1792 = vld [vmem:[#allocation13 + $0x4c8] sm:$0xff]
      %v1793 = vld [vmem:[#allocation13 + $0x4d0] sm:$0xff]
      %v1794 = vld [vmem:[#allocation13 + $0x4d8] sm:$0xff]
      %v1795 = vld [vmem:[#allocation13 + $0x4e0] sm:$0xff]
      %v1796 = vld [vmem:[#allocation13 + $0x4e8] sm:$0xff]
      %v1797 = vld [vmem:[#allocation13 + $0x4f0] sm:$0xff]
      %v1798 = vld [vmem:[#allocation13 + $0x4f8] sm:$0xff]
      %v1799 = vld [vmem:[#allocation13 + $0x500] sm:$0xff]
      %v1800 = vld [vmem:[#allocation13 + $0x508] sm:$0xff]
      %v1801 = vld [vmem:[#allocation13 + $0x510] sm:$0xff]
      %v1802 = vld [vmem:[#allocation13 + $0x518] sm:$0xff]
      %v1803 = vld [vmem:[#allocation13 + $0x520] sm:$0xff]
      %v1804 = vld [vmem:[#allocation13 + $0x528] sm:$0xff]
      %v1805 = vld [vmem:[#allocation13 + $0x530] sm:$0xff]
      %v1806 = vld [vmem:[#allocation13 + $0x538] sm:$0xff]
      %v1807 = vld [vmem:[#allocation13 + $0x540] sm:$0xff]
      %v1808 = vld [vmem:[#allocation13 + $0x548] sm:$0xff]
      %v1809 = vld [vmem:[#allocation13 + $0x550] sm:$0xff]
      %v1810 = vld [vmem:[#allocation13 + $0x558] sm:$0xff]
      %v1811 = vld [vmem:[#allocation13 + $0x560] sm:$0xff]
      %v1812 = vld [vmem:[#allocation13 + $0x568] sm:$0xff]
      %v1813 = vld [vmem:[#allocation13 + $0x570] sm:$0xff]
      %v1814 = vld [vmem:[#allocation13 + $0x578] sm:$0xff]
      %v1815 = vld [vmem:[#allocation13 + $0x580] sm:$0xff]
      %v1816 = vld [vmem:[#allocation13 + $0x588] sm:$0xff]
      %v1817 = vld [vmem:[#allocation13 + $0x590] sm:$0xff]
      %v1818 = vld [vmem:[#allocation13 + $0x598] sm:$0xff]
      %v1819 = vld [vmem:[#allocation13 + $0x5a0] sm:$0xff]
      %v1820 = vld [vmem:[#allocation13 + $0x5a8] sm:$0xff]
      %v1821 = vld [vmem:[#allocation13 + $0x5b0] sm:$0xff]
      %v1822 = vld [vmem:[#allocation13 + $0x5b8] sm:$0xff]
      %v1823 = vld [vmem:[#allocation13 + $0x5c0] sm:$0xff]
      %v1824 = vld [vmem:[#allocation13 + $0x5c8] sm:$0xff]
      %v1825 = vld [vmem:[#allocation13 + $0x5d0] sm:$0xff]
      %v1826 = vld [vmem:[#allocation13 + $0x5d8] sm:$0xff]
      %v1827 = vld [vmem:[#allocation13 + $0x5e0] sm:$0xff]
      %v1828 = vld [vmem:[#allocation13 + $0x5e8] sm:$0xff]
      %v1829 = vld [vmem:[#allocation13 + $0x5f0] sm:$0xff]
      %v1830 = vld [vmem:[#allocation13 + $0x5f8] sm:$0xff]
      %v1831 = vld [vmem:[#allocation13 + $0x600] sm:$0xff]
      %v1832 = vld [vmem:[#allocation13 + $0x608] sm:$0xff]
      %v1833 = vld [vmem:[#allocation13 + $0x610] sm:$0xff]
      %v1834 = vld [vmem:[#allocation13 + $0x618] sm:$0xff]
      %v1835 = vld [vmem:[#allocation13 + $0x620] sm:$0xff]
      %v1836 = vld [vmem:[#allocation13 + $0x628] sm:$0xff]
      %v1837 = vld [vmem:[#allocation13 + $0x630] sm:$0xff]
      %v1838 = vld [vmem:[#allocation13 + $0x638] sm:$0xff]
      %v1839 = vld [vmem:[#allocation13 + $0x640] sm:$0xff]
      %v1840 = vld [vmem:[#allocation13 + $0x648] sm:$0xff]
      %v1841 = vld [vmem:[#allocation13 + $0x650] sm:$0xff]
      %v1842 = vld [vmem:[#allocation13 + $0x658] sm:$0xff]
      %v1843 = vld [vmem:[#allocation13 + $0x660] sm:$0xff]
      %v1844 = vld [vmem:[#allocation13 + $0x668] sm:$0xff]
      %v1845 = vld [vmem:[#allocation13 + $0x670] sm:$0xff]
      %v1846 = vld [vmem:[#allocation13 + $0x678] sm:$0xff]
      %v1847 = vld [vmem:[#allocation13 + $0x680] sm:$0xff]
      %v1848 = vld [vmem:[#allocation13 + $0x688] sm:$0xff]
      %v1849 = vld [vmem:[#allocation13 + $0x690] sm:$0xff]
      %v1850 = vld [vmem:[#allocation13 + $0x698] sm:$0xff]
      %v1851 = vld [vmem:[#allocation13 + $0x6a0] sm:$0xff]
      %v1852 = vld [vmem:[#allocation13 + $0x6a8] sm:$0xff]
      %v1853 = vld [vmem:[#allocation13 + $0x6b0] sm:$0xff]
      %v1854 = vld [vmem:[#allocation13 + $0x6b8] sm:$0xff]
      %v1855 = vld [vmem:[#allocation13 + $0x6c0] sm:$0xff]
      %v1856 = vld [vmem:[#allocation13 + $0x6c8] sm:$0xff]
      %v1857 = vld [vmem:[#allocation13 + $0x6d0] sm:$0xff]
      %v1858 = vld [vmem:[#allocation13 + $0x6d8] sm:$0xff]
      %v1859 = vld [vmem:[#allocation13 + $0x6e0] sm:$0xff]
      %v1860 = vld [vmem:[#allocation13 + $0x6e8] sm:$0xff]
      %v1861 = vld [vmem:[#allocation13 + $0x6f0] sm:$0xff]
      %v1862 = vld [vmem:[#allocation13 + $0x6f8] sm:$0xff]
      %v1863 = vld [vmem:[#allocation13 + $0x700] sm:$0xff]
      %v1864 = vld [vmem:[#allocation13 + $0x708] sm:$0xff]
      %v1865 = vld [vmem:[#allocation13 + $0x710] sm:$0xff]
      %v1866 = vld [vmem:[#allocation13 + $0x718] sm:$0xff]
      %v1867 = vld [vmem:[#allocation13 + $0x720] sm:$0xff]
      %v1868 = vld [vmem:[#allocation13 + $0x728] sm:$0xff]
      %v1869 = vld [vmem:[#allocation13 + $0x730] sm:$0xff]
      %v1870 = vld [vmem:[#allocation13 + $0x738] sm:$0xff]
      %v1871 = vld [vmem:[#allocation13 + $0x740] sm:$0xff]
      %v1872 = vld [vmem:[#allocation13 + $0x748] sm:$0xff]
      %v1873 = vld [vmem:[#allocation13 + $0x750] sm:$0xff]
      %v1874 = vld [vmem:[#allocation13 + $0x758] sm:$0xff]
      %v1875 = vld [vmem:[#allocation13 + $0x760] sm:$0xff]
      %v1876 = vld [vmem:[#allocation13 + $0x768] sm:$0xff]
      %v1877 = vld [vmem:[#allocation13 + $0x770] sm:$0xff]
      %v1878 = vld [vmem:[#allocation13 + $0x778] sm:$0xff]
      %v1879 = vld [vmem:[#allocation13 + $0x780] sm:$0xff]
      %v1880 = vld [vmem:[#allocation13 + $0x788] sm:$0xff]
      %v1881 = vld [vmem:[#allocation13 + $0x790] sm:$0xff]
      %v1882 = vld [vmem:[#allocation13 + $0x798] sm:$0xff]
      %v1883 = vld [vmem:[#allocation13 + $0x7a0] sm:$0xff]
      %v1884 = vld [vmem:[#allocation13 + $0x7a8] sm:$0xff]
      %v1885 = vld [vmem:[#allocation13 + $0x7b0] sm:$0xff]
      %v1886 = vld [vmem:[#allocation13 + $0x7b8] sm:$0xff]
      %v1887 = vld [vmem:[#allocation13 + $0x7c0] sm:$0xff]
      %v1888 = vld [vmem:[#allocation13 + $0x7c8] sm:$0xff]
      %v1889 = vld [vmem:[#allocation13 + $0x7d0] sm:$0xff]
      %v1890 = vld [vmem:[#allocation13 + $0x7d8] sm:$0xff]
      %v1891 = vld [vmem:[#allocation13 + $0x7e0] sm:$0xff]
      %v1892 = vld [vmem:[#allocation13 + $0x7e8] sm:$0xff]
      %v1893 = vld [vmem:[#allocation13 + $0x7f0] sm:$0xff]
      %v1894 = vld [vmem:[#allocation13 + $0x7f8] sm:$0xff]
      %v1895 = vld [vmem:[#allocation15] sm:$0xf]
      %v1897 = vperm.slane %v1895, 0
      %v1898 = vperm.slane %v1895, 1
      %v1899 = vperm.slane %v1895, 2
      %v1900 = vperm.slane %v1895, 3
      %1905 = vmatpush.msra.mxu0 %v1699
      %1906 = vmatpush.msra.mxu0 %v1695
      %1907 = vmatpush.msra.mxu0 %v1691
      %1908 = vmatpush.msra.mxu0 %v1687
      %1909 = vmatpush.msra.mxu0 %v1683
      %1910 = vmatpush.msra.mxu0 %v1679
      %1911 = vmatpush.msra.mxu0 %v1675
      %1912 = vmatpush.msra.mxu0 %v1671
      %1913 = vmatpush.msra.mxu0 %v1667
      %1914 = vmatpush.msra.mxu0 %v1663
      %1915 = vmatpush.msra.mxu0 %v1659
      %1916 = vmatpush.msra.mxu0 %v1655
      %1917 = vmatpush.msra.mxu0 %v1651
      %1918 = vmatpush.msra.mxu0 %v1647
      %1919 = vmatpush.msra.mxu0 %v1643
      %1920 = vmatpush.msra.mxu0 %v1639
      %1921 = vmatmul.f32.gmra.mxu0 %v1635
      %v1922 = vpop.f32.mrf.mxu0
      %v1923 = vadd.f32 %v1897, %v1922
      %1924 = vdwg.mxu0
      %1925 = vmatpush.msra.mxu0 %v1763
      %1926 = vmatpush.msra.mxu0 %v1759
      %1927 = vmatpush.msra.mxu0 %v1755
      %1928 = vmatpush.msra.mxu0 %v1751
      %1929 = vmatpush.msra.mxu0 %v1747
      %1930 = vmatpush.msra.mxu0 %v1743
      %1931 = vmatpush.msra.mxu0 %v1739
      %1932 = vmatpush.msra.mxu0 %v1735
      %1933 = vmatpush.msra.mxu0 %v1731
      %1934 = vmatpush.msra.mxu0 %v1727
      %1935 = vmatpush.msra.mxu0 %v1723
      %1936 = vmatpush.msra.mxu0 %v1719
      %1937 = vmatpush.msra.mxu0 %v1715
      %1938 = vmatpush.msra.mxu0 %v1711
      %1939 = vmatpush.msra.mxu0 %v1707
      %1940 = vmatpush.msra.mxu0 %v1703
      %1941 = vmatmul.f32.gmra.mxu0 %v1636
      %v1942 = vpop.f32.mrf.mxu0
      %v1943 = vadd.f32 %v1923, %v1942
      %1944 = vdwg.mxu0
      %1945 = vmatpush.msra.mxu0 %v1827
      %1946 = vmatpush.msra.mxu0 %v1823
      %1947 = vmatpush.msra.mxu0 %v1819
      %1948 = vmatpush.msra.mxu0 %v1815
      %1949 = vmatpush.msra.mxu0 %v1811
      %1950 = vmatpush.msra.mxu0 %v1807
      %1951 = vmatpush.msra.mxu0 %v1803
      %1952 = vmatpush.msra.mxu0 %v1799
      %1953 = vmatpush.msra.mxu0 %v1795
      %1954 = vmatpush.msra.mxu0 %v1791
      %1955 = vmatpush.msra.mxu0 %v1787
      %1956 = vmatpush.msra.mxu0 %v1783
      %1957 = vmatpush.msra.mxu0 %v1779
      %1958 = vmatpush.msra.mxu0 %v1775
      %1959 = vmatpush.msra.mxu0 %v1771
      %1960 = vmatpush.msra.mxu0 %v1767
      %1961 = vmatmul.f32.gmra.mxu0 %v1637
      %v1962 = vpop.f32.mrf.mxu0
      %v1963 = vadd.f32 %v1943, %v1962
      %1964 = vdwg.mxu0
      %1965 = vmatpush.msra.mxu0 %v1891
      %1966 = vmatpush.msra.mxu0 %v1887
      %1967 = vmatpush.msra.mxu0 %v1883
      %1968 = vmatpush.msra.mxu0 %v1879
      %1969 = vmatpush.msra.mxu0 %v1875
      %1970 = vmatpush.msra.mxu0 %v1871
      %1971 = vmatpush.msra.mxu0 %v1867
      %1972 = vmatpush.msra.mxu0 %v1863
      %1973 = vmatpush.msra.mxu0 %v1859
      %1974 = vmatpush.msra.mxu0 %v1855
      %1975 = vmatpush.msra.mxu0 %v1851
      %1976 = vmatpush.msra.mxu0 %v1847
      %1977 = vmatpush.msra.mxu0 %v1843
      %1978 = vmatpush.msra.mxu0 %v1839
      %1979 = vmatpush.msra.mxu0 %v1835
      %1980 = vmatpush.msra.mxu0 %v1831
      %1981 = vmatmul.f32.gmra.mxu0 %v1638
      %v1982 = vpop.f32.mrf.mxu0
      %v1983 = vadd.f32 %v1963, %v1982
      %1984 = vdwg.mxu0
      %1985 = vmatpush.msra.mxu0 %v1700
      %1986 = vmatpush.msra.mxu0 %v1696
      %1987 = vmatpush.msra.mxu0 %v1692
      %1988 = vmatpush.msra.mxu0 %v1688
      %1989 = vmatpush.msra.mxu0 %v1684
      %1990 = vmatpush.msra.mxu0 %v1680
      %1991 = vmatpush.msra.mxu0 %v1676
      %1992 = vmatpush.msra.mxu0 %v1672
      %1993 = vmatpush.msra.mxu0 %v1668
      %1994 = vmatpush.msra.mxu0 %v1664
      %1995 = vmatpush.msra.mxu0 %v1660
      %1996 = vmatpush.msra.mxu0 %v1656
      %1997 = vmatpush.msra.mxu0 %v1652
      %1998 = vmatpush.msra.mxu0 %v1648
      %1999 = vmatpush.msra.mxu0 %v1644
      %2000 = vmatpush.msra.mxu0 %v1640
      %2001 = vmatmul.f32.gmra.mxu0 %v1635
      %v2002 = vpop.f32.mrf.mxu0
      %v2003 = vadd.f32 %v1898, %v2002
      %2004 = vdwg.mxu0
      %2005 = vmatpush.msra.mxu0 %v1764
      %2006 = vmatpush.msra.mxu0 %v1760
      %2007 = vmatpush.msra.mxu0 %v1756
      %2008 = vmatpush.msra.mxu0 %v1752
      %2009 = vmatpush.msra.mxu0 %v1748
      %2010 = vmatpush.msra.mxu0 %v1744
      %2011 = vmatpush.msra.mxu0 %v1740
      %2012 = vmatpush.msra.mxu0 %v1736
      %2013 = vmatpush.msra.mxu0 %v1732
      %2014 = vmatpush.msra.mxu0 %v1728
      %2015 = vmatpush.msra.mxu0 %v1724
      %2016 = vmatpush.msra.mxu0 %v1720
      %2017 = vmatpush.msra.mxu0 %v1716
      %2018 = vmatpush.msra.mxu0 %v1712
      %2019 = vmatpush.msra.mxu0 %v1708
      %2020 = vmatpush.msra.mxu0 %v1704
      %2021 = vmatmul.f32.gmra.mxu0 %v1636
      %v2022 = vpop.f32.mrf.mxu0
      %v2023 = vadd.f32 %v2003, %v2022
      %2024 = vdwg.mxu0
      %2025 = vmatpush.msra.mxu0 %v1828
      %2026 = vmatpush.msra.mxu0 %v1824
      %2027 = vmatpush.msra.mxu0 %v1820
      %2028 = vmatpush.msra.mxu0 %v1816
      %2029 = vmatpush.msra.mxu0 %v1812
      %2030 = vmatpush.msra.mxu0 %v1808
      %2031 = vmatpush.msra.mxu0 %v1804
      %2032 = vmatpush.msra.mxu0 %v1800
      %2033 = vmatpush.msra.mxu0 %v1796
      %2034 = vmatpush.msra.mxu0 %v1792
      %2035 = vmatpush.msra.mxu0 %v1788
      %2036 = vmatpush.msra.mxu0 %v1784
      %2037 = vmatpush.msra.mxu0 %v1780
      %2038 = vmatpush.msra.mxu0 %v1776
      %2039 = vmatpush.msra.mxu0 %v1772
      %2040 = vmatpush.msra.mxu0 %v1768
      %2041 = vmatmul.f32.gmra.mxu0 %v1637
      %v2042 = vpop.f32.mrf.mxu0
      %v2043 = vadd.f32 %v2023, %v2042
      %2044 = vdwg.mxu0
      %2045 = vmatpush.msra.mxu0 %v1892
      %2046 = vmatpush.msra.mxu0 %v1888
      %2047 = vmatpush.msra.mxu0 %v1884
      %2048 = vmatpush.msra.mxu0 %v1880
      %2049 = vmatpush.msra.mxu0 %v1876
      %2050 = vmatpush.msra.mxu0 %v1872
      %2051 = vmatpush.msra.mxu0 %v1868
      %2052 = vmatpush.msra.mxu0 %v1864
      %2053 = vmatpush.msra.mxu0 %v1860
      %2054 = vmatpush.msra.mxu0 %v1856
      %2055 = vmatpush.msra.mxu0 %v1852
      %2056 = vmatpush.msra.mxu0 %v1848
      %2057 = vmatpush.msra.mxu0 %v1844
      %2058 = vmatpush.msra.mxu0 %v1840
      %2059 = vmatpush.msra.mxu0 %v1836
      %2060 = vmatpush.msra.mxu0 %v1832
      %2061 = vmatmul.f32.gmra.mxu0 %v1638
      %v2062 = vpop.f32.mrf.mxu0
      %v2063 = vadd.f32 %v2043, %v2062
      %2064 = vdwg.mxu0
      %2065 = vmatpush.msra.mxu0 %v1701
      %2066 = vmatpush.msra.mxu0 %v1697
      %2067 = vmatpush.msra.mxu0 %v1693
      %2068 = vmatpush.msra.mxu0 %v1689
      %2069 = vmatpush.msra.mxu0 %v1685
      %2070 = vmatpush.msra.mxu0 %v1681
      %2071 = vmatpush.msra.mxu0 %v1677
      %2072 = vmatpush.msra.mxu0 %v1673
      %2073 = vmatpush.msra.mxu0 %v1669
      %2074 = vmatpush.msra.mxu0 %v1665
      %2075 = vmatpush.msra.mxu0 %v1661
      %2076 = vmatpush.msra.mxu0 %v1657
      %2077 = vmatpush.msra.mxu0 %v1653
      %2078 = vmatpush.msra.mxu0 %v1649
      %2079 = vmatpush.msra.mxu0 %v1645
      %2080 = vmatpush.msra.mxu0 %v1641
      %2081 = vmatmul.f32.gmra.mxu0 %v1635
      %v2082 = vpop.f32.mrf.mxu0
      %v2083 = vadd.f32 %v1899, %v2082
      %2084 = vdwg.mxu0
      %2085 = vmatpush.msra.mxu0 %v1765
      %2086 = vmatpush.msra.mxu0 %v1761
      %2087 = vmatpush.msra.mxu0 %v1757
      %2088 = vmatpush.msra.mxu0 %v1753
      %2089 = vmatpush.msra.mxu0 %v1749
      %2090 = vmatpush.msra.mxu0 %v1745
      %2091 = vmatpush.msra.mxu0 %v1741
      %2092 = vmatpush.msra.mxu0 %v1737
      %2093 = vmatpush.msra.mxu0 %v1733
      %2094 = vmatpush.msra.mxu0 %v1729
      %2095 = vmatpush.msra.mxu0 %v1725
      %2096 = vmatpush.msra.mxu0 %v1721
      %2097 = vmatpush.msra.mxu0 %v1717
      %2098 = vmatpush.msra.mxu0 %v1713
      %2099 = vmatpush.msra.mxu0 %v1709
      %2100 = vmatpush.msra.mxu0 %v1705
      %2101 = vmatmul.f32.gmra.mxu0 %v1636
      %v2102 = vpop.f32.mrf.mxu0
      %v2103 = vadd.f32 %v2083, %v2102
      %2104 = vdwg.mxu0
      %2105 = vmatpush.msra.mxu0 %v1829
      %2106 = vmatpush.msra.mxu0 %v1825
      %2107 = vmatpush.msra.mxu0 %v1821
      %2108 = vmatpush.msra.mxu0 %v1817
      %2109 = vmatpush.msra.mxu0 %v1813
      %2110 = vmatpush.msra.mxu0 %v1809
      %2111 = vmatpush.msra.mxu0 %v1805
      %2112 = vmatpush.msra.mxu0 %v1801
      %2113 = vmatpush.msra.mxu0 %v1797
      %2114 = vmatpush.msra.mxu0 %v1793
      %2115 = vmatpush.msra.mxu0 %v1789
      %2116 = vmatpush.msra.mxu0 %v1785
      %2117 = vmatpush.msra.mxu0 %v1781
      %2118 = vmatpush.msra.mxu0 %v1777
      %2119 = vmatpush.msra.mxu0 %v1773
      %2120 = vmatpush.msra.mxu0 %v1769
      %2121 = vmatmul.f32.gmra.mxu0 %v1637
      %v2122 = vpop.f32.mrf.mxu0
      %v2123 = vadd.f32 %v2103, %v2122
      %2124 = vdwg.mxu0
      %2125 = vmatpush.msra.mxu0 %v1893
      %2126 = vmatpush.msra.mxu0 %v1889
      %2127 = vmatpush.msra.mxu0 %v1885
      %2128 = vmatpush.msra.mxu0 %v1881
      %2129 = vmatpush.msra.mxu0 %v1877
      %2130 = vmatpush.msra.mxu0 %v1873
      %2131 = vmatpush.msra.mxu0 %v1869
      %2132 = vmatpush.msra.mxu0 %v1865
      %2133 = vmatpush.msra.mxu0 %v1861
      %2134 = vmatpush.msra.mxu0 %v1857
      %2135 = vmatpush.msra.mxu0 %v1853
      %2136 = vmatpush.msra.mxu0 %v1849
      %2137 = vmatpush.msra.mxu0 %v1845
      %2138 = vmatpush.msra.mxu0 %v1841
      %2139 = vmatpush.msra.mxu0 %v1837
      %2140 = vmatpush.msra.mxu0 %v1833
      %2141 = vmatmul.f32.gmra.mxu0 %v1638
      %v2142 = vpop.f32.mrf.mxu0
      %v2143 = vadd.f32 %v2123, %v2142
      %2144 = vdwg.mxu0
      %2145 = vmatpush.msra.mxu0 %v1702
      %2146 = vmatpush.msra.mxu0 %v1698
      %2147 = vmatpush.msra.mxu0 %v1694
      %2148 = vmatpush.msra.mxu0 %v1690
      %2149 = vmatpush.msra.mxu0 %v1686
      %2150 = vmatpush.msra.mxu0 %v1682
      %2151 = vmatpush.msra.mxu0 %v1678
      %2152 = vmatpush.msra.mxu0 %v1674
      %2153 = vmatpush.msra.mxu0 %v1670
      %2154 = vmatpush.msra.mxu0 %v1666
      %2155 = vmatpush.msra.mxu0 %v1662
      %2156 = vmatpush.msra.mxu0 %v1658
      %2157 = vmatpush.msra.mxu0 %v1654
      %2158 = vmatpush.msra.mxu0 %v1650
      %2159 = vmatpush.msra.mxu0 %v1646
      %2160 = vmatpush.msra.mxu0 %v1642
      %2161 = vmatmul.f32.gmra.mxu0 %v1635
      %v2162 = vpop.f32.mrf.mxu0
      %v2163 = vadd.f32 %v1900, %v2162
      %2164 = vdwg.mxu0
      %2165 = vmatpush.msra.mxu0 %v1766
      %2166 = vmatpush.msra.mxu0 %v1762
      %2167 = vmatpush.msra.mxu0 %v1758
      %2168 = vmatpush.msra.mxu0 %v1754
      %2169 = vmatpush.msra.mxu0 %v1750
      %2170 = vmatpush.msra.mxu0 %v1746
      %2171 = vmatpush.msra.mxu0 %v1742
      %2172 = vmatpush.msra.mxu0 %v1738
      %2173 = vmatpush.msra.mxu0 %v1734
      %2174 = vmatpush.msra.mxu0 %v1730
      %2175 = vmatpush.msra.mxu0 %v1726
      %2176 = vmatpush.msra.mxu0 %v1722
      %2177 = vmatpush.msra.mxu0 %v1718
      %2178 = vmatpush.msra.mxu0 %v1714
      %2179 = vmatpush.msra.mxu0 %v1710
      %2180 = vmatpush.msra.mxu0 %v1706
      %2181 = vmatmul.f32.gmra.mxu0 %v1636
      %v2182 = vpop.f32.mrf.mxu0
      %v2183 = vadd.f32 %v2163, %v2182
      %2184 = vdwg.mxu0
      %2185 = vmatpush.msra.mxu0 %v1830
      %2186 = vmatpush.msra.mxu0 %v1826
      %2187 = vmatpush.msra.mxu0 %v1822
      %2188 = vmatpush.msra.mxu0 %v1818
      %2189 = vmatpush.msra.mxu0 %v1814
      %2190 = vmatpush.msra.mxu0 %v1810
      %2191 = vmatpush.msra.mxu0 %v1806
      %2192 = vmatpush.msra.mxu0 %v1802
      %2193 = vmatpush.msra.mxu0 %v1798
      %2194 = vmatpush.msra.mxu0 %v1794
      %2195 = vmatpush.msra.mxu0 %v1790
      %2196 = vmatpush.msra.mxu0 %v1786
      %2197 = vmatpush.msra.mxu0 %v1782
      %2198 = vmatpush.msra.mxu0 %v1778
      %2199 = vmatpush.msra.mxu0 %v1774
      %2200 = vmatpush.msra.mxu0 %v1770
      %2201 = vmatmul.f32.gmra.mxu0 %v1637
      %v2202 = vpop.f32.mrf.mxu0
      %v2203 = vadd.f32 %v2183, %v2202
      %2204 = vdwg.mxu0
      %2205 = vmatpush.msra.mxu0 %v1894
      %2206 = vmatpush.msra.mxu0 %v1890
      %2207 = vmatpush.msra.mxu0 %v1886
      %2208 = vmatpush.msra.mxu0 %v1882
      %2209 = vmatpush.msra.mxu0 %v1878
      %2210 = vmatpush.msra.mxu0 %v1874
      %2211 = vmatpush.msra.mxu0 %v1870
      %2212 = vmatpush.msra.mxu0 %v1866
      %2213 = vmatpush.msra.mxu0 %v1862
      %2214 = vmatpush.msra.mxu0 %v1858
      %2215 = vmatpush.msra.mxu0 %v1854
      %2216 = vmatpush.msra.mxu0 %v1850
      %2217 = vmatpush.msra.mxu0 %v1846
      %2218 = vmatpush.msra.mxu0 %v1842
      %2219 = vmatpush.msra.mxu0 %v1838
      %2220 = vmatpush.msra.mxu0 %v1834
      %2221 = vmatmul.f32.gmra.mxu0 %v1638
      %v2222 = vpop.f32.mrf.mxu0
      %v2223 = vadd.f32 %v2203, %v2222
      %2224 = vdwg.mxu0
      %v2225 = vld [vmem:[#allocation16] sm:$0xf]
      %v2226 = vld [vmem:[#allocation18] sm:$0xf]
      %v2227 = vsel %vm323, %v1983, 0.0
      %v2228 = vsel %vm323, %v2063, 0.0
      %v2229 = vadd.f32 %v2227, %v2228
      %v2230 = vsel %vm323, %v2143, 0.0
      %v2231 = vadd.f32 %v2229, %v2230
      %v2232 = vsel %vm323, %v2223, 0.0
      %v2233 = vadd.f32 %v2231, %v2232
      %2234 = vadd.xlane.f32.xlu0 %v2233
      %v2235 = vpop.xlane.xlu0 %2234
      %v2236 = vmul.f32 %v2235, %v1574
      %v2237 = vsub.f32 %v1983, %v2236
      %v2238 = vsub.f32 %v2063, %v2236
      %v2239 = vsub.f32 %v2143, %v2236
      %v2240 = vsub.f32 %v2223, %v2236
      %v2241 = vmul.f32 %v2237, %v2237
      %v2242 = vmul.f32 %v2238, %v2238
      %v2243 = vmul.f32 %v2239, %v2239
      %v2244 = vmul.f32 %v2240, %v2240
      %v2245 = vsel %vm323, %v2241, 0.0
      %v2246 = vsel %vm323, %v2242, 0.0
      %v2247 = vadd.f32 %v2245, %v2246
      %v2248 = vsel %vm323, %v2243, 0.0
      %v2249 = vadd.f32 %v2247, %v2248
      %v2250 = vsel %vm323, %v2244, 0.0
      %v2251 = vadd.f32 %v2249, %v2250
      %2252 = vadd.xlane.f32.xlu0 %v2251
      %v2253 = vpop.xlane.xlu0 %2252
      %v2254 = vmul.f32 %v2253, %v1574
      %v2255 = vadd.f32 %v2254, 1e-05
      %v2256 = vrsqrt.pop %v2255
      %v2257 = vmul.f32 %v2256, %v2255
      %v2258 = vmul.f32 %v2257, %v2256
      %v2259 = vmul.f32 0.5, %v2258
      %v2260 = vsub.f32 1.5, %v2259
      %v2261 = vmul.f32 %v2256, %v2260
      %vm2262 = vweird.f32 %v2255
      %vm2263 = vweird.f32 %v2256
      %vm2264 = vmor %vm2262, %vm2263
      %v2265 = vsel %vm2264, %v2256, %v2261
      %v2266 = vmul.f32 %v2237, %v2265
      %v2267 = vmul.f32 %v2238, %v2265
      %v2268 = vmul.f32 %v2239, %v2265
      %v2269 = vmul.f32 %v2240, %v2265
      %v2271 = vperm.slane %v2225, 0
      %v2272 = vperm.slane %v2225, 1
      %v2273 = vperm.slane %v2225, 2
      %v2274 = vperm.slane %v2225, 3
      %v2279 = vmul.f32 %v2266, %v2271
      %v2280 = vmul.f32 %v2267, %v2272
      %v2281 = vmul.f32 %v2268, %v2273
      %v2282 = vmul.f32 %v2269, %v2274
      %v2284 = vperm.slane %v2226, 0
      %v2285 = vperm.slane %v2226, 1
      %v2286 = vperm.slane %v2226, 2
      %v2287 = vperm.slane %v2226, 3
      %v2292 = vadd.f32 %v2279, %v2284
      %v2293 = vadd.f32 %v2280, %v2285
      %v2294 = vadd.f32 %v2281, %v2286
      %v2295 = vadd.f32 %v2282, %v2287
      %v2296 = vmax.f32 %v2292, 0.0
      %v2297 = vmax.f32 %v2293, 0.0
      %v2298 = vmax.f32 %v2294, 0.0
      %v2299 = vmax.f32 %v2295, 0.0
      %v2300 = vld [vmem:[#allocation19] sm:$0xff]
      %v2301 = vld [vmem:[#allocation19 + $0x8] sm:$0xff]
      %v2302 = vld [vmem:[#allocation19 + $0x10] sm:$0xff]
      %v2303 = vld [vmem:[#allocation19 + $0x18] sm:$0xff]
      %v2304 = vld [vmem:[#allocation19 + $0x20] sm:$0xff]
      %v2305 = vld [vmem:[#allocation19 + $0x28] sm:$0xff]
      %v2306 = vld [vmem:[#allocation19 + $0x30] sm:$0xff]
      %v2307 = vld [vmem:[#allocation19 + $0x38] sm:$0xff]
      %v2308 = vld [vmem:[#allocation19 + $0x40] sm:$0xff]
      %v2309 = vld [vmem:[#allocation19 + $0x48] sm:$0xff]
      %v2310 = vld [vmem:[#allocation19 + $0x50] sm:$0xff]
      %v2311 = vld [vmem:[#allocation19 + $0x58] sm:$0xff]
      %v2312 = vld [vmem:[#allocation19 + $0x60] sm:$0xff]
      %v2313 = vld [vmem:[#allocation19 + $0x68] sm:$0xff]
      %v2314 = vld [vmem:[#allocation19 + $0x70] sm:$0xff]
      %v2315 = vld [vmem:[#allocation19 + $0x78] sm:$0xff]
      %v2316 = vld [vmem:[#allocation19 + $0x80] sm:$0xff]
      %v2317 = vld [vmem:[#allocation19 + $0x88] sm:$0xff]
      %v2318 = vld [vmem:[#allocation19 + $0x90] sm:$0xff]
      %v2319 = vld [vmem:[#allocation19 + $0x98] sm:$0xff]
      %v2320 = vld [vmem:[#allocation19 + $0xa0] sm:$0xff]
      %v2321 = vld [vmem:[#allocation19 + $0xa8] sm:$0xff]
      %v2322 = vld [vmem:[#allocation19 + $0xb0] sm:$0xff]
      %v2323 = vld [vmem:[#allocation19 + $0xb8] sm:$0xff]
      %v2324 = vld [vmem:[#allocation19 + $0xc0] sm:$0xff]
      %v2325 = vld [vmem:[#allocation19 + $0xc8] sm:$0xff]
      %v2326 = vld [vmem:[#allocation19 + $0xd0] sm:$0xff]
      %v2327 = vld [vmem:[#allocation19 + $0xd8] sm:$0xff]
      %v2328 = vld [vmem:[#allocation19 + $0xe0] sm:$0xff]
      %v2329 = vld [vmem:[#allocation19 + $0xe8] sm:$0xff]
      %v2330 = vld [vmem:[#allocation19 + $0xf0] sm:$0xff]
      %v2331 = vld [vmem:[#allocation19 + $0xf8] sm:$0xff]
      %v2332 = vld [vmem:[#allocation19 + $0x100] sm:$0xff]
      %v2333 = vld [vmem:[#allocation19 + $0x108] sm:$0xff]
      %v2334 = vld [vmem:[#allocation19 + $0x110] sm:$0xff]
      %v2335 = vld [vmem:[#allocation19 + $0x118] sm:$0xff]
      %v2336 = vld [vmem:[#allocation19 + $0x120] sm:$0xff]
      %v2337 = vld [vmem:[#allocation19 + $0x128] sm:$0xff]
      %v2338 = vld [vmem:[#allocation19 + $0x130] sm:$0xff]
      %v2339 = vld [vmem:[#allocation19 + $0x138] sm:$0xff]
      %v2340 = vld [vmem:[#allocation19 + $0x140] sm:$0xff]
      %v2341 = vld [vmem:[#allocation19 + $0x148] sm:$0xff]
      %v2342 = vld [vmem:[#allocation19 + $0x150] sm:$0xff]
      %v2343 = vld [vmem:[#allocation19 + $0x158] sm:$0xff]
      %v2344 = vld [vmem:[#allocation19 + $0x160] sm:$0xff]
      %v2345 = vld [vmem:[#allocation19 + $0x168] sm:$0xff]
      %v2346 = vld [vmem:[#allocation19 + $0x170] sm:$0xff]
      %v2347 = vld [vmem:[#allocation19 + $0x178] sm:$0xff]
      %v2348 = vld [vmem:[#allocation19 + $0x180] sm:$0xff]
      %v2349 = vld [vmem:[#allocation19 + $0x188] sm:$0xff]
      %v2350 = vld [vmem:[#allocation19 + $0x190] sm:$0xff]
      %v2351 = vld [vmem:[#allocation19 + $0x198] sm:$0xff]
      %v2352 = vld [vmem:[#allocation19 + $0x1a0] sm:$0xff]
      %v2353 = vld [vmem:[#allocation19 + $0x1a8] sm:$0xff]
      %v2354 = vld [vmem:[#allocation19 + $0x1b0] sm:$0xff]
      %v2355 = vld [vmem:[#allocation19 + $0x1b8] sm:$0xff]
      %v2356 = vld [vmem:[#allocation19 + $0x1c0] sm:$0xff]
      %v2357 = vld [vmem:[#allocation19 + $0x1c8] sm:$0xff]
      %v2358 = vld [vmem:[#allocation19 + $0x1d0] sm:$0xff]
      %v2359 = vld [vmem:[#allocation19 + $0x1d8] sm:$0xff]
      %v2360 = vld [vmem:[#allocation19 + $0x1e0] sm:$0xff]
      %v2361 = vld [vmem:[#allocation19 + $0x1e8] sm:$0xff]
      %v2362 = vld [vmem:[#allocation19 + $0x1f0] sm:$0xff]
      %v2363 = vld [vmem:[#allocation19 + $0x1f8] sm:$0xff]
      %v2364 = vld [vmem:[#allocation19 + $0x200] sm:$0xff]
      %v2365 = vld [vmem:[#allocation19 + $0x208] sm:$0xff]
      %v2366 = vld [vmem:[#allocation19 + $0x210] sm:$0xff]
      %v2367 = vld [vmem:[#allocation19 + $0x218] sm:$0xff]
      %v2368 = vld [vmem:[#allocation19 + $0x220] sm:$0xff]
      %v2369 = vld [vmem:[#allocation19 + $0x228] sm:$0xff]
      %v2370 = vld [vmem:[#allocation19 + $0x230] sm:$0xff]
      %v2371 = vld [vmem:[#allocation19 + $0x238] sm:$0xff]
      %v2372 = vld [vmem:[#allocation19 + $0x240] sm:$0xff]
      %v2373 = vld [vmem:[#allocation19 + $0x248] sm:$0xff]
      %v2374 = vld [vmem:[#allocation19 + $0x250] sm:$0xff]
      %v2375 = vld [vmem:[#allocation19 + $0x258] sm:$0xff]
      %v2376 = vld [vmem:[#allocation19 + $0x260] sm:$0xff]
      %v2377 = vld [vmem:[#allocation19 + $0x268] sm:$0xff]
      %v2378 = vld [vmem:[#allocation19 + $0x270] sm:$0xff]
      %v2379 = vld [vmem:[#allocation19 + $0x278] sm:$0xff]
      %v2380 = vld [vmem:[#allocation19 + $0x280] sm:$0xff]
      %v2381 = vld [vmem:[#allocation19 + $0x288] sm:$0xff]
      %v2382 = vld [vmem:[#allocation19 + $0x290] sm:$0xff]
      %v2383 = vld [vmem:[#allocation19 + $0x298] sm:$0xff]
      %v2384 = vld [vmem:[#allocation19 + $0x2a0] sm:$0xff]
      %v2385 = vld [vmem:[#allocation19 + $0x2a8] sm:$0xff]
      %v2386 = vld [vmem:[#allocation19 + $0x2b0] sm:$0xff]
      %v2387 = vld [vmem:[#allocation19 + $0x2b8] sm:$0xff]
      %v2388 = vld [vmem:[#allocation19 + $0x2c0] sm:$0xff]
      %v2389 = vld [vmem:[#allocation19 + $0x2c8] sm:$0xff]
      %v2390 = vld [vmem:[#allocation19 + $0x2d0] sm:$0xff]
      %v2391 = vld [vmem:[#allocation19 + $0x2d8] sm:$0xff]
      %v2392 = vld [vmem:[#allocation19 + $0x2e0] sm:$0xff]
      %v2393 = vld [vmem:[#allocation19 + $0x2e8] sm:$0xff]
      %v2394 = vld [vmem:[#allocation19 + $0x2f0] sm:$0xff]
      %v2395 = vld [vmem:[#allocation19 + $0x2f8] sm:$0xff]
      %v2396 = vld [vmem:[#allocation19 + $0x300] sm:$0xff]
      %v2397 = vld [vmem:[#allocation19 + $0x308] sm:$0xff]
      %v2398 = vld [vmem:[#allocation19 + $0x310] sm:$0xff]
      %v2399 = vld [vmem:[#allocation19 + $0x318] sm:$0xff]
      %v2400 = vld [vmem:[#allocation19 + $0x320] sm:$0xff]
      %v2401 = vld [vmem:[#allocation19 + $0x328] sm:$0xff]
      %v2402 = vld [vmem:[#allocation19 + $0x330] sm:$0xff]
      %v2403 = vld [vmem:[#allocation19 + $0x338] sm:$0xff]
      %v2404 = vld [vmem:[#allocation19 + $0x340] sm:$0xff]
      %v2405 = vld [vmem:[#allocation19 + $0x348] sm:$0xff]
      %v2406 = vld [vmem:[#allocation19 + $0x350] sm:$0xff]
      %v2407 = vld [vmem:[#allocation19 + $0x358] sm:$0xff]
      %v2408 = vld [vmem:[#allocation19 + $0x360] sm:$0xff]
      %v2409 = vld [vmem:[#allocation19 + $0x368] sm:$0xff]
      %v2410 = vld [vmem:[#allocation19 + $0x370] sm:$0xff]
      %v2411 = vld [vmem:[#allocation19 + $0x378] sm:$0xff]
      %v2412 = vld [vmem:[#allocation19 + $0x380] sm:$0xff]
      %v2413 = vld [vmem:[#allocation19 + $0x388] sm:$0xff]
      %v2414 = vld [vmem:[#allocation19 + $0x390] sm:$0xff]
      %v2415 = vld [vmem:[#allocation19 + $0x398] sm:$0xff]
      %v2416 = vld [vmem:[#allocation19 + $0x3a0] sm:$0xff]
      %v2417 = vld [vmem:[#allocation19 + $0x3a8] sm:$0xff]
      %v2418 = vld [vmem:[#allocation19 + $0x3b0] sm:$0xff]
      %v2419 = vld [vmem:[#allocation19 + $0x3b8] sm:$0xff]
      %v2420 = vld [vmem:[#allocation19 + $0x3c0] sm:$0xff]
      %v2421 = vld [vmem:[#allocation19 + $0x3c8] sm:$0xff]
      %v2422 = vld [vmem:[#allocation19 + $0x3d0] sm:$0xff]
      %v2423 = vld [vmem:[#allocation19 + $0x3d8] sm:$0xff]
      %v2424 = vld [vmem:[#allocation19 + $0x3e0] sm:$0xff]
      %v2425 = vld [vmem:[#allocation19 + $0x3e8] sm:$0xff]
      %v2426 = vld [vmem:[#allocation19 + $0x3f0] sm:$0xff]
      %v2427 = vld [vmem:[#allocation19 + $0x3f8] sm:$0xff]
      %v2428 = vld [vmem:[#allocation19 + $0x400] sm:$0xff]
      %v2429 = vld [vmem:[#allocation19 + $0x408] sm:$0xff]
      %v2430 = vld [vmem:[#allocation19 + $0x410] sm:$0xff]
      %v2431 = vld [vmem:[#allocation19 + $0x418] sm:$0xff]
      %v2432 = vld [vmem:[#allocation19 + $0x420] sm:$0xff]
      %v2433 = vld [vmem:[#allocation19 + $0x428] sm:$0xff]
      %v2434 = vld [vmem:[#allocation19 + $0x430] sm:$0xff]
      %v2435 = vld [vmem:[#allocation19 + $0x438] sm:$0xff]
      %v2436 = vld [vmem:[#allocation19 + $0x440] sm:$0xff]
      %v2437 = vld [vmem:[#allocation19 + $0x448] sm:$0xff]
      %v2438 = vld [vmem:[#allocation19 + $0x450] sm:$0xff]
      %v2439 = vld [vmem:[#allocation19 + $0x458] sm:$0xff]
      %v2440 = vld [vmem:[#allocation19 + $0x460] sm:$0xff]
      %v2441 = vld [vmem:[#allocation19 + $0x468] sm:$0xff]
      %v2442 = vld [vmem:[#allocation19 + $0x470] sm:$0xff]
      %v2443 = vld [vmem:[#allocation19 + $0x478] sm:$0xff]
      %v2444 = vld [vmem:[#allocation19 + $0x480] sm:$0xff]
      %v2445 = vld [vmem:[#allocation19 + $0x488] sm:$0xff]
      %v2446 = vld [vmem:[#allocation19 + $0x490] sm:$0xff]
      %v2447 = vld [vmem:[#allocation19 + $0x498] sm:$0xff]
      %v2448 = vld [vmem:[#allocation19 + $0x4a0] sm:$0xff]
      %v2449 = vld [vmem:[#allocation19 + $0x4a8] sm:$0xff]
      %v2450 = vld [vmem:[#allocation19 + $0x4b0] sm:$0xff]
      %v2451 = vld [vmem:[#allocation19 + $0x4b8] sm:$0xff]
      %v2452 = vld [vmem:[#allocation19 + $0x4c0] sm:$0xff]
      %v2453 = vld [vmem:[#allocation19 + $0x4c8] sm:$0xff]
      %v2454 = vld [vmem:[#allocation19 + $0x4d0] sm:$0xff]
      %v2455 = vld [vmem:[#allocation19 + $0x4d8] sm:$0xff]
      %v2456 = vld [vmem:[#allocation19 + $0x4e0] sm:$0xff]
      %v2457 = vld [vmem:[#allocation19 + $0x4e8] sm:$0xff]
      %v2458 = vld [vmem:[#allocation19 + $0x4f0] sm:$0xff]
      %v2459 = vld [vmem:[#allocation19 + $0x4f8] sm:$0xff]
      %v2460 = vld [vmem:[#allocation19 + $0x500] sm:$0xff]
      %v2461 = vld [vmem:[#allocation19 + $0x508] sm:$0xff]
      %v2462 = vld [vmem:[#allocation19 + $0x510] sm:$0xff]
      %v2463 = vld [vmem:[#allocation19 + $0x518] sm:$0xff]
      %v2464 = vld [vmem:[#allocation19 + $0x520] sm:$0xff]
      %v2465 = vld [vmem:[#allocation19 + $0x528] sm:$0xff]
      %v2466 = vld [vmem:[#allocation19 + $0x530] sm:$0xff]
      %v2467 = vld [vmem:[#allocation19 + $0x538] sm:$0xff]
      %v2468 = vld [vmem:[#allocation19 + $0x540] sm:$0xff]
      %v2469 = vld [vmem:[#allocation19 + $0x548] sm:$0xff]
      %v2470 = vld [vmem:[#allocation19 + $0x550] sm:$0xff]
      %v2471 = vld [vmem:[#allocation19 + $0x558] sm:$0xff]
      %v2472 = vld [vmem:[#allocation19 + $0x560] sm:$0xff]
      %v2473 = vld [vmem:[#allocation19 + $0x568] sm:$0xff]
      %v2474 = vld [vmem:[#allocation19 + $0x570] sm:$0xff]
      %v2475 = vld [vmem:[#allocation19 + $0x578] sm:$0xff]
      %v2476 = vld [vmem:[#allocation19 + $0x580] sm:$0xff]
      %v2477 = vld [vmem:[#allocation19 + $0x588] sm:$0xff]
      %v2478 = vld [vmem:[#allocation19 + $0x590] sm:$0xff]
      %v2479 = vld [vmem:[#allocation19 + $0x598] sm:$0xff]
      %v2480 = vld [vmem:[#allocation19 + $0x5a0] sm:$0xff]
      %v2481 = vld [vmem:[#allocation19 + $0x5a8] sm:$0xff]
      %v2482 = vld [vmem:[#allocation19 + $0x5b0] sm:$0xff]
      %v2483 = vld [vmem:[#allocation19 + $0x5b8] sm:$0xff]
      %v2484 = vld [vmem:[#allocation19 + $0x5c0] sm:$0xff]
      %v2485 = vld [vmem:[#allocation19 + $0x5c8] sm:$0xff]
      %v2486 = vld [vmem:[#allocation19 + $0x5d0] sm:$0xff]
      %v2487 = vld [vmem:[#allocation19 + $0x5d8] sm:$0xff]
      %v2488 = vld [vmem:[#allocation19 + $0x5e0] sm:$0xff]
      %v2489 = vld [vmem:[#allocation19 + $0x5e8] sm:$0xff]
      %v2490 = vld [vmem:[#allocation19 + $0x5f0] sm:$0xff]
      %v2491 = vld [vmem:[#allocation19 + $0x5f8] sm:$0xff]
      %v2492 = vld [vmem:[#allocation19 + $0x600] sm:$0xff]
      %v2493 = vld [vmem:[#allocation19 + $0x608] sm:$0xff]
      %v2494 = vld [vmem:[#allocation19 + $0x610] sm:$0xff]
      %v2495 = vld [vmem:[#allocation19 + $0x618] sm:$0xff]
      %v2496 = vld [vmem:[#allocation19 + $0x620] sm:$0xff]
      %v2497 = vld [vmem:[#allocation19 + $0x628] sm:$0xff]
      %v2498 = vld [vmem:[#allocation19 + $0x630] sm:$0xff]
      %v2499 = vld [vmem:[#allocation19 + $0x638] sm:$0xff]
      %v2500 = vld [vmem:[#allocation19 + $0x640] sm:$0xff]
      %v2501 = vld [vmem:[#allocation19 + $0x648] sm:$0xff]
      %v2502 = vld [vmem:[#allocation19 + $0x650] sm:$0xff]
      %v2503 = vld [vmem:[#allocation19 + $0x658] sm:$0xff]
      %v2504 = vld [vmem:[#allocation19 + $0x660] sm:$0xff]
      %v2505 = vld [vmem:[#allocation19 + $0x668] sm:$0xff]
      %v2506 = vld [vmem:[#allocation19 + $0x670] sm:$0xff]
      %v2507 = vld [vmem:[#allocation19 + $0x678] sm:$0xff]
      %v2508 = vld [vmem:[#allocation19 + $0x680] sm:$0xff]
      %v2509 = vld [vmem:[#allocation19 + $0x688] sm:$0xff]
      %v2510 = vld [vmem:[#allocation19 + $0x690] sm:$0xff]
      %v2511 = vld [vmem:[#allocation19 + $0x698] sm:$0xff]
      %v2512 = vld [vmem:[#allocation19 + $0x6a0] sm:$0xff]
      %v2513 = vld [vmem:[#allocation19 + $0x6a8] sm:$0xff]
      %v2514 = vld [vmem:[#allocation19 + $0x6b0] sm:$0xff]
      %v2515 = vld [vmem:[#allocation19 + $0x6b8] sm:$0xff]
      %v2516 = vld [vmem:[#allocation19 + $0x6c0] sm:$0xff]
      %v2517 = vld [vmem:[#allocation19 + $0x6c8] sm:$0xff]
      %v2518 = vld [vmem:[#allocation19 + $0x6d0] sm:$0xff]
      %v2519 = vld [vmem:[#allocation19 + $0x6d8] sm:$0xff]
      %v2520 = vld [vmem:[#allocation19 + $0x6e0] sm:$0xff]
      %v2521 = vld [vmem:[#allocation19 + $0x6e8] sm:$0xff]
      %v2522 = vld [vmem:[#allocation19 + $0x6f0] sm:$0xff]
      %v2523 = vld [vmem:[#allocation19 + $0x6f8] sm:$0xff]
      %v2524 = vld [vmem:[#allocation19 + $0x700] sm:$0xff]
      %v2525 = vld [vmem:[#allocation19 + $0x708] sm:$0xff]
      %v2526 = vld [vmem:[#allocation19 + $0x710] sm:$0xff]
      %v2527 = vld [vmem:[#allocation19 + $0x718] sm:$0xff]
      %v2528 = vld [vmem:[#allocation19 + $0x720] sm:$0xff]
      %v2529 = vld [vmem:[#allocation19 + $0x728] sm:$0xff]
      %v2530 = vld [vmem:[#allocation19 + $0x730] sm:$0xff]
      %v2531 = vld [vmem:[#allocation19 + $0x738] sm:$0xff]
      %v2532 = vld [vmem:[#allocation19 + $0x740] sm:$0xff]
      %v2533 = vld [vmem:[#allocation19 + $0x748] sm:$0xff]
      %v2534 = vld [vmem:[#allocation19 + $0x750] sm:$0xff]
      %v2535 = vld [vmem:[#allocation19 + $0x758] sm:$0xff]
      %v2536 = vld [vmem:[#allocation19 + $0x760] sm:$0xff]
      %v2537 = vld [vmem:[#allocation19 + $0x768] sm:$0xff]
      %v2538 = vld [vmem:[#allocation19 + $0x770] sm:$0xff]
      %v2539 = vld [vmem:[#allocation19 + $0x778] sm:$0xff]
      %v2540 = vld [vmem:[#allocation19 + $0x780] sm:$0xff]
      %v2541 = vld [vmem:[#allocation19 + $0x788] sm:$0xff]
      %v2542 = vld [vmem:[#allocation19 + $0x790] sm:$0xff]
      %v2543 = vld [vmem:[#allocation19 + $0x798] sm:$0xff]
      %v2544 = vld [vmem:[#allocation19 + $0x7a0] sm:$0xff]
      %v2545 = vld [vmem:[#allocation19 + $0x7a8] sm:$0xff]
      %v2546 = vld [vmem:[#allocation19 + $0x7b0] sm:$0xff]
      %v2547 = vld [vmem:[#allocation19 + $0x7b8] sm:$0xff]
      %v2548 = vld [vmem:[#allocation19 + $0x7c0] sm:$0xff]
      %v2549 = vld [vmem:[#allocation19 + $0x7c8] sm:$0xff]
      %v2550 = vld [vmem:[#allocation19 + $0x7d0] sm:$0xff]
      %v2551 = vld [vmem:[#allocation19 + $0x7d8] sm:$0xff]
      %v2552 = vld [vmem:[#allocation19 + $0x7e0] sm:$0xff]
      %v2553 = vld [vmem:[#allocation19 + $0x7e8] sm:$0xff]
      %v2554 = vld [vmem:[#allocation19 + $0x7f0] sm:$0xff]
      %v2555 = vld [vmem:[#allocation19 + $0x7f8] sm:$0xff]
      %v2556 = vld [vmem:[#allocation19 + $0x800] sm:$0xff]
      %v2557 = vld [vmem:[#allocation19 + $0x808] sm:$0xff]
      %v2558 = vld [vmem:[#allocation19 + $0x810] sm:$0xff]
      %v2559 = vld [vmem:[#allocation19 + $0x818] sm:$0xff]
      %v2560 = vld [vmem:[#allocation19 + $0x820] sm:$0xff]
      %v2561 = vld [vmem:[#allocation19 + $0x828] sm:$0xff]
      %v2562 = vld [vmem:[#allocation19 + $0x830] sm:$0xff]
      %v2563 = vld [vmem:[#allocation19 + $0x838] sm:$0xff]
      %v2564 = vld [vmem:[#allocation19 + $0x840] sm:$0xff]
      %v2565 = vld [vmem:[#allocation19 + $0x848] sm:$0xff]
      %v2566 = vld [vmem:[#allocation19 + $0x850] sm:$0xff]
      %v2567 = vld [vmem:[#allocation19 + $0x858] sm:$0xff]
      %v2568 = vld [vmem:[#allocation19 + $0x860] sm:$0xff]
      %v2569 = vld [vmem:[#allocation19 + $0x868] sm:$0xff]
      %v2570 = vld [vmem:[#allocation19 + $0x870] sm:$0xff]
      %v2571 = vld [vmem:[#allocation19 + $0x878] sm:$0xff]
      %v2572 = vld [vmem:[#allocation19 + $0x880] sm:$0xff]
      %v2573 = vld [vmem:[#allocation19 + $0x888] sm:$0xff]
      %v2574 = vld [vmem:[#allocation19 + $0x890] sm:$0xff]
      %v2575 = vld [vmem:[#allocation19 + $0x898] sm:$0xff]
      %v2576 = vld [vmem:[#allocation19 + $0x8a0] sm:$0xff]
      %v2577 = vld [vmem:[#allocation19 + $0x8a8] sm:$0xff]
      %v2578 = vld [vmem:[#allocation19 + $0x8b0] sm:$0xff]
      %v2579 = vld [vmem:[#allocation19 + $0x8b8] sm:$0xff]
      %v2580 = vld [vmem:[#allocation19 + $0x8c0] sm:$0xff]
      %v2581 = vld [vmem:[#allocation19 + $0x8c8] sm:$0xff]
      %v2582 = vld [vmem:[#allocation19 + $0x8d0] sm:$0xff]
      %v2583 = vld [vmem:[#allocation19 + $0x8d8] sm:$0xff]
      %v2584 = vld [vmem:[#allocation19 + $0x8e0] sm:$0xff]
      %v2585 = vld [vmem:[#allocation19 + $0x8e8] sm:$0xff]
      %v2586 = vld [vmem:[#allocation19 + $0x8f0] sm:$0xff]
      %v2587 = vld [vmem:[#allocation19 + $0x8f8] sm:$0xff]
      %v2588 = vld [vmem:[#allocation19 + $0x900] sm:$0xff]
      %v2589 = vld [vmem:[#allocation19 + $0x908] sm:$0xff]
      %v2590 = vld [vmem:[#allocation19 + $0x910] sm:$0xff]
      %v2591 = vld [vmem:[#allocation19 + $0x918] sm:$0xff]
      %v2592 = vld [vmem:[#allocation19 + $0x920] sm:$0xff]
      %v2593 = vld [vmem:[#allocation19 + $0x928] sm:$0xff]
      %v2594 = vld [vmem:[#allocation19 + $0x930] sm:$0xff]
      %v2595 = vld [vmem:[#allocation19 + $0x938] sm:$0xff]
      %v2596 = vld [vmem:[#allocation19 + $0x940] sm:$0xff]
      %v2597 = vld [vmem:[#allocation19 + $0x948] sm:$0xff]
      %v2598 = vld [vmem:[#allocation19 + $0x950] sm:$0xff]
      %v2599 = vld [vmem:[#allocation19 + $0x958] sm:$0xff]
      %v2600 = vld [vmem:[#allocation19 + $0x960] sm:$0xff]
      %v2601 = vld [vmem:[#allocation19 + $0x968] sm:$0xff]
      %v2602 = vld [vmem:[#allocation19 + $0x970] sm:$0xff]
      %v2603 = vld [vmem:[#allocation19 + $0x978] sm:$0xff]
      %v2604 = vld [vmem:[#allocation19 + $0x980] sm:$0xff]
      %v2605 = vld [vmem:[#allocation19 + $0x988] sm:$0xff]
      %v2606 = vld [vmem:[#allocation19 + $0x990] sm:$0xff]
      %v2607 = vld [vmem:[#allocation19 + $0x998] sm:$0xff]
      %v2608 = vld [vmem:[#allocation19 + $0x9a0] sm:$0xff]
      %v2609 = vld [vmem:[#allocation19 + $0x9a8] sm:$0xff]
      %v2610 = vld [vmem:[#allocation19 + $0x9b0] sm:$0xff]
      %v2611 = vld [vmem:[#allocation19 + $0x9b8] sm:$0xff]
      %v2612 = vld [vmem:[#allocation19 + $0x9c0] sm:$0xff]
      %v2613 = vld [vmem:[#allocation19 + $0x9c8] sm:$0xff]
      %v2614 = vld [vmem:[#allocation19 + $0x9d0] sm:$0xff]
      %v2615 = vld [vmem:[#allocation19 + $0x9d8] sm:$0xff]
      %v2616 = vld [vmem:[#allocation19 + $0x9e0] sm:$0xff]
      %v2617 = vld [vmem:[#allocation19 + $0x9e8] sm:$0xff]
      %v2618 = vld [vmem:[#allocation19 + $0x9f0] sm:$0xff]
      %v2619 = vld [vmem:[#allocation19 + $0x9f8] sm:$0xff]
      %v2620 = vld [vmem:[#allocation19 + $0xa00] sm:$0xff]
      %v2621 = vld [vmem:[#allocation19 + $0xa08] sm:$0xff]
      %v2622 = vld [vmem:[#allocation19 + $0xa10] sm:$0xff]
      %v2623 = vld [vmem:[#allocation19 + $0xa18] sm:$0xff]
      %v2624 = vld [vmem:[#allocation19 + $0xa20] sm:$0xff]
      %v2625 = vld [vmem:[#allocation19 + $0xa28] sm:$0xff]
      %v2626 = vld [vmem:[#allocation19 + $0xa30] sm:$0xff]
      %v2627 = vld [vmem:[#allocation19 + $0xa38] sm:$0xff]
      %v2628 = vld [vmem:[#allocation19 + $0xa40] sm:$0xff]
      %v2629 = vld [vmem:[#allocation19 + $0xa48] sm:$0xff]
      %v2630 = vld [vmem:[#allocation19 + $0xa50] sm:$0xff]
      %v2631 = vld [vmem:[#allocation19 + $0xa58] sm:$0xff]
      %v2632 = vld [vmem:[#allocation19 + $0xa60] sm:$0xff]
      %v2633 = vld [vmem:[#allocation19 + $0xa68] sm:$0xff]
      %v2634 = vld [vmem:[#allocation19 + $0xa70] sm:$0xff]
      %v2635 = vld [vmem:[#allocation19 + $0xa78] sm:$0xff]
      %v2636 = vld [vmem:[#allocation19 + $0xa80] sm:$0xff]
      %v2637 = vld [vmem:[#allocation19 + $0xa88] sm:$0xff]
      %v2638 = vld [vmem:[#allocation19 + $0xa90] sm:$0xff]
      %v2639 = vld [vmem:[#allocation19 + $0xa98] sm:$0xff]
      %v2640 = vld [vmem:[#allocation19 + $0xaa0] sm:$0xff]
      %v2641 = vld [vmem:[#allocation19 + $0xaa8] sm:$0xff]
      %v2642 = vld [vmem:[#allocation19 + $0xab0] sm:$0xff]
      %v2643 = vld [vmem:[#allocation19 + $0xab8] sm:$0xff]
      %v2644 = vld [vmem:[#allocation19 + $0xac0] sm:$0xff]
      %v2645 = vld [vmem:[#allocation19 + $0xac8] sm:$0xff]
      %v2646 = vld [vmem:[#allocation19 + $0xad0] sm:$0xff]
      %v2647 = vld [vmem:[#allocation19 + $0xad8] sm:$0xff]
      %v2648 = vld [vmem:[#allocation19 + $0xae0] sm:$0xff]
      %v2649 = vld [vmem:[#allocation19 + $0xae8] sm:$0xff]
      %v2650 = vld [vmem:[#allocation19 + $0xaf0] sm:$0xff]
      %v2651 = vld [vmem:[#allocation19 + $0xaf8] sm:$0xff]
      %v2652 = vld [vmem:[#allocation19 + $0xb00] sm:$0xff]
      %v2653 = vld [vmem:[#allocation19 + $0xb08] sm:$0xff]
      %v2654 = vld [vmem:[#allocation19 + $0xb10] sm:$0xff]
      %v2655 = vld [vmem:[#allocation19 + $0xb18] sm:$0xff]
      %v2656 = vld [vmem:[#allocation19 + $0xb20] sm:$0xff]
      %v2657 = vld [vmem:[#allocation19 + $0xb28] sm:$0xff]
      %v2658 = vld [vmem:[#allocation19 + $0xb30] sm:$0xff]
      %v2659 = vld [vmem:[#allocation19 + $0xb38] sm:$0xff]
      %v2660 = vld [vmem:[#allocation19 + $0xb40] sm:$0xff]
      %v2661 = vld [vmem:[#allocation19 + $0xb48] sm:$0xff]
      %v2662 = vld [vmem:[#allocation19 + $0xb50] sm:$0xff]
      %v2663 = vld [vmem:[#allocation19 + $0xb58] sm:$0xff]
      %v2664 = vld [vmem:[#allocation19 + $0xb60] sm:$0xff]
      %v2665 = vld [vmem:[#allocation19 + $0xb68] sm:$0xff]
      %v2666 = vld [vmem:[#allocation19 + $0xb70] sm:$0xff]
      %v2667 = vld [vmem:[#allocation19 + $0xb78] sm:$0xff]
      %v2668 = vld [vmem:[#allocation19 + $0xb80] sm:$0xff]
      %v2669 = vld [vmem:[#allocation19 + $0xb88] sm:$0xff]
      %v2670 = vld [vmem:[#allocation19 + $0xb90] sm:$0xff]
      %v2671 = vld [vmem:[#allocation19 + $0xb98] sm:$0xff]
      %v2672 = vld [vmem:[#allocation19 + $0xba0] sm:$0xff]
      %v2673 = vld [vmem:[#allocation19 + $0xba8] sm:$0xff]
      %v2674 = vld [vmem:[#allocation19 + $0xbb0] sm:$0xff]
      %v2675 = vld [vmem:[#allocation19 + $0xbb8] sm:$0xff]
      %v2676 = vld [vmem:[#allocation19 + $0xbc0] sm:$0xff]
      %v2677 = vld [vmem:[#allocation19 + $0xbc8] sm:$0xff]
      %v2678 = vld [vmem:[#allocation19 + $0xbd0] sm:$0xff]
      %v2679 = vld [vmem:[#allocation19 + $0xbd8] sm:$0xff]
      %v2680 = vld [vmem:[#allocation19 + $0xbe0] sm:$0xff]
      %v2681 = vld [vmem:[#allocation19 + $0xbe8] sm:$0xff]
      %v2682 = vld [vmem:[#allocation19 + $0xbf0] sm:$0xff]
      %v2683 = vld [vmem:[#allocation19 + $0xbf8] sm:$0xff]
      %v2684 = vld [vmem:[#allocation19 + $0xc00] sm:$0xff]
      %v2685 = vld [vmem:[#allocation19 + $0xc08] sm:$0xff]
      %v2686 = vld [vmem:[#allocation19 + $0xc10] sm:$0xff]
      %v2687 = vld [vmem:[#allocation19 + $0xc18] sm:$0xff]
      %v2688 = vld [vmem:[#allocation19 + $0xc20] sm:$0xff]
      %v2689 = vld [vmem:[#allocation19 + $0xc28] sm:$0xff]
      %v2690 = vld [vmem:[#allocation19 + $0xc30] sm:$0xff]
      %v2691 = vld [vmem:[#allocation19 + $0xc38] sm:$0xff]
      %v2692 = vld [vmem:[#allocation19 + $0xc40] sm:$0xff]
      %v2693 = vld [vmem:[#allocation19 + $0xc48] sm:$0xff]
      %v2694 = vld [vmem:[#allocation19 + $0xc50] sm:$0xff]
      %v2695 = vld [vmem:[#allocation19 + $0xc58] sm:$0xff]
      %v2696 = vld [vmem:[#allocation19 + $0xc60] sm:$0xff]
      %v2697 = vld [vmem:[#allocation19 + $0xc68] sm:$0xff]
      %v2698 = vld [vmem:[#allocation19 + $0xc70] sm:$0xff]
      %v2699 = vld [vmem:[#allocation19 + $0xc78] sm:$0xff]
      %v2700 = vld [vmem:[#allocation19 + $0xc80] sm:$0xff]
      %v2701 = vld [vmem:[#allocation19 + $0xc88] sm:$0xff]
      %v2702 = vld [vmem:[#allocation19 + $0xc90] sm:$0xff]
      %v2703 = vld [vmem:[#allocation19 + $0xc98] sm:$0xff]
      %v2704 = vld [vmem:[#allocation19 + $0xca0] sm:$0xff]
      %v2705 = vld [vmem:[#allocation19 + $0xca8] sm:$0xff]
      %v2706 = vld [vmem:[#allocation19 + $0xcb0] sm:$0xff]
      %v2707 = vld [vmem:[#allocation19 + $0xcb8] sm:$0xff]
      %v2708 = vld [vmem:[#allocation19 + $0xcc0] sm:$0xff]
      %v2709 = vld [vmem:[#allocation19 + $0xcc8] sm:$0xff]
      %v2710 = vld [vmem:[#allocation19 + $0xcd0] sm:$0xff]
      %v2711 = vld [vmem:[#allocation19 + $0xcd8] sm:$0xff]
      %v2712 = vld [vmem:[#allocation19 + $0xce0] sm:$0xff]
      %v2713 = vld [vmem:[#allocation19 + $0xce8] sm:$0xff]
      %v2714 = vld [vmem:[#allocation19 + $0xcf0] sm:$0xff]
      %v2715 = vld [vmem:[#allocation19 + $0xcf8] sm:$0xff]
      %v2716 = vld [vmem:[#allocation19 + $0xd00] sm:$0xff]
      %v2717 = vld [vmem:[#allocation19 + $0xd08] sm:$0xff]
      %v2718 = vld [vmem:[#allocation19 + $0xd10] sm:$0xff]
      %v2719 = vld [vmem:[#allocation19 + $0xd18] sm:$0xff]
      %v2720 = vld [vmem:[#allocation19 + $0xd20] sm:$0xff]
      %v2721 = vld [vmem:[#allocation19 + $0xd28] sm:$0xff]
      %v2722 = vld [vmem:[#allocation19 + $0xd30] sm:$0xff]
      %v2723 = vld [vmem:[#allocation19 + $0xd38] sm:$0xff]
      %v2724 = vld [vmem:[#allocation19 + $0xd40] sm:$0xff]
      %v2725 = vld [vmem:[#allocation19 + $0xd48] sm:$0xff]
      %v2726 = vld [vmem:[#allocation19 + $0xd50] sm:$0xff]
      %v2727 = vld [vmem:[#allocation19 + $0xd58] sm:$0xff]
      %v2728 = vld [vmem:[#allocation19 + $0xd60] sm:$0xff]
      %v2729 = vld [vmem:[#allocation19 + $0xd68] sm:$0xff]
      %v2730 = vld [vmem:[#allocation19 + $0xd70] sm:$0xff]
      %v2731 = vld [vmem:[#allocation19 + $0xd78] sm:$0xff]
      %v2732 = vld [vmem:[#allocation19 + $0xd80] sm:$0xff]
      %v2733 = vld [vmem:[#allocation19 + $0xd88] sm:$0xff]
      %v2734 = vld [vmem:[#allocation19 + $0xd90] sm:$0xff]
      %v2735 = vld [vmem:[#allocation19 + $0xd98] sm:$0xff]
      %v2736 = vld [vmem:[#allocation19 + $0xda0] sm:$0xff]
      %v2737 = vld [vmem:[#allocation19 + $0xda8] sm:$0xff]
      %v2738 = vld [vmem:[#allocation19 + $0xdb0] sm:$0xff]
      %v2739 = vld [vmem:[#allocation19 + $0xdb8] sm:$0xff]
      %v2740 = vld [vmem:[#allocation19 + $0xdc0] sm:$0xff]
      %v2741 = vld [vmem:[#allocation19 + $0xdc8] sm:$0xff]
      %v2742 = vld [vmem:[#allocation19 + $0xdd0] sm:$0xff]
      %v2743 = vld [vmem:[#allocation19 + $0xdd8] sm:$0xff]
      %v2744 = vld [vmem:[#allocation19 + $0xde0] sm:$0xff]
      %v2745 = vld [vmem:[#allocation19 + $0xde8] sm:$0xff]
      %v2746 = vld [vmem:[#allocation19 + $0xdf0] sm:$0xff]
      %v2747 = vld [vmem:[#allocation19 + $0xdf8] sm:$0xff]
      %v2748 = vld [vmem:[#allocation19 + $0xe00] sm:$0xff]
      %v2749 = vld [vmem:[#allocation19 + $0xe08] sm:$0xff]
      %v2750 = vld [vmem:[#allocation19 + $0xe10] sm:$0xff]
      %v2751 = vld [vmem:[#allocation19 + $0xe18] sm:$0xff]
      %v2752 = vld [vmem:[#allocation19 + $0xe20] sm:$0xff]
      %v2753 = vld [vmem:[#allocation19 + $0xe28] sm:$0xff]
      %v2754 = vld [vmem:[#allocation19 + $0xe30] sm:$0xff]
      %v2755 = vld [vmem:[#allocation19 + $0xe38] sm:$0xff]
      %v2756 = vld [vmem:[#allocation19 + $0xe40] sm:$0xff]
      %v2757 = vld [vmem:[#allocation19 + $0xe48] sm:$0xff]
      %v2758 = vld [vmem:[#allocation19 + $0xe50] sm:$0xff]
      %v2759 = vld [vmem:[#allocation19 + $0xe58] sm:$0xff]
      %v2760 = vld [vmem:[#allocation19 + $0xe60] sm:$0xff]
      %v2761 = vld [vmem:[#allocation19 + $0xe68] sm:$0xff]
      %v2762 = vld [vmem:[#allocation19 + $0xe70] sm:$0xff]
      %v2763 = vld [vmem:[#allocation19 + $0xe78] sm:$0xff]
      %v2764 = vld [vmem:[#allocation19 + $0xe80] sm:$0xff]
      %v2765 = vld [vmem:[#allocation19 + $0xe88] sm:$0xff]
      %v2766 = vld [vmem:[#allocation19 + $0xe90] sm:$0xff]
      %v2767 = vld [vmem:[#allocation19 + $0xe98] sm:$0xff]
      %v2768 = vld [vmem:[#allocation19 + $0xea0] sm:$0xff]
      %v2769 = vld [vmem:[#allocation19 + $0xea8] sm:$0xff]
      %v2770 = vld [vmem:[#allocation19 + $0xeb0] sm:$0xff]
      %v2771 = vld [vmem:[#allocation19 + $0xeb8] sm:$0xff]
      %v2772 = vld [vmem:[#allocation19 + $0xec0] sm:$0xff]
      %v2773 = vld [vmem:[#allocation19 + $0xec8] sm:$0xff]
      %v2774 = vld [vmem:[#allocation19 + $0xed0] sm:$0xff]
      %v2775 = vld [vmem:[#allocation19 + $0xed8] sm:$0xff]
      %v2776 = vld [vmem:[#allocation19 + $0xee0] sm:$0xff]
      %v2777 = vld [vmem:[#allocation19 + $0xee8] sm:$0xff]
      %v2778 = vld [vmem:[#allocation19 + $0xef0] sm:$0xff]
      %v2779 = vld [vmem:[#allocation19 + $0xef8] sm:$0xff]
      %v2780 = vld [vmem:[#allocation19 + $0xf00] sm:$0xff]
      %v2781 = vld [vmem:[#allocation19 + $0xf08] sm:$0xff]
      %v2782 = vld [vmem:[#allocation19 + $0xf10] sm:$0xff]
      %v2783 = vld [vmem:[#allocation19 + $0xf18] sm:$0xff]
      %v2784 = vld [vmem:[#allocation19 + $0xf20] sm:$0xff]
      %v2785 = vld [vmem:[#allocation19 + $0xf28] sm:$0xff]
      %v2786 = vld [vmem:[#allocation19 + $0xf30] sm:$0xff]
      %v2787 = vld [vmem:[#allocation19 + $0xf38] sm:$0xff]
      %v2788 = vld [vmem:[#allocation19 + $0xf40] sm:$0xff]
      %v2789 = vld [vmem:[#allocation19 + $0xf48] sm:$0xff]
      %v2790 = vld [vmem:[#allocation19 + $0xf50] sm:$0xff]
      %v2791 = vld [vmem:[#allocation19 + $0xf58] sm:$0xff]
      %v2792 = vld [vmem:[#allocation19 + $0xf60] sm:$0xff]
      %v2793 = vld [vmem:[#allocation19 + $0xf68] sm:$0xff]
      %v2794 = vld [vmem:[#allocation19 + $0xf70] sm:$0xff]
      %v2795 = vld [vmem:[#allocation19 + $0xf78] sm:$0xff]
      %v2796 = vld [vmem:[#allocation19 + $0xf80] sm:$0xff]
      %v2797 = vld [vmem:[#allocation19 + $0xf88] sm:$0xff]
      %v2798 = vld [vmem:[#allocation19 + $0xf90] sm:$0xff]
      %v2799 = vld [vmem:[#allocation19 + $0xf98] sm:$0xff]
      %v2800 = vld [vmem:[#allocation19 + $0xfa0] sm:$0xff]
      %v2801 = vld [vmem:[#allocation19 + $0xfa8] sm:$0xff]
      %v2802 = vld [vmem:[#allocation19 + $0xfb0] sm:$0xff]
      %v2803 = vld [vmem:[#allocation19 + $0xfb8] sm:$0xff]
      %v2804 = vld [vmem:[#allocation19 + $0xfc0] sm:$0xff]
      %v2805 = vld [vmem:[#allocation19 + $0xfc8] sm:$0xff]
      %v2806 = vld [vmem:[#allocation19 + $0xfd0] sm:$0xff]
      %v2807 = vld [vmem:[#allocation19 + $0xfd8] sm:$0xff]
      %v2808 = vld [vmem:[#allocation19 + $0xfe0] sm:$0xff]
      %v2809 = vld [vmem:[#allocation19 + $0xfe8] sm:$0xff]
      %v2810 = vld [vmem:[#allocation19 + $0xff0] sm:$0xff]
      %v2811 = vld [vmem:[#allocation19 + $0xff8] sm:$0xff]
      %v2812 = vld [vmem:[#allocation21] sm:$0xff]
      %v2814 = vperm.slane %v2812, 0
      %v2815 = vperm.slane %v2812, 1
      %v2816 = vperm.slane %v2812, 2
      %v2817 = vperm.slane %v2812, 3
      %v2818 = vperm.slane %v2812, 4
      %v2819 = vperm.slane %v2812, 5
      %v2820 = vperm.slane %v2812, 6
      %v2821 = vperm.slane %v2812, 7
      %2830 = vmatpush.msra.mxu0 %v2420
      %2831 = vmatpush.msra.mxu0 %v2412
      %2832 = vmatpush.msra.mxu0 %v2404
      %2833 = vmatpush.msra.mxu0 %v2396
      %2834 = vmatpush.msra.mxu0 %v2388
      %2835 = vmatpush.msra.mxu0 %v2380
      %2836 = vmatpush.msra.mxu0 %v2372
      %2837 = vmatpush.msra.mxu0 %v2364
      %2838 = vmatpush.msra.mxu0 %v2356
      %2839 = vmatpush.msra.mxu0 %v2348
      %2840 = vmatpush.msra.mxu0 %v2340
      %2841 = vmatpush.msra.mxu0 %v2332
      %2842 = vmatpush.msra.mxu0 %v2324
      %2843 = vmatpush.msra.mxu0 %v2316
      %2844 = vmatpush.msra.mxu0 %v2308
      %2845 = vmatpush.msra.mxu0 %v2300
      %2846 = vmatmul.f32.gmra.mxu0 %v2296
      %v2847 = vpop.f32.mrf.mxu0
      %v2848 = vadd.f32 %v2814, %v2847
      %2849 = vdwg.mxu0
      %2850 = vmatpush.msra.mxu0 %v2548
      %2851 = vmatpush.msra.mxu0 %v2540
      %2852 = vmatpush.msra.mxu0 %v2532
      %2853 = vmatpush.msra.mxu0 %v2524
      %2854 = vmatpush.msra.mxu0 %v2516
      %2855 = vmatpush.msra.mxu0 %v2508
      %2856 = vmatpush.msra.mxu0 %v2500
      %2857 = vmatpush.msra.mxu0 %v2492
      %2858 = vmatpush.msra.mxu0 %v2484
      %2859 = vmatpush.msra.mxu0 %v2476
      %2860 = vmatpush.msra.mxu0 %v2468
      %2861 = vmatpush.msra.mxu0 %v2460
      %2862 = vmatpush.msra.mxu0 %v2452
      %2863 = vmatpush.msra.mxu0 %v2444
      %2864 = vmatpush.msra.mxu0 %v2436
      %2865 = vmatpush.msra.mxu0 %v2428
      %2866 = vmatmul.f32.gmra.mxu0 %v2297
      %v2867 = vpop.f32.mrf.mxu0
      %v2868 = vadd.f32 %v2848, %v2867
      %2869 = vdwg.mxu0
      %2870 = vmatpush.msra.mxu0 %v2676
      %2871 = vmatpush.msra.mxu0 %v2668
      %2872 = vmatpush.msra.mxu0 %v2660
      %2873 = vmatpush.msra.mxu0 %v2652
      %2874 = vmatpush.msra.mxu0 %v2644
      %2875 = vmatpush.msra.mxu0 %v2636
      %2876 = vmatpush.msra.mxu0 %v2628
      %2877 = vmatpush.msra.mxu0 %v2620
      %2878 = vmatpush.msra.mxu0 %v2612
      %2879 = vmatpush.msra.mxu0 %v2604
      %2880 = vmatpush.msra.mxu0 %v2596
      %2881 = vmatpush.msra.mxu0 %v2588
      %2882 = vmatpush.msra.mxu0 %v2580
      %2883 = vmatpush.msra.mxu0 %v2572
      %2884 = vmatpush.msra.mxu0 %v2564
      %2885 = vmatpush.msra.mxu0 %v2556
      %2886 = vmatmul.f32.gmra.mxu0 %v2298
      %v2887 = vpop.f32.mrf.mxu0
      %v2888 = vadd.f32 %v2868, %v2887
      %2889 = vdwg.mxu0
      %2890 = vmatpush.msra.mxu0 %v2804
      %2891 = vmatpush.msra.mxu0 %v2796
      %2892 = vmatpush.msra.mxu0 %v2788
      %2893 = vmatpush.msra.mxu0 %v2780
      %2894 = vmatpush.msra.mxu0 %v2772
      %2895 = vmatpush.msra.mxu0 %v2764
      %2896 = vmatpush.msra.mxu0 %v2756
      %2897 = vmatpush.msra.mxu0 %v2748
      %2898 = vmatpush.msra.mxu0 %v2740
      %2899 = vmatpush.msra.mxu0 %v2732
      %2900 = vmatpush.msra.mxu0 %v2724
      %2901 = vmatpush.msra.mxu0 %v2716
      %2902 = vmatpush.msra.mxu0 %v2708
      %2903 = vmatpush.msra.mxu0 %v2700
      %2904 = vmatpush.msra.mxu0 %v2692
      %2905 = vmatpush.msra.mxu0 %v2684
      %2906 = vmatmul.f32.gmra.mxu0 %v2299
      %v2907 = vpop.f32.mrf.mxu0
      %v2908 = vadd.f32 %v2888, %v2907
      %2909 = vdwg.mxu0
      %2910 = vmatpush.msra.mxu0 %v2421
      %2911 = vmatpush.msra.mxu0 %v2413
      %2912 = vmatpush.msra.mxu0 %v2405
      %2913 = vmatpush.msra.mxu0 %v2397
      %2914 = vmatpush.msra.mxu0 %v2389
      %2915 = vmatpush.msra.mxu0 %v2381
      %2916 = vmatpush.msra.mxu0 %v2373
      %2917 = vmatpush.msra.mxu0 %v2365
      %2918 = vmatpush.msra.mxu0 %v2357
      %2919 = vmatpush.msra.mxu0 %v2349
      %2920 = vmatpush.msra.mxu0 %v2341
      %2921 = vmatpush.msra.mxu0 %v2333
      %2922 = vmatpush.msra.mxu0 %v2325
      %2923 = vmatpush.msra.mxu0 %v2317
      %2924 = vmatpush.msra.mxu0 %v2309
      %2925 = vmatpush.msra.mxu0 %v2301
      %2926 = vmatmul.f32.gmra.mxu0 %v2296
      %v2927 = vpop.f32.mrf.mxu0
      %v2928 = vadd.f32 %v2815, %v2927
      %2929 = vdwg.mxu0
      %2930 = vmatpush.msra.mxu0 %v2549
      %2931 = vmatpush.msra.mxu0 %v2541
      %2932 = vmatpush.msra.mxu0 %v2533
      %2933 = vmatpush.msra.mxu0 %v2525
      %2934 = vmatpush.msra.mxu0 %v2517
      %2935 = vmatpush.msra.mxu0 %v2509
      %2936 = vmatpush.msra.mxu0 %v2501
      %2937 = vmatpush.msra.mxu0 %v2493
      %2938 = vmatpush.msra.mxu0 %v2485
      %2939 = vmatpush.msra.mxu0 %v2477
      %2940 = vmatpush.msra.mxu0 %v2469
      %2941 = vmatpush.msra.mxu0 %v2461
      %2942 = vmatpush.msra.mxu0 %v2453
      %2943 = vmatpush.msra.mxu0 %v2445
      %2944 = vmatpush.msra.mxu0 %v2437
      %2945 = vmatpush.msra.mxu0 %v2429
      %2946 = vmatmul.f32.gmra.mxu0 %v2297
      %v2947 = vpop.f32.mrf.mxu0
      %v2948 = vadd.f32 %v2928, %v2947
      %2949 = vdwg.mxu0
      %2950 = vmatpush.msra.mxu0 %v2677
      %2951 = vmatpush.msra.mxu0 %v2669
      %2952 = vmatpush.msra.mxu0 %v2661
      %2953 = vmatpush.msra.mxu0 %v2653
      %2954 = vmatpush.msra.mxu0 %v2645
      %2955 = vmatpush.msra.mxu0 %v2637
      %2956 = vmatpush.msra.mxu0 %v2629
      %2957 = vmatpush.msra.mxu0 %v2621
      %2958 = vmatpush.msra.mxu0 %v2613
      %2959 = vmatpush.msra.mxu0 %v2605
      %2960 = vmatpush.msra.mxu0 %v2597
      %2961 = vmatpush.msra.mxu0 %v2589
      %2962 = vmatpush.msra.mxu0 %v2581
      %2963 = vmatpush.msra.mxu0 %v2573
      %2964 = vmatpush.msra.mxu0 %v2565
      %2965 = vmatpush.msra.mxu0 %v2557
      %2966 = vmatmul.f32.gmra.mxu0 %v2298
      %v2967 = vpop.f32.mrf.mxu0
      %v2968 = vadd.f32 %v2948, %v2967
      %2969 = vdwg.mxu0
      %2970 = vmatpush.msra.mxu0 %v2805
      %2971 = vmatpush.msra.mxu0 %v2797
      %2972 = vmatpush.msra.mxu0 %v2789
      %2973 = vmatpush.msra.mxu0 %v2781
      %2974 = vmatpush.msra.mxu0 %v2773
      %2975 = vmatpush.msra.mxu0 %v2765
      %2976 = vmatpush.msra.mxu0 %v2757
      %2977 = vmatpush.msra.mxu0 %v2749
      %2978 = vmatpush.msra.mxu0 %v2741
      %2979 = vmatpush.msra.mxu0 %v2733
      %2980 = vmatpush.msra.mxu0 %v2725
      %2981 = vmatpush.msra.mxu0 %v2717
      %2982 = vmatpush.msra.mxu0 %v2709
      %2983 = vmatpush.msra.mxu0 %v2701
      %2984 = vmatpush.msra.mxu0 %v2693
      %2985 = vmatpush.msra.mxu0 %v2685
      %2986 = vmatmul.f32.gmra.mxu0 %v2299
      %v2987 = vpop.f32.mrf.mxu0
      %v2988 = vadd.f32 %v2968, %v2987
      %2989 = vdwg.mxu0
      %2990 = vmatpush.msra.mxu0 %v2422
      %2991 = vmatpush.msra.mxu0 %v2414
      %2992 = vmatpush.msra.mxu0 %v2406
      %2993 = vmatpush.msra.mxu0 %v2398
      %2994 = vmatpush.msra.mxu0 %v2390
      %2995 = vmatpush.msra.mxu0 %v2382
      %2996 = vmatpush.msra.mxu0 %v2374
      %2997 = vmatpush.msra.mxu0 %v2366
      %2998 = vmatpush.msra.mxu0 %v2358
      %2999 = vmatpush.msra.mxu0 %v2350
      %3000 = vmatpush.msra.mxu0 %v2342
      %3001 = vmatpush.msra.mxu0 %v2334
      %3002 = vmatpush.msra.mxu0 %v2326
      %3003 = vmatpush.msra.mxu0 %v2318
      %3004 = vmatpush.msra.mxu0 %v2310
      %3005 = vmatpush.msra.mxu0 %v2302
      %3006 = vmatmul.f32.gmra.mxu0 %v2296
      %v3007 = vpop.f32.mrf.mxu0
      %v3008 = vadd.f32 %v2816, %v3007
      %3009 = vdwg.mxu0
      %3010 = vmatpush.msra.mxu0 %v2550
      %3011 = vmatpush.msra.mxu0 %v2542
      %3012 = vmatpush.msra.mxu0 %v2534
      %3013 = vmatpush.msra.mxu0 %v2526
      %3014 = vmatpush.msra.mxu0 %v2518
      %3015 = vmatpush.msra.mxu0 %v2510
      %3016 = vmatpush.msra.mxu0 %v2502
      %3017 = vmatpush.msra.mxu0 %v2494
      %3018 = vmatpush.msra.mxu0 %v2486
      %3019 = vmatpush.msra.mxu0 %v2478
      %3020 = vmatpush.msra.mxu0 %v2470
      %3021 = vmatpush.msra.mxu0 %v2462
      %3022 = vmatpush.msra.mxu0 %v2454
      %3023 = vmatpush.msra.mxu0 %v2446
      %3024 = vmatpush.msra.mxu0 %v2438
      %3025 = vmatpush.msra.mxu0 %v2430
      %3026 = vmatmul.f32.gmra.mxu0 %v2297
      %v3027 = vpop.f32.mrf.mxu0
      %v3028 = vadd.f32 %v3008, %v3027
      %3029 = vdwg.mxu0
      %3030 = vmatpush.msra.mxu0 %v2678
      %3031 = vmatpush.msra.mxu0 %v2670
      %3032 = vmatpush.msra.mxu0 %v2662
      %3033 = vmatpush.msra.mxu0 %v2654
      %3034 = vmatpush.msra.mxu0 %v2646
      %3035 = vmatpush.msra.mxu0 %v2638
      %3036 = vmatpush.msra.mxu0 %v2630
      %3037 = vmatpush.msra.mxu0 %v2622
      %3038 = vmatpush.msra.mxu0 %v2614
      %3039 = vmatpush.msra.mxu0 %v2606
      %3040 = vmatpush.msra.mxu0 %v2598
      %3041 = vmatpush.msra.mxu0 %v2590
      %3042 = vmatpush.msra.mxu0 %v2582
      %3043 = vmatpush.msra.mxu0 %v2574
      %3044 = vmatpush.msra.mxu0 %v2566
      %3045 = vmatpush.msra.mxu0 %v2558
      %3046 = vmatmul.f32.gmra.mxu0 %v2298
      %v3047 = vpop.f32.mrf.mxu0
      %v3048 = vadd.f32 %v3028, %v3047
      %3049 = vdwg.mxu0
      %3050 = vmatpush.msra.mxu0 %v2806
      %3051 = vmatpush.msra.mxu0 %v2798
      %3052 = vmatpush.msra.mxu0 %v2790
      %3053 = vmatpush.msra.mxu0 %v2782
      %3054 = vmatpush.msra.mxu0 %v2774
      %3055 = vmatpush.msra.mxu0 %v2766
      %3056 = vmatpush.msra.mxu0 %v2758
      %3057 = vmatpush.msra.mxu0 %v2750
      %3058 = vmatpush.msra.mxu0 %v2742
      %3059 = vmatpush.msra.mxu0 %v2734
      %3060 = vmatpush.msra.mxu0 %v2726
      %3061 = vmatpush.msra.mxu0 %v2718
      %3062 = vmatpush.msra.mxu0 %v2710
      %3063 = vmatpush.msra.mxu0 %v2702
      %3064 = vmatpush.msra.mxu0 %v2694
      %3065 = vmatpush.msra.mxu0 %v2686
      %3066 = vmatmul.f32.gmra.mxu0 %v2299
      %v3067 = vpop.f32.mrf.mxu0
      %v3068 = vadd.f32 %v3048, %v3067
      %3069 = vdwg.mxu0
      %3070 = vmatpush.msra.mxu0 %v2423
      %3071 = vmatpush.msra.mxu0 %v2415
      %3072 = vmatpush.msra.mxu0 %v2407
      %3073 = vmatpush.msra.mxu0 %v2399
      %3074 = vmatpush.msra.mxu0 %v2391
      %3075 = vmatpush.msra.mxu0 %v2383
      %3076 = vmatpush.msra.mxu0 %v2375
      %3077 = vmatpush.msra.mxu0 %v2367
      %3078 = vmatpush.msra.mxu0 %v2359
      %3079 = vmatpush.msra.mxu0 %v2351
      %3080 = vmatpush.msra.mxu0 %v2343
      %3081 = vmatpush.msra.mxu0 %v2335
      %3082 = vmatpush.msra.mxu0 %v2327
      %3083 = vmatpush.msra.mxu0 %v2319
      %3084 = vmatpush.msra.mxu0 %v2311
      %3085 = vmatpush.msra.mxu0 %v2303
      %3086 = vmatmul.f32.gmra.mxu0 %v2296
      %v3087 = vpop.f32.mrf.mxu0
      %v3088 = vadd.f32 %v2817, %v3087
      %3089 = vdwg.mxu0
      %3090 = vmatpush.msra.mxu0 %v2551
      %3091 = vmatpush.msra.mxu0 %v2543
      %3092 = vmatpush.msra.mxu0 %v2535
      %3093 = vmatpush.msra.mxu0 %v2527
      %3094 = vmatpush.msra.mxu0 %v2519
      %3095 = vmatpush.msra.mxu0 %v2511
      %3096 = vmatpush.msra.mxu0 %v2503
      %3097 = vmatpush.msra.mxu0 %v2495
      %3098 = vmatpush.msra.mxu0 %v2487
      %3099 = vmatpush.msra.mxu0 %v2479
      %3100 = vmatpush.msra.mxu0 %v2471
      %3101 = vmatpush.msra.mxu0 %v2463
      %3102 = vmatpush.msra.mxu0 %v2455
      %3103 = vmatpush.msra.mxu0 %v2447
      %3104 = vmatpush.msra.mxu0 %v2439
      %3105 = vmatpush.msra.mxu0 %v2431
      %3106 = vmatmul.f32.gmra.mxu0 %v2297
      %v3107 = vpop.f32.mrf.mxu0
      %v3108 = vadd.f32 %v3088, %v3107
      %3109 = vdwg.mxu0
      %3110 = vmatpush.msra.mxu0 %v2679
      %3111 = vmatpush.msra.mxu0 %v2671
      %3112 = vmatpush.msra.mxu0 %v2663
      %3113 = vmatpush.msra.mxu0 %v2655
      %3114 = vmatpush.msra.mxu0 %v2647
      %3115 = vmatpush.msra.mxu0 %v2639
      %3116 = vmatpush.msra.mxu0 %v2631
      %3117 = vmatpush.msra.mxu0 %v2623
      %3118 = vmatpush.msra.mxu0 %v2615
      %3119 = vmatpush.msra.mxu0 %v2607
      %3120 = vmatpush.msra.mxu0 %v2599
      %3121 = vmatpush.msra.mxu0 %v2591
      %3122 = vmatpush.msra.mxu0 %v2583
      %3123 = vmatpush.msra.mxu0 %v2575
      %3124 = vmatpush.msra.mxu0 %v2567
      %3125 = vmatpush.msra.mxu0 %v2559
      %3126 = vmatmul.f32.gmra.mxu0 %v2298
      %v3127 = vpop.f32.mrf.mxu0
      %v3128 = vadd.f32 %v3108, %v3127
      %3129 = vdwg.mxu0
      %3130 = vmatpush.msra.mxu0 %v2807
      %3131 = vmatpush.msra.mxu0 %v2799
      %3132 = vmatpush.msra.mxu0 %v2791
      %3133 = vmatpush.msra.mxu0 %v2783
      %3134 = vmatpush.msra.mxu0 %v2775
      %3135 = vmatpush.msra.mxu0 %v2767
      %3136 = vmatpush.msra.mxu0 %v2759
      %3137 = vmatpush.msra.mxu0 %v2751
      %3138 = vmatpush.msra.mxu0 %v2743
      %3139 = vmatpush.msra.mxu0 %v2735
      %3140 = vmatpush.msra.mxu0 %v2727
      %3141 = vmatpush.msra.mxu0 %v2719
      %3142 = vmatpush.msra.mxu0 %v2711
      %3143 = vmatpush.msra.mxu0 %v2703
      %3144 = vmatpush.msra.mxu0 %v2695
      %3145 = vmatpush.msra.mxu0 %v2687
      %3146 = vmatmul.f32.gmra.mxu0 %v2299
      %v3147 = vpop.f32.mrf.mxu0
      %v3148 = vadd.f32 %v3128, %v3147
      %3149 = vdwg.mxu0
      %3150 = vmatpush.msra.mxu0 %v2424
      %3151 = vmatpush.msra.mxu0 %v2416
      %3152 = vmatpush.msra.mxu0 %v2408
      %3153 = vmatpush.msra.mxu0 %v2400
      %3154 = vmatpush.msra.mxu0 %v2392
      %3155 = vmatpush.msra.mxu0 %v2384
      %3156 = vmatpush.msra.mxu0 %v2376
      %3157 = vmatpush.msra.mxu0 %v2368
      %3158 = vmatpush.msra.mxu0 %v2360
      %3159 = vmatpush.msra.mxu0 %v2352
      %3160 = vmatpush.msra.mxu0 %v2344
      %3161 = vmatpush.msra.mxu0 %v2336
      %3162 = vmatpush.msra.mxu0 %v2328
      %3163 = vmatpush.msra.mxu0 %v2320
      %3164 = vmatpush.msra.mxu0 %v2312
      %3165 = vmatpush.msra.mxu0 %v2304
      %3166 = vmatmul.f32.gmra.mxu0 %v2296
      %v3167 = vpop.f32.mrf.mxu0
      %v3168 = vadd.f32 %v2818, %v3167
      %3169 = vdwg.mxu0
      %3170 = vmatpush.msra.mxu0 %v2552
      %3171 = vmatpush.msra.mxu0 %v2544
      %3172 = vmatpush.msra.mxu0 %v2536
      %3173 = vmatpush.msra.mxu0 %v2528
      %3174 = vmatpush.msra.mxu0 %v2520
      %3175 = vmatpush.msra.mxu0 %v2512
      %3176 = vmatpush.msra.mxu0 %v2504
      %3177 = vmatpush.msra.mxu0 %v2496
      %3178 = vmatpush.msra.mxu0 %v2488
      %3179 = vmatpush.msra.mxu0 %v2480
      %3180 = vmatpush.msra.mxu0 %v2472
      %3181 = vmatpush.msra.mxu0 %v2464
      %3182 = vmatpush.msra.mxu0 %v2456
      %3183 = vmatpush.msra.mxu0 %v2448
      %3184 = vmatpush.msra.mxu0 %v2440
      %3185 = vmatpush.msra.mxu0 %v2432
      %3186 = vmatmul.f32.gmra.mxu0 %v2297
      %v3187 = vpop.f32.mrf.mxu0
      %v3188 = vadd.f32 %v3168, %v3187
      %3189 = vdwg.mxu0
      %3190 = vmatpush.msra.mxu0 %v2680
      %3191 = vmatpush.msra.mxu0 %v2672
      %3192 = vmatpush.msra.mxu0 %v2664
      %3193 = vmatpush.msra.mxu0 %v2656
      %3194 = vmatpush.msra.mxu0 %v2648
      %3195 = vmatpush.msra.mxu0 %v2640
      %3196 = vmatpush.msra.mxu0 %v2632
      %3197 = vmatpush.msra.mxu0 %v2624
      %3198 = vmatpush.msra.mxu0 %v2616
      %3199 = vmatpush.msra.mxu0 %v2608
      %3200 = vmatpush.msra.mxu0 %v2600
      %3201 = vmatpush.msra.mxu0 %v2592
      %3202 = vmatpush.msra.mxu0 %v2584
      %3203 = vmatpush.msra.mxu0 %v2576
      %3204 = vmatpush.msra.mxu0 %v2568
      %3205 = vmatpush.msra.mxu0 %v2560
      %3206 = vmatmul.f32.gmra.mxu0 %v2298
      %v3207 = vpop.f32.mrf.mxu0
      %v3208 = vadd.f32 %v3188, %v3207
      %3209 = vdwg.mxu0
      %3210 = vmatpush.msra.mxu0 %v2808
      %3211 = vmatpush.msra.mxu0 %v2800
      %3212 = vmatpush.msra.mxu0 %v2792
      %3213 = vmatpush.msra.mxu0 %v2784
      %3214 = vmatpush.msra.mxu0 %v2776
      %3215 = vmatpush.msra.mxu0 %v2768
      %3216 = vmatpush.msra.mxu0 %v2760
      %3217 = vmatpush.msra.mxu0 %v2752
      %3218 = vmatpush.msra.mxu0 %v2744
      %3219 = vmatpush.msra.mxu0 %v2736
      %3220 = vmatpush.msra.mxu0 %v2728
      %3221 = vmatpush.msra.mxu0 %v2720
      %3222 = vmatpush.msra.mxu0 %v2712
      %3223 = vmatpush.msra.mxu0 %v2704
      %3224 = vmatpush.msra.mxu0 %v2696
      %3225 = vmatpush.msra.mxu0 %v2688
      %3226 = vmatmul.f32.gmra.mxu0 %v2299
      %v3227 = vpop.f32.mrf.mxu0
      %v3228 = vadd.f32 %v3208, %v3227
      %3229 = vdwg.mxu0
      %3230 = vmatpush.msra.mxu0 %v2425
      %3231 = vmatpush.msra.mxu0 %v2417
      %3232 = vmatpush.msra.mxu0 %v2409
      %3233 = vmatpush.msra.mxu0 %v2401
      %3234 = vmatpush.msra.mxu0 %v2393
      %3235 = vmatpush.msra.mxu0 %v2385
      %3236 = vmatpush.msra.mxu0 %v2377
      %3237 = vmatpush.msra.mxu0 %v2369
      %3238 = vmatpush.msra.mxu0 %v2361
      %3239 = vmatpush.msra.mxu0 %v2353
      %3240 = vmatpush.msra.mxu0 %v2345
      %3241 = vmatpush.msra.mxu0 %v2337
      %3242 = vmatpush.msra.mxu0 %v2329
      %3243 = vmatpush.msra.mxu0 %v2321
      %3244 = vmatpush.msra.mxu0 %v2313
      %3245 = vmatpush.msra.mxu0 %v2305
      %3246 = vmatmul.f32.gmra.mxu0 %v2296
      %v3247 = vpop.f32.mrf.mxu0
      %v3248 = vadd.f32 %v2819, %v3247
      %3249 = vdwg.mxu0
      %3250 = vmatpush.msra.mxu0 %v2553
      %3251 = vmatpush.msra.mxu0 %v2545
      %3252 = vmatpush.msra.mxu0 %v2537
      %3253 = vmatpush.msra.mxu0 %v2529
      %3254 = vmatpush.msra.mxu0 %v2521
      %3255 = vmatpush.msra.mxu0 %v2513
      %3256 = vmatpush.msra.mxu0 %v2505
      %3257 = vmatpush.msra.mxu0 %v2497
      %3258 = vmatpush.msra.mxu0 %v2489
      %3259 = vmatpush.msra.mxu0 %v2481
      %3260 = vmatpush.msra.mxu0 %v2473
      %3261 = vmatpush.msra.mxu0 %v2465
      %3262 = vmatpush.msra.mxu0 %v2457
      %3263 = vmatpush.msra.mxu0 %v2449
      %3264 = vmatpush.msra.mxu0 %v2441
      %3265 = vmatpush.msra.mxu0 %v2433
      %3266 = vmatmul.f32.gmra.mxu0 %v2297
      %v3267 = vpop.f32.mrf.mxu0
      %v3268 = vadd.f32 %v3248, %v3267
      %3269 = vdwg.mxu0
      %3270 = vmatpush.msra.mxu0 %v2681
      %3271 = vmatpush.msra.mxu0 %v2673
      %3272 = vmatpush.msra.mxu0 %v2665
      %3273 = vmatpush.msra.mxu0 %v2657
      %3274 = vmatpush.msra.mxu0 %v2649
      %3275 = vmatpush.msra.mxu0 %v2641
      %3276 = vmatpush.msra.mxu0 %v2633
      %3277 = vmatpush.msra.mxu0 %v2625
      %3278 = vmatpush.msra.mxu0 %v2617
      %3279 = vmatpush.msra.mxu0 %v2609
      %3280 = vmatpush.msra.mxu0 %v2601
      %3281 = vmatpush.msra.mxu0 %v2593
      %3282 = vmatpush.msra.mxu0 %v2585
      %3283 = vmatpush.msra.mxu0 %v2577
      %3284 = vmatpush.msra.mxu0 %v2569
      %3285 = vmatpush.msra.mxu0 %v2561
      %3286 = vmatmul.f32.gmra.mxu0 %v2298
      %v3287 = vpop.f32.mrf.mxu0
      %v3288 = vadd.f32 %v3268, %v3287
      %3289 = vdwg.mxu0
      %3290 = vmatpush.msra.mxu0 %v2809
      %3291 = vmatpush.msra.mxu0 %v2801
      %3292 = vmatpush.msra.mxu0 %v2793
      %3293 = vmatpush.msra.mxu0 %v2785
      %3294 = vmatpush.msra.mxu0 %v2777
      %3295 = vmatpush.msra.mxu0 %v2769
      %3296 = vmatpush.msra.mxu0 %v2761
      %3297 = vmatpush.msra.mxu0 %v2753
      %3298 = vmatpush.msra.mxu0 %v2745
      %3299 = vmatpush.msra.mxu0 %v2737
      %3300 = vmatpush.msra.mxu0 %v2729
      %3301 = vmatpush.msra.mxu0 %v2721
      %3302 = vmatpush.msra.mxu0 %v2713
      %3303 = vmatpush.msra.mxu0 %v2705
      %3304 = vmatpush.msra.mxu0 %v2697
      %3305 = vmatpush.msra.mxu0 %v2689
      %3306 = vmatmul.f32.gmra.mxu0 %v2299
      %v3307 = vpop.f32.mrf.mxu0
      %v3308 = vadd.f32 %v3288, %v3307
      %3309 = vdwg.mxu0
      %3310 = vmatpush.msra.mxu0 %v2426
      %3311 = vmatpush.msra.mxu0 %v2418
      %3312 = vmatpush.msra.mxu0 %v2410
      %3313 = vmatpush.msra.mxu0 %v2402
      %3314 = vmatpush.msra.mxu0 %v2394
      %3315 = vmatpush.msra.mxu0 %v2386
      %3316 = vmatpush.msra.mxu0 %v2378
      %3317 = vmatpush.msra.mxu0 %v2370
      %3318 = vmatpush.msra.mxu0 %v2362
      %3319 = vmatpush.msra.mxu0 %v2354
      %3320 = vmatpush.msra.mxu0 %v2346
      %3321 = vmatpush.msra.mxu0 %v2338
      %3322 = vmatpush.msra.mxu0 %v2330
      %3323 = vmatpush.msra.mxu0 %v2322
      %3324 = vmatpush.msra.mxu0 %v2314
      %3325 = vmatpush.msra.mxu0 %v2306
      %3326 = vmatmul.f32.gmra.mxu0 %v2296
      %v3327 = vpop.f32.mrf.mxu0
      %v3328 = vadd.f32 %v2820, %v3327
      %3329 = vdwg.mxu0
      %3330 = vmatpush.msra.mxu0 %v2554
      %3331 = vmatpush.msra.mxu0 %v2546
      %3332 = vmatpush.msra.mxu0 %v2538
      %3333 = vmatpush.msra.mxu0 %v2530
      %3334 = vmatpush.msra.mxu0 %v2522
      %3335 = vmatpush.msra.mxu0 %v2514
      %3336 = vmatpush.msra.mxu0 %v2506
      %3337 = vmatpush.msra.mxu0 %v2498
      %3338 = vmatpush.msra.mxu0 %v2490
      %3339 = vmatpush.msra.mxu0 %v2482
      %3340 = vmatpush.msra.mxu0 %v2474
      %3341 = vmatpush.msra.mxu0 %v2466
      %3342 = vmatpush.msra.mxu0 %v2458
      %3343 = vmatpush.msra.mxu0 %v2450
      %3344 = vmatpush.msra.mxu0 %v2442
      %3345 = vmatpush.msra.mxu0 %v2434
      %3346 = vmatmul.f32.gmra.mxu0 %v2297
      %v3347 = vpop.f32.mrf.mxu0
      %v3348 = vadd.f32 %v3328, %v3347
      %3349 = vdwg.mxu0
      %3350 = vmatpush.msra.mxu0 %v2682
      %3351 = vmatpush.msra.mxu0 %v2674
      %3352 = vmatpush.msra.mxu0 %v2666
      %3353 = vmatpush.msra.mxu0 %v2658
      %3354 = vmatpush.msra.mxu0 %v2650
      %3355 = vmatpush.msra.mxu0 %v2642
      %3356 = vmatpush.msra.mxu0 %v2634
      %3357 = vmatpush.msra.mxu0 %v2626
      %3358 = vmatpush.msra.mxu0 %v2618
      %3359 = vmatpush.msra.mxu0 %v2610
      %3360 = vmatpush.msra.mxu0 %v2602
      %3361 = vmatpush.msra.mxu0 %v2594
      %3362 = vmatpush.msra.mxu0 %v2586
      %3363 = vmatpush.msra.mxu0 %v2578
      %3364 = vmatpush.msra.mxu0 %v2570
      %3365 = vmatpush.msra.mxu0 %v2562
      %3366 = vmatmul.f32.gmra.mxu0 %v2298
      %v3367 = vpop.f32.mrf.mxu0
      %v3368 = vadd.f32 %v3348, %v3367
      %3369 = vdwg.mxu0
      %3370 = vmatpush.msra.mxu0 %v2810
      %3371 = vmatpush.msra.mxu0 %v2802
      %3372 = vmatpush.msra.mxu0 %v2794
      %3373 = vmatpush.msra.mxu0 %v2786
      %3374 = vmatpush.msra.mxu0 %v2778
      %3375 = vmatpush.msra.mxu0 %v2770
      %3376 = vmatpush.msra.mxu0 %v2762
      %3377 = vmatpush.msra.mxu0 %v2754
      %3378 = vmatpush.msra.mxu0 %v2746
      %3379 = vmatpush.msra.mxu0 %v2738
      %3380 = vmatpush.msra.mxu0 %v2730
      %3381 = vmatpush.msra.mxu0 %v2722
      %3382 = vmatpush.msra.mxu0 %v2714
      %3383 = vmatpush.msra.mxu0 %v2706
      %3384 = vmatpush.msra.mxu0 %v2698
      %3385 = vmatpush.msra.mxu0 %v2690
      %3386 = vmatmul.f32.gmra.mxu0 %v2299
      %v3387 = vpop.f32.mrf.mxu0
      %v3388 = vadd.f32 %v3368, %v3387
      %3389 = vdwg.mxu0
      %3390 = vmatpush.msra.mxu0 %v2427
      %3391 = vmatpush.msra.mxu0 %v2419
      %3392 = vmatpush.msra.mxu0 %v2411
      %3393 = vmatpush.msra.mxu0 %v2403
      %3394 = vmatpush.msra.mxu0 %v2395
      %3395 = vmatpush.msra.mxu0 %v2387
      %3396 = vmatpush.msra.mxu0 %v2379
      %3397 = vmatpush.msra.mxu0 %v2371
      %3398 = vmatpush.msra.mxu0 %v2363
      %3399 = vmatpush.msra.mxu0 %v2355
      %3400 = vmatpush.msra.mxu0 %v2347
      %3401 = vmatpush.msra.mxu0 %v2339
      %3402 = vmatpush.msra.mxu0 %v2331
      %3403 = vmatpush.msra.mxu0 %v2323
      %3404 = vmatpush.msra.mxu0 %v2315
      %3405 = vmatpush.msra.mxu0 %v2307
      %3406 = vmatmul.f32.gmra.mxu0 %v2296
      %v3407 = vpop.f32.mrf.mxu0
      %v3408 = vadd.f32 %v2821, %v3407
      %3409 = vdwg.mxu0
      %3410 = vmatpush.msra.mxu0 %v2555
      %3411 = vmatpush.msra.mxu0 %v2547
      %3412 = vmatpush.msra.mxu0 %v2539
      %3413 = vmatpush.msra.mxu0 %v2531
      %3414 = vmatpush.msra.mxu0 %v2523
      %3415 = vmatpush.msra.mxu0 %v2515
      %3416 = vmatpush.msra.mxu0 %v2507
      %3417 = vmatpush.msra.mxu0 %v2499
      %3418 = vmatpush.msra.mxu0 %v2491
      %3419 = vmatpush.msra.mxu0 %v2483
      %3420 = vmatpush.msra.mxu0 %v2475
      %3421 = vmatpush.msra.mxu0 %v2467
      %3422 = vmatpush.msra.mxu0 %v2459
      %3423 = vmatpush.msra.mxu0 %v2451
      %3424 = vmatpush.msra.mxu0 %v2443
      %3425 = vmatpush.msra.mxu0 %v2435
      %3426 = vmatmul.f32.gmra.mxu0 %v2297
      %v3427 = vpop.f32.mrf.mxu0
      %v3428 = vadd.f32 %v3408, %v3427
      %3429 = vdwg.mxu0
      %3430 = vmatpush.msra.mxu0 %v2683
      %3431 = vmatpush.msra.mxu0 %v2675
      %3432 = vmatpush.msra.mxu0 %v2667
      %3433 = vmatpush.msra.mxu0 %v2659
      %3434 = vmatpush.msra.mxu0 %v2651
      %3435 = vmatpush.msra.mxu0 %v2643
      %3436 = vmatpush.msra.mxu0 %v2635
      %3437 = vmatpush.msra.mxu0 %v2627
      %3438 = vmatpush.msra.mxu0 %v2619
      %3439 = vmatpush.msra.mxu0 %v2611
      %3440 = vmatpush.msra.mxu0 %v2603
      %3441 = vmatpush.msra.mxu0 %v2595
      %3442 = vmatpush.msra.mxu0 %v2587
      %3443 = vmatpush.msra.mxu0 %v2579
      %3444 = vmatpush.msra.mxu0 %v2571
      %3445 = vmatpush.msra.mxu0 %v2563
      %3446 = vmatmul.f32.gmra.mxu0 %v2298
      %v3447 = vpop.f32.mrf.mxu0
      %v3448 = vadd.f32 %v3428, %v3447
      %3449 = vdwg.mxu0
      %3450 = vmatpush.msra.mxu0 %v2811
      %3451 = vmatpush.msra.mxu0 %v2803
      %3452 = vmatpush.msra.mxu0 %v2795
      %3453 = vmatpush.msra.mxu0 %v2787
      %3454 = vmatpush.msra.mxu0 %v2779
      %3455 = vmatpush.msra.mxu0 %v2771
      %3456 = vmatpush.msra.mxu0 %v2763
      %3457 = vmatpush.msra.mxu0 %v2755
      %3458 = vmatpush.msra.mxu0 %v2747
      %3459 = vmatpush.msra.mxu0 %v2739
      %3460 = vmatpush.msra.mxu0 %v2731
      %3461 = vmatpush.msra.mxu0 %v2723
      %3462 = vmatpush.msra.mxu0 %v2715
      %3463 = vmatpush.msra.mxu0 %v2707
      %3464 = vmatpush.msra.mxu0 %v2699
      %3465 = vmatpush.msra.mxu0 %v2691
      %3466 = vmatmul.f32.gmra.mxu0 %v2299
      %v3467 = vpop.f32.mrf.mxu0
      %v3468 = vadd.f32 %v3448, %v3467
      %3469 = vdwg.mxu0
      %v3470 = vld [vmem:[#allocation22] sm:$0xff]
      %v3471 = vld [vmem:[#allocation24] sm:$0xff]
      %v3472 = vsel %vm323, %v2908, 0.0
      %v3473 = vsel %vm323, %v2988, 0.0
      %v3474 = vadd.f32 %v3472, %v3473
      %v3475 = vsel %vm323, %v3068, 0.0
      %v3476 = vadd.f32 %v3474, %v3475
      %v3477 = vsel %vm323, %v3148, 0.0
      %v3478 = vadd.f32 %v3476, %v3477
      %v3479 = vsel %vm323, %v3228, 0.0
      %v3480 = vadd.f32 %v3478, %v3479
      %v3481 = vsel %vm323, %v3308, 0.0
      %v3482 = vadd.f32 %v3480, %v3481
      %v3483 = vsel %vm323, %v3388, 0.0
      %v3484 = vadd.f32 %v3482, %v3483
      %v3485 = vsel %vm323, %v3468, 0.0
      %v3486 = vadd.f32 %v3484, %v3485
      %3487 = vadd.xlane.f32.xlu0 %v3486
      %v3488 = vpop.xlane.xlu0 %3487
      %v3489 = vrcp.pop 1024.0
      %v3490 = vmul.f32 1024.0, %v3489
      %v3491 = vsub.f32 1.0, %v3490
      %v3492 = vmul.f32 %v3489, %v3491
      %v3493 = vadd.f32 %v3489, %v3492
      %vm3494 = vweird.f32 %v3489
      %v3495 = vsel %vm3494, %v3489, %v3493
      %v3496 = vmul.f32 %v3488, %v3495
      %v3497 = vsub.f32 %v2908, %v3496
      %v3498 = vsub.f32 %v2988, %v3496
      %v3499 = vsub.f32 %v3068, %v3496
      %v3500 = vsub.f32 %v3148, %v3496
      %v3501 = vsub.f32 %v3228, %v3496
      %v3502 = vsub.f32 %v3308, %v3496
      %v3503 = vsub.f32 %v3388, %v3496
      %v3504 = vsub.f32 %v3468, %v3496
      %v3505 = vmul.f32 %v3497, %v3497
      %v3506 = vmul.f32 %v3498, %v3498
      %v3507 = vmul.f32 %v3499, %v3499
      %v3508 = vmul.f32 %v3500, %v3500
      %v3509 = vmul.f32 %v3501, %v3501
      %v3510 = vmul.f32 %v3502, %v3502
      %v3511 = vmul.f32 %v3503, %v3503
      %v3512 = vmul.f32 %v3504, %v3504
      %v3513 = vsel %vm323, %v3505, 0.0
      %v3514 = vsel %vm323, %v3506, 0.0
      %v3515 = vadd.f32 %v3513, %v3514
      %v3516 = vsel %vm323, %v3507, 0.0
      %v3517 = vadd.f32 %v3515, %v3516
      %v3518 = vsel %vm323, %v3508, 0.0
      %v3519 = vadd.f32 %v3517, %v3518
      %v3520 = vsel %vm323, %v3509, 0.0
      %v3521 = vadd.f32 %v3519, %v3520
      %v3522 = vsel %vm323, %v3510, 0.0
      %v3523 = vadd.f32 %v3521, %v3522
      %v3524 = vsel %vm323, %v3511, 0.0
      %v3525 = vadd.f32 %v3523, %v3524
      %v3526 = vsel %vm323, %v3512, 0.0
      %v3527 = vadd.f32 %v3525, %v3526
      %3528 = vadd.xlane.f32.xlu0 %v3527
      %v3529 = vpop.xlane.xlu0 %3528
      %v3530 = vmul.f32 %v3529, %v3495
      %v3531 = vadd.f32 %v3530, 1e-05
      %v3532 = vrsqrt.pop %v3531
      %v3533 = vmul.f32 %v3532, %v3531
      %v3534 = vmul.f32 %v3533, %v3532
      %v3535 = vmul.f32 0.5, %v3534
      %v3536 = vsub.f32 1.5, %v3535
      %v3537 = vmul.f32 %v3532, %v3536
      %vm3538 = vweird.f32 %v3531
      %vm3539 = vweird.f32 %v3532
      %vm3540 = vmor %vm3538, %vm3539
      %v3541 = vsel %vm3540, %v3532, %v3537
      %v3542 = vmul.f32 %v3497, %v3541
      %v3543 = vmul.f32 %v3498, %v3541
      %v3544 = vmul.f32 %v3499, %v3541
      %v3545 = vmul.f32 %v3500, %v3541
      %v3546 = vmul.f32 %v3501, %v3541
      %v3547 = vmul.f32 %v3502, %v3541
      %v3548 = vmul.f32 %v3503, %v3541
      %v3549 = vmul.f32 %v3504, %v3541
      %v3551 = vperm.slane %v3470, 0
      %v3552 = vperm.slane %v3470, 1
      %v3553 = vperm.slane %v3470, 2
      %v3554 = vperm.slane %v3470, 3
      %v3555 = vperm.slane %v3470, 4
      %v3556 = vperm.slane %v3470, 5
      %v3557 = vperm.slane %v3470, 6
      %v3558 = vperm.slane %v3470, 7
      %v3567 = vmul.f32 %v3542, %v3551
      %v3568 = vmul.f32 %v3543, %v3552
      %v3569 = vmul.f32 %v3544, %v3553
      %v3570 = vmul.f32 %v3545, %v3554
      %v3571 = vmul.f32 %v3546, %v3555
      %v3572 = vmul.f32 %v3547, %v3556
      %v3573 = vmul.f32 %v3548, %v3557
      %v3574 = vmul.f32 %v3549, %v3558
      %v3576 = vperm.slane %v3471, 0
      %v3577 = vperm.slane %v3471, 1
      %v3578 = vperm.slane %v3471, 2
      %v3579 = vperm.slane %v3471, 3
      %v3580 = vperm.slane %v3471, 4
      %v3581 = vperm.slane %v3471, 5
      %v3582 = vperm.slane %v3471, 6
      %v3583 = vperm.slane %v3471, 7
      %v3592 = vadd.f32 %v3567, %v3576
      %v3593 = vadd.f32 %v3568, %v3577
      %v3594 = vadd.f32 %v3569, %v3578
      %v3595 = vadd.f32 %v3570, %v3579
      %v3596 = vadd.f32 %v3571, %v3580
      %v3597 = vadd.f32 %v3572, %v3581
      %v3598 = vadd.f32 %v3573, %v3582
      %v3599 = vadd.f32 %v3574, %v3583
      %v3608 = vrot.slane %v3593, 7
      %v3609 = vrot.slane %v3594, 6
      %v3610 = vrot.slane %v3595, 5
      %v3611 = vrot.slane %v3596, 4
      %v3612 = vrot.slane %v3597, 3
      %v3613 = vrot.slane %v3598, 2
      %v3614 = vrot.slane %v3599, 1
      %v3615 = vsel %vm323, %v3592, %v3608
      %v3616 = vsel %vm325, %v3609, %v3610
      %v3617 = vsel %vm327, %v3615, %v3616
      %v3618 = vsel %vm329, %v3611, %v3612
      %v3619 = vsel %vm331, %v3613, %v3614
      %v3620 = vsel %vm333, %v3618, %v3619
      %v3621 = vsel %vm335, %v3617, %v3620
      %3623 = vst [vmem:[#allocation25] sm:$0xff] %v3621
    $region117: #{_call_kernel.1} parent=1 // pred_fallthru
      _
    // Predicated region
    $region118: #{_call_kernel.1} parent=1 // pred_check
      _
    $region119: #{_call_kernel.1} parent=1 // pred_check_branch
      %3625 = sbr.rel (0) target = $region121
    $region120: #{_call_kernel.1} parent=1 // pred_region
      %3627 = vsyncadd [#allocation6], 0
      %s3629 = sshll.u32 [#allocation25], 4
      %s3630 = int_to_ptr.vmem [resolvable:$true] %s3629
      %s3631 = sshll.u32 %s14, 4
      %s3632 = int_to_ptr.hbm [resolvable:$true] %s3631
      %3634 = dma.vmem_to_hbm [thread:$0]  %s3630, 128, %s3632, [#allocation6]
    $region121: #{_call_kernel.1} parent=1 // pred_fallthru
      _
    // Predicated region
    $region122: #{_call_kernel.1} parent=1 // pred_check
      _
    $region123: #{_call_kernel.1} parent=1 // pred_check_branch
      %3636 = sbr.rel (0) target = $region125
    $region124: #{_call_kernel.1} parent=1 // pred_region
      %3638 = dma.done [#allocation6], 128
    $region125: #{_call_kernel.1} parent=1 // pred_fallthru
      _
    %3639 = vsyncpa [#allocation5], 1
    %3640 = vsyncpa [#allocation8], 1
    %3641 = vsyncpa [#allocation11], 1
    %3642 = vsyncpa [#allocation14], 1
    %3643 = vsyncpa [#allocation17], 1
    %3644 = vsyncpa [#allocation20], 1
    %3645 = vsyncpa [#allocation23], 1
    %3646 = vsyncpa [#allocation6], 1

// kernel: _call_kernel.1
$region0: #{_call_kernel.1}
  #allocation0 [shape = 'u32[]', space=smem, size = 0x4, offset = 0x4, fixed_abs, tag = 'smem constant byte address 0x4 - core index']
  #allocation1 [shape = 'u32[72,128]{1,0:T(1,128)}', space=vmem, size = 0x9000, scoped, tag = 'internal scratch']
  #allocation2 [shape = 'f32[1,1024]{1,0:T(1,128)}', space=vmem, size = 0x1000, scoped, tag = 'scratch operand']
  #allocation3 [shape = 'f32[1,1]{1,0:T(1,128)}', space=vmem, size = 0x200, scoped, tag = 'scratch operand']
  %s0 = inlined_call_operand.vmem [shape: f32[8,1], index: 0, kind: input, shape index: {}]
  %s1 = inlined_call_operand.hbm [shape: f32[8,1024], index: 1, kind: input, shape index: {}]
  %s2 = inlined_call_operand.hbm [shape: f32[1024,512], index: 2, kind: input, shape index: {}]
  %s3 = inlined_call_operand.hbm [shape: f32[1,512], index: 3, kind: input, shape index: {}]
  %s4 = inlined_call_operand.hbm [shape: f32[1,512], index: 4, kind: input, shape index: {}]
  %s5 = inlined_call_operand.hbm [shape: f32[1,512], index: 5, kind: input, shape index: {}]
  %s6 = inlined_call_operand.hbm [shape: f32[512,512], index: 6, kind: input, shape index: {}]
  %s7 = inlined_call_operand.hbm [shape: f32[1,512], index: 7, kind: input, shape index: {}]
  %s8 = inlined_call_operand.hbm [shape: f32[1,512], index: 8, kind: input, shape index: {}]
  %s9 = inlined_call_operand.hbm [shape: f32[1,512], index: 9, kind: input, shape index: {}]
  %s10 = inlined_call_operand.hbm [shape: f32[512,1024], index: 10, kind: input, shape index: {}]
  %s11 = inlined_call_operand.hbm [shape: f32[1,1024], index: 11, kind: input, shape index: {}]
  %s12 = inlined_call_operand.hbm [shape: f32[1,1024], index: 12, kind: input, shape index: {}]
  %s13 = inlined_call_operand.hbm [shape: f32[1,1024], index: 13, kind: input, shape index: {}]
  %s14 = inlined_call_operand.hbm [shape: f32[1,1024], index: 14, kind: output, shape index: {}]
  %s15 = sld [smem:[#allocation0]]
  $region126: #{_call_kernel.1} parent=0
    _
  %s17 = ssub.s32 1, %s15
  %s18 = scalar_select 0, %s17, %s15
  $region1: #{_call_kernel.1} parent=0
    #allocation4 [shape = 'u8[32768]{0}', space=vmem, size = 0x8000, scoped, tag = 'input window, operand 1, single buffered']
    #allocation5 [shape = 's32[1]{0}', space=sflag, size = 0x4, scoped, tag = 'scoped memory for _call_kernel.1']
    #allocation6 [shape = 's32[1]{0}', space=sflag, size = 0x4, scoped, tag = 'scoped memory for _call_kernel.1']
    #allocation7 [shape = 'u8[2097152]{0}', space=vmem, size = 0x200000, scoped, tag = 'input window, operand 2, single buffered']
    #allocation8 [shape = 's32[1]{0}', space=sflag, size = 0x4, scoped, tag = 'scoped memory for _call_kernel.1']
    #allocation9 [shape = 'u8[2048]{0}', space=vmem, size = 0x800, scoped, tag = 'input window, operand 3, single buffered']
    #allocation10 [shape = 'u8[2048]{0}', space=vmem, size = 0x800, scoped, tag = 'input window, operand 4, single buffered']
    #allocation11 [shape = 's32[1]{0}', space=sflag, size = 0x4, scoped, tag = 'scoped memory for _call_kernel.1']
    #allocation12 [shape = 'u8[2048]{0}', space=vmem, size = 0x800, scoped, tag = 'input window, operand 5, single buffered']
    #allocation13 [shape = 'u8[1048576]{0}', space=vmem, size = 0x100000, scoped, tag = 'input window, operand 6, single buffered']
    #allocation14 [shape = 's32[1]{0}', space=sflag, size = 0x4, scoped, tag = 'scoped memory for _call_kernel.1']
    #allocation15 [shape = 'u8[2048]{0}', space=vmem, size = 0x800, scoped, tag = 'input window, operand 7, single buffered']
    #allocation16 [shape = 'u8[2048]{0}', space=vmem, size = 0x800, scoped, tag = 'input window, operand 8, single buffered']
    #allocation17 [shape = 's32[1]{0}', space=sflag, size = 0x4, scoped, tag = 'scoped memory for _call_kernel.1']
    #allocation18 [shape = 'u8[2048]{0}', space=vmem, size = 0x800, scoped, tag = 'input window, operand 9, single buffered']
    #allocation19 [shape = 'u8[2097152]{0}', space=vmem, size = 0x200000, scoped, tag = 'input window, operand 10, single buffered']
    #allocation20 [shape = 's32[1]{0}', space=sflag, size = 0x4, scoped, tag = 'scoped memory for _call_kernel.1']
    #allocation21 [shape = 'u8[4096]{0}', space=vmem, size = 0x1000, scoped, tag = 'input window, operand 11, single buffered']
    #allocation22 [shape = 'u8[4096]{0}', space=vmem, size = 0x1000, scoped, tag = 'input window, operand 12, single buffered']
    #allocation23 [shape = 's32[1]{0}', space=sflag, size = 0x4, scoped, tag = 'scoped memory for _call_kernel.1']
    #allocation24 [shape = 'u8[4096]{0}', space=vmem, size = 0x1000, scoped, tag = 'input window, operand 13, single buffered']
    #allocation25 [shape = 'u8[4096]{0}', space=vmem, size = 0x1000, scoped, tag = 'output window, operand 0, single buffered']
    %19 = vsyncpa [#allocation5], 0
    %20 = vsyncpa [#allocation8], 0
    %21 = vsyncpa [#allocation11], 0
    %22 = vsyncpa [#allocation14], 0
    %23 = vsyncpa [#allocation17], 0
    %24 = vsyncpa [#allocation20], 0
    %25 = vsyncpa [#allocation23], 0
    %26 = vsyncpa [#allocation6], 0
    // Predicated region
    $region2: #{_call_kernel.1} parent=1 // pred_check
      _
    $region3: #{_call_kernel.1} parent=1 // pred_check_branch
      %28 = sbr.rel (0) target = $region5
    $region4: #{_call_kernel.1} parent=1 // pred_region
      _
    $region5: #{_call_kernel.1} parent=1 // pred_fallthru
      _
    // Predicated region
    $region6: #{_call_kernel.1} parent=1 // pred_check
      _
    $region7: #{_call_kernel.1} parent=1 // pred_check_branch
      %30 = sbr.rel (0) target = $region9
    $region8: #{_call_kernel.1} parent=1 // pred_region
      %32 = vsyncadd [#allocation5], 0
      %s34 = sshll.u32 %s1, 4
      %s35 = int_to_ptr.hbm [resolvable:$true] %s34
      %s36 = sshll.u32 [#allocation4], 4
      %s37 = int_to_ptr.vmem [resolvable:$true] %s36
      %39 = dma.hbm_to_vmem [thread:$0]  %s35, 1024, %s37, [#allocation5]
    $region9: #{_call_kernel.1} parent=1 // pred_fallthru
      _
    // Predicated region
    $region10: #{_call_kernel.1} parent=1 // pred_check
      _
    $region11: #{_call_kernel.1} parent=1 // pred_check_branch
      %41 = sbr.rel (0) target = $region13
    $region12: #{_call_kernel.1} parent=1 // pred_region
      %43 = vsyncadd [#allocation8], 0
      %s44 = sshll.u32 %s2, 4
      %s45 = int_to_ptr.hbm [resolvable:$true] %s44
      %s46 = sshll.u32 [#allocation7], 4
      %s47 = int_to_ptr.vmem [resolvable:$true] %s46
      %52 = dma.hbm_to_vmem [thread:$0]  %s45, 65536, %s47, [#allocation8], 512, 512, 32
    $region13: #{_call_kernel.1} parent=1 // pred_fallthru
      _
    // Predicated region
    $region14: #{_call_kernel.1} parent=1 // pred_check
      _
    $region15: #{_call_kernel.1} parent=1 // pred_check_branch
      %54 = sbr.rel (0) target = $region17
    $region16: #{_call_kernel.1} parent=1 // pred_region
      %56 = vsyncadd [#allocation8], 0
      %s58 = sshll.u32 %s3, 4
      %s59 = int_to_ptr.hbm [resolvable:$true] %s58
      %s60 = sshll.u32 [#allocation9], 4
      %s61 = int_to_ptr.vmem [resolvable:$true] %s60
      %63 = dma.hbm_to_vmem [thread:$0]  %s59, 64, %s61, [#allocation8]
    $region17: #{_call_kernel.1} parent=1 // pred_fallthru
      _
    // Predicated region
    $region18: #{_call_kernel.1} parent=1 // pred_check
      _
    $region19: #{_call_kernel.1} parent=1 // pred_check_branch
      %65 = sbr.rel (0) target = $region21
    $region20: #{_call_kernel.1} parent=1 // pred_region
      %67 = vsyncadd [#allocation11], 0
      %s69 = sshll.u32 %s4, 4
      %s70 = int_to_ptr.hbm [resolvable:$true] %s69
      %s71 = sshll.u32 [#allocation10], 4
      %s72 = int_to_ptr.vmem [resolvable:$true] %s71
      %74 = dma.hbm_to_vmem [thread:$0]  %s70, 64, %s72, [#allocation11]
    $region21: #{_call_kernel.1} parent=1 // pred_fallthru
      _
    // Predicated region
    $region22: #{_call_kernel.1} parent=1 // pred_check
      _
    $region23: #{_call_kernel.1} parent=1 // pred_check_branch
      %76 = sbr.rel (0) target = $region25
    $region24: #{_call_kernel.1} parent=1 // pred_region
      %78 = vsyncadd [#allocation11], 0
      %s80 = sshll.u32 %s5, 4
      %s81 = int_to_ptr.hbm [resolvable:$true] %s80
      %s82 = sshll.u32 [#allocation12], 4
      %s83 = int_to_ptr.vmem [resolvable:$true] %s82
      %85 = dma.hbm_to_vmem [thread:$0]  %s81, 64, %s83, [#allocation11]
    $region25: #{_call_kernel.1} parent=1 // pred_fallthru
      _
    // Predicated region
    $region26: #{_call_kernel.1} parent=1 // pred_check
      _
    $region27: #{_call_kernel.1} parent=1 // pred_check_branch
      %87 = sbr.rel (0) target = $region29
    $region28: #{_call_kernel.1} parent=1 // pred_region
      %89 = vsyncadd [#allocation14], 0
      %s90 = sshll.u32 %s6, 4
      %s91 = int_to_ptr.hbm [resolvable:$true] %s90
      %s92 = sshll.u32 [#allocation13], 4
      %s93 = int_to_ptr.vmem [resolvable:$true] %s92
      %98 = dma.hbm_to_vmem [thread:$0]  %s91, 32768, %s93, [#allocation14], 512, 512, 32
    $region29: #{_call_kernel.1} parent=1 // pred_fallthru
      _
    // Predicated region
    $region30: #{_call_kernel.1} parent=1 // pred_check
      _
    $region31: #{_call_kernel.1} parent=1 // pred_check_branch
      %100 = sbr.rel (0) target = $region33
    $region32: #{_call_kernel.1} parent=1 // pred_region
      %102 = vsyncadd [#allocation14], 0
      %s104 = sshll.u32 %s7, 4
      %s105 = int_to_ptr.hbm [resolvable:$true] %s104
      %s106 = sshll.u32 [#allocation15], 4
      %s107 = int_to_ptr.vmem [resolvable:$true] %s106
      %109 = dma.hbm_to_vmem [thread:$0]  %s105, 64, %s107, [#allocation14]
    $region33: #{_call_kernel.1} parent=1 // pred_fallthru
      _
    // Predicated region
    $region34: #{_call_kernel.1} parent=1 // pred_check
      _
    $region35: #{_call_kernel.1} parent=1 // pred_check_branch
      %111 = sbr.rel (0) target = $region37
    $region36: #{_call_kernel.1} parent=1 // pred_region
      %113 = vsyncadd [#allocation17], 0
      %s115 = sshll.u32 %s8, 4
      %s116 = int_to_ptr.hbm [resolvable:$true] %s115
      %s117 = sshll.u32 [#allocation16], 4
      %s118 = int_to_ptr.vmem [resolvable:$true] %s117
      %120 = dma.hbm_to_vmem [thread:$0]  %s116, 64, %s118, [#allocation17]
    $region37: #{_call_kernel.1} parent=1 // pred_fallthru
      _
    // Predicated region
    $region38: #{_call_kernel.1} parent=1 // pred_check
      _
    $region39: #{_call_kernel.1} parent=1 // pred_check_branch
      %122 = sbr.rel (0) target = $region41
    $region40: #{_call_kernel.1} parent=1 // pred_region
      %124 = vsyncadd [#allocation17], 0
      %s126 = sshll.u32 %s9, 4
      %s127 = int_to_ptr.hbm [resolvable:$true] %s126
      %s128 = sshll.u32 [#allocation18], 4
      %s129 = int_to_ptr.vmem [resolvable:$true] %s128
      %131 = dma.hbm_to_vmem [thread:$0]  %s127, 64, %s129, [#allocation17]
    $region41: #{_call_kernel.1} parent=1 // pred_fallthru
      _
    // Predicated region
    $region42: #{_call_kernel.1} parent=1 // pred_check
      _
    $region43: #{_call_kernel.1} parent=1 // pred_check_branch
      %133 = sbr.rel (0) target = $region45
    $region44: #{_call_kernel.1} parent=1 // pred_region
      %135 = vsyncadd [#allocation20], 0
      %s136 = sshll.u32 %s10, 4
      %s137 = int_to_ptr.hbm [resolvable:$true] %s136
      %s138 = sshll.u32 [#allocation19], 4
      %s139 = int_to_ptr.vmem [resolvable:$true] %s138
      %144 = dma.hbm_to_vmem [thread:$0]  %s137, 65536, %s139, [#allocation20], 1024, 1024, 64
    $region45: #{_call_kernel.1} parent=1 // pred_fallthru
      _
    // Predicated region
    $region46: #{_call_kernel.1} parent=1 // pred_check
      _
    $region47: #{_call_kernel.1} parent=1 // pred_check_branch
      %146 = sbr.rel (0) target = $region49
    $region48: #{_call_kernel.1} parent=1 // pred_region
      %148 = vsyncadd [#allocation20], 0
      %s150 = sshll.u32 %s11, 4
      %s151 = int_to_ptr.hbm [resolvable:$true] %s150
      %s152 = sshll.u32 [#allocation21], 4
      %s153 = int_to_ptr.vmem [resolvable:$true] %s152
      %155 = dma.hbm_to_vmem [thread:$0]  %s151, 128, %s153, [#allocation20]
    $region49: #{_call_kernel.1} parent=1 // pred_fallthru
      _
    // Predicated region
    $region50: #{_call_kernel.1} parent=1 // pred_check
      _
    $region51: #{_call_kernel.1} parent=1 // pred_check_branch
      %157 = sbr.rel (0) target = $region53
    $region52: #{_call_kernel.1} parent=1 // pred_region
      %159 = vsyncadd [#allocation23], 0
      %s161 = sshll.u32 %s12, 4
      %s162 = int_to_ptr.hbm [resolvable:$true] %s161
      %s163 = sshll.u32 [#allocation22], 4
      %s164 = int_to_ptr.vmem [resolvable:$true] %s163
      %166 = dma.hbm_to_vmem [thread:$0]  %s162, 128, %s164, [#allocation23]
    $region53: #{_call_kernel.1} parent=1 // pred_fallthru
      _
    // Predicated region
    $region54: #{_call_kernel.1} parent=1 // pred_check
      _
    $region55: #{_call_kernel.1} parent=1 // pred_check_branch
      %168 = sbr.rel (0) target = $region57
    $region56: #{_call_kernel.1} parent=1 // pred_region
      %170 = vsyncadd [#allocation23], 0
      %s172 = sshll.u32 %s13, 4
      %s173 = int_to_ptr.hbm [resolvable:$true] %s172
      %s174 = sshll.u32 [#allocation24], 4
      %s175 = int_to_ptr.vmem [resolvable:$true] %s174
      %177 = dma.hbm_to_vmem [thread:$0]  %s173, 128, %s175, [#allocation23]
    $region57: #{_call_kernel.1} parent=1 // pred_fallthru
      _
    // Predicated region
    $region58: #{_call_kernel.1} parent=1 // pred_check
      _
    $region59: #{_call_kernel.1} parent=1 // pred_check_branch
      %179 = sbr.rel (0) target = $region61
    $region60: #{_call_kernel.1} parent=1 // pred_region
      %181 = dma.done [#allocation5], 1024
    $region61: #{_call_kernel.1} parent=1 // pred_fallthru
      _
    // Predicated region
    $region62: #{_call_kernel.1} parent=1 // pred_check
      _
    $region63: #{_call_kernel.1} parent=1 // pred_check_branch
      %183 = sbr.rel (0) target = $region65
    $region64: #{_call_kernel.1} parent=1 // pred_region
      %185 = dma.done [#allocation8], 65536
    $region65: #{_call_kernel.1} parent=1 // pred_fallthru
      _
    // Predicated region
    $region66: #{_call_kernel.1} parent=1 // pred_check
      _
    $region67: #{_call_kernel.1} parent=1 // pred_check_branch
      %187 = sbr.rel (0) target = $region69
    $region68: #{_call_kernel.1} parent=1 // pred_region
      %189 = dma.done [#allocation8], 64
    $region69: #{_call_kernel.1} parent=1 // pred_fallthru
      _
    // Predicated region
    $region70: #{_call_kernel.1} parent=1 // pred_check
      _
    $region71: #{_call_kernel.1} parent=1 // pred_check_branch
      %191 = sbr.rel (0) target = $region73
    $region72: #{_call_kernel.1} parent=1 // pred_region
      %193 = dma.done [#allocation11], 64
    $region73: #{_call_kernel.1} parent=1 // pred_fallthru
      _
    // Predicated region
    $region74: #{_call_kernel.1} parent=1 // pred_check
      _
    $region75: #{_call_kernel.1} parent=1 // pred_check_branch
      %195 = sbr.rel (0) target = $region77
    $region76: #{_call_kernel.1} parent=1 // pred_region
      %197 = dma.done [#allocation11], 64
    $region77: #{_call_kernel.1} parent=1 // pred_fallthru
      _
    // Predicated region
    $region78: #{_call_kernel.1} parent=1 // pred_check
      _
    $region79: #{_call_kernel.1} parent=1 // pred_check_branch
      %199 = sbr.rel (0) target = $region81
    $region80: #{_call_kernel.1} parent=1 // pred_region
      %201 = dma.done [#allocation14], 32768
    $region81: #{_call_kernel.1} parent=1 // pred_fallthru
      _
    // Predicated region
    $region82: #{_call_kernel.1} parent=1 // pred_check
      _
    $region83: #{_call_kernel.1} parent=1 // pred_check_branch
      %203 = sbr.rel (0) target = $region85
    $region84: #{_call_kernel.1} parent=1 // pred_region
      %205 = dma.done [#allocation14], 64
    $region85: #{_call_kernel.1} parent=1 // pred_fallthru
      _
    // Predicated region
    $region86: #{_call_kernel.1} parent=1 // pred_check
      _
    $region87: #{_call_kernel.1} parent=1 // pred_check_branch
      %207 = sbr.rel (0) target = $region89
    $region88: #{_call_kernel.1} parent=1 // pred_region
      %209 = dma.done [#allocation17], 64
    $region89: #{_call_kernel.1} parent=1 // pred_fallthru
      _
    // Predicated region
    $region90: #{_call_kernel.1} parent=1 // pred_check
      _
    $region91: #{_call_kernel.1} parent=1 // pred_check_branch
      %211 = sbr.rel (0) target = $region93
    $region92: #{_call_kernel.1} parent=1 // pred_region
      %213 = dma.done [#allocation17], 64
    $region93: #{_call_kernel.1} parent=1 // pred_fallthru
      _
    // Predicated region
    $region94: #{_call_kernel.1} parent=1 // pred_check
      _
    $region95: #{_call_kernel.1} parent=1 // pred_check_branch
      %215 = sbr.rel (0) target = $region97
    $region96: #{_call_kernel.1} parent=1 // pred_region
      %217 = dma.done [#allocation20], 65536
    $region97: #{_call_kernel.1} parent=1 // pred_fallthru
      _
    // Predicated region
    $region98: #{_call_kernel.1} parent=1 // pred_check
      _
    $region99: #{_call_kernel.1} parent=1 // pred_check_branch
      %219 = sbr.rel (0) target = $region101
    $region100: #{_call_kernel.1} parent=1 // pred_region
      %221 = dma.done [#allocation20], 128
    $region101: #{_call_kernel.1} parent=1 // pred_fallthru
      _
    // Predicated region
    $region102: #{_call_kernel.1} parent=1 // pred_check
      _
    $region103: #{_call_kernel.1} parent=1 // pred_check_branch
      %223 = sbr.rel (0) target = $region105
    $region104: #{_call_kernel.1} parent=1 // pred_region
      %225 = dma.done [#allocation23], 128
    $region105: #{_call_kernel.1} parent=1 // pred_fallthru
      _
    // Predicated region
    $region106: #{_call_kernel.1} parent=1 // pred_check
      _
    $region107: #{_call_kernel.1} parent=1 // pred_check_branch
      %227 = sbr.rel (0) target = $region109
    $region108: #{_call_kernel.1} parent=1 // pred_region
      %229 = dma.done [#allocation23], 128
    $region109: #{_call_kernel.1} parent=1 // pred_fallthru
      _
    %p230 = scmp.eq.s32.totalorder 0, 0
    // Predicated region
    $region110: #{_call_kernel.1} parent=1 // pred_check
      %p231 = pneg %p230
    $region111: #{_call_kernel.1} parent=1 // pred_check_branch
      %233 = sbr.rel (%p231) target = $region113
    $region112: #{_call_kernel.1} parent=1 // pred_region
      %234 = vst [vmem:[#allocation2] sm:$0xff] 0.0
      %vm235 = vcmask 0
      %236 = vst.msk [vmem:[#allocation3] sm:$0x1] %vm235, 0.0
    $region113: #{_call_kernel.1} parent=1 // pred_fallthru
      _
    %v237 = vld [vmem:[#allocation4] sm:$0xff]
    %v238 = vld [vmem:[#allocation4 + $0x8] sm:$0xff]
    %v239 = vld [vmem:[#allocation4 + $0x10] sm:$0xff]
    %v240 = vld [vmem:[#allocation4 + $0x18] sm:$0xff]
    %v241 = vld [vmem:[#allocation4 + $0x20] sm:$0xff]
    %v242 = vld [vmem:[#allocation4 + $0x28] sm:$0xff]
    %v243 = vld [vmem:[#allocation4 + $0x30] sm:$0xff]
    %v244 = vld [vmem:[#allocation4 + $0x38] sm:$0xff]
    %v245 = vld [vmem:[%s0] sm:$0xff]
    %v246 = vld [vmem:[#allocation2] sm:$0xff]
    %248 = vset.pattern.permute.xlu0 0
    %249 = vperm.xlu0 %248, %v245
    %v250 = vpop.permute.xlu0 %249
    %v252 = vmul.f32 %v237, %v250
    %v253 = vmul.f32 %v238, %v250
    %v254 = vmul.f32 %v239, %v250
    %v255 = vmul.f32 %v240, %v250
    %v256 = vmul.f32 %v241, %v250
    %v257 = vmul.f32 %v242, %v250
    %v258 = vmul.f32 %v243, %v250
    %v259 = vmul.f32 %v244, %v250
    %v260 = vrot.slane %v252, 4
    %v261 = vadd.f32 %v252, %v260
    %v262 = vrot.slane %v261, 2
    %v263 = vadd.f32 %v261, %v262
    %v264 = vrot.slane %v263, 1
    %v265 = vadd.f32 %v263, %v264
    %v266 = vrot.slane %v253, 4
    %v267 = vadd.f32 %v253, %v266
    %v268 = vrot.slane %v267, 2
    %v269 = vadd.f32 %v267, %v268
    %v270 = vrot.slane %v269, 1
    %v271 = vadd.f32 %v269, %v270
    %v272 = vrot.slane %v254, 4
    %v273 = vadd.f32 %v254, %v272
    %v274 = vrot.slane %v273, 2
    %v275 = vadd.f32 %v273, %v274
    %v276 = vrot.slane %v275, 1
    %v277 = vadd.f32 %v275, %v276
    %v278 = vrot.slane %v255, 4
    %v279 = vadd.f32 %v255, %v278
    %v280 = vrot.slane %v279, 2
    %v281 = vadd.f32 %v279, %v280
    %v282 = vrot.slane %v281, 1
    %v283 = vadd.f32 %v281, %v282
    %v284 = vrot.slane %v256, 4
    %v285 = vadd.f32 %v256, %v284
    %v286 = vrot.slane %v285, 2
    %v287 = vadd.f32 %v285, %v286
    %v288 = vrot.slane %v287, 1
    %v289 = vadd.f32 %v287, %v288
    %v290 = vrot.slane %v257, 4
    %v291 = vadd.f32 %v257, %v290
    %v292 = vrot.slane %v291, 2
    %v293 = vadd.f32 %v291, %v292
    %v294 = vrot.slane %v293, 1
    %v295 = vadd.f32 %v293, %v294
    %v296 = vrot.slane %v258, 4
    %v297 = vadd.f32 %v258, %v296
    %v298 = vrot.slane %v297, 2
    %v299 = vadd.f32 %v297, %v298
    %v300 = vrot.slane %v299, 1
    %v301 = vadd.f32 %v299, %v300
    %v302 = vrot.slane %v259, 4
    %v303 = vadd.f32 %v259, %v302
    %v304 = vrot.slane %v303, 2
    %v305 = vadd.f32 %v303, %v304
    %v306 = vrot.slane %v305, 1
    %v307 = vadd.f32 %v305, %v306
    %v316 = vrot.slane %v271, 7
    %v317 = vrot.slane %v277, 6
    %v318 = vrot.slane %v283, 5
    %v319 = vrot.slane %v289, 4
    %v320 = vrot.slane %v295, 3
    %v321 = vrot.slane %v301, 2
    %v322 = vrot.slane %v307, 1
    %vm323 = vcmask 1040384
    %v324 = vsel %vm323, %v265, %v316
    %vm325 = vcmask 1042434
    %v326 = vsel %vm325, %v317, %v318
    %vm327 = vcmask 1041408
    %v328 = vsel %vm327, %v324, %v326
    %vm329 = vcmask 1044484
    %v330 = vsel %vm329, %v319, %v320
    %vm331 = vcmask 1046534
    %v332 = vsel %vm331, %v321, %v322
    %vm333 = vcmask 1045508
    %v334 = vsel %vm333, %v330, %v332
    %vm335 = vcmask 1043456
    %v336 = vsel %vm335, %v328, %v334
    %v338 = vadd.f32 %v246, %v336
    %339 = vst [vmem:[#allocation2] sm:$0xff] %v338
    %v340 = vld [vmem:[#allocation3] sm:$0x1]
    %vm341 = vcmask 7168
    %v342 = vsel %vm341, %v245, 0.0
    %v343 = vrot.slane %v342, 4
    %v344 = vadd.f32 %v342, %v343
    %v345 = vrot.slane %v344, 2
    %v346 = vadd.f32 %v344, %v345
    %v347 = vrot.slane %v346, 1
    %v348 = vadd.f32 %v346, %v347
    %v349 = vadd.f32 %v340, %v348
    %vm350 = vcmask 0
    %351 = vst.msk [vmem:[#allocation3] sm:$0x1] %vm350, %v349
    // Predicated region
    $region114: #{_call_kernel.1} parent=1 // pred_check
      %p352 = pneg %p230
    $region115: #{_call_kernel.1} parent=1 // pred_check_branch
      %354 = sbr.rel (%p352) target = $region117
    $region116: #{_call_kernel.1} parent=1 // pred_region
      %v355 = vld [vmem:[#allocation2] sm:$0xff]
      %v356 = vld [vmem:[#allocation3] sm:$0x1]
      %358 = vset.pattern.permute.xlu0 0
      %359 = vperm.xlu0 %358, %v356
      %v360 = vpop.permute.xlu0 %359
      %v362 = vperm.slane %v360, 0
      %v363 = vrcp.pop %v362
      %v364 = vmul.f32 %v362, %v363
      %v365 = vsub.f32 1.0, %v364
      %v366 = vmul.f32 %v363, %v365
      %v367 = vadd.f32 %v363, %v366
      %vm368 = vweird.f32 %v362
      %vm369 = vweird.f32 %v363
      %vm370 = vmor %vm368, %vm369
      %v371 = vsel %vm370, %v363, %v367
      %v372 = vand.u32 2147483647, %v362
      %vm373 = vcmp.eq.f32.partialorder %v372, 8.507059e+37
      %v374 = vand.u32 %v362, 2147483648
      %v375 = vor.u32 1.1754944e-38, %v374
      %v376 = vsel %vm373, %v375, %v371
      %v377 = vmul.f32 %v355, %v376
      %v378 = vld [vmem:[#allocation7] sm:$0xff]
      %v379 = vld [vmem:[#allocation7 + $0x8] sm:$0xff]
      %v380 = vld [vmem:[#allocation7 + $0x10] sm:$0xff]
      %v381 = vld [vmem:[#allocation7 + $0x18] sm:$0xff]
      %v382 = vld [vmem:[#allocation7 + $0x20] sm:$0xff]
      %v383 = vld [vmem:[#allocation7 + $0x28] sm:$0xff]
      %v384 = vld [vmem:[#allocation7 + $0x30] sm:$0xff]
      %v385 = vld [vmem:[#allocation7 + $0x38] sm:$0xff]
      %v386 = vld [vmem:[#allocation7 + $0x40] sm:$0xff]
      %v387 = vld [vmem:[#allocation7 + $0x48] sm:$0xff]
      %v388 = vld [vmem:[#allocation7 + $0x50] sm:$0xff]
      %v389 = vld [vmem:[#allocation7 + $0x58] sm:$0xff]
      %v390 = vld [vmem:[#allocation7 + $0x60] sm:$0xff]
      %v391 = vld [vmem:[#allocation7 + $0x68] sm:$0xff]
      %v392 = vld [vmem:[#allocation7 + $0x70] sm:$0xff]
      %v393 = vld [vmem:[#allocation7 + $0x78] sm:$0xff]
      %v394 = vld [vmem:[#allocation7 + $0x80] sm:$0xff]
      %v395 = vld [vmem:[#allocation7 + $0x88] sm:$0xff]
      %v396 = vld [vmem:[#allocation7 + $0x90] sm:$0xff]
      %v397 = vld [vmem:[#allocation7 + $0x98] sm:$0xff]
      %v398 = vld [vmem:[#allocation7 + $0xa0] sm:$0xff]
      %v399 = vld [vmem:[#allocation7 + $0xa8] sm:$0xff]
      %v400 = vld [vmem:[#allocation7 + $0xb0] sm:$0xff]
      %v401 = vld [vmem:[#allocation7 + $0xb8] sm:$0xff]
      %v402 = vld [vmem:[#allocation7 + $0xc0] sm:$0xff]
      %v403 = vld [vmem:[#allocation7 + $0xc8] sm:$0xff]
      %v404 = vld [vmem:[#allocation7 + $0xd0] sm:$0xff]
      %v405 = vld [vmem:[#allocation7 + $0xd8] sm:$0xff]
      %v406 = vld [vmem:[#allocation7 + $0xe0] sm:$0xff]
      %v407 = vld [vmem:[#allocation7 + $0xe8] sm:$0xff]
      %v408 = vld [vmem:[#allocation7 + $0xf0] sm:$0xff]
      %v409 = vld [vmem:[#allocation7 + $0xf8] sm:$0xff]
      %v410 = vld [vmem:[#allocation7 + $0x100] sm:$0xff]
      %v411 = vld [vmem:[#allocation7 + $0x108] sm:$0xff]
      %v412 = vld [vmem:[#allocation7 + $0x110] sm:$0xff]
      %v413 = vld [vmem:[#allocation7 + $0x118] sm:$0xff]
      %v414 = vld [vmem:[#allocation7 + $0x120] sm:$0xff]
      %v415 = vld [vmem:[#allocation7 + $0x128] sm:$0xff]
      %v416 = vld [vmem:[#allocation7 + $0x130] sm:$0xff]
      %v417 = vld [vmem:[#allocation7 + $0x138] sm:$0xff]
      %v418 = vld [vmem:[#allocation7 + $0x140] sm:$0xff]
      %v419 = vld [vmem:[#allocation7 + $0x148] sm:$0xff]
      %v420 = vld [vmem:[#allocation7 + $0x150] sm:$0xff]
      %v421 = vld [vmem:[#allocation7 + $0x158] sm:$0xff]
      %v422 = vld [vmem:[#allocation7 + $0x160] sm:$0xff]
      %v423 = vld [vmem:[#allocation7 + $0x168] sm:$0xff]
      %v424 = vld [vmem:[#allocation7 + $0x170] sm:$0xff]
      %v425 = vld [vmem:[#allocation7 + $0x178] sm:$0xff]
      %v426 = vld [vmem:[#allocation7 + $0x180] sm:$0xff]
      %v427 = vld [vmem:[#allocation7 + $0x188] sm:$0xff]
      %v428 = vld [vmem:[#allocation7 + $0x190] sm:$0xff]
      %v429 = vld [vmem:[#allocation7 + $0x198] sm:$0xff]
      %v430 = vld [vmem:[#allocation7 + $0x1a0] sm:$0xff]
      %v431 = vld [vmem:[#allocation7 + $0x1a8] sm:$0xff]
      %v432 = vld [vmem:[#allocation7 + $0x1b0] sm:$0xff]
      %v433 = vld [vmem:[#allocation7 + $0x1b8] sm:$0xff]
      %v434 = vld [vmem:[#allocation7 + $0x1c0] sm:$0xff]
      %v435 = vld [vmem:[#allocation7 + $0x1c8] sm:$0xff]
      %v436 = vld [vmem:[#allocation7 + $0x1d0] sm:$0xff]
      %v437 = vld [vmem:[#allocation7 + $0x1d8] sm:$0xff]
      %v438 = vld [vmem:[#allocation7 + $0x1e0] sm:$0xff]
      %v439 = vld [vmem:[#allocation7 + $0x1e8] sm:$0xff]
      %v440 = vld [vmem:[#allocation7 + $0x1f0] sm:$0xff]
      %v441 = vld [vmem:[#allocation7 + $0x1f8] sm:$0xff]
      %v442 = vld [vmem:[#allocation7 + $0x200] sm:$0xff]
      %v443 = vld [vmem:[#allocation7 + $0x208] sm:$0xff]
      %v444 = vld [vmem:[#allocation7 + $0x210] sm:$0xff]
      %v445 = vld [vmem:[#allocation7 + $0x218] sm:$0xff]
      %v446 = vld [vmem:[#allocation7 + $0x220] sm:$0xff]
      %v447 = vld [vmem:[#allocation7 + $0x228] sm:$0xff]
      %v448 = vld [vmem:[#allocation7 + $0x230] sm:$0xff]
      %v449 = vld [vmem:[#allocation7 + $0x238] sm:$0xff]
      %v450 = vld [vmem:[#allocation7 + $0x240] sm:$0xff]
      %v451 = vld [vmem:[#allocation7 + $0x248] sm:$0xff]
      %v452 = vld [vmem:[#allocation7 + $0x250] sm:$0xff]
      %v453 = vld [vmem:[#allocation7 + $0x258] sm:$0xff]
      %v454 = vld [vmem:[#allocation7 + $0x260] sm:$0xff]
      %v455 = vld [vmem:[#allocation7 + $0x268] sm:$0xff]
      %v456 = vld [vmem:[#allocation7 + $0x270] sm:$0xff]
      %v457 = vld [vmem:[#allocation7 + $0x278] sm:$0xff]
      %v458 = vld [vmem:[#allocation7 + $0x280] sm:$0xff]
      %v459 = vld [vmem:[#allocation7 + $0x288] sm:$0xff]
      %v460 = vld [vmem:[#allocation7 + $0x290] sm:$0xff]
      %v461 = vld [vmem:[#allocation7 + $0x298] sm:$0xff]
      %v462 = vld [vmem:[#allocation7 + $0x2a0] sm:$0xff]
      %v463 = vld [vmem:[#allocation7 + $0x2a8] sm:$0xff]
      %v464 = vld [vmem:[#allocation7 + $0x2b0] sm:$0xff]
      %v465 = vld [vmem:[#allocation7 + $0x2b8] sm:$0xff]
      %v466 = vld [vmem:[#allocation7 + $0x2c0] sm:$0xff]
      %v467 = vld [vmem:[#allocation7 + $0x2c8] sm:$0xff]
      %v468 = vld [vmem:[#allocation7 + $0x2d0] sm:$0xff]
      %v469 = vld [vmem:[#allocation7 + $0x2d8] sm:$0xff]
      %v470 = vld [vmem:[#allocation7 + $0x2e0] sm:$0xff]
      %v471 = vld [vmem:[#allocation7 + $0x2e8] sm:$0xff]
      %v472 = vld [vmem:[#allocation7 + $0x2f0] sm:$0xff]
      %v473 = vld [vmem:[#allocation7 + $0x2f8] sm:$0xff]
      %v474 = vld [vmem:[#allocation7 + $0x300] sm:$0xff]
      %v475 = vld [vmem:[#allocation7 + $0x308] sm:$0xff]
      %v476 = vld [vmem:[#allocation7 + $0x310] sm:$0xff]
      %v477 = vld [vmem:[#allocation7 + $0x318] sm:$0xff]
      %v478 = vld [vmem:[#allocation7 + $0x320] sm:$0xff]
      %v479 = vld [vmem:[#allocation7 + $0x328] sm:$0xff]
      %v480 = vld [vmem:[#allocation7 + $0x330] sm:$0xff]
      %v481 = vld [vmem:[#allocation7 + $0x338] sm:$0xff]
      %v482 = vld [vmem:[#allocation7 + $0x340] sm:$0xff]
      %v483 = vld [vmem:[#allocation7 + $0x348] sm:$0xff]
      %v484 = vld [vmem:[#allocation7 + $0x350] sm:$0xff]
      %v485 = vld [vmem:[#allocation7 + $0x358] sm:$0xff]
      %v486 = vld [vmem:[#allocation7 + $0x360] sm:$0xff]
      %v487 = vld [vmem:[#allocation7 + $0x368] sm:$0xff]
      %v488 = vld [vmem:[#allocation7 + $0x370] sm:$0xff]
      %v489 = vld [vmem:[#allocation7 + $0x378] sm:$0xff]
      %v490 = vld [vmem:[#allocation7 + $0x380] sm:$0xff]
      %v491 = vld [vmem:[#allocation7 + $0x388] sm:$0xff]
      %v492 = vld [vmem:[#allocation7 + $0x390] sm:$0xff]
      %v493 = vld [vmem:[#allocation7 + $0x398] sm:$0xff]
      %v494 = vld [vmem:[#allocation7 + $0x3a0] sm:$0xff]
      %v495 = vld [vmem:[#allocation7 + $0x3a8] sm:$0xff]
      %v496 = vld [vmem:[#allocation7 + $0x3b0] sm:$0xff]
      %v497 = vld [vmem:[#allocation7 + $0x3b8] sm:$0xff]
      %v498 = vld [vmem:[#allocation7 + $0x3c0] sm:$0xff]
      %v499 = vld [vmem:[#allocation7 + $0x3c8] sm:$0xff]
      %v500 = vld [vmem:[#allocation7 + $0x3d0] sm:$0xff]
      %v501 = vld [vmem:[#allocation7 + $0x3d8] sm:$0xff]
      %v502 = vld [vmem:[#allocation7 + $0x3e0] sm:$0xff]
      %v503 = vld [vmem:[#allocation7 + $0x3e8] sm:$0xff]
      %v504 = vld [vmem:[#allocation7 + $0x3f0] sm:$0xff]
      %v505 = vld [vmem:[#allocation7 + $0x3f8] sm:$0xff]
      %v506 = vld [vmem:[#allocation7 + $0x400] sm:$0xff]
      %v507 = vld [vmem:[#allocation7 + $0x408] sm:$0xff]
      %v508 = vld [vmem:[#allocation7 + $0x410] sm:$0xff]
      %v509 = vld [vmem:[#allocation7 + $0x418] sm:$0xff]
      %v510 = vld [vmem:[#allocation7 + $0x420] sm:$0xff]
      %v511 = vld [vmem:[#allocation7 + $0x428] sm:$0xff]
      %v512 = vld [vmem:[#allocation7 + $0x430] sm:$0xff]
      %v513 = vld [vmem:[#allocation7 + $0x438] sm:$0xff]
      %v514 = vld [vmem:[#allocation7 + $0x440] sm:$0xff]
      %v515 = vld [vmem:[#allocation7 + $0x448] sm:$0xff]
      %v516 = vld [vmem:[#allocation7 + $0x450] sm:$0xff]
      %v517 = vld [vmem:[#allocation7 + $0x458] sm:$0xff]
      %v518 = vld [vmem:[#allocation7 + $0x460] sm:$0xff]
      %v519 = vld [vmem:[#allocation7 + $0x468] sm:$0xff]
      %v520 = vld [vmem:[#allocation7 + $0x470] sm:$0xff]
      %v521 = vld [vmem:[#allocation7 + $0x478] sm:$0xff]
      %v522 = vld [vmem:[#allocation7 + $0x480] sm:$0xff]
      %v523 = vld [vmem:[#allocation7 + $0x488] sm:$0xff]
      %v524 = vld [vmem:[#allocation7 + $0x490] sm:$0xff]
      %v525 = vld [vmem:[#allocation7 + $0x498] sm:$0xff]
      %v526 = vld [vmem:[#allocation7 + $0x4a0] sm:$0xff]
      %v527 = vld [vmem:[#allocation7 + $0x4a8] sm:$0xff]
      %v528 = vld [vmem:[#allocation7 + $0x4b0] sm:$0xff]
      %v529 = vld [vmem:[#allocation7 + $0x4b8] sm:$0xff]
      %v530 = vld [vmem:[#allocation7 + $0x4c0] sm:$0xff]
      %v531 = vld [vmem:[#allocation7 + $0x4c8] sm:$0xff]
      %v532 = vld [vmem:[#allocation7 + $0x4d0] sm:$0xff]
      %v533 = vld [vmem:[#allocation7 + $0x4d8] sm:$0xff]
      %v534 = vld [vmem:[#allocation7 + $0x4e0] sm:$0xff]
      %v535 = vld [vmem:[#allocation7 + $0x4e8] sm:$0xff]
      %v536 = vld [vmem:[#allocation7 + $0x4f0] sm:$0xff]
      %v537 = vld [vmem:[#allocation7 + $0x4f8] sm:$0xff]
      %v538 = vld [vmem:[#allocation7 + $0x500] sm:$0xff]
      %v539 = vld [vmem:[#allocation7 + $0x508] sm:$0xff]
      %v540 = vld [vmem:[#allocation7 + $0x510] sm:$0xff]
      %v541 = vld [vmem:[#allocation7 + $0x518] sm:$0xff]
      %v542 = vld [vmem:[#allocation7 + $0x520] sm:$0xff]
      %v543 = vld [vmem:[#allocation7 + $0x528] sm:$0xff]
      %v544 = vld [vmem:[#allocation7 + $0x530] sm:$0xff]
      %v545 = vld [vmem:[#allocation7 + $0x538] sm:$0xff]
      %v546 = vld [vmem:[#allocation7 + $0x540] sm:$0xff]
      %v547 = vld [vmem:[#allocation7 + $0x548] sm:$0xff]
      %v548 = vld [vmem:[#allocation7 + $0x550] sm:$0xff]
      %v549 = vld [vmem:[#allocation7 + $0x558] sm:$0xff]
      %v550 = vld [vmem:[#allocation7 + $0x560] sm:$0xff]
      %v551 = vld [vmem:[#allocation7 + $0x568] sm:$0xff]
      %v552 = vld [vmem:[#allocation7 + $0x570] sm:$0xff]
      %v553 = vld [vmem:[#allocation7 + $0x578] sm:$0xff]
      %v554 = vld [vmem:[#allocation7 + $0x580] sm:$0xff]
      %v555 = vld [vmem:[#allocation7 + $0x588] sm:$0xff]
      %v556 = vld [vmem:[#allocation7 + $0x590] sm:$0xff]
      %v557 = vld [vmem:[#allocation7 + $0x598] sm:$0xff]
      %v558 = vld [vmem:[#allocation7 + $0x5a0] sm:$0xff]
      %v559 = vld [vmem:[#allocation7 + $0x5a8] sm:$0xff]
      %v560 = vld [vmem:[#allocation7 + $0x5b0] sm:$0xff]
      %v561 = vld [vmem:[#allocation7 + $0x5b8] sm:$0xff]
      %v562 = vld [vmem:[#allocation7 + $0x5c0] sm:$0xff]
      %v563 = vld [vmem:[#allocation7 + $0x5c8] sm:$0xff]
      %v564 = vld [vmem:[#allocation7 + $0x5d0] sm:$0xff]
      %v565 = vld [vmem:[#allocation7 + $0x5d8] sm:$0xff]
      %v566 = vld [vmem:[#allocation7 + $0x5e0] sm:$0xff]
      %v567 = vld [vmem:[#allocation7 + $0x5e8] sm:$0xff]
      %v568 = vld [vmem:[#allocation7 + $0x5f0] sm:$0xff]
      %v569 = vld [vmem:[#allocation7 + $0x5f8] sm:$0xff]
      %v570 = vld [vmem:[#allocation7 + $0x600] sm:$0xff]
      %v571 = vld [vmem:[#allocation7 + $0x608] sm:$0xff]
      %v572 = vld [vmem:[#allocation7 + $0x610] sm:$0xff]
      %v573 = vld [vmem:[#allocation7 + $0x618] sm:$0xff]
      %v574 = vld [vmem:[#allocation7 + $0x620] sm:$0xff]
      %v575 = vld [vmem:[#allocation7 + $0x628] sm:$0xff]
      %v576 = vld [vmem:[#allocation7 + $0x630] sm:$0xff]
      %v577 = vld [vmem:[#allocation7 + $0x638] sm:$0xff]
      %v578 = vld [vmem:[#allocation7 + $0x640] sm:$0xff]
      %v579 = vld [vmem:[#allocation7 + $0x648] sm:$0xff]
      %v580 = vld [vmem:[#allocation7 + $0x650] sm:$0xff]
      %v581 = vld [vmem:[#allocation7 + $0x658] sm:$0xff]
      %v582 = vld [vmem:[#allocation7 + $0x660] sm:$0xff]
      %v583 = vld [vmem:[#allocation7 + $0x668] sm:$0xff]
      %v584 = vld [vmem:[#allocation7 + $0x670] sm:$0xff]
      %v585 = vld [vmem:[#allocation7 + $0x678] sm:$0xff]
      %v586 = vld [vmem:[#allocation7 + $0x680] sm:$0xff]
      %v587 = vld [vmem:[#allocation7 + $0x688] sm:$0xff]
      %v588 = vld [vmem:[#allocation7 + $0x690] sm:$0xff]
      %v589 = vld [vmem:[#allocation7 + $0x698] sm:$0xff]
      %v590 = vld [vmem:[#allocation7 + $0x6a0] sm:$0xff]
      %v591 = vld [vmem:[#allocation7 + $0x6a8] sm:$0xff]
      %v592 = vld [vmem:[#allocation7 + $0x6b0] sm:$0xff]
      %v593 = vld [vmem:[#allocation7 + $0x6b8] sm:$0xff]
      %v594 = vld [vmem:[#allocation7 + $0x6c0] sm:$0xff]
      %v595 = vld [vmem:[#allocation7 + $0x6c8] sm:$0xff]
      %v596 = vld [vmem:[#allocation7 + $0x6d0] sm:$0xff]
      %v597 = vld [vmem:[#allocation7 + $0x6d8] sm:$0xff]
      %v598 = vld [vmem:[#allocation7 + $0x6e0] sm:$0xff]
      %v599 = vld [vmem:[#allocation7 + $0x6e8] sm:$0xff]
      %v600 = vld [vmem:[#allocation7 + $0x6f0] sm:$0xff]
      %v601 = vld [vmem:[#allocation7 + $0x6f8] sm:$0xff]
      %v602 = vld [vmem:[#allocation7 + $0x700] sm:$0xff]
      %v603 = vld [vmem:[#allocation7 + $0x708] sm:$0xff]
      %v604 = vld [vmem:[#allocation7 + $0x710] sm:$0xff]
      %v605 = vld [vmem:[#allocation7 + $0x718] sm:$0xff]
      %v606 = vld [vmem:[#allocation7 + $0x720] sm:$0xff]
      %v607 = vld [vmem:[#allocation7 + $0x728] sm:$0xff]
      %v608 = vld [vmem:[#allocation7 + $0x730] sm:$0xff]
      %v609 = vld [vmem:[#allocation7 + $0x738] sm:$0xff]
      %v610 = vld [vmem:[#allocation7 + $0x740] sm:$0xff]
      %v611 = vld [vmem:[#allocation7 + $0x748] sm:$0xff]
      %v612 = vld [vmem:[#allocation7 + $0x750] sm:$0xff]
      %v613 = vld [vmem:[#allocation7 + $0x758] sm:$0xff]
      %v614 = vld [vmem:[#allocation7 + $0x760] sm:$0xff]
      %v615 = vld [vmem:[#allocation7 + $0x768] sm:$0xff]
      %v616 = vld [vmem:[#allocation7 + $0x770] sm:$0xff]
      %v617 = vld [vmem:[#allocation7 + $0x778] sm:$0xff]
      %v618 = vld [vmem:[#allocation7 + $0x780] sm:$0xff]
      %v619 = vld [vmem:[#allocation7 + $0x788] sm:$0xff]
      %v620 = vld [vmem:[#allocation7 + $0x790] sm:$0xff]
      %v621 = vld [vmem:[#allocation7 + $0x798] sm:$0xff]
      %v622 = vld [vmem:[#allocation7 + $0x7a0] sm:$0xff]
      %v623 = vld [vmem:[#allocation7 + $0x7a8] sm:$0xff]
      %v624 = vld [vmem:[#allocation7 + $0x7b0] sm:$0xff]
      %v625 = vld [vmem:[#allocation7 + $0x7b8] sm:$0xff]
      %v626 = vld [vmem:[#allocation7 + $0x7c0] sm:$0xff]
      %v627 = vld [vmem:[#allocation7 + $0x7c8] sm:$0xff]
      %v628 = vld [vmem:[#allocation7 + $0x7d0] sm:$0xff]
      %v629 = vld [vmem:[#allocation7 + $0x7d8] sm:$0xff]
      %v630 = vld [vmem:[#allocation7 + $0x7e0] sm:$0xff]
      %v631 = vld [vmem:[#allocation7 + $0x7e8] sm:$0xff]
      %v632 = vld [vmem:[#allocation7 + $0x7f0] sm:$0xff]
      %v633 = vld [vmem:[#allocation7 + $0x7f8] sm:$0xff]
      %v634 = vld [vmem:[#allocation7 + $0x800] sm:$0xff]
      %v635 = vld [vmem:[#allocation7 + $0x808] sm:$0xff]
      %v636 = vld [vmem:[#allocation7 + $0x810] sm:$0xff]
      %v637 = vld [vmem:[#allocation7 + $0x818] sm:$0xff]
      %v638 = vld [vmem:[#allocation7 + $0x820] sm:$0xff]
      %v639 = vld [vmem:[#allocation7 + $0x828] sm:$0xff]
      %v640 = vld [vmem:[#allocation7 + $0x830] sm:$0xff]
      %v641 = vld [vmem:[#allocation7 + $0x838] sm:$0xff]
      %v642 = vld [vmem:[#allocation7 + $0x840] sm:$0xff]
      %v643 = vld [vmem:[#allocation7 + $0x848] sm:$0xff]
      %v644 = vld [vmem:[#allocation7 + $0x850] sm:$0xff]
      %v645 = vld [vmem:[#allocation7 + $0x858] sm:$0xff]
      %v646 = vld [vmem:[#allocation7 + $0x860] sm:$0xff]
      %v647 = vld [vmem:[#allocation7 + $0x868] sm:$0xff]
      %v648 = vld [vmem:[#allocation7 + $0x870] sm:$0xff]
      %v649 = vld [vmem:[#allocation7 + $0x878] sm:$0xff]
      %v650 = vld [vmem:[#allocation7 + $0x880] sm:$0xff]
      %v651 = vld [vmem:[#allocation7 + $0x888] sm:$0xff]
      %v652 = vld [vmem:[#allocation7 + $0x890] sm:$0xff]
      %v653 = vld [vmem:[#allocation7 + $0x898] sm:$0xff]
      %v654 = vld [vmem:[#allocation7 + $0x8a0] sm:$0xff]
      %v655 = vld [vmem:[#allocation7 + $0x8a8] sm:$0xff]
      %v656 = vld [vmem:[#allocation7 + $0x8b0] sm:$0xff]
      %v657 = vld [vmem:[#allocation7 + $0x8b8] sm:$0xff]
      %v658 = vld [vmem:[#allocation7 + $0x8c0] sm:$0xff]
      %v659 = vld [vmem:[#allocation7 + $0x8c8] sm:$0xff]
      %v660 = vld [vmem:[#allocation7 + $0x8d0] sm:$0xff]
      %v661 = vld [vmem:[#allocation7 + $0x8d8] sm:$0xff]
      %v662 = vld [vmem:[#allocation7 + $0x8e0] sm:$0xff]
      %v663 = vld [vmem:[#allocation7 + $0x8e8] sm:$0xff]
      %v664 = vld [vmem:[#allocation7 + $0x8f0] sm:$0xff]
      %v665 = vld [vmem:[#allocation7 + $0x8f8] sm:$0xff]
      %v666 = vld [vmem:[#allocation7 + $0x900] sm:$0xff]
      %v667 = vld [vmem:[#allocation7 + $0x908] sm:$0xff]
      %v668 = vld [vmem:[#allocation7 + $0x910] sm:$0xff]
      %v669 = vld [vmem:[#allocation7 + $0x918] sm:$0xff]
      %v670 = vld [vmem:[#allocation7 + $0x920] sm:$0xff]
      %v671 = vld [vmem:[#allocation7 + $0x928] sm:$0xff]
      %v672 = vld [vmem:[#allocation7 + $0x930] sm:$0xff]
      %v673 = vld [vmem:[#allocation7 + $0x938] sm:$0xff]
      %v674 = vld [vmem:[#allocation7 + $0x940] sm:$0xff]
      %v675 = vld [vmem:[#allocation7 + $0x948] sm:$0xff]
      %v676 = vld [vmem:[#allocation7 + $0x950] sm:$0xff]
      %v677 = vld [vmem:[#allocation7 + $0x958] sm:$0xff]
      %v678 = vld [vmem:[#allocation7 + $0x960] sm:$0xff]
      %v679 = vld [vmem:[#allocation7 + $0x968] sm:$0xff]
      %v680 = vld [vmem:[#allocation7 + $0x970] sm:$0xff]
      %v681 = vld [vmem:[#allocation7 + $0x978] sm:$0xff]
      %v682 = vld [vmem:[#allocation7 + $0x980] sm:$0xff]
      %v683 = vld [vmem:[#allocation7 + $0x988] sm:$0xff]
      %v684 = vld [vmem:[#allocation7 + $0x990] sm:$0xff]
      %v685 = vld [vmem:[#allocation7 + $0x998] sm:$0xff]
      %v686 = vld [vmem:[#allocation7 + $0x9a0] sm:$0xff]
      %v687 = vld [vmem:[#allocation7 + $0x9a8] sm:$0xff]
      %v688 = vld [vmem:[#allocation7 + $0x9b0] sm:$0xff]
      %v689 = vld [vmem:[#allocation7 + $0x9b8] sm:$0xff]
      %v690 = vld [vmem:[#allocation7 + $0x9c0] sm:$0xff]
      %v691 = vld [vmem:[#allocation7 + $0x9c8] sm:$0xff]
      %v692 = vld [vmem:[#allocation7 + $0x9d0] sm:$0xff]
      %v693 = vld [vmem:[#allocation7 + $0x9d8] sm:$0xff]
      %v694 = vld [vmem:[#allocation7 + $0x9e0] sm:$0xff]
      %v695 = vld [vmem:[#allocation7 + $0x9e8] sm:$0xff]
      %v696 = vld [vmem:[#allocation7 + $0x9f0] sm:$0xff]
      %v697 = vld [vmem:[#allocation7 + $0x9f8] sm:$0xff]
      %v698 = vld [vmem:[#allocation7 + $0xa00] sm:$0xff]
      %v699 = vld [vmem:[#allocation7 + $0xa08] sm:$0xff]
      %v700 = vld [vmem:[#allocation7 + $0xa10] sm:$0xff]
      %v701 = vld [vmem:[#allocation7 + $0xa18] sm:$0xff]
      %v702 = vld [vmem:[#allocation7 + $0xa20] sm:$0xff]
      %v703 = vld [vmem:[#allocation7 + $0xa28] sm:$0xff]
      %v704 = vld [vmem:[#allocation7 + $0xa30] sm:$0xff]
      %v705 = vld [vmem:[#allocation7 + $0xa38] sm:$0xff]
      %v706 = vld [vmem:[#allocation7 + $0xa40] sm:$0xff]
      %v707 = vld [vmem:[#allocation7 + $0xa48] sm:$0xff]
      %v708 = vld [vmem:[#allocation7 + $0xa50] sm:$0xff]
      %v709 = vld [vmem:[#allocation7 + $0xa58] sm:$0xff]
      %v710 = vld [vmem:[#allocation7 + $0xa60] sm:$0xff]
      %v711 = vld [vmem:[#allocation7 + $0xa68] sm:$0xff]
      %v712 = vld [vmem:[#allocation7 + $0xa70] sm:$0xff]
      %v713 = vld [vmem:[#allocation7 + $0xa78] sm:$0xff]
      %v714 = vld [vmem:[#allocation7 + $0xa80] sm:$0xff]
      %v715 = vld [vmem:[#allocation7 + $0xa88] sm:$0xff]
      %v716 = vld [vmem:[#allocation7 + $0xa90] sm:$0xff]
      %v717 = vld [vmem:[#allocation7 + $0xa98] sm:$0xff]
      %v718 = vld [vmem:[#allocation7 + $0xaa0] sm:$0xff]
      %v719 = vld [vmem:[#allocation7 + $0xaa8] sm:$0xff]
      %v720 = vld [vmem:[#allocation7 + $0xab0] sm:$0xff]
      %v721 = vld [vmem:[#allocation7 + $0xab8] sm:$0xff]
      %v722 = vld [vmem:[#allocation7 + $0xac0] sm:$0xff]
      %v723 = vld [vmem:[#allocation7 + $0xac8] sm:$0xff]
      %v724 = vld [vmem:[#allocation7 + $0xad0] sm:$0xff]
      %v725 = vld [vmem:[#allocation7 + $0xad8] sm:$0xff]
      %v726 = vld [vmem:[#allocation7 + $0xae0] sm:$0xff]
      %v727 = vld [vmem:[#allocation7 + $0xae8] sm:$0xff]
      %v728 = vld [vmem:[#allocation7 + $0xaf0] sm:$0xff]
      %v729 = vld [vmem:[#allocation7 + $0xaf8] sm:$0xff]
      %v730 = vld [vmem:[#allocation7 + $0xb00] sm:$0xff]
      %v731 = vld [vmem:[#allocation7 + $0xb08] sm:$0xff]
      %v732 = vld [vmem:[#allocation7 + $0xb10] sm:$0xff]
      %v733 = vld [vmem:[#allocation7 + $0xb18] sm:$0xff]
      %v734 = vld [vmem:[#allocation7 + $0xb20] sm:$0xff]
      %v735 = vld [vmem:[#allocation7 + $0xb28] sm:$0xff]
      %v736 = vld [vmem:[#allocation7 + $0xb30] sm:$0xff]
      %v737 = vld [vmem:[#allocation7 + $0xb38] sm:$0xff]
      %v738 = vld [vmem:[#allocation7 + $0xb40] sm:$0xff]
      %v739 = vld [vmem:[#allocation7 + $0xb48] sm:$0xff]
      %v740 = vld [vmem:[#allocation7 + $0xb50] sm:$0xff]
      %v741 = vld [vmem:[#allocation7 + $0xb58] sm:$0xff]
      %v742 = vld [vmem:[#allocation7 + $0xb60] sm:$0xff]
      %v743 = vld [vmem:[#allocation7 + $0xb68] sm:$0xff]
      %v744 = vld [vmem:[#allocation7 + $0xb70] sm:$0xff]
      %v745 = vld [vmem:[#allocation7 + $0xb78] sm:$0xff]
      %v746 = vld [vmem:[#allocation7 + $0xb80] sm:$0xff]
      %v747 = vld [vmem:[#allocation7 + $0xb88] sm:$0xff]
      %v748 = vld [vmem:[#allocation7 + $0xb90] sm:$0xff]
      %v749 = vld [vmem:[#allocation7 + $0xb98] sm:$0xff]
      %v750 = vld [vmem:[#allocation7 + $0xba0] sm:$0xff]
      %v751 = vld [vmem:[#allocation7 + $0xba8] sm:$0xff]
      %v752 = vld [vmem:[#allocation7 + $0xbb0] sm:$0xff]
      %v753 = vld [vmem:[#allocation7 + $0xbb8] sm:$0xff]
      %v754 = vld [vmem:[#allocation7 + $0xbc0] sm:$0xff]
      %v755 = vld [vmem:[#allocation7 + $0xbc8] sm:$0xff]
      %v756 = vld [vmem:[#allocation7 + $0xbd0] sm:$0xff]
      %v757 = vld [vmem:[#allocation7 + $0xbd8] sm:$0xff]
      %v758 = vld [vmem:[#allocation7 + $0xbe0] sm:$0xff]
      %v759 = vld [vmem:[#allocation7 + $0xbe8] sm:$0xff]
      %v760 = vld [vmem:[#allocation7 + $0xbf0] sm:$0xff]
      %v761 = vld [vmem:[#allocation7 + $0xbf8] sm:$0xff]
      %v762 = vld [vmem:[#allocation7 + $0xc00] sm:$0xff]
      %v763 = vld [vmem:[#allocation7 + $0xc08] sm:$0xff]
      %v764 = vld [vmem:[#allocation7 + $0xc10] sm:$0xff]
      %v765 = vld [vmem:[#allocation7 + $0xc18] sm:$0xff]
      %v766 = vld [vmem:[#allocation7 + $0xc20] sm:$0xff]
      %v767 = vld [vmem:[#allocation7 + $0xc28] sm:$0xff]
      %v768 = vld [vmem:[#allocation7 + $0xc30] sm:$0xff]
      %v769 = vld [vmem:[#allocation7 + $0xc38] sm:$0xff]
      %v770 = vld [vmem:[#allocation7 + $0xc40] sm:$0xff]
      %v771 = vld [vmem:[#allocation7 + $0xc48] sm:$0xff]
      %v772 = vld [vmem:[#allocation7 + $0xc50] sm:$0xff]
      %v773 = vld [vmem:[#allocation7 + $0xc58] sm:$0xff]
      %v774 = vld [vmem:[#allocation7 + $0xc60] sm:$0xff]
      %v775 = vld [vmem:[#allocation7 + $0xc68] sm:$0xff]
      %v776 = vld [vmem:[#allocation7 + $0xc70] sm:$0xff]
      %v777 = vld [vmem:[#allocation7 + $0xc78] sm:$0xff]
      %v778 = vld [vmem:[#allocation7 + $0xc80] sm:$0xff]
      %v779 = vld [vmem:[#allocation7 + $0xc88] sm:$0xff]
      %v780 = vld [vmem:[#allocation7 + $0xc90] sm:$0xff]
      %v781 = vld [vmem:[#allocation7 + $0xc98] sm:$0xff]
      %v782 = vld [vmem:[#allocation7 + $0xca0] sm:$0xff]
      %v783 = vld [vmem:[#allocation7 + $0xca8] sm:$0xff]
      %v784 = vld [vmem:[#allocation7 + $0xcb0] sm:$0xff]
      %v785 = vld [vmem:[#allocation7 + $0xcb8] sm:$0xff]
      %v786 = vld [vmem:[#allocation7 + $0xcc0] sm:$0xff]
      %v787 = vld [vmem:[#allocation7 + $0xcc8] sm:$0xff]
      %v788 = vld [vmem:[#allocation7 + $0xcd0] sm:$0xff]
      %v789 = vld [vmem:[#allocation7 + $0xcd8] sm:$0xff]
      %v790 = vld [vmem:[#allocation7 + $0xce0] sm:$0xff]
      %v791 = vld [vmem:[#allocation7 + $0xce8] sm:$0xff]
      %v792 = vld [vmem:[#allocation7 + $0xcf0] sm:$0xff]
      %v793 = vld [vmem:[#allocation7 + $0xcf8] sm:$0xff]
      %v794 = vld [vmem:[#allocation7 + $0xd00] sm:$0xff]
      %v795 = vld [vmem:[#allocation7 + $0xd08] sm:$0xff]
      %v796 = vld [vmem:[#allocation7 + $0xd10] sm:$0xff]
      %v797 = vld [vmem:[#allocation7 + $0xd18] sm:$0xff]
      %v798 = vld [vmem:[#allocation7 + $0xd20] sm:$0xff]
      %v799 = vld [vmem:[#allocation7 + $0xd28] sm:$0xff]
      %v800 = vld [vmem:[#allocation7 + $0xd30] sm:$0xff]
      %v801 = vld [vmem:[#allocation7 + $0xd38] sm:$0xff]
      %v802 = vld [vmem:[#allocation7 + $0xd40] sm:$0xff]
      %v803 = vld [vmem:[#allocation7 + $0xd48] sm:$0xff]
      %v804 = vld [vmem:[#allocation7 + $0xd50] sm:$0xff]
      %v805 = vld [vmem:[#allocation7 + $0xd58] sm:$0xff]
      %v806 = vld [vmem:[#allocation7 + $0xd60] sm:$0xff]
      %v807 = vld [vmem:[#allocation7 + $0xd68] sm:$0xff]
      %v808 = vld [vmem:[#allocation7 + $0xd70] sm:$0xff]
      %v809 = vld [vmem:[#allocation7 + $0xd78] sm:$0xff]
      %v810 = vld [vmem:[#allocation7 + $0xd80] sm:$0xff]
      %v811 = vld [vmem:[#allocation7 + $0xd88] sm:$0xff]
      %v812 = vld [vmem:[#allocation7 + $0xd90] sm:$0xff]
      %v813 = vld [vmem:[#allocation7 + $0xd98] sm:$0xff]
      %v814 = vld [vmem:[#allocation7 + $0xda0] sm:$0xff]
      %v815 = vld [vmem:[#allocation7 + $0xda8] sm:$0xff]
      %v816 = vld [vmem:[#allocation7 + $0xdb0] sm:$0xff]
      %v817 = vld [vmem:[#allocation7 + $0xdb8] sm:$0xff]
      %v818 = vld [vmem:[#allocation7 + $0xdc0] sm:$0xff]
      %v819 = vld [vmem:[#allocation7 + $0xdc8] sm:$0xff]
      %v820 = vld [vmem:[#allocation7 + $0xdd0] sm:$0xff]
      %v821 = vld [vmem:[#allocation7 + $0xdd8] sm:$0xff]
      %v822 = vld [vmem:[#allocation7 + $0xde0] sm:$0xff]
      %v823 = vld [vmem:[#allocation7 + $0xde8] sm:$0xff]
      %v824 = vld [vmem:[#allocation7 + $0xdf0] sm:$0xff]
      %v825 = vld [vmem:[#allocation7 + $0xdf8] sm:$0xff]
      %v826 = vld [vmem:[#allocation7 + $0xe00] sm:$0xff]
      %v827 = vld [vmem:[#allocation7 + $0xe08] sm:$0xff]
      %v828 = vld [vmem:[#allocation7 + $0xe10] sm:$0xff]
      %v829 = vld [vmem:[#allocation7 + $0xe18] sm:$0xff]
      %v830 = vld [vmem:[#allocation7 + $0xe20] sm:$0xff]
      %v831 = vld [vmem:[#allocation7 + $0xe28] sm:$0xff]
      %v832 = vld [vmem:[#allocation7 + $0xe30] sm:$0xff]
      %v833 = vld [vmem:[#allocation7 + $0xe38] sm:$0xff]
      %v834 = vld [vmem:[#allocation7 + $0xe40] sm:$0xff]
      %v835 = vld [vmem:[#allocation7 + $0xe48] sm:$0xff]
      %v836 = vld [vmem:[#allocation7 + $0xe50] sm:$0xff]
      %v837 = vld [vmem:[#allocation7 + $0xe58] sm:$0xff]
      %v838 = vld [vmem:[#allocation7 + $0xe60] sm:$0xff]
      %v839 = vld [vmem:[#allocation7 + $0xe68] sm:$0xff]
      %v840 = vld [vmem:[#allocation7 + $0xe70] sm:$0xff]
      %v841 = vld [vmem:[#allocation7 + $0xe78] sm:$0xff]
      %v842 = vld [vmem:[#allocation7 + $0xe80] sm:$0xff]
      %v843 = vld [vmem:[#allocation7 + $0xe88] sm:$0xff]
      %v844 = vld [vmem:[#allocation7 + $0xe90] sm:$0xff]
      %v845 = vld [vmem:[#allocation7 + $0xe98] sm:$0xff]
      %v846 = vld [vmem:[#allocation7 + $0xea0] sm:$0xff]
      %v847 = vld [vmem:[#allocation7 + $0xea8] sm:$0xff]
      %v848 = vld [vmem:[#allocation7 + $0xeb0] sm:$0xff]
      %v849 = vld [vmem:[#allocation7 + $0xeb8] sm:$0xff]
      %v850 = vld [vmem:[#allocation7 + $0xec0] sm:$0xff]
      %v851 = vld [vmem:[#allocation7 + $0xec8] sm:$0xff]
      %v852 = vld [vmem:[#allocation7 + $0xed0] sm:$0xff]
      %v853 = vld [vmem:[#allocation7 + $0xed8] sm:$0xff]
      %v854 = vld [vmem:[#allocation7 + $0xee0] sm:$0xff]
      %v855 = vld [vmem:[#allocation7 + $0xee8] sm:$0xff]
      %v856 = vld [vmem:[#allocation7 + $0xef0] sm:$0xff]
      %v857 = vld [vmem:[#allocation7 + $0xef8] sm:$0xff]
      %v858 = vld [vmem:[#allocation7 + $0xf00] sm:$0xff]
      %v859 = vld [vmem:[#allocation7 + $0xf08] sm:$0xff]
      %v860 = vld [vmem:[#allocation7 + $0xf10] sm:$0xff]
      %v861 = vld [vmem:[#allocation7 + $0xf18] sm:$0xff]
      %v862 = vld [vmem:[#allocation7 + $0xf20] sm:$0xff]
      %v863 = vld [vmem:[#allocation7 + $0xf28] sm:$0xff]
      %v864 = vld [vmem:[#allocation7 + $0xf30] sm:$0xff]
      %v865 = vld [vmem:[#allocation7 + $0xf38] sm:$0xff]
      %v866 = vld [vmem:[#allocation7 + $0xf40] sm:$0xff]
      %v867 = vld [vmem:[#allocation7 + $0xf48] sm:$0xff]
      %v868 = vld [vmem:[#allocation7 + $0xf50] sm:$0xff]
      %v869 = vld [vmem:[#allocation7 + $0xf58] sm:$0xff]
      %v870 = vld [vmem:[#allocation7 + $0xf60] sm:$0xff]
      %v871 = vld [vmem:[#allocation7 + $0xf68] sm:$0xff]
      %v872 = vld [vmem:[#allocation7 + $0xf70] sm:$0xff]
      %v873 = vld [vmem:[#allocation7 + $0xf78] sm:$0xff]
      %v874 = vld [vmem:[#allocation7 + $0xf80] sm:$0xff]
      %v875 = vld [vmem:[#allocation7 + $0xf88] sm:$0xff]
      %v876 = vld [vmem:[#allocation7 + $0xf90] sm:$0xff]
      %v877 = vld [vmem:[#allocation7 + $0xf98] sm:$0xff]
      %v878 = vld [vmem:[#allocation7 + $0xfa0] sm:$0xff]
      %v879 = vld [vmem:[#allocation7 + $0xfa8] sm:$0xff]
      %v880 = vld [vmem:[#allocation7 + $0xfb0] sm:$0xff]
      %v881 = vld [vmem:[#allocation7 + $0xfb8] sm:$0xff]
      %v882 = vld [vmem:[#allocation7 + $0xfc0] sm:$0xff]
      %v883 = vld [vmem:[#allocation7 + $0xfc8] sm:$0xff]
      %v884 = vld [vmem:[#allocation7 + $0xfd0] sm:$0xff]
      %v885 = vld [vmem:[#allocation7 + $0xfd8] sm:$0xff]
      %v886 = vld [vmem:[#allocation7 + $0xfe0] sm:$0xff]
      %v887 = vld [vmem:[#allocation7 + $0xfe8] sm:$0xff]
      %v888 = vld [vmem:[#allocation7 + $0xff0] sm:$0xff]
      %v889 = vld [vmem:[#allocation7 + $0xff8] sm:$0xff]
      %v890 = vld [vmem:[#allocation9] sm:$0xf]
      %v892 = vperm.slane %v377, 0
      %v893 = vperm.slane %v377, 1
      %v894 = vperm.slane %v377, 2
      %v895 = vperm.slane %v377, 3
      %v896 = vperm.slane %v377, 4
      %v897 = vperm.slane %v377, 5
      %v898 = vperm.slane %v377, 6
      %v899 = vperm.slane %v377, 7
      %v909 = vperm.slane %v890, 0
      %v910 = vperm.slane %v890, 1
      %v911 = vperm.slane %v890, 2
      %v912 = vperm.slane %v890, 3
      %917 = vmatpush.msra.mxu0 %v438
      %918 = vmatpush.msra.mxu0 %v434
      %919 = vmatpush.msra.mxu0 %v430
      %920 = vmatpush.msra.mxu0 %v426
      %921 = vmatpush.msra.mxu0 %v422
      %922 = vmatpush.msra.mxu0 %v418
      %923 = vmatpush.msra.mxu0 %v414
      %924 = vmatpush.msra.mxu0 %v410
      %925 = vmatpush.msra.mxu0 %v406
      %926 = vmatpush.msra.mxu0 %v402
      %927 = vmatpush.msra.mxu0 %v398
      %928 = vmatpush.msra.mxu0 %v394
      %929 = vmatpush.msra.mxu0 %v390
      %930 = vmatpush.msra.mxu0 %v386
      %931 = vmatpush.msra.mxu0 %v382
      %932 = vmatpush.msra.mxu0 %v378
      %933 = vmatmul.f32.gmra.mxu0 %v892
      %v934 = vpop.f32.mrf.mxu0
      %v935 = vadd.f32 %v909, %v934
      %936 = vdwg.mxu0
      %937 = vmatpush.msra.mxu0 %v502
      %938 = vmatpush.msra.mxu0 %v498
      %939 = vmatpush.msra.mxu0 %v494
      %940 = vmatpush.msra.mxu0 %v490
      %941 = vmatpush.msra.mxu0 %v486
      %942 = vmatpush.msra.mxu0 %v482
      %943 = vmatpush.msra.mxu0 %v478
      %944 = vmatpush.msra.mxu0 %v474
      %945 = vmatpush.msra.mxu0 %v470
      %946 = vmatpush.msra.mxu0 %v466
      %947 = vmatpush.msra.mxu0 %v462
      %948 = vmatpush.msra.mxu0 %v458
      %949 = vmatpush.msra.mxu0 %v454
      %950 = vmatpush.msra.mxu0 %v450
      %951 = vmatpush.msra.mxu0 %v446
      %952 = vmatpush.msra.mxu0 %v442
      %953 = vmatmul.f32.gmra.mxu0 %v893
      %v954 = vpop.f32.mrf.mxu0
      %v955 = vadd.f32 %v935, %v954
      %956 = vdwg.mxu0
      %957 = vmatpush.msra.mxu0 %v566
      %958 = vmatpush.msra.mxu0 %v562
      %959 = vmatpush.msra.mxu0 %v558
      %960 = vmatpush.msra.mxu0 %v554
      %961 = vmatpush.msra.mxu0 %v550
      %962 = vmatpush.msra.mxu0 %v546
      %963 = vmatpush.msra.mxu0 %v542
      %964 = vmatpush.msra.mxu0 %v538
      %965 = vmatpush.msra.mxu0 %v534
      %966 = vmatpush.msra.mxu0 %v530
      %967 = vmatpush.msra.mxu0 %v526
      %968 = vmatpush.msra.mxu0 %v522
      %969 = vmatpush.msra.mxu0 %v518
      %970 = vmatpush.msra.mxu0 %v514
      %971 = vmatpush.msra.mxu0 %v510
      %972 = vmatpush.msra.mxu0 %v506
      %973 = vmatmul.f32.gmra.mxu0 %v894
      %v974 = vpop.f32.mrf.mxu0
      %v975 = vadd.f32 %v955, %v974
      %976 = vdwg.mxu0
      %977 = vmatpush.msra.mxu0 %v630
      %978 = vmatpush.msra.mxu0 %v626
      %979 = vmatpush.msra.mxu0 %v622
      %980 = vmatpush.msra.mxu0 %v618
      %981 = vmatpush.msra.mxu0 %v614
      %982 = vmatpush.msra.mxu0 %v610
      %983 = vmatpush.msra.mxu0 %v606
      %984 = vmatpush.msra.mxu0 %v602
      %985 = vmatpush.msra.mxu0 %v598
      %986 = vmatpush.msra.mxu0 %v594
      %987 = vmatpush.msra.mxu0 %v590
      %988 = vmatpush.msra.mxu0 %v586
      %989 = vmatpush.msra.mxu0 %v582
      %990 = vmatpush.msra.mxu0 %v578
      %991 = vmatpush.msra.mxu0 %v574
      %992 = vmatpush.msra.mxu0 %v570
      %993 = vmatmul.f32.gmra.mxu0 %v895
      %v994 = vpop.f32.mrf.mxu0
      %v995 = vadd.f32 %v975, %v994
      %996 = vdwg.mxu0
      %997 = vmatpush.msra.mxu0 %v694
      %998 = vmatpush.msra.mxu0 %v690
      %999 = vmatpush.msra.mxu0 %v686
      %1000 = vmatpush.msra.mxu0 %v682
      %1001 = vmatpush.msra.mxu0 %v678
      %1002 = vmatpush.msra.mxu0 %v674
      %1003 = vmatpush.msra.mxu0 %v670
      %1004 = vmatpush.msra.mxu0 %v666
      %1005 = vmatpush.msra.mxu0 %v662
      %1006 = vmatpush.msra.mxu0 %v658
      %1007 = vmatpush.msra.mxu0 %v654
      %1008 = vmatpush.msra.mxu0 %v650
      %1009 = vmatpush.msra.mxu0 %v646
      %1010 = vmatpush.msra.mxu0 %v642
      %1011 = vmatpush.msra.mxu0 %v638
      %1012 = vmatpush.msra.mxu0 %v634
      %1013 = vmatmul.f32.gmra.mxu0 %v896
      %v1014 = vpop.f32.mrf.mxu0
      %v1015 = vadd.f32 %v995, %v1014
      %1016 = vdwg.mxu0
      %1017 = vmatpush.msra.mxu0 %v758
      %1018 = vmatpush.msra.mxu0 %v754
      %1019 = vmatpush.msra.mxu0 %v750
      %1020 = vmatpush.msra.mxu0 %v746
      %1021 = vmatpush.msra.mxu0 %v742
      %1022 = vmatpush.msra.mxu0 %v738
      %1023 = vmatpush.msra.mxu0 %v734
      %1024 = vmatpush.msra.mxu0 %v730
      %1025 = vmatpush.msra.mxu0 %v726
      %1026 = vmatpush.msra.mxu0 %v722
      %1027 = vmatpush.msra.mxu0 %v718
      %1028 = vmatpush.msra.mxu0 %v714
      %1029 = vmatpush.msra.mxu0 %v710
      %1030 = vmatpush.msra.mxu0 %v706
      %1031 = vmatpush.msra.mxu0 %v702
      %1032 = vmatpush.msra.mxu0 %v698
      %1033 = vmatmul.f32.gmra.mxu0 %v897
      %v1034 = vpop.f32.mrf.mxu0
      %v1035 = vadd.f32 %v1015, %v1034
      %1036 = vdwg.mxu0
      %1037 = vmatpush.msra.mxu0 %v822
      %1038 = vmatpush.msra.mxu0 %v818
      %1039 = vmatpush.msra.mxu0 %v814
      %1040 = vmatpush.msra.mxu0 %v810
      %1041 = vmatpush.msra.mxu0 %v806
      %1042 = vmatpush.msra.mxu0 %v802
      %1043 = vmatpush.msra.mxu0 %v798
      %1044 = vmatpush.msra.mxu0 %v794
      %1045 = vmatpush.msra.mxu0 %v790
      %1046 = vmatpush.msra.mxu0 %v786
      %1047 = vmatpush.msra.mxu0 %v782
      %1048 = vmatpush.msra.mxu0 %v778
      %1049 = vmatpush.msra.mxu0 %v774
      %1050 = vmatpush.msra.mxu0 %v770
      %1051 = vmatpush.msra.mxu0 %v766
      %1052 = vmatpush.msra.mxu0 %v762
      %1053 = vmatmul.f32.gmra.mxu0 %v898
      %v1054 = vpop.f32.mrf.mxu0
      %v1055 = vadd.f32 %v1035, %v1054
      %1056 = vdwg.mxu0
      %1057 = vmatpush.msra.mxu0 %v886
      %1058 = vmatpush.msra.mxu0 %v882
      %1059 = vmatpush.msra.mxu0 %v878
      %1060 = vmatpush.msra.mxu0 %v874
      %1061 = vmatpush.msra.mxu0 %v870
      %1062 = vmatpush.msra.mxu0 %v866
      %1063 = vmatpush.msra.mxu0 %v862
      %1064 = vmatpush.msra.mxu0 %v858
      %1065 = vmatpush.msra.mxu0 %v854
      %1066 = vmatpush.msra.mxu0 %v850
      %1067 = vmatpush.msra.mxu0 %v846
      %1068 = vmatpush.msra.mxu0 %v842
      %1069 = vmatpush.msra.mxu0 %v838
      %1070 = vmatpush.msra.mxu0 %v834
      %1071 = vmatpush.msra.mxu0 %v830
      %1072 = vmatpush.msra.mxu0 %v826
      %1073 = vmatmul.f32.gmra.mxu0 %v899
      %v1074 = vpop.f32.mrf.mxu0
      %v1075 = vadd.f32 %v1055, %v1074
      %1076 = vdwg.mxu0
      %1077 = vmatpush.msra.mxu0 %v439
      %1078 = vmatpush.msra.mxu0 %v435
      %1079 = vmatpush.msra.mxu0 %v431
      %1080 = vmatpush.msra.mxu0 %v427
      %1081 = vmatpush.msra.mxu0 %v423
      %1082 = vmatpush.msra.mxu0 %v419
      %1083 = vmatpush.msra.mxu0 %v415
      %1084 = vmatpush.msra.mxu0 %v411
      %1085 = vmatpush.msra.mxu0 %v407
      %1086 = vmatpush.msra.mxu0 %v403
      %1087 = vmatpush.msra.mxu0 %v399
      %1088 = vmatpush.msra.mxu0 %v395
      %1089 = vmatpush.msra.mxu0 %v391
      %1090 = vmatpush.msra.mxu0 %v387
      %1091 = vmatpush.msra.mxu0 %v383
      %1092 = vmatpush.msra.mxu0 %v379
      %1093 = vmatmul.f32.gmra.mxu0 %v892
      %v1094 = vpop.f32.mrf.mxu0
      %v1095 = vadd.f32 %v910, %v1094
      %1096 = vdwg.mxu0
      %1097 = vmatpush.msra.mxu0 %v503
      %1098 = vmatpush.msra.mxu0 %v499
      %1099 = vmatpush.msra.mxu0 %v495
      %1100 = vmatpush.msra.mxu0 %v491
      %1101 = vmatpush.msra.mxu0 %v487
      %1102 = vmatpush.msra.mxu0 %v483
      %1103 = vmatpush.msra.mxu0 %v479
      %1104 = vmatpush.msra.mxu0 %v475
      %1105 = vmatpush.msra.mxu0 %v471
      %1106 = vmatpush.msra.mxu0 %v467
      %1107 = vmatpush.msra.mxu0 %v463
      %1108 = vmatpush.msra.mxu0 %v459
      %1109 = vmatpush.msra.mxu0 %v455
      %1110 = vmatpush.msra.mxu0 %v451
      %1111 = vmatpush.msra.mxu0 %v447
      %1112 = vmatpush.msra.mxu0 %v443
      %1113 = vmatmul.f32.gmra.mxu0 %v893
      %v1114 = vpop.f32.mrf.mxu0
      %v1115 = vadd.f32 %v1095, %v1114
      %1116 = vdwg.mxu0
      %1117 = vmatpush.msra.mxu0 %v567
      %1118 = vmatpush.msra.mxu0 %v563
      %1119 = vmatpush.msra.mxu0 %v559
      %1120 = vmatpush.msra.mxu0 %v555
      %1121 = vmatpush.msra.mxu0 %v551
      %1122 = vmatpush.msra.mxu0 %v547
      %1123 = vmatpush.msra.mxu0 %v543
      %1124 = vmatpush.msra.mxu0 %v539
      %1125 = vmatpush.msra.mxu0 %v535
      %1126 = vmatpush.msra.mxu0 %v531
      %1127 = vmatpush.msra.mxu0 %v527
      %1128 = vmatpush.msra.mxu0 %v523
      %1129 = vmatpush.msra.mxu0 %v519
      %1130 = vmatpush.msra.mxu0 %v515
      %1131 = vmatpush.msra.mxu0 %v511
      %1132 = vmatpush.msra.mxu0 %v507
      %1133 = vmatmul.f32.gmra.mxu0 %v894
      %v1134 = vpop.f32.mrf.mxu0
      %v1135 = vadd.f32 %v1115, %v1134
      %1136 = vdwg.mxu0
      %1137 = vmatpush.msra.mxu0 %v631
      %1138 = vmatpush.msra.mxu0 %v627
      %1139 = vmatpush.msra.mxu0 %v623
      %1140 = vmatpush.msra.mxu0 %v619
      %1141 = vmatpush.msra.mxu0 %v615
      %1142 = vmatpush.msra.mxu0 %v611
      %1143 = vmatpush.msra.mxu0 %v607
      %1144 = vmatpush.msra.mxu0 %v603
      %1145 = vmatpush.msra.mxu0 %v599
      %1146 = vmatpush.msra.mxu0 %v595
      %1147 = vmatpush.msra.mxu0 %v591
      %1148 = vmatpush.msra.mxu0 %v587
      %1149 = vmatpush.msra.mxu0 %v583
      %1150 = vmatpush.msra.mxu0 %v579
      %1151 = vmatpush.msra.mxu0 %v575
      %1152 = vmatpush.msra.mxu0 %v571
      %1153 = vmatmul.f32.gmra.mxu0 %v895
      %v1154 = vpop.f32.mrf.mxu0
      %v1155 = vadd.f32 %v1135, %v1154
      %1156 = vdwg.mxu0
      %1157 = vmatpush.msra.mxu0 %v695
      %1158 = vmatpush.msra.mxu0 %v691
      %1159 = vmatpush.msra.mxu0 %v687
      %1160 = vmatpush.msra.mxu0 %v683
      %1161 = vmatpush.msra.mxu0 %v679
      %1162 = vmatpush.msra.mxu0 %v675
      %1163 = vmatpush.msra.mxu0 %v671
      %1164 = vmatpush.msra.mxu0 %v667
      %1165 = vmatpush.msra.mxu0 %v663
      %1166 = vmatpush.msra.mxu0 %v659
      %1167 = vmatpush.msra.mxu0 %v655
      %1168 = vmatpush.msra.mxu0 %v651
      %1169 = vmatpush.msra.mxu0 %v647
      %1170 = vmatpush.msra.mxu0 %v643
      %1171 = vmatpush.msra.mxu0 %v639
      %1172 = vmatpush.msra.mxu0 %v635
      %1173 = vmatmul.f32.gmra.mxu0 %v896
      %v1174 = vpop.f32.mrf.mxu0
      %v1175 = vadd.f32 %v1155, %v1174
      %1176 = vdwg.mxu0
      %1177 = vmatpush.msra.mxu0 %v759
      %1178 = vmatpush.msra.mxu0 %v755
      %1179 = vmatpush.msra.mxu0 %v751
      %1180 = vmatpush.msra.mxu0 %v747
      %1181 = vmatpush.msra.mxu0 %v743
      %1182 = vmatpush.msra.mxu0 %v739
      %1183 = vmatpush.msra.mxu0 %v735
      %1184 = vmatpush.msra.mxu0 %v731
      %1185 = vmatpush.msra.mxu0 %v727
      %1186 = vmatpush.msra.mxu0 %v723
      %1187 = vmatpush.msra.mxu0 %v719
      %1188 = vmatpush.msra.mxu0 %v715
      %1189 = vmatpush.msra.mxu0 %v711
      %1190 = vmatpush.msra.mxu0 %v707
      %1191 = vmatpush.msra.mxu0 %v703
      %1192 = vmatpush.msra.mxu0 %v699
      %1193 = vmatmul.f32.gmra.mxu0 %v897
      %v1194 = vpop.f32.mrf.mxu0
      %v1195 = vadd.f32 %v1175, %v1194
      %1196 = vdwg.mxu0
      %1197 = vmatpush.msra.mxu0 %v823
      %1198 = vmatpush.msra.mxu0 %v819
      %1199 = vmatpush.msra.mxu0 %v815
      %1200 = vmatpush.msra.mxu0 %v811
      %1201 = vmatpush.msra.mxu0 %v807
      %1202 = vmatpush.msra.mxu0 %v803
      %1203 = vmatpush.msra.mxu0 %v799
      %1204 = vmatpush.msra.mxu0 %v795
      %1205 = vmatpush.msra.mxu0 %v791
      %1206 = vmatpush.msra.mxu0 %v787
      %1207 = vmatpush.msra.mxu0 %v783
      %1208 = vmatpush.msra.mxu0 %v779
      %1209 = vmatpush.msra.mxu0 %v775
      %1210 = vmatpush.msra.mxu0 %v771
      %1211 = vmatpush.msra.mxu0 %v767
      %1212 = vmatpush.msra.mxu0 %v763
      %1213 = vmatmul.f32.gmra.mxu0 %v898
      %v1214 = vpop.f32.mrf.mxu0
      %v1215 = vadd.f32 %v1195, %v1214
      %1216 = vdwg.mxu0
      %1217 = vmatpush.msra.mxu0 %v887
      %1218 = vmatpush.msra.mxu0 %v883
      %1219 = vmatpush.msra.mxu0 %v879
      %1220 = vmatpush.msra.mxu0 %v875
      %1221 = vmatpush.msra.mxu0 %v871
      %1222 = vmatpush.msra.mxu0 %v867
      %1223 = vmatpush.msra.mxu0 %v863
      %1224 = vmatpush.msra.mxu0 %v859
      %1225 = vmatpush.msra.mxu0 %v855
      %1226 = vmatpush.msra.mxu0 %v851
      %1227 = vmatpush.msra.mxu0 %v847
      %1228 = vmatpush.msra.mxu0 %v843
      %1229 = vmatpush.msra.mxu0 %v839
      %1230 = vmatpush.msra.mxu0 %v835
      %1231 = vmatpush.msra.mxu0 %v831
      %1232 = vmatpush.msra.mxu0 %v827
      %1233 = vmatmul.f32.gmra.mxu0 %v899
      %v1234 = vpop.f32.mrf.mxu0
      %v1235 = vadd.f32 %v1215, %v1234
      %1236 = vdwg.mxu0
      %1237 = vmatpush.msra.mxu0 %v440
      %1238 = vmatpush.msra.mxu0 %v436
      %1239 = vmatpush.msra.mxu0 %v432
      %1240 = vmatpush.msra.mxu0 %v428
      %1241 = vmatpush.msra.mxu0 %v424
      %1242 = vmatpush.msra.mxu0 %v420
      %1243 = vmatpush.msra.mxu0 %v416
      %1244 = vmatpush.msra.mxu0 %v412
      %1245 = vmatpush.msra.mxu0 %v408
      %1246 = vmatpush.msra.mxu0 %v404
      %1247 = vmatpush.msra.mxu0 %v400
      %1248 = vmatpush.msra.mxu0 %v396
      %1249 = vmatpush.msra.mxu0 %v392
      %1250 = vmatpush.msra.mxu0 %v388
      %1251 = vmatpush.msra.mxu0 %v384
      %1252 = vmatpush.msra.mxu0 %v380
      %1253 = vmatmul.f32.gmra.mxu0 %v892
      %v1254 = vpop.f32.mrf.mxu0
      %v1255 = vadd.f32 %v911, %v1254
      %1256 = vdwg.mxu0
      %1257 = vmatpush.msra.mxu0 %v504
      %1258 = vmatpush.msra.mxu0 %v500
      %1259 = vmatpush.msra.mxu0 %v496
      %1260 = vmatpush.msra.mxu0 %v492
      %1261 = vmatpush.msra.mxu0 %v488
      %1262 = vmatpush.msra.mxu0 %v484
      %1263 = vmatpush.msra.mxu0 %v480
      %1264 = vmatpush.msra.mxu0 %v476
      %1265 = vmatpush.msra.mxu0 %v472
      %1266 = vmatpush.msra.mxu0 %v468
      %1267 = vmatpush.msra.mxu0 %v464
      %1268 = vmatpush.msra.mxu0 %v460
      %1269 = vmatpush.msra.mxu0 %v456
      %1270 = vmatpush.msra.mxu0 %v452
      %1271 = vmatpush.msra.mxu0 %v448
      %1272 = vmatpush.msra.mxu0 %v444
      %1273 = vmatmul.f32.gmra.mxu0 %v893
      %v1274 = vpop.f32.mrf.mxu0
      %v1275 = vadd.f32 %v1255, %v1274
      %1276 = vdwg.mxu0
      %1277 = vmatpush.msra.mxu0 %v568
      %1278 = vmatpush.msra.mxu0 %v564
      %1279 = vmatpush.msra.mxu0 %v560
      %1280 = vmatpush.msra.mxu0 %v556
      %1281 = vmatpush.msra.mxu0 %v552
      %1282 = vmatpush.msra.mxu0 %v548
      %1283 = vmatpush.msra.mxu0 %v544
      %1284 = vmatpush.msra.mxu0 %v540
      %1285 = vmatpush.msra.mxu0 %v536
      %1286 = vmatpush.msra.mxu0 %v532
      %1287 = vmatpush.msra.mxu0 %v528
      %1288 = vmatpush.msra.mxu0 %v524
      %1289 = vmatpush.msra.mxu0 %v520
      %1290 = vmatpush.msra.mxu0 %v516
      %1291 = vmatpush.msra.mxu0 %v512
      %1292 = vmatpush.msra.mxu0 %v508
      %1293 = vmatmul.f32.gmra.mxu0 %v894
      %v1294 = vpop.f32.mrf.mxu0
      %v1295 = vadd.f32 %v1275, %v1294
      %1296 = vdwg.mxu0
      %1297 = vmatpush.msra.mxu0 %v632
      %1298 = vmatpush.msra.mxu0 %v628
      %1299 = vmatpush.msra.mxu0 %v624
      %1300 = vmatpush.msra.mxu0 %v620
      %1301 = vmatpush.msra.mxu0 %v616
      %1302 = vmatpush.msra.mxu0 %v612
      %1303 = vmatpush.msra.mxu0 %v608
      %1304 = vmatpush.msra.mxu0 %v604
      %1305 = vmatpush.msra.mxu0 %v600
      %1306 = vmatpush.msra.mxu0 %v596
      %1307 = vmatpush.msra.mxu0 %v592
      %1308 = vmatpush.msra.mxu0 %v588
      %1309 = vmatpush.msra.mxu0 %v584
      %1310 = vmatpush.msra.mxu0 %v580
      %1311 = vmatpush.msra.mxu0 %v576
      %1312 = vmatpush.msra.mxu0 %v572
      %1313 = vmatmul.f32.gmra.mxu0 %v895
      %v1314 = vpop.f32.mrf.mxu0
      %v1315 = vadd.f32 %v1295, %v1314
      %1316 = vdwg.mxu0
      %1317 = vmatpush.msra.mxu0 %v696
      %1318 = vmatpush.msra.mxu0 %v692
      %1319 = vmatpush.msra.mxu0 %v688
      %1320 = vmatpush.msra.mxu0 %v684
      %1321 = vmatpush.msra.mxu0 %v680
      %1322 = vmatpush.msra.mxu0 %v676
      %1323 = vmatpush.msra.mxu0 %v672
      %1324 = vmatpush.msra.mxu0 %v668
      %1325 = vmatpush.msra.mxu0 %v664
      %1326 = vmatpush.msra.mxu0 %v660
      %1327 = vmatpush.msra.mxu0 %v656
      %1328 = vmatpush.msra.mxu0 %v652
      %1329 = vmatpush.msra.mxu0 %v648
      %1330 = vmatpush.msra.mxu0 %v644
      %1331 = vmatpush.msra.mxu0 %v640
      %1332 = vmatpush.msra.mxu0 %v636
      %1333 = vmatmul.f32.gmra.mxu0 %v896
      %v1334 = vpop.f32.mrf.mxu0
      %v1335 = vadd.f32 %v1315, %v1334
      %1336 = vdwg.mxu0
      %1337 = vmatpush.msra.mxu0 %v760
      %1338 = vmatpush.msra.mxu0 %v756
      %1339 = vmatpush.msra.mxu0 %v752
      %1340 = vmatpush.msra.mxu0 %v748
      %1341 = vmatpush.msra.mxu0 %v744
      %1342 = vmatpush.msra.mxu0 %v740
      %1343 = vmatpush.msra.mxu0 %v736
      %1344 = vmatpush.msra.mxu0 %v732
      %1345 = vmatpush.msra.mxu0 %v728
      %1346 = vmatpush.msra.mxu0 %v724
      %1347 = vmatpush.msra.mxu0 %v720
      %1348 = vmatpush.msra.mxu0 %v716
      %1349 = vmatpush.msra.mxu0 %v712
      %1350 = vmatpush.msra.mxu0 %v708
      %1351 = vmatpush.msra.mxu0 %v704
      %1352 = vmatpush.msra.mxu0 %v700
      %1353 = vmatmul.f32.gmra.mxu0 %v897
      %v1354 = vpop.f32.mrf.mxu0
      %v1355 = vadd.f32 %v1335, %v1354
      %1356 = vdwg.mxu0
      %1357 = vmatpush.msra.mxu0 %v824
      %1358 = vmatpush.msra.mxu0 %v820
      %1359 = vmatpush.msra.mxu0 %v816
      %1360 = vmatpush.msra.mxu0 %v812
      %1361 = vmatpush.msra.mxu0 %v808
      %1362 = vmatpush.msra.mxu0 %v804
      %1363 = vmatpush.msra.mxu0 %v800
      %1364 = vmatpush.msra.mxu0 %v796
      %1365 = vmatpush.msra.mxu0 %v792
      %1366 = vmatpush.msra.mxu0 %v788
      %1367 = vmatpush.msra.mxu0 %v784
      %1368 = vmatpush.msra.mxu0 %v780
      %1369 = vmatpush.msra.mxu0 %v776
      %1370 = vmatpush.msra.mxu0 %v772
      %1371 = vmatpush.msra.mxu0 %v768
      %1372 = vmatpush.msra.mxu0 %v764
      %1373 = vmatmul.f32.gmra.mxu0 %v898
      %v1374 = vpop.f32.mrf.mxu0
      %v1375 = vadd.f32 %v1355, %v1374
      %1376 = vdwg.mxu0
      %1377 = vmatpush.msra.mxu0 %v888
      %1378 = vmatpush.msra.mxu0 %v884
      %1379 = vmatpush.msra.mxu0 %v880
      %1380 = vmatpush.msra.mxu0 %v876
      %1381 = vmatpush.msra.mxu0 %v872
      %1382 = vmatpush.msra.mxu0 %v868
      %1383 = vmatpush.msra.mxu0 %v864
      %1384 = vmatpush.msra.mxu0 %v860
      %1385 = vmatpush.msra.mxu0 %v856
      %1386 = vmatpush.msra.mxu0 %v852
      %1387 = vmatpush.msra.mxu0 %v848
      %1388 = vmatpush.msra.mxu0 %v844
      %1389 = vmatpush.msra.mxu0 %v840
      %1390 = vmatpush.msra.mxu0 %v836
      %1391 = vmatpush.msra.mxu0 %v832
      %1392 = vmatpush.msra.mxu0 %v828
      %1393 = vmatmul.f32.gmra.mxu0 %v899
      %v1394 = vpop.f32.mrf.mxu0
      %v1395 = vadd.f32 %v1375, %v1394
      %1396 = vdwg.mxu0
      %1397 = vmatpush.msra.mxu0 %v441
      %1398 = vmatpush.msra.mxu0 %v437
      %1399 = vmatpush.msra.mxu0 %v433
      %1400 = vmatpush.msra.mxu0 %v429
      %1401 = vmatpush.msra.mxu0 %v425
      %1402 = vmatpush.msra.mxu0 %v421
      %1403 = vmatpush.msra.mxu0 %v417
      %1404 = vmatpush.msra.mxu0 %v413
      %1405 = vmatpush.msra.mxu0 %v409
      %1406 = vmatpush.msra.mxu0 %v405
      %1407 = vmatpush.msra.mxu0 %v401
      %1408 = vmatpush.msra.mxu0 %v397
      %1409 = vmatpush.msra.mxu0 %v393
      %1410 = vmatpush.msra.mxu0 %v389
      %1411 = vmatpush.msra.mxu0 %v385
      %1412 = vmatpush.msra.mxu0 %v381
      %1413 = vmatmul.f32.gmra.mxu0 %v892
      %v1414 = vpop.f32.mrf.mxu0
      %v1415 = vadd.f32 %v912, %v1414
      %1416 = vdwg.mxu0
      %1417 = vmatpush.msra.mxu0 %v505
      %1418 = vmatpush.msra.mxu0 %v501
      %1419 = vmatpush.msra.mxu0 %v497
      %1420 = vmatpush.msra.mxu0 %v493
      %1421 = vmatpush.msra.mxu0 %v489
      %1422 = vmatpush.msra.mxu0 %v485
      %1423 = vmatpush.msra.mxu0 %v481
      %1424 = vmatpush.msra.mxu0 %v477
      %1425 = vmatpush.msra.mxu0 %v473
      %1426 = vmatpush.msra.mxu0 %v469
      %1427 = vmatpush.msra.mxu0 %v465
      %1428 = vmatpush.msra.mxu0 %v461
      %1429 = vmatpush.msra.mxu0 %v457
      %1430 = vmatpush.msra.mxu0 %v453
      %1431 = vmatpush.msra.mxu0 %v449
      %1432 = vmatpush.msra.mxu0 %v445
      %1433 = vmatmul.f32.gmra.mxu0 %v893
      %v1434 = vpop.f32.mrf.mxu0
      %v1435 = vadd.f32 %v1415, %v1434
      %1436 = vdwg.mxu0
      %1437 = vmatpush.msra.mxu0 %v569
      %1438 = vmatpush.msra.mxu0 %v565
      %1439 = vmatpush.msra.mxu0 %v561
      %1440 = vmatpush.msra.mxu0 %v557
      %1441 = vmatpush.msra.mxu0 %v553
      %1442 = vmatpush.msra.mxu0 %v549
      %1443 = vmatpush.msra.mxu0 %v545
      %1444 = vmatpush.msra.mxu0 %v541
      %1445 = vmatpush.msra.mxu0 %v537
      %1446 = vmatpush.msra.mxu0 %v533
      %1447 = vmatpush.msra.mxu0 %v529
      %1448 = vmatpush.msra.mxu0 %v525
      %1449 = vmatpush.msra.mxu0 %v521
      %1450 = vmatpush.msra.mxu0 %v517
      %1451 = vmatpush.msra.mxu0 %v513
      %1452 = vmatpush.msra.mxu0 %v509
      %1453 = vmatmul.f32.gmra.mxu0 %v894
      %v1454 = vpop.f32.mrf.mxu0
      %v1455 = vadd.f32 %v1435, %v1454
      %1456 = vdwg.mxu0
      %1457 = vmatpush.msra.mxu0 %v633
      %1458 = vmatpush.msra.mxu0 %v629
      %1459 = vmatpush.msra.mxu0 %v625
      %1460 = vmatpush.msra.mxu0 %v621
      %1461 = vmatpush.msra.mxu0 %v617
      %1462 = vmatpush.msra.mxu0 %v613
      %1463 = vmatpush.msra.mxu0 %v609
      %1464 = vmatpush.msra.mxu0 %v605
      %1465 = vmatpush.msra.mxu0 %v601
      %1466 = vmatpush.msra.mxu0 %v597
      %1467 = vmatpush.msra.mxu0 %v593
      %1468 = vmatpush.msra.mxu0 %v589
      %1469 = vmatpush.msra.mxu0 %v585
      %1470 = vmatpush.msra.mxu0 %v581
      %1471 = vmatpush.msra.mxu0 %v577
      %1472 = vmatpush.msra.mxu0 %v573
      %1473 = vmatmul.f32.gmra.mxu0 %v895
      %v1474 = vpop.f32.mrf.mxu0
      %v1475 = vadd.f32 %v1455, %v1474
      %1476 = vdwg.mxu0
      %1477 = vmatpush.msra.mxu0 %v697
      %1478 = vmatpush.msra.mxu0 %v693
      %1479 = vmatpush.msra.mxu0 %v689
      %1480 = vmatpush.msra.mxu0 %v685
      %1481 = vmatpush.msra.mxu0 %v681
      %1482 = vmatpush.msra.mxu0 %v677
      %1483 = vmatpush.msra.mxu0 %v673
      %1484 = vmatpush.msra.mxu0 %v669
      %1485 = vmatpush.msra.mxu0 %v665
      %1486 = vmatpush.msra.mxu0 %v661
      %1487 = vmatpush.msra.mxu0 %v657
      %1488 = vmatpush.msra.mxu0 %v653
      %1489 = vmatpush.msra.mxu0 %v649
      %1490 = vmatpush.msra.mxu0 %v645
      %1491 = vmatpush.msra.mxu0 %v641
      %1492 = vmatpush.msra.mxu0 %v637
      %1493 = vmatmul.f32.gmra.mxu0 %v896
      %v1494 = vpop.f32.mrf.mxu0
      %v1495 = vadd.f32 %v1475, %v1494
      %1496 = vdwg.mxu0
      %1497 = vmatpush.msra.mxu0 %v761
      %1498 = vmatpush.msra.mxu0 %v757
      %1499 = vmatpush.msra.mxu0 %v753
      %1500 = vmatpush.msra.mxu0 %v749
      %1501 = vmatpush.msra.mxu0 %v745
      %1502 = vmatpush.msra.mxu0 %v741
      %1503 = vmatpush.msra.mxu0 %v737
      %1504 = vmatpush.msra.mxu0 %v733
      %1505 = vmatpush.msra.mxu0 %v729
      %1506 = vmatpush.msra.mxu0 %v725
      %1507 = vmatpush.msra.mxu0 %v721
      %1508 = vmatpush.msra.mxu0 %v717
      %1509 = vmatpush.msra.mxu0 %v713
      %1510 = vmatpush.msra.mxu0 %v709
      %1511 = vmatpush.msra.mxu0 %v705
      %1512 = vmatpush.msra.mxu0 %v701
      %1513 = vmatmul.f32.gmra.mxu0 %v897
      %v1514 = vpop.f32.mrf.mxu0
      %v1515 = vadd.f32 %v1495, %v1514
      %1516 = vdwg.mxu0
      %1517 = vmatpush.msra.mxu0 %v825
      %1518 = vmatpush.msra.mxu0 %v821
      %1519 = vmatpush.msra.mxu0 %v817
      %1520 = vmatpush.msra.mxu0 %v813
      %1521 = vmatpush.msra.mxu0 %v809
      %1522 = vmatpush.msra.mxu0 %v805
      %1523 = vmatpush.msra.mxu0 %v801
      %1524 = vmatpush.msra.mxu0 %v797
      %1525 = vmatpush.msra.mxu0 %v793
      %1526 = vmatpush.msra.mxu0 %v789
      %1527 = vmatpush.msra.mxu0 %v785
      %1528 = vmatpush.msra.mxu0 %v781
      %1529 = vmatpush.msra.mxu0 %v777
      %1530 = vmatpush.msra.mxu0 %v773
      %1531 = vmatpush.msra.mxu0 %v769
      %1532 = vmatpush.msra.mxu0 %v765
      %1533 = vmatmul.f32.gmra.mxu0 %v898
      %v1534 = vpop.f32.mrf.mxu0
      %v1535 = vadd.f32 %v1515, %v1534
      %1536 = vdwg.mxu0
      %1537 = vmatpush.msra.mxu0 %v889
      %1538 = vmatpush.msra.mxu0 %v885
      %1539 = vmatpush.msra.mxu0 %v881
      %1540 = vmatpush.msra.mxu0 %v877
      %1541 = vmatpush.msra.mxu0 %v873
      %1542 = vmatpush.msra.mxu0 %v869
      %1543 = vmatpush.msra.mxu0 %v865
      %1544 = vmatpush.msra.mxu0 %v861
      %1545 = vmatpush.msra.mxu0 %v857
      %1546 = vmatpush.msra.mxu0 %v853
      %1547 = vmatpush.msra.mxu0 %v849
      %1548 = vmatpush.msra.mxu0 %v845
      %1549 = vmatpush.msra.mxu0 %v841
      %1550 = vmatpush.msra.mxu0 %v837
      %1551 = vmatpush.msra.mxu0 %v833
      %1552 = vmatpush.msra.mxu0 %v829
      %1553 = vmatmul.f32.gmra.mxu0 %v899
      %v1554 = vpop.f32.mrf.mxu0
      %v1555 = vadd.f32 %v1535, %v1554
      %1556 = vdwg.mxu0
      %v1557 = vld [vmem:[#allocation10] sm:$0xf]
      %v1558 = vld [vmem:[#allocation12] sm:$0xf]
      %v1559 = vsel %vm323, %v1075, 0.0
      %v1560 = vsel %vm323, %v1235, 0.0
      %v1561 = vadd.f32 %v1559, %v1560
      %v1562 = vsel %vm323, %v1395, 0.0
      %v1563 = vadd.f32 %v1561, %v1562
      %v1564 = vsel %vm323, %v1555, 0.0
      %v1565 = vadd.f32 %v1563, %v1564
      %1566 = vadd.xlane.f32.xlu0 %v1565
      %v1567 = vpop.xlane.xlu0 %1566
      %v1568 = vrcp.pop 512.0
      %v1569 = vmul.f32 512.0, %v1568
      %v1570 = vsub.f32 1.0, %v1569
      %v1571 = vmul.f32 %v1568, %v1570
      %v1572 = vadd.f32 %v1568, %v1571
      %vm1573 = vweird.f32 %v1568
      %v1574 = vsel %vm1573, %v1568, %v1572
      %v1575 = vmul.f32 %v1567, %v1574
      %v1576 = vsub.f32 %v1075, %v1575
      %v1577 = vsub.f32 %v1235, %v1575
      %v1578 = vsub.f32 %v1395, %v1575
      %v1579 = vsub.f32 %v1555, %v1575
      %v1580 = vmul.f32 %v1576, %v1576
      %v1581 = vmul.f32 %v1577, %v1577
      %v1582 = vmul.f32 %v1578, %v1578
      %v1583 = vmul.f32 %v1579, %v1579
      %v1584 = vsel %vm323, %v1580, 0.0
      %v1585 = vsel %vm323, %v1581, 0.0
      %v1586 = vadd.f32 %v1584, %v1585
      %v1587 = vsel %vm323, %v1582, 0.0
      %v1588 = vadd.f32 %v1586, %v1587
      %v1589 = vsel %vm323, %v1583, 0.0
      %v1590 = vadd.f32 %v1588, %v1589
      %1591 = vadd.xlane.f32.xlu0 %v1590
      %v1592 = vpop.xlane.xlu0 %1591
      %v1593 = vmul.f32 %v1592, %v1574
      %v1594 = vadd.f32 %v1593, 1e-05
      %v1595 = vrsqrt.pop %v1594
      %v1596 = vmul.f32 %v1595, %v1594
      %v1597 = vmul.f32 %v1596, %v1595
      %v1598 = vmul.f32 0.5, %v1597
      %v1599 = vsub.f32 1.5, %v1598
      %v1600 = vmul.f32 %v1595, %v1599
      %vm1601 = vweird.f32 %v1594
      %vm1602 = vweird.f32 %v1595
      %vm1603 = vmor %vm1601, %vm1602
      %v1604 = vsel %vm1603, %v1595, %v1600
      %v1605 = vmul.f32 %v1576, %v1604
      %v1606 = vmul.f32 %v1577, %v1604
      %v1607 = vmul.f32 %v1578, %v1604
      %v1608 = vmul.f32 %v1579, %v1604
      %v1610 = vperm.slane %v1557, 0
      %v1611 = vperm.slane %v1557, 1
      %v1612 = vperm.slane %v1557, 2
      %v1613 = vperm.slane %v1557, 3
      %v1618 = vmul.f32 %v1605, %v1610
      %v1619 = vmul.f32 %v1606, %v1611
      %v1620 = vmul.f32 %v1607, %v1612
      %v1621 = vmul.f32 %v1608, %v1613
      %v1623 = vperm.slane %v1558, 0
      %v1624 = vperm.slane %v1558, 1
      %v1625 = vperm.slane %v1558, 2
      %v1626 = vperm.slane %v1558, 3
      %v1631 = vadd.f32 %v1618, %v1623
      %v1632 = vadd.f32 %v1619, %v1624
      %v1633 = vadd.f32 %v1620, %v1625
      %v1634 = vadd.f32 %v1621, %v1626
      %v1635 = vmax.f32 %v1631, 0.0
      %v1636 = vmax.f32 %v1632, 0.0
      %v1637 = vmax.f32 %v1633, 0.0
      %v1638 = vmax.f32 %v1634, 0.0
      %v1639 = vld [vmem:[#allocation13] sm:$0xff]
      %v1640 = vld [vmem:[#allocation13 + $0x8] sm:$0xff]
      %v1641 = vld [vmem:[#allocation13 + $0x10] sm:$0xff]
      %v1642 = vld [vmem:[#allocation13 + $0x18] sm:$0xff]
      %v1643 = vld [vmem:[#allocation13 + $0x20] sm:$0xff]
      %v1644 = vld [vmem:[#allocation13 + $0x28] sm:$0xff]
      %v1645 = vld [vmem:[#allocation13 + $0x30] sm:$0xff]
      %v1646 = vld [vmem:[#allocation13 + $0x38] sm:$0xff]
      %v1647 = vld [vmem:[#allocation13 + $0x40] sm:$0xff]
      %v1648 = vld [vmem:[#allocation13 + $0x48] sm:$0xff]
      %v1649 = vld [vmem:[#allocation13 + $0x50] sm:$0xff]
      %v1650 = vld [vmem:[#allocation13 + $0x58] sm:$0xff]
      %v1651 = vld [vmem:[#allocation13 + $0x60] sm:$0xff]
      %v1652 = vld [vmem:[#allocation13 + $0x68] sm:$0xff]
      %v1653 = vld [vmem:[#allocation13 + $0x70] sm:$0xff]
      %v1654 = vld [vmem:[#allocation13 + $0x78] sm:$0xff]
      %v1655 = vld [vmem:[#allocation13 + $0x80] sm:$0xff]
      %v1656 = vld [vmem:[#allocation13 + $0x88] sm:$0xff]
      %v1657 = vld [vmem:[#allocation13 + $0x90] sm:$0xff]
      %v1658 = vld [vmem:[#allocation13 + $0x98] sm:$0xff]
      %v1659 = vld [vmem:[#allocation13 + $0xa0] sm:$0xff]
      %v1660 = vld [vmem:[#allocation13 + $0xa8] sm:$0xff]
      %v1661 = vld [vmem:[#allocation13 + $0xb0] sm:$0xff]
      %v1662 = vld [vmem:[#allocation13 + $0xb8] sm:$0xff]
      %v1663 = vld [vmem:[#allocation13 + $0xc0] sm:$0xff]
      %v1664 = vld [vmem:[#allocation13 + $0xc8] sm:$0xff]
      %v1665 = vld [vmem:[#allocation13 + $0xd0] sm:$0xff]
      %v1666 = vld [vmem:[#allocation13 + $0xd8] sm:$0xff]
      %v1667 = vld [vmem:[#allocation13 + $0xe0] sm:$0xff]
      %v1668 = vld [vmem:[#allocation13 + $0xe8] sm:$0xff]
      %v1669 = vld [vmem:[#allocation13 + $0xf0] sm:$0xff]
      %v1670 = vld [vmem:[#allocation13 + $0xf8] sm:$0xff]
      %v1671 = vld [vmem:[#allocation13 + $0x100] sm:$0xff]
      %v1672 = vld [vmem:[#allocation13 + $0x108] sm:$0xff]
      %v1673 = vld [vmem:[#allocation13 + $0x110] sm:$0xff]
      %v1674 = vld [vmem:[#allocation13 + $0x118] sm:$0xff]
      %v1675 = vld [vmem:[#allocation13 + $0x120] sm:$0xff]
      %v1676 = vld [vmem:[#allocation13 + $0x128] sm:$0xff]
      %v1677 = vld [vmem:[#allocation13 + $0x130] sm:$0xff]
      %v1678 = vld [vmem:[#allocation13 + $0x138] sm:$0xff]
      %v1679 = vld [vmem:[#allocation13 + $0x140] sm:$0xff]
      %v1680 = vld [vmem:[#allocation13 + $0x148] sm:$0xff]
      %v1681 = vld [vmem:[#allocation13 + $0x150] sm:$0xff]
      %v1682 = vld [vmem:[#allocation13 + $0x158] sm:$0xff]
      %v1683 = vld [vmem:[#allocation13 + $0x160] sm:$0xff]
      %v1684 = vld [vmem:[#allocation13 + $0x168] sm:$0xff]
      %v1685 = vld [vmem:[#allocation13 + $0x170] sm:$0xff]
      %v1686 = vld [vmem:[#allocation13 + $0x178] sm:$0xff]
      %v1687 = vld [vmem:[#allocation13 + $0x180] sm:$0xff]
      %v1688 = vld [vmem:[#allocation13 + $0x188] sm:$0xff]
      %v1689 = vld [vmem:[#allocation13 + $0x190] sm:$0xff]
      %v1690 = vld [vmem:[#allocation13 + $0x198] sm:$0xff]
      %v1691 = vld [vmem:[#allocation13 + $0x1a0] sm:$0xff]
      %v1692 = vld [vmem:[#allocation13 + $0x1a8] sm:$0xff]
      %v1693 = vld [vmem:[#allocation13 + $0x1b0] sm:$0xff]
      %v1694 = vld [vmem:[#allocation13 + $0x1b8] sm:$0xff]
      %v1695 = vld [vmem:[#allocation13 + $0x1c0] sm:$0xff]
      %v1696 = vld [vmem:[#allocation13 + $0x1c8] sm:$0xff]
      %v1697 = vld [vmem:[#allocation13 + $0x1d0] sm:$0xff]
      %v1698 = vld [vmem:[#allocation13 + $0x1d8] sm:$0xff]
      %v1699 = vld [vmem:[#allocation13 + $0x1e0] sm:$0xff]
      %v1700 = vld [vmem:[#allocation13 + $0x1e8] sm:$0xff]
      %v1701 = vld [vmem:[#allocation13 + $0x1f0] sm:$0xff]
      %v1702 = vld [vmem:[#allocation13 + $0x1f8] sm:$0xff]
      %v1703 = vld [vmem:[#allocation13 + $0x200] sm:$0xff]
      %v1704 = vld [vmem:[#allocation13 + $0x208] sm:$0xff]
      %v1705 = vld [vmem:[#allocation13 + $0x210] sm:$0xff]
      %v1706 = vld [vmem:[#allocation13 + $0x218] sm:$0xff]
      %v1707 = vld [vmem:[#allocation13 + $0x220] sm:$0xff]
      %v1708 = vld [vmem:[#allocation13 + $0x228] sm:$0xff]
      %v1709 = vld [vmem:[#allocation13 + $0x230] sm:$0xff]
      %v1710 = vld [vmem:[#allocation13 + $0x238] sm:$0xff]
      %v1711 = vld [vmem:[#allocation13 + $0x240] sm:$0xff]
      %v1712 = vld [vmem:[#allocation13 + $0x248] sm:$0xff]
      %v1713 = vld [vmem:[#allocation13 + $0x250] sm:$0xff]
      %v1714 = vld [vmem:[#allocation13 + $0x258] sm:$0xff]
      %v1715 = vld [vmem:[#allocation13 + $0x260] sm:$0xff]
      %v1716 = vld [vmem:[#allocation13 + $0x268] sm:$0xff]
      %v1717 = vld [vmem:[#allocation13 + $0x270] sm:$0xff]
      %v1718 = vld [vmem:[#allocation13 + $0x278] sm:$0xff]
      %v1719 = vld [vmem:[#allocation13 + $0x280] sm:$0xff]
      %v1720 = vld [vmem:[#allocation13 + $0x288] sm:$0xff]
      %v1721 = vld [vmem:[#allocation13 + $0x290] sm:$0xff]
      %v1722 = vld [vmem:[#allocation13 + $0x298] sm:$0xff]
      %v1723 = vld [vmem:[#allocation13 + $0x2a0] sm:$0xff]
      %v1724 = vld [vmem:[#allocation13 + $0x2a8] sm:$0xff]
      %v1725 = vld [vmem:[#allocation13 + $0x2b0] sm:$0xff]
      %v1726 = vld [vmem:[#allocation13 + $0x2b8] sm:$0xff]
      %v1727 = vld [vmem:[#allocation13 + $0x2c0] sm:$0xff]
      %v1728 = vld [vmem:[#allocation13 + $0x2c8] sm:$0xff]
      %v1729 = vld [vmem:[#allocation13 + $0x2d0] sm:$0xff]
      %v1730 = vld [vmem:[#allocation13 + $0x2d8] sm:$0xff]
      %v1731 = vld [vmem:[#allocation13 + $0x2e0] sm:$0xff]
      %v1732 = vld [vmem:[#allocation13 + $0x2e8] sm:$0xff]
      %v1733 = vld [vmem:[#allocation13 + $0x2f0] sm:$0xff]
      %v1734 = vld [vmem:[#allocation13 + $0x2f8] sm:$0xff]
      %v1735 = vld [vmem:[#allocation13 + $0x300] sm:$0xff]
      %v1736 = vld [vmem:[#allocation13 + $0x308] sm:$0xff]
      %v1737 = vld [vmem:[#allocation13 + $0x310] sm:$0xff]
      %v1738 = vld [vmem:[#allocation13 + $0x318] sm:$0xff]
      %v1739 = vld [vmem:[#allocation13 + $0x320] sm:$0xff]
      %v1740 = vld [vmem:[#allocation13 + $0x328] sm:$0xff]
      %v1741 = vld [vmem:[#allocation13 + $0x330] sm:$0xff]
      %v1742 = vld [vmem:[#allocation13 + $0x338] sm:$0xff]
      %v1743 = vld [vmem:[#allocation13 + $0x340] sm:$0xff]
      %v1744 = vld [vmem:[#allocation13 + $0x348] sm:$0xff]
      %v1745 = vld [vmem:[#allocation13 + $0x350] sm:$0xff]
      %v1746 = vld [vmem:[#allocation13 + $0x358] sm:$0xff]
      %v1747 = vld [vmem:[#allocation13 + $0x360] sm:$0xff]
      %v1748 = vld [vmem:[#allocation13 + $0x368] sm:$0xff]
      %v1749 = vld [vmem:[#allocation13 + $0x370] sm:$0xff]
      %v1750 = vld [vmem:[#allocation13 + $0x378] sm:$0xff]
      %v1751 = vld [vmem:[#allocation13 + $0x380] sm:$0xff]
      %v1752 = vld [vmem:[#allocation13 + $0x388] sm:$0xff]
      %v1753 = vld [vmem:[#allocation13 + $0x390] sm:$0xff]
      %v1754 = vld [vmem:[#allocation13 + $0x398] sm:$0xff]
      %v1755 = vld [vmem:[#allocation13 + $0x3a0] sm:$0xff]
      %v1756 = vld [vmem:[#allocation13 + $0x3a8] sm:$0xff]
      %v1757 = vld [vmem:[#allocation13 + $0x3b0] sm:$0xff]
      %v1758 = vld [vmem:[#allocation13 + $0x3b8] sm:$0xff]
      %v1759 = vld [vmem:[#allocation13 + $0x3c0] sm:$0xff]
      %v1760 = vld [vmem:[#allocation13 + $0x3c8] sm:$0xff]
      %v1761 = vld [vmem:[#allocation13 + $0x3d0] sm:$0xff]
      %v1762 = vld [vmem:[#allocation13 + $0x3d8] sm:$0xff]
      %v1763 = vld [vmem:[#allocation13 + $0x3e0] sm:$0xff]
      %v1764 = vld [vmem:[#allocation13 + $0x3e8] sm:$0xff]
      %v1765 = vld [vmem:[#allocation13 + $0x3f0] sm:$0xff]
      %v1766 = vld [vmem:[#allocation13 + $0x3f8] sm:$0xff]
      %v1767 = vld [vmem:[#allocation13 + $0x400] sm:$0xff]
      %v1768 = vld [vmem:[#allocation13 + $0x408] sm:$0xff]
      %v1769 = vld [vmem:[#allocation13 + $0x410] sm:$0xff]
      %v1770 = vld [vmem:[#allocation13 + $0x418] sm:$0xff]
      %v1771 = vld [vmem:[#allocation13 + $0x420] sm:$0xff]
      %v1772 = vld [vmem:[#allocation13 + $0x428] sm:$0xff]
      %v1773 = vld [vmem:[#allocation13 + $0x430] sm:$0xff]
      %v1774 = vld [vmem:[#allocation13 + $0x438] sm:$0xff]
      %v1775 = vld [vmem:[#allocation13 + $0x440] sm:$0xff]
      %v1776 = vld [vmem:[#allocation13 + $0x448] sm:$0xff]
      %v1777 = vld [vmem:[#allocation13 + $0x450] sm:$0xff]
      %v1778 = vld [vmem:[#allocation13 + $0x458] sm:$0xff]
      %v1779 = vld [vmem:[#allocation13 + $0x460] sm:$0xff]
      %v1780 = vld [vmem:[#allocation13 + $0x468] sm:$0xff]
      %v1781 = vld [vmem:[#allocation13 + $0x470] sm:$0xff]
      %v1782 = vld [vmem:[#allocation13 + $0x478] sm:$0xff]
      %v1783 = vld [vmem:[#allocation13 + $0x480] sm:$0xff]
      %v1784 = vld [vmem:[#allocation13 + $0x488] sm:$0xff]
      %v1785 = vld [vmem:[#allocation13 + $0x490] sm:$0xff]
      %v1786 = vld [vmem:[#allocation13 + $0x498] sm:$0xff]
      %v1787 = vld [vmem:[#allocation13 + $0x4a0] sm:$0xff]
      %v1788 = vld [vmem:[#allocation13 + $0x4a8] sm:$0xff]
      %v1789 = vld [vmem:[#allocation13 + $0x4b0] sm:$0xff]
      %v1790 = vld [vmem:[#allocation13 + $0x4b8] sm:$0xff]
      %v1791 = vld [vmem:[#allocation13 + $0x4c0] sm:$0xff]
      %v1792 = vld [vmem:[#allocation13 + $0x4c8] sm:$0xff]
      %v1793 = vld [vmem:[#allocation13 + $0x4d0] sm:$0xff]
      %v1794 = vld [vmem:[#allocation13 + $0x4d8] sm:$0xff]
      %v1795 = vld [vmem:[#allocation13 + $0x4e0] sm:$0xff]
      %v1796 = vld [vmem:[#allocation13 + $0x4e8] sm:$0xff]
      %v1797 = vld [vmem:[#allocation13 + $0x4f0] sm:$0xff]
      %v1798 = vld [vmem:[#allocation13 + $0x4f8] sm:$0xff]
      %v1799 = vld [vmem:[#allocation13 + $0x500] sm:$0xff]
      %v1800 = vld [vmem:[#allocation13 + $0x508] sm:$0xff]
      %v1801 = vld [vmem:[#allocation13 + $0x510] sm:$0xff]
      %v1802 = vld [vmem:[#allocation13 + $0x518] sm:$0xff]
      %v1803 = vld [vmem:[#allocation13 + $0x520] sm:$0xff]
      %v1804 = vld [vmem:[#allocation13 + $0x528] sm:$0xff]
      %v1805 = vld [vmem:[#allocation13 + $0x530] sm:$0xff]
      %v1806 = vld [vmem:[#allocation13 + $0x538] sm:$0xff]
      %v1807 = vld [vmem:[#allocation13 + $0x540] sm:$0xff]
      %v1808 = vld [vmem:[#allocation13 + $0x548] sm:$0xff]
      %v1809 = vld [vmem:[#allocation13 + $0x550] sm:$0xff]
      %v1810 = vld [vmem:[#allocation13 + $0x558] sm:$0xff]
      %v1811 = vld [vmem:[#allocation13 + $0x560] sm:$0xff]
      %v1812 = vld [vmem:[#allocation13 + $0x568] sm:$0xff]
      %v1813 = vld [vmem:[#allocation13 + $0x570] sm:$0xff]
      %v1814 = vld [vmem:[#allocation13 + $0x578] sm:$0xff]
      %v1815 = vld [vmem:[#allocation13 + $0x580] sm:$0xff]
      %v1816 = vld [vmem:[#allocation13 + $0x588] sm:$0xff]
      %v1817 = vld [vmem:[#allocation13 + $0x590] sm:$0xff]
      %v1818 = vld [vmem:[#allocation13 + $0x598] sm:$0xff]
      %v1819 = vld [vmem:[#allocation13 + $0x5a0] sm:$0xff]
      %v1820 = vld [vmem:[#allocation13 + $0x5a8] sm:$0xff]
      %v1821 = vld [vmem:[#allocation13 + $0x5b0] sm:$0xff]
      %v1822 = vld [vmem:[#allocation13 + $0x5b8] sm:$0xff]
      %v1823 = vld [vmem:[#allocation13 + $0x5c0] sm:$0xff]
      %v1824 = vld [vmem:[#allocation13 + $0x5c8] sm:$0xff]
      %v1825 = vld [vmem:[#allocation13 + $0x5d0] sm:$0xff]
      %v1826 = vld [vmem:[#allocation13 + $0x5d8] sm:$0xff]
      %v1827 = vld [vmem:[#allocation13 + $0x5e0] sm:$0xff]
      %v1828 = vld [vmem:[#allocation13 + $0x5e8] sm:$0xff]
      %v1829 = vld [vmem:[#allocation13 + $0x5f0] sm:$0xff]
      %v1830 = vld [vmem:[#allocation13 + $0x5f8] sm:$0xff]
      %v1831 = vld [vmem:[#allocation13 + $0x600] sm:$0xff]
      %v1832 = vld [vmem:[#allocation13 + $0x608] sm:$0xff]
      %v1833 = vld [vmem:[#allocation13 + $0x610] sm:$0xff]
      %v1834 = vld [vmem:[#allocation13 + $0x618] sm:$0xff]
      %v1835 = vld [vmem:[#allocation13 + $0x620] sm:$0xff]
      %v1836 = vld [vmem:[#allocation13 + $0x628] sm:$0xff]
      %v1837 = vld [vmem:[#allocation13 + $0x630] sm:$0xff]
      %v1838 = vld [vmem:[#allocation13 + $0x638] sm:$0xff]
      %v1839 = vld [vmem:[#allocation13 + $0x640] sm:$0xff]
      %v1840 = vld [vmem:[#allocation13 + $0x648] sm:$0xff]
      %v1841 = vld [vmem:[#allocation13 + $0x650] sm:$0xff]
      %v1842 = vld [vmem:[#allocation13 + $0x658] sm:$0xff]
      %v1843 = vld [vmem:[#allocation13 + $0x660] sm:$0xff]
      %v1844 = vld [vmem:[#allocation13 + $0x668] sm:$0xff]
      %v1845 = vld [vmem:[#allocation13 + $0x670] sm:$0xff]
      %v1846 = vld [vmem:[#allocation13 + $0x678] sm:$0xff]
      %v1847 = vld [vmem:[#allocation13 + $0x680] sm:$0xff]
      %v1848 = vld [vmem:[#allocation13 + $0x688] sm:$0xff]
      %v1849 = vld [vmem:[#allocation13 + $0x690] sm:$0xff]
      %v1850 = vld [vmem:[#allocation13 + $0x698] sm:$0xff]
      %v1851 = vld [vmem:[#allocation13 + $0x6a0] sm:$0xff]
      %v1852 = vld [vmem:[#allocation13 + $0x6a8] sm:$0xff]
      %v1853 = vld [vmem:[#allocation13 + $0x6b0] sm:$0xff]
      %v1854 = vld [vmem:[#allocation13 + $0x6b8] sm:$0xff]
      %v1855 = vld [vmem:[#allocation13 + $0x6c0] sm:$0xff]
      %v1856 = vld [vmem:[#allocation13 + $0x6c8] sm:$0xff]
      %v1857 = vld [vmem:[#allocation13 + $0x6d0] sm:$0xff]
      %v1858 = vld [vmem:[#allocation13 + $0x6d8] sm:$0xff]
      %v1859 = vld [vmem:[#allocation13 + $0x6e0] sm:$0xff]
      %v1860 = vld [vmem:[#allocation13 + $0x6e8] sm:$0xff]
      %v1861 = vld [vmem:[#allocation13 + $0x6f0] sm:$0xff]
      %v1862 = vld [vmem:[#allocation13 + $0x6f8] sm:$0xff]
      %v1863 = vld [vmem:[#allocation13 + $0x700] sm:$0xff]
      %v1864 = vld [vmem:[#allocation13 + $0x708] sm:$0xff]
      %v1865 = vld [vmem:[#allocation13 + $0x710] sm:$0xff]
      %v1866 = vld [vmem:[#allocation13 + $0x718] sm:$0xff]
      %v1867 = vld [vmem:[#allocation13 + $0x720] sm:$0xff]
      %v1868 = vld [vmem:[#allocation13 + $0x728] sm:$0xff]
      %v1869 = vld [vmem:[#allocation13 + $0x730] sm:$0xff]
      %v1870 = vld [vmem:[#allocation13 + $0x738] sm:$0xff]
      %v1871 = vld [vmem:[#allocation13 + $0x740] sm:$0xff]
      %v1872 = vld [vmem:[#allocation13 + $0x748] sm:$0xff]
      %v1873 = vld [vmem:[#allocation13 + $0x750] sm:$0xff]
      %v1874 = vld [vmem:[#allocation13 + $0x758] sm:$0xff]
      %v1875 = vld [vmem:[#allocation13 + $0x760] sm:$0xff]
      %v1876 = vld [vmem:[#allocation13 + $0x768] sm:$0xff]
      %v1877 = vld [vmem:[#allocation13 + $0x770] sm:$0xff]
      %v1878 = vld [vmem:[#allocation13 + $0x778] sm:$0xff]
      %v1879 = vld [vmem:[#allocation13 + $0x780] sm:$0xff]
      %v1880 = vld [vmem:[#allocation13 + $0x788] sm:$0xff]
      %v1881 = vld [vmem:[#allocation13 + $0x790] sm:$0xff]
      %v1882 = vld [vmem:[#allocation13 + $0x798] sm:$0xff]
      %v1883 = vld [vmem:[#allocation13 + $0x7a0] sm:$0xff]
      %v1884 = vld [vmem:[#allocation13 + $0x7a8] sm:$0xff]
      %v1885 = vld [vmem:[#allocation13 + $0x7b0] sm:$0xff]
      %v1886 = vld [vmem:[#allocation13 + $0x7b8] sm:$0xff]
      %v1887 = vld [vmem:[#allocation13 + $0x7c0] sm:$0xff]
      %v1888 = vld [vmem:[#allocation13 + $0x7c8] sm:$0xff]
      %v1889 = vld [vmem:[#allocation13 + $0x7d0] sm:$0xff]
      %v1890 = vld [vmem:[#allocation13 + $0x7d8] sm:$0xff]
      %v1891 = vld [vmem:[#allocation13 + $0x7e0] sm:$0xff]
      %v1892 = vld [vmem:[#allocation13 + $0x7e8] sm:$0xff]
      %v1893 = vld [vmem:[#allocation13 + $0x7f0] sm:$0xff]
      %v1894 = vld [vmem:[#allocation13 + $0x7f8] sm:$0xff]
      %v1895 = vld [vmem:[#allocation15] sm:$0xf]
      %v1897 = vperm.slane %v1895, 0
      %v1898 = vperm.slane %v1895, 1
      %v1899 = vperm.slane %v1895, 2
      %v1900 = vperm.slane %v1895, 3
      %1905 = vmatpush.msra.mxu0 %v1699
      %1906 = vmatpush.msra.mxu0 %v1695
      %1907 = vmatpush.msra.mxu0 %v1691
      %1908 = vmatpush.msra.mxu0 %v1687
      %1909 = vmatpush.msra.mxu0 %v1683
      %1910 = vmatpush.msra.mxu0 %v1679
      %1911 = vmatpush.msra.mxu0 %v1675
      %1912 = vmatpush.msra.mxu0 %v1671
      %1913 = vmatpush.msra.mxu0 %v1667
      %1914 = vmatpush.msra.mxu0 %v1663
      %1915 = vmatpush.msra.mxu0 %v1659
      %1916 = vmatpush.msra.mxu0 %v1655
      %1917 = vmatpush.msra.mxu0 %v1651
      %1918 = vmatpush.msra.mxu0 %v1647
      %1919 = vmatpush.msra.mxu0 %v1643
      %1920 = vmatpush.msra.mxu0 %v1639
      %1921 = vmatmul.f32.gmra.mxu0 %v1635
      %v1922 = vpop.f32.mrf.mxu0
      %v1923 = vadd.f32 %v1897, %v1922
      %1924 = vdwg.mxu0
      %1925 = vmatpush.msra.mxu0 %v1763
      %1926 = vmatpush.msra.mxu0 %v1759
      %1927 = vmatpush.msra.mxu0 %v1755
      %1928 = vmatpush.msra.mxu0 %v1751
      %1929 = vmatpush.msra.mxu0 %v1747
      %1930 = vmatpush.msra.mxu0 %v1743
      %1931 = vmatpush.msra.mxu0 %v1739
      %1932 = vmatpush.msra.mxu0 %v1735
      %1933 = vmatpush.msra.mxu0 %v1731
      %1934 = vmatpush.msra.mxu0 %v1727
      %1935 = vmatpush.msra.mxu0 %v1723
      %1936 = vmatpush.msra.mxu0 %v1719
      %1937 = vmatpush.msra.mxu0 %v1715
      %1938 = vmatpush.msra.mxu0 %v1711
      %1939 = vmatpush.msra.mxu0 %v1707
      %1940 = vmatpush.msra.mxu0 %v1703
      %1941 = vmatmul.f32.gmra.mxu0 %v1636
      %v1942 = vpop.f32.mrf.mxu0
      %v1943 = vadd.f32 %v1923, %v1942
      %1944 = vdwg.mxu0
      %1945 = vmatpush.msra.mxu0 %v1827
      %1946 = vmatpush.msra.mxu0 %v1823
      %1947 = vmatpush.msra.mxu0 %v1819
      %1948 = vmatpush.msra.mxu0 %v1815
      %1949 = vmatpush.msra.mxu0 %v1811
      %1950 = vmatpush.msra.mxu0 %v1807
      %1951 = vmatpush.msra.mxu0 %v1803
      %1952 = vmatpush.msra.mxu0 %v1799
      %1953 = vmatpush.msra.mxu0 %v1795
      %1954 = vmatpush.msra.mxu0 %v1791
      %1955 = vmatpush.msra.mxu0 %v1787
      %1956 = vmatpush.msra.mxu0 %v1783
      %1957 = vmatpush.msra.mxu0 %v1779
      %1958 = vmatpush.msra.mxu0 %v1775
      %1959 = vmatpush.msra.mxu0 %v1771
      %1960 = vmatpush.msra.mxu0 %v1767
      %1961 = vmatmul.f32.gmra.mxu0 %v1637
      %v1962 = vpop.f32.mrf.mxu0
      %v1963 = vadd.f32 %v1943, %v1962
      %1964 = vdwg.mxu0
      %1965 = vmatpush.msra.mxu0 %v1891
      %1966 = vmatpush.msra.mxu0 %v1887
      %1967 = vmatpush.msra.mxu0 %v1883
      %1968 = vmatpush.msra.mxu0 %v1879
      %1969 = vmatpush.msra.mxu0 %v1875
      %1970 = vmatpush.msra.mxu0 %v1871
      %1971 = vmatpush.msra.mxu0 %v1867
      %1972 = vmatpush.msra.mxu0 %v1863
      %1973 = vmatpush.msra.mxu0 %v1859
      %1974 = vmatpush.msra.mxu0 %v1855
      %1975 = vmatpush.msra.mxu0 %v1851
      %1976 = vmatpush.msra.mxu0 %v1847
      %1977 = vmatpush.msra.mxu0 %v1843
      %1978 = vmatpush.msra.mxu0 %v1839
      %1979 = vmatpush.msra.mxu0 %v1835
      %1980 = vmatpush.msra.mxu0 %v1831
      %1981 = vmatmul.f32.gmra.mxu0 %v1638
      %v1982 = vpop.f32.mrf.mxu0
      %v1983 = vadd.f32 %v1963, %v1982
      %1984 = vdwg.mxu0
      %1985 = vmatpush.msra.mxu0 %v1700
      %1986 = vmatpush.msra.mxu0 %v1696
      %1987 = vmatpush.msra.mxu0 %v1692
      %1988 = vmatpush.msra.mxu0 %v1688
      %1989 = vmatpush.msra.mxu0 %v1684
      %1990 = vmatpush.msra.mxu0 %v1680
      %1991 = vmatpush.msra.mxu0 %v1676
      %1992 = vmatpush.msra.mxu0 %v1672
      %1993 = vmatpush.msra.mxu0 %v1668
      %1994 = vmatpush.msra.mxu0 %v1664
      %1995 = vmatpush.msra.mxu0 %v1660
      %1996 = vmatpush.msra.mxu0 %v1656
      %1997 = vmatpush.msra.mxu0 %v1652
      %1998 = vmatpush.msra.mxu0 %v1648
      %1999 = vmatpush.msra.mxu0 %v1644
      %2000 = vmatpush.msra.mxu0 %v1640
      %2001 = vmatmul.f32.gmra.mxu0 %v1635
      %v2002 = vpop.f32.mrf.mxu0
      %v2003 = vadd.f32 %v1898, %v2002
      %2004 = vdwg.mxu0
      %2005 = vmatpush.msra.mxu0 %v1764
      %2006 = vmatpush.msra.mxu0 %v1760
      %2007 = vmatpush.msra.mxu0 %v1756
      %2008 = vmatpush.msra.mxu0 %v1752
      %2009 = vmatpush.msra.mxu0 %v1748
      %2010 = vmatpush.msra.mxu0 %v1744
      %2011 = vmatpush.msra.mxu0 %v1740
      %2012 = vmatpush.msra.mxu0 %v1736
      %2013 = vmatpush.msra.mxu0 %v1732
      %2014 = vmatpush.msra.mxu0 %v1728
      %2015 = vmatpush.msra.mxu0 %v1724
      %2016 = vmatpush.msra.mxu0 %v1720
      %2017 = vmatpush.msra.mxu0 %v1716
      %2018 = vmatpush.msra.mxu0 %v1712
      %2019 = vmatpush.msra.mxu0 %v1708
      %2020 = vmatpush.msra.mxu0 %v1704
      %2021 = vmatmul.f32.gmra.mxu0 %v1636
      %v2022 = vpop.f32.mrf.mxu0
      %v2023 = vadd.f32 %v2003, %v2022
      %2024 = vdwg.mxu0
      %2025 = vmatpush.msra.mxu0 %v1828
      %2026 = vmatpush.msra.mxu0 %v1824
      %2027 = vmatpush.msra.mxu0 %v1820
      %2028 = vmatpush.msra.mxu0 %v1816
      %2029 = vmatpush.msra.mxu0 %v1812
      %2030 = vmatpush.msra.mxu0 %v1808
      %2031 = vmatpush.msra.mxu0 %v1804
      %2032 = vmatpush.msra.mxu0 %v1800
      %2033 = vmatpush.msra.mxu0 %v1796
      %2034 = vmatpush.msra.mxu0 %v1792
      %2035 = vmatpush.msra.mxu0 %v1788
      %2036 = vmatpush.msra.mxu0 %v1784
      %2037 = vmatpush.msra.mxu0 %v1780
      %2038 = vmatpush.msra.mxu0 %v1776
      %2039 = vmatpush.msra.mxu0 %v1772
      %2040 = vmatpush.msra.mxu0 %v1768
      %2041 = vmatmul.f32.gmra.mxu0 %v1637
      %v2042 = vpop.f32.mrf.mxu0
      %v2043 = vadd.f32 %v2023, %v2042
      %2044 = vdwg.mxu0
      %2045 = vmatpush.msra.mxu0 %v1892
      %2046 = vmatpush.msra.mxu0 %v1888
      %2047 = vmatpush.msra.mxu0 %v1884
      %2048 = vmatpush.msra.mxu0 %v1880
      %2049 = vmatpush.msra.mxu0 %v1876
      %2050 = vmatpush.msra.mxu0 %v1872
      %2051 = vmatpush.msra.mxu0 %v1868
      %2052 = vmatpush.msra.mxu0 %v1864
      %2053 = vmatpush.msra.mxu0 %v1860
      %2054 = vmatpush.msra.mxu0 %v1856
      %2055 = vmatpush.msra.mxu0 %v1852
      %2056 = vmatpush.msra.mxu0 %v1848
      %2057 = vmatpush.msra.mxu0 %v1844
      %2058 = vmatpush.msra.mxu0 %v1840
      %2059 = vmatpush.msra.mxu0 %v1836
      %2060 = vmatpush.msra.mxu0 %v1832
      %2061 = vmatmul.f32.gmra.mxu0 %v1638
      %v2062 = vpop.f32.mrf.mxu0
      %v2063 = vadd.f32 %v2043, %v2062
      %2064 = vdwg.mxu0
      %2065 = vmatpush.msra.mxu0 %v1701
      %2066 = vmatpush.msra.mxu0 %v1697
      %2067 = vmatpush.msra.mxu0 %v1693
      %2068 = vmatpush.msra.mxu0 %v1689
      %2069 = vmatpush.msra.mxu0 %v1685
      %2070 = vmatpush.msra.mxu0 %v1681
      %2071 = vmatpush.msra.mxu0 %v1677
      %2072 = vmatpush.msra.mxu0 %v1673
      %2073 = vmatpush.msra.mxu0 %v1669
      %2074 = vmatpush.msra.mxu0 %v1665
      %2075 = vmatpush.msra.mxu0 %v1661
      %2076 = vmatpush.msra.mxu0 %v1657
      %2077 = vmatpush.msra.mxu0 %v1653
      %2078 = vmatpush.msra.mxu0 %v1649
      %2079 = vmatpush.msra.mxu0 %v1645
      %2080 = vmatpush.msra.mxu0 %v1641
      %2081 = vmatmul.f32.gmra.mxu0 %v1635
      %v2082 = vpop.f32.mrf.mxu0
      %v2083 = vadd.f32 %v1899, %v2082
      %2084 = vdwg.mxu0
      %2085 = vmatpush.msra.mxu0 %v1765
      %2086 = vmatpush.msra.mxu0 %v1761
      %2087 = vmatpush.msra.mxu0 %v1757
      %2088 = vmatpush.msra.mxu0 %v1753
      %2089 = vmatpush.msra.mxu0 %v1749
      %2090 = vmatpush.msra.mxu0 %v1745
      %2091 = vmatpush.msra.mxu0 %v1741
      %2092 = vmatpush.msra.mxu0 %v1737
      %2093 = vmatpush.msra.mxu0 %v1733
      %2094 = vmatpush.msra.mxu0 %v1729
      %2095 = vmatpush.msra.mxu0 %v1725
      %2096 = vmatpush.msra.mxu0 %v1721
      %2097 = vmatpush.msra.mxu0 %v1717
      %2098 = vmatpush.msra.mxu0 %v1713
      %2099 = vmatpush.msra.mxu0 %v1709
      %2100 = vmatpush.msra.mxu0 %v1705
      %2101 = vmatmul.f32.gmra.mxu0 %v1636
      %v2102 = vpop.f32.mrf.mxu0
      %v2103 = vadd.f32 %v2083, %v2102
      %2104 = vdwg.mxu0
      %2105 = vmatpush.msra.mxu0 %v1829
      %2106 = vmatpush.msra.mxu0 %v1825
      %2107 = vmatpush.msra.mxu0 %v1821
      %2108 = vmatpush.msra.mxu0 %v1817
      %2109 = vmatpush.msra.mxu0 %v1813
      %2110 = vmatpush.msra.mxu0 %v1809
      %2111 = vmatpush.msra.mxu0 %v1805
      %2112 = vmatpush.msra.mxu0 %v1801
      %2113 = vmatpush.msra.mxu0 %v1797
      %2114 = vmatpush.msra.mxu0 %v1793
      %2115 = vmatpush.msra.mxu0 %v1789
      %2116 = vmatpush.msra.mxu0 %v1785
      %2117 = vmatpush.msra.mxu0 %v1781
      %2118 = vmatpush.msra.mxu0 %v1777
      %2119 = vmatpush.msra.mxu0 %v1773
      %2120 = vmatpush.msra.mxu0 %v1769
      %2121 = vmatmul.f32.gmra.mxu0 %v1637
      %v2122 = vpop.f32.mrf.mxu0
      %v2123 = vadd.f32 %v2103, %v2122
      %2124 = vdwg.mxu0
      %2125 = vmatpush.msra.mxu0 %v1893
      %2126 = vmatpush.msra.mxu0 %v1889
      %2127 = vmatpush.msra.mxu0 %v1885
      %2128 = vmatpush.msra.mxu0 %v1881
      %2129 = vmatpush.msra.mxu0 %v1877
      %2130 = vmatpush.msra.mxu0 %v1873
      %2131 = vmatpush.msra.mxu0 %v1869
      %2132 = vmatpush.msra.mxu0 %v1865
      %2133 = vmatpush.msra.mxu0 %v1861
      %2134 = vmatpush.msra.mxu0 %v1857
      %2135 = vmatpush.msra.mxu0 %v1853
      %2136 = vmatpush.msra.mxu0 %v1849
      %2137 = vmatpush.msra.mxu0 %v1845
      %2138 = vmatpush.msra.mxu0 %v1841
      %2139 = vmatpush.msra.mxu0 %v1837
      %2140 = vmatpush.msra.mxu0 %v1833
      %2141 = vmatmul.f32.gmra.mxu0 %v1638
      %v2142 = vpop.f32.mrf.mxu0
      %v2143 = vadd.f32 %v2123, %v2142
      %2144 = vdwg.mxu0
      %2145 = vmatpush.msra.mxu0 %v1702
      %2146 = vmatpush.msra.mxu0 %v1698
      %2147 = vmatpush.msra.mxu0 %v1694
      %2148 = vmatpush.msra.mxu0 %v1690
      %2149 = vmatpush.msra.mxu0 %v1686
      %2150 = vmatpush.msra.mxu0 %v1682
      %2151 = vmatpush.msra.mxu0 %v1678
      %2152 = vmatpush.msra.mxu0 %v1674
      %2153 = vmatpush.msra.mxu0 %v1670
      %2154 = vmatpush.msra.mxu0 %v1666
      %2155 = vmatpush.msra.mxu0 %v1662
      %2156 = vmatpush.msra.mxu0 %v1658
      %2157 = vmatpush.msra.mxu0 %v1654
      %2158 = vmatpush.msra.mxu0 %v1650
      %2159 = vmatpush.msra.mxu0 %v1646
      %2160 = vmatpush.msra.mxu0 %v1642
      %2161 = vmatmul.f32.gmra.mxu0 %v1635
      %v2162 = vpop.f32.mrf.mxu0
      %v2163 = vadd.f32 %v1900, %v2162
      %2164 = vdwg.mxu0
      %2165 = vmatpush.msra.mxu0 %v1766
      %2166 = vmatpush.msra.mxu0 %v1762
      %2167 = vmatpush.msra.mxu0 %v1758
      %2168 = vmatpush.msra.mxu0 %v1754
      %2169 = vmatpush.msra.mxu0 %v1750
      %2170 = vmatpush.msra.mxu0 %v1746
      %2171 = vmatpush.msra.mxu0 %v1742
      %2172 = vmatpush.msra.mxu0 %v1738
      %2173 = vmatpush.msra.mxu0 %v1734
      %2174 = vmatpush.msra.mxu0 %v1730
      %2175 = vmatpush.msra.mxu0 %v1726
      %2176 = vmatpush.msra.mxu0 %v1722
      %2177 = vmatpush.msra.mxu0 %v1718
      %2178 = vmatpush.msra.mxu0 %v1714
      %2179 = vmatpush.msra.mxu0 %v1710
      %2180 = vmatpush.msra.mxu0 %v1706
      %2181 = vmatmul.f32.gmra.mxu0 %v1636
      %v2182 = vpop.f32.mrf.mxu0
      %v2183 = vadd.f32 %v2163, %v2182
      %2184 = vdwg.mxu0
      %2185 = vmatpush.msra.mxu0 %v1830
      %2186 = vmatpush.msra.mxu0 %v1826
      %2187 = vmatpush.msra.mxu0 %v1822
      %2188 = vmatpush.msra.mxu0 %v1818
      %2189 = vmatpush.msra.mxu0 %v1814
      %2190 = vmatpush.msra.mxu0 %v1810
      %2191 = vmatpush.msra.mxu0 %v1806
      %2192 = vmatpush.msra.mxu0 %v1802
      %2193 = vmatpush.msra.mxu0 %v1798
      %2194 = vmatpush.msra.mxu0 %v1794
      %2195 = vmatpush.msra.mxu0 %v1790
      %2196 = vmatpush.msra.mxu0 %v1786
      %2197 = vmatpush.msra.mxu0 %v1782
      %2198 = vmatpush.msra.mxu0 %v1778
      %2199 = vmatpush.msra.mxu0 %v1774
      %2200 = vmatpush.msra.mxu0 %v1770
      %2201 = vmatmul.f32.gmra.mxu0 %v1637
      %v2202 = vpop.f32.mrf.mxu0
      %v2203 = vadd.f32 %v2183, %v2202
      %2204 = vdwg.mxu0
      %2205 = vmatpush.msra.mxu0 %v1894
      %2206 = vmatpush.msra.mxu0 %v1890
      %2207 = vmatpush.msra.mxu0 %v1886
      %2208 = vmatpush.msra.mxu0 %v1882
      %2209 = vmatpush.msra.mxu0 %v1878
      %2210 = vmatpush.msra.mxu0 %v1874
      %2211 = vmatpush.msra.mxu0 %v1870
      %2212 = vmatpush.msra.mxu0 %v1866
      %2213 = vmatpush.msra.mxu0 %v1862
      %2214 = vmatpush.msra.mxu0 %v1858
      %2215 = vmatpush.msra.mxu0 %v1854
      %2216 = vmatpush.msra.mxu0 %v1850
      %2217 = vmatpush.msra.mxu0 %v1846
      %2218 = vmatpush.msra.mxu0 %v1842
      %2219 = vmatpush.msra.mxu0 %v1838
      %2220 = vmatpush.msra.mxu0 %v1834
      %2221 = vmatmul.f32.gmra.mxu0 %v1638
      %v2222 = vpop.f32.mrf.mxu0
      %v2223 = vadd.f32 %v2203, %v2222
      %2224 = vdwg.mxu0
      %v2225 = vld [vmem:[#allocation16] sm:$0xf]
      %v2226 = vld [vmem:[#allocation18] sm:$0xf]
      %v2227 = vsel %vm323, %v1983, 0.0
      %v2228 = vsel %vm323, %v2063, 0.0
      %v2229 = vadd.f32 %v2227, %v2228
      %v2230 = vsel %vm323, %v2143, 0.0
      %v2231 = vadd.f32 %v2229, %v2230
      %v2232 = vsel %vm323, %v2223, 0.0
      %v2233 = vadd.f32 %v2231, %v2232
      %2234 = vadd.xlane.f32.xlu0 %v2233
      %v2235 = vpop.xlane.xlu0 %2234
      %v2236 = vmul.f32 %v2235, %v1574
      %v2237 = vsub.f32 %v1983, %v2236
      %v2238 = vsub.f32 %v2063, %v2236
      %v2239 = vsub.f32 %v2143, %v2236
      %v2240 = vsub.f32 %v2223, %v2236
      %v2241 = vmul.f32 %v2237, %v2237
      %v2242 = vmul.f32 %v2238, %v2238
      %v2243 = vmul.f32 %v2239, %v2239
      %v2244 = vmul.f32 %v2240, %v2240
      %v2245 = vsel %vm323, %v2241, 0.0
      %v2246 = vsel %vm323, %v2242, 0.0
      %v2247 = vadd.f32 %v2245, %v2246
      %v2248 = vsel %vm323, %v2243, 0.0
      %v2249 = vadd.f32 %v2247, %v2248
      %v2250 = vsel %vm323, %v2244, 0.0
      %v2251 = vadd.f32 %v2249, %v2250
      %2252 = vadd.xlane.f32.xlu0 %v2251
      %v2253 = vpop.xlane.xlu0 %2252
      %v2254 = vmul.f32 %v2253, %v1574
      %v2255 = vadd.f32 %v2254, 1e-05
      %v2256 = vrsqrt.pop %v2255
      %v2257 = vmul.f32 %v2256, %v2255
      %v2258 = vmul.f32 %v2257, %v2256
      %v2259 = vmul.f32 0.5, %v2258
      %v2260 = vsub.f32 1.5, %v2259
      %v2261 = vmul.f32 %v2256, %v2260
      %vm2262 = vweird.f32 %v2255
      %vm2263 = vweird.f32 %v2256
      %vm2264 = vmor %vm2262, %vm2263
      %v2265 = vsel %vm2264, %v2256, %v2261
      %v2266 = vmul.f32 %v2237, %v2265
      %v2267 = vmul.f32 %v2238, %v2265
      %v2268 = vmul.f32 %v2239, %v2265
      %v2269 = vmul.f32 %v2240, %v2265
      %v2271 = vperm.slane %v2225, 0
      %v2272 = vperm.slane %v2225, 1
      %v2273 = vperm.slane %v2225, 2
      %v2274 = vperm.slane %v2225, 3
      %v2279 = vmul.f32 %v2266, %v2271
      %v2280 = vmul.f32 %v2267, %v2272
      %v2281 = vmul.f32 %v2268, %v2273
      %v2282 = vmul.f32 %v2269, %v2274
      %v2284 = vperm.slane %v2226, 0
      %v2285 = vperm.slane %v2226, 1
      %v2286 = vperm.slane %v2226, 2
      %v2287 = vperm.slane %v2226, 3
      %v2292 = vadd.f32 %v2279, %v2284
      %v2293 = vadd.f32 %v2280, %v2285
      %v2294 = vadd.f32 %v2281, %v2286
      %v2295 = vadd.f32 %v2282, %v2287
      %v2296 = vmax.f32 %v2292, 0.0
      %v2297 = vmax.f32 %v2293, 0.0
      %v2298 = vmax.f32 %v2294, 0.0
      %v2299 = vmax.f32 %v2295, 0.0
      %v2300 = vld [vmem:[#allocation19] sm:$0xff]
      %v2301 = vld [vmem:[#allocation19 + $0x8] sm:$0xff]
      %v2302 = vld [vmem:[#allocation19 + $0x10] sm:$0xff]
      %v2303 = vld [vmem:[#allocation19 + $0x18] sm:$0xff]
      %v2304 = vld [vmem:[#allocation19 + $0x20] sm:$0xff]
      %v2305 = vld [vmem:[#allocation19 + $0x28] sm:$0xff]
      %v2306 = vld [vmem:[#allocation19 + $0x30] sm:$0xff]
      %v2307 = vld [vmem:[#allocation19 + $0x38] sm:$0xff]
      %v2308 = vld [vmem:[#allocation19 + $0x40] sm:$0xff]
      %v2309 = vld [vmem:[#allocation19 + $0x48] sm:$0xff]
      %v2310 = vld [vmem:[#allocation19 + $0x50] sm:$0xff]
      %v2311 = vld [vmem:[#allocation19 + $0x58] sm:$0xff]
      %v2312 = vld [vmem:[#allocation19 + $0x60] sm:$0xff]
      %v2313 = vld [vmem:[#allocation19 + $0x68] sm:$0xff]
      %v2314 = vld [vmem:[#allocation19 + $0x70] sm:$0xff]
      %v2315 = vld [vmem:[#allocation19 + $0x78] sm:$0xff]
      %v2316 = vld [vmem:[#allocation19 + $0x80] sm:$0xff]
      %v2317 = vld [vmem:[#allocation19 + $0x88] sm:$0xff]
      %v2318 = vld [vmem:[#allocation19 + $0x90] sm:$0xff]
      %v2319 = vld [vmem:[#allocation19 + $0x98] sm:$0xff]
      %v2320 = vld [vmem:[#allocation19 + $0xa0] sm:$0xff]
      %v2321 = vld [vmem:[#allocation19 + $0xa8] sm:$0xff]
      %v2322 = vld [vmem:[#allocation19 + $0xb0] sm:$0xff]
      %v2323 = vld [vmem:[#allocation19 + $0xb8] sm:$0xff]
      %v2324 = vld [vmem:[#allocation19 + $0xc0] sm:$0xff]
      %v2325 = vld [vmem:[#allocation19 + $0xc8] sm:$0xff]
      %v2326 = vld [vmem:[#allocation19 + $0xd0] sm:$0xff]
      %v2327 = vld [vmem:[#allocation19 + $0xd8] sm:$0xff]
      %v2328 = vld [vmem:[#allocation19 + $0xe0] sm:$0xff]
      %v2329 = vld [vmem:[#allocation19 + $0xe8] sm:$0xff]
      %v2330 = vld [vmem:[#allocation19 + $0xf0] sm:$0xff]
      %v2331 = vld [vmem:[#allocation19 + $0xf8] sm:$0xff]
      %v2332 = vld [vmem:[#allocation19 + $0x100] sm:$0xff]
      %v2333 = vld [vmem:[#allocation19 + $0x108] sm:$0xff]
      %v2334 = vld [vmem:[#allocation19 + $0x110] sm:$0xff]
      %v2335 = vld [vmem:[#allocation19 + $0x118] sm:$0xff]
      %v2336 = vld [vmem:[#allocation19 + $0x120] sm:$0xff]
      %v2337 = vld [vmem:[#allocation19 + $0x128] sm:$0xff]
      %v2338 = vld [vmem:[#allocation19 + $0x130] sm:$0xff]
      %v2339 = vld [vmem:[#allocation19 + $0x138] sm:$0xff]
      %v2340 = vld [vmem:[#allocation19 + $0x140] sm:$0xff]
      %v2341 = vld [vmem:[#allocation19 + $0x148] sm:$0xff]
      %v2342 = vld [vmem:[#allocation19 + $0x150] sm:$0xff]
      %v2343 = vld [vmem:[#allocation19 + $0x158] sm:$0xff]
      %v2344 = vld [vmem:[#allocation19 + $0x160] sm:$0xff]
      %v2345 = vld [vmem:[#allocation19 + $0x168] sm:$0xff]
      %v2346 = vld [vmem:[#allocation19 + $0x170] sm:$0xff]
      %v2347 = vld [vmem:[#allocation19 + $0x178] sm:$0xff]
      %v2348 = vld [vmem:[#allocation19 + $0x180] sm:$0xff]
      %v2349 = vld [vmem:[#allocation19 + $0x188] sm:$0xff]
      %v2350 = vld [vmem:[#allocation19 + $0x190] sm:$0xff]
      %v2351 = vld [vmem:[#allocation19 + $0x198] sm:$0xff]
      %v2352 = vld [vmem:[#allocation19 + $0x1a0] sm:$0xff]
      %v2353 = vld [vmem:[#allocation19 + $0x1a8] sm:$0xff]
      %v2354 = vld [vmem:[#allocation19 + $0x1b0] sm:$0xff]
      %v2355 = vld [vmem:[#allocation19 + $0x1b8] sm:$0xff]
      %v2356 = vld [vmem:[#allocation19 + $0x1c0] sm:$0xff]
      %v2357 = vld [vmem:[#allocation19 + $0x1c8] sm:$0xff]
      %v2358 = vld [vmem:[#allocation19 + $0x1d0] sm:$0xff]
      %v2359 = vld [vmem:[#allocation19 + $0x1d8] sm:$0xff]
      %v2360 = vld [vmem:[#allocation19 + $0x1e0] sm:$0xff]
      %v2361 = vld [vmem:[#allocation19 + $0x1e8] sm:$0xff]
      %v2362 = vld [vmem:[#allocation19 + $0x1f0] sm:$0xff]
      %v2363 = vld [vmem:[#allocation19 + $0x1f8] sm:$0xff]
      %v2364 = vld [vmem:[#allocation19 + $0x200] sm:$0xff]
      %v2365 = vld [vmem:[#allocation19 + $0x208] sm:$0xff]
      %v2366 = vld [vmem:[#allocation19 + $0x210] sm:$0xff]
      %v2367 = vld [vmem:[#allocation19 + $0x218] sm:$0xff]
      %v2368 = vld [vmem:[#allocation19 + $0x220] sm:$0xff]
      %v2369 = vld [vmem:[#allocation19 + $0x228] sm:$0xff]
      %v2370 = vld [vmem:[#allocation19 + $0x230] sm:$0xff]
      %v2371 = vld [vmem:[#allocation19 + $0x238] sm:$0xff]
      %v2372 = vld [vmem:[#allocation19 + $0x240] sm:$0xff]
      %v2373 = vld [vmem:[#allocation19 + $0x248] sm:$0xff]
      %v2374 = vld [vmem:[#allocation19 + $0x250] sm:$0xff]
      %v2375 = vld [vmem:[#allocation19 + $0x258] sm:$0xff]
      %v2376 = vld [vmem:[#allocation19 + $0x260] sm:$0xff]
      %v2377 = vld [vmem:[#allocation19 + $0x268] sm:$0xff]
      %v2378 = vld [vmem:[#allocation19 + $0x270] sm:$0xff]
      %v2379 = vld [vmem:[#allocation19 + $0x278] sm:$0xff]
      %v2380 = vld [vmem:[#allocation19 + $0x280] sm:$0xff]
      %v2381 = vld [vmem:[#allocation19 + $0x288] sm:$0xff]
      %v2382 = vld [vmem:[#allocation19 + $0x290] sm:$0xff]
      %v2383 = vld [vmem:[#allocation19 + $0x298] sm:$0xff]
      %v2384 = vld [vmem:[#allocation19 + $0x2a0] sm:$0xff]
      %v2385 = vld [vmem:[#allocation19 + $0x2a8] sm:$0xff]
      %v2386 = vld [vmem:[#allocation19 + $0x2b0] sm:$0xff]
      %v2387 = vld [vmem:[#allocation19 + $0x2b8] sm:$0xff]
      %v2388 = vld [vmem:[#allocation19 + $0x2c0] sm:$0xff]
      %v2389 = vld [vmem:[#allocation19 + $0x2c8] sm:$0xff]
      %v2390 = vld [vmem:[#allocation19 + $0x2d0] sm:$0xff]
      %v2391 = vld [vmem:[#allocation19 + $0x2d8] sm:$0xff]
      %v2392 = vld [vmem:[#allocation19 + $0x2e0] sm:$0xff]
      %v2393 = vld [vmem:[#allocation19 + $0x2e8] sm:$0xff]
      %v2394 = vld [vmem:[#allocation19 + $0x2f0] sm:$0xff]
      %v2395 = vld [vmem:[#allocation19 + $0x2f8] sm:$0xff]
      %v2396 = vld [vmem:[#allocation19 + $0x300] sm:$0xff]
      %v2397 = vld [vmem:[#allocation19 + $0x308] sm:$0xff]
      %v2398 = vld [vmem:[#allocation19 + $0x310] sm:$0xff]
      %v2399 = vld [vmem:[#allocation19 + $0x318] sm:$0xff]
      %v2400 = vld [vmem:[#allocation19 + $0x320] sm:$0xff]
      %v2401 = vld [vmem:[#allocation19 + $0x328] sm:$0xff]
      %v2402 = vld [vmem:[#allocation19 + $0x330] sm:$0xff]
      %v2403 = vld [vmem:[#allocation19 + $0x338] sm:$0xff]
      %v2404 = vld [vmem:[#allocation19 + $0x340] sm:$0xff]
      %v2405 = vld [vmem:[#allocation19 + $0x348] sm:$0xff]
      %v2406 = vld [vmem:[#allocation19 + $0x350] sm:$0xff]
      %v2407 = vld [vmem:[#allocation19 + $0x358] sm:$0xff]
      %v2408 = vld [vmem:[#allocation19 + $0x360] sm:$0xff]
      %v2409 = vld [vmem:[#allocation19 + $0x368] sm:$0xff]
      %v2410 = vld [vmem:[#allocation19 + $0x370] sm:$0xff]
      %v2411 = vld [vmem:[#allocation19 + $0x378] sm:$0xff]
      %v2412 = vld [vmem:[#allocation19 + $0x380] sm:$0xff]
      %v2413 = vld [vmem:[#allocation19 + $0x388] sm:$0xff]
      %v2414 = vld [vmem:[#allocation19 + $0x390] sm:$0xff]
      %v2415 = vld [vmem:[#allocation19 + $0x398] sm:$0xff]
      %v2416 = vld [vmem:[#allocation19 + $0x3a0] sm:$0xff]
      %v2417 = vld [vmem:[#allocation19 + $0x3a8] sm:$0xff]
      %v2418 = vld [vmem:[#allocation19 + $0x3b0] sm:$0xff]
      %v2419 = vld [vmem:[#allocation19 + $0x3b8] sm:$0xff]
      %v2420 = vld [vmem:[#allocation19 + $0x3c0] sm:$0xff]
      %v2421 = vld [vmem:[#allocation19 + $0x3c8] sm:$0xff]
      %v2422 = vld [vmem:[#allocation19 + $0x3d0] sm:$0xff]
      %v2423 = vld [vmem:[#allocation19 + $0x3d8] sm:$0xff]
      %v2424 = vld [vmem:[#allocation19 + $0x3e0] sm:$0xff]
      %v2425 = vld [vmem:[#allocation19 + $0x3e8] sm:$0xff]
      %v2426 = vld [vmem:[#allocation19 + $0x3f0] sm:$0xff]
      %v2427 = vld [vmem:[#allocation19 + $0x3f8] sm:$0xff]
      %v2428 = vld [vmem:[#allocation19 + $0x400] sm:$0xff]
      %v2429 = vld [vmem:[#allocation19 + $0x408] sm:$0xff]
      %v2430 = vld [vmem:[#allocation19 + $0x410] sm:$0xff]
      %v2431 = vld [vmem:[#allocation19 + $0x418] sm:$0xff]
      %v2432 = vld [vmem:[#allocation19 + $0x420] sm:$0xff]
      %v2433 = vld [vmem:[#allocation19 + $0x428] sm:$0xff]
      %v2434 = vld [vmem:[#allocation19 + $0x430] sm:$0xff]
      %v2435 = vld [vmem:[#allocation19 + $0x438] sm:$0xff]
      %v2436 = vld [vmem:[#allocation19 + $0x440] sm:$0xff]
      %v2437 = vld [vmem:[#allocation19 + $0x448] sm:$0xff]
      %v2438 = vld [vmem:[#allocation19 + $0x450] sm:$0xff]
      %v2439 = vld [vmem:[#allocation19 + $0x458] sm:$0xff]
      %v2440 = vld [vmem:[#allocation19 + $0x460] sm:$0xff]
      %v2441 = vld [vmem:[#allocation19 + $0x468] sm:$0xff]
      %v2442 = vld [vmem:[#allocation19 + $0x470] sm:$0xff]
      %v2443 = vld [vmem:[#allocation19 + $0x478] sm:$0xff]
      %v2444 = vld [vmem:[#allocation19 + $0x480] sm:$0xff]
      %v2445 = vld [vmem:[#allocation19 + $0x488] sm:$0xff]
      %v2446 = vld [vmem:[#allocation19 + $0x490] sm:$0xff]
      %v2447 = vld [vmem:[#allocation19 + $0x498] sm:$0xff]
      %v2448 = vld [vmem:[#allocation19 + $0x4a0] sm:$0xff]
      %v2449 = vld [vmem:[#allocation19 + $0x4a8] sm:$0xff]
      %v2450 = vld [vmem:[#allocation19 + $0x4b0] sm:$0xff]
      %v2451 = vld [vmem:[#allocation19 + $0x4b8] sm:$0xff]
      %v2452 = vld [vmem:[#allocation19 + $0x4c0] sm:$0xff]
      %v2453 = vld [vmem:[#allocation19 + $0x4c8] sm:$0xff]
      %v2454 = vld [vmem:[#allocation19 + $0x4d0] sm:$0xff]
      %v2455 = vld [vmem:[#allocation19 + $0x4d8] sm:$0xff]
      %v2456 = vld [vmem:[#allocation19 + $0x4e0] sm:$0xff]
      %v2457 = vld [vmem:[#allocation19 + $0x4e8] sm:$0xff]
      %v2458 = vld [vmem:[#allocation19 + $0x4f0] sm:$0xff]
      %v2459 = vld [vmem:[#allocation19 + $0x4f8] sm:$0xff]
      %v2460 = vld [vmem:[#allocation19 + $0x500] sm:$0xff]
      %v2461 = vld [vmem:[#allocation19 + $0x508] sm:$0xff]
      %v2462 = vld [vmem:[#allocation19 + $0x510] sm:$0xff]
      %v2463 = vld [vmem:[#allocation19 + $0x518] sm:$0xff]
      %v2464 = vld [vmem:[#allocation19 + $0x520] sm:$0xff]
      %v2465 = vld [vmem:[#allocation19 + $0x528] sm:$0xff]
      %v2466 = vld [vmem:[#allocation19 + $0x530] sm:$0xff]
      %v2467 = vld [vmem:[#allocation19 + $0x538] sm:$0xff]
      %v2468 = vld [vmem:[#allocation19 + $0x540] sm:$0xff]
      %v2469 = vld [vmem:[#allocation19 + $0x548] sm:$0xff]
      %v2470 = vld [vmem:[#allocation19 + $0x550] sm:$0xff]
      %v2471 = vld [vmem:[#allocation19 + $0x558] sm:$0xff]
      %v2472 = vld [vmem:[#allocation19 + $0x560] sm:$0xff]
      %v2473 = vld [vmem:[#allocation19 + $0x568] sm:$0xff]
      %v2474 = vld [vmem:[#allocation19 + $0x570] sm:$0xff]
      %v2475 = vld [vmem:[#allocation19 + $0x578] sm:$0xff]
      %v2476 = vld [vmem:[#allocation19 + $0x580] sm:$0xff]
      %v2477 = vld [vmem:[#allocation19 + $0x588] sm:$0xff]
      %v2478 = vld [vmem:[#allocation19 + $0x590] sm:$0xff]
      %v2479 = vld [vmem:[#allocation19 + $0x598] sm:$0xff]
      %v2480 = vld [vmem:[#allocation19 + $0x5a0] sm:$0xff]
      %v2481 = vld [vmem:[#allocation19 + $0x5a8] sm:$0xff]
      %v2482 = vld [vmem:[#allocation19 + $0x5b0] sm:$0xff]
      %v2483 = vld [vmem:[#allocation19 + $0x5b8] sm:$0xff]
      %v2484 = vld [vmem:[#allocation19 + $0x5c0] sm:$0xff]
      %v2485 = vld [vmem:[#allocation19 + $0x5c8] sm:$0xff]
      %v2486 = vld [vmem:[#allocation19 + $0x5d0] sm:$0xff]
      %v2487 = vld [vmem:[#allocation19 + $0x5d8] sm:$0xff]
      %v2488 = vld [vmem:[#allocation19 + $0x5e0] sm:$0xff]
      %v2489 = vld [vmem:[#allocation19 + $0x5e8] sm:$0xff]
      %v2490 = vld [vmem:[#allocation19 + $0x5f0] sm:$0xff]
      %v2491 = vld [vmem:[#allocation19 + $0x5f8] sm:$0xff]
      %v2492 = vld [vmem:[#allocation19 + $0x600] sm:$0xff]
      %v2493 = vld [vmem:[#allocation19 + $0x608] sm:$0xff]
      %v2494 = vld [vmem:[#allocation19 + $0x610] sm:$0xff]
      %v2495 = vld [vmem:[#allocation19 + $0x618] sm:$0xff]
      %v2496 = vld [vmem:[#allocation19 + $0x620] sm:$0xff]
      %v2497 = vld [vmem:[#allocation19 + $0x628] sm:$0xff]
      %v2498 = vld [vmem:[#allocation19 + $0x630] sm:$0xff]
      %v2499 = vld [vmem:[#allocation19 + $0x638] sm:$0xff]
      %v2500 = vld [vmem:[#allocation19 + $0x640] sm:$0xff]
      %v2501 = vld [vmem:[#allocation19 + $0x648] sm:$0xff]
      %v2502 = vld [vmem:[#allocation19 + $0x650] sm:$0xff]
      %v2503 = vld [vmem:[#allocation19 + $0x658] sm:$0xff]
      %v2504 = vld [vmem:[#allocation19 + $0x660] sm:$0xff]
      %v2505 = vld [vmem:[#allocation19 + $0x668] sm:$0xff]
      %v2506 = vld [vmem:[#allocation19 + $0x670] sm:$0xff]
      %v2507 = vld [vmem:[#allocation19 + $0x678] sm:$0xff]
      %v2508 = vld [vmem:[#allocation19 + $0x680] sm:$0xff]
      %v2509 = vld [vmem:[#allocation19 + $0x688] sm:$0xff]
      %v2510 = vld [vmem:[#allocation19 + $0x690] sm:$0xff]
      %v2511 = vld [vmem:[#allocation19 + $0x698] sm:$0xff]
      %v2512 = vld [vmem:[#allocation19 + $0x6a0] sm:$0xff]
      %v2513 = vld [vmem:[#allocation19 + $0x6a8] sm:$0xff]
      %v2514 = vld [vmem:[#allocation19 + $0x6b0] sm:$0xff]
      %v2515 = vld [vmem:[#allocation19 + $0x6b8] sm:$0xff]
      %v2516 = vld [vmem:[#allocation19 + $0x6c0] sm:$0xff]
      %v2517 = vld [vmem:[#allocation19 + $0x6c8] sm:$0xff]
      %v2518 = vld [vmem:[#allocation19 + $0x6d0] sm:$0xff]
      %v2519 = vld [vmem:[#allocation19 + $0x6d8] sm:$0xff]
      %v2520 = vld [vmem:[#allocation19 + $0x6e0] sm:$0xff]
      %v2521 = vld [vmem:[#allocation19 + $0x6e8] sm:$0xff]
      %v2522 = vld [vmem:[#allocation19 + $0x6f0] sm:$0xff]
      %v2523 = vld [vmem:[#allocation19 + $0x6f8] sm:$0xff]
      %v2524 = vld [vmem:[#allocation19 + $0x700] sm:$0xff]
      %v2525 = vld [vmem:[#allocation19 + $0x708] sm:$0xff]
      %v2526 = vld [vmem:[#allocation19 + $0x710] sm:$0xff]
      %v2527 = vld [vmem:[#allocation19 + $0x718] sm:$0xff]
      %v2528 = vld [vmem:[#allocation19 + $0x720] sm:$0xff]
      %v2529 = vld [vmem:[#allocation19 + $0x728] sm:$0xff]
      %v2530 = vld [vmem:[#allocation19 + $0x730] sm:$0xff]
      %v2531 = vld [vmem:[#allocation19 + $0x738] sm:$0xff]
      %v2532 = vld [vmem:[#allocation19 + $0x740] sm:$0xff]
      %v2533 = vld [vmem:[#allocation19 + $0x748] sm:$0xff]
      %v2534 = vld [vmem:[#allocation19 + $0x750] sm:$0xff]
      %v2535 = vld [vmem:[#allocation19 + $0x758] sm:$0xff]
      %v2536 = vld [vmem:[#allocation19 + $0x760] sm:$0xff]
      %v2537 = vld [vmem:[#allocation19 + $0x768] sm:$0xff]
      %v2538 = vld [vmem:[#allocation19 + $0x770] sm:$0xff]
      %v2539 = vld [vmem:[#allocation19 + $0x778] sm:$0xff]
      %v2540 = vld [vmem:[#allocation19 + $0x780] sm:$0xff]
      %v2541 = vld [vmem:[#allocation19 + $0x788] sm:$0xff]
      %v2542 = vld [vmem:[#allocation19 + $0x790] sm:$0xff]
      %v2543 = vld [vmem:[#allocation19 + $0x798] sm:$0xff]
      %v2544 = vld [vmem:[#allocation19 + $0x7a0] sm:$0xff]
      %v2545 = vld [vmem:[#allocation19 + $0x7a8] sm:$0xff]
      %v2546 = vld [vmem:[#allocation19 + $0x7b0] sm:$0xff]
      %v2547 = vld [vmem:[#allocation19 + $0x7b8] sm:$0xff]
      %v2548 = vld [vmem:[#allocation19 + $0x7c0] sm:$0xff]
      %v2549 = vld [vmem:[#allocation19 + $0x7c8] sm:$0xff]
      %v2550 = vld [vmem:[#allocation19 + $0x7d0] sm:$0xff]
      %v2551 = vld [vmem:[#allocation19 + $0x7d8] sm:$0xff]
      %v2552 = vld [vmem:[#allocation19 + $0x7e0] sm:$0xff]
      %v2553 = vld [vmem:[#allocation19 + $0x7e8] sm:$0xff]
      %v2554 = vld [vmem:[#allocation19 + $0x7f0] sm:$0xff]
      %v2555 = vld [vmem:[#allocation19 + $0x7f8] sm:$0xff]
      %v2556 = vld [vmem:[#allocation19 + $0x800] sm:$0xff]
      %v2557 = vld [vmem:[#allocation19 + $0x808] sm:$0xff]
      %v2558 = vld [vmem:[#allocation19 + $0x810] sm:$0xff]
      %v2559 = vld [vmem:[#allocation19 + $0x818] sm:$0xff]
      %v2560 = vld [vmem:[#allocation19 + $0x820] sm:$0xff]
      %v2561 = vld [vmem:[#allocation19 + $0x828] sm:$0xff]
      %v2562 = vld [vmem:[#allocation19 + $0x830] sm:$0xff]
      %v2563 = vld [vmem:[#allocation19 + $0x838] sm:$0xff]
      %v2564 = vld [vmem:[#allocation19 + $0x840] sm:$0xff]
      %v2565 = vld [vmem:[#allocation19 + $0x848] sm:$0xff]
      %v2566 = vld [vmem:[#allocation19 + $0x850] sm:$0xff]
      %v2567 = vld [vmem:[#allocation19 + $0x858] sm:$0xff]
      %v2568 = vld [vmem:[#allocation19 + $0x860] sm:$0xff]
      %v2569 = vld [vmem:[#allocation19 + $0x868] sm:$0xff]
      %v2570 = vld [vmem:[#allocation19 + $0x870] sm:$0xff]
      %v2571 = vld [vmem:[#allocation19 + $0x878] sm:$0xff]
      %v2572 = vld [vmem:[#allocation19 + $0x880] sm:$0xff]
      %v2573 = vld [vmem:[#allocation19 + $0x888] sm:$0xff]
      %v2574 = vld [vmem:[#allocation19 + $0x890] sm:$0xff]
      %v2575 = vld [vmem:[#allocation19 + $0x898] sm:$0xff]
      %v2576 = vld [vmem:[#allocation19 + $0x8a0] sm:$0xff]
      %v2577 = vld [vmem:[#allocation19 + $0x8a8] sm:$0xff]
      %v2578 = vld [vmem:[#allocation19 + $0x8b0] sm:$0xff]
      %v2579 = vld [vmem:[#allocation19 + $0x8b8] sm:$0xff]
      %v2580 = vld [vmem:[#allocation19 + $0x8c0] sm:$0xff]
      %v2581 = vld [vmem:[#allocation19 + $0x8c8] sm:$0xff]
      %v2582 = vld [vmem:[#allocation19 + $0x8d0] sm:$0xff]
      %v2583 = vld [vmem:[#allocation19 + $0x8d8] sm:$0xff]
      %v2584 = vld [vmem:[#allocation19 + $0x8e0] sm:$0xff]
      %v2585 = vld [vmem:[#allocation19 + $0x8e8] sm:$0xff]
      %v2586 = vld [vmem:[#allocation19 + $0x8f0] sm:$0xff]
      %v2587 = vld [vmem:[#allocation19 + $0x8f8] sm:$0xff]
      %v2588 = vld [vmem:[#allocation19 + $0x900] sm:$0xff]
      %v2589 = vld [vmem:[#allocation19 + $0x908] sm:$0xff]
      %v2590 = vld [vmem:[#allocation19 + $0x910] sm:$0xff]
      %v2591 = vld [vmem:[#allocation19 + $0x918] sm:$0xff]
      %v2592 = vld [vmem:[#allocation19 + $0x920] sm:$0xff]
      %v2593 = vld [vmem:[#allocation19 + $0x928] sm:$0xff]
      %v2594 = vld [vmem:[#allocation19 + $0x930] sm:$0xff]
      %v2595 = vld [vmem:[#allocation19 + $0x938] sm:$0xff]
      %v2596 = vld [vmem:[#allocation19 + $0x940] sm:$0xff]
      %v2597 = vld [vmem:[#allocation19 + $0x948] sm:$0xff]
      %v2598 = vld [vmem:[#allocation19 + $0x950] sm:$0xff]
      %v2599 = vld [vmem:[#allocation19 + $0x958] sm:$0xff]
      %v2600 = vld [vmem:[#allocation19 + $0x960] sm:$0xff]
      %v2601 = vld [vmem:[#allocation19 + $0x968] sm:$0xff]
      %v2602 = vld [vmem:[#allocation19 + $0x970] sm:$0xff]
      %v2603 = vld [vmem:[#allocation19 + $0x978] sm:$0xff]
      %v2604 = vld [vmem:[#allocation19 + $0x980] sm:$0xff]
      %v2605 = vld [vmem:[#allocation19 + $0x988] sm:$0xff]
      %v2606 = vld [vmem:[#allocation19 + $0x990] sm:$0xff]
      %v2607 = vld [vmem:[#allocation19 + $0x998] sm:$0xff]
      %v2608 = vld [vmem:[#allocation19 + $0x9a0] sm:$0xff]
      %v2609 = vld [vmem:[#allocation19 + $0x9a8] sm:$0xff]
      %v2610 = vld [vmem:[#allocation19 + $0x9b0] sm:$0xff]
      %v2611 = vld [vmem:[#allocation19 + $0x9b8] sm:$0xff]
      %v2612 = vld [vmem:[#allocation19 + $0x9c0] sm:$0xff]
      %v2613 = vld [vmem:[#allocation19 + $0x9c8] sm:$0xff]
      %v2614 = vld [vmem:[#allocation19 + $0x9d0] sm:$0xff]
      %v2615 = vld [vmem:[#allocation19 + $0x9d8] sm:$0xff]
      %v2616 = vld [vmem:[#allocation19 + $0x9e0] sm:$0xff]
      %v2617 = vld [vmem:[#allocation19 + $0x9e8] sm:$0xff]
      %v2618 = vld [vmem:[#allocation19 + $0x9f0] sm:$0xff]
      %v2619 = vld [vmem:[#allocation19 + $0x9f8] sm:$0xff]
      %v2620 = vld [vmem:[#allocation19 + $0xa00] sm:$0xff]
      %v2621 = vld [vmem:[#allocation19 + $0xa08] sm:$0xff]
      %v2622 = vld [vmem:[#allocation19 + $0xa10] sm:$0xff]
      %v2623 = vld [vmem:[#allocation19 + $0xa18] sm:$0xff]
      %v2624 = vld [vmem:[#allocation19 + $0xa20] sm:$0xff]
      %v2625 = vld [vmem:[#allocation19 + $0xa28] sm:$0xff]
      %v2626 = vld [vmem:[#allocation19 + $0xa30] sm:$0xff]
      %v2627 = vld [vmem:[#allocation19 + $0xa38] sm:$0xff]
      %v2628 = vld [vmem:[#allocation19 + $0xa40] sm:$0xff]
      %v2629 = vld [vmem:[#allocation19 + $0xa48] sm:$0xff]
      %v2630 = vld [vmem:[#allocation19 + $0xa50] sm:$0xff]
      %v2631 = vld [vmem:[#allocation19 + $0xa58] sm:$0xff]
      %v2632 = vld [vmem:[#allocation19 + $0xa60] sm:$0xff]
      %v2633 = vld [vmem:[#allocation19 + $0xa68] sm:$0xff]
      %v2634 = vld [vmem:[#allocation19 + $0xa70] sm:$0xff]
      %v2635 = vld [vmem:[#allocation19 + $0xa78] sm:$0xff]
      %v2636 = vld [vmem:[#allocation19 + $0xa80] sm:$0xff]
      %v2637 = vld [vmem:[#allocation19 + $0xa88] sm:$0xff]
      %v2638 = vld [vmem:[#allocation19 + $0xa90] sm:$0xff]
      %v2639 = vld [vmem:[#allocation19 + $0xa98] sm:$0xff]
      %v2640 = vld [vmem:[#allocation19 + $0xaa0] sm:$0xff]
      %v2641 = vld [vmem:[#allocation19 + $0xaa8] sm:$0xff]
      %v2642 = vld [vmem:[#allocation19 + $0xab0] sm:$0xff]
      %v2643 = vld [vmem:[#allocation19 + $0xab8] sm:$0xff]
      %v2644 = vld [vmem:[#allocation19 + $0xac0] sm:$0xff]
      %v2645 = vld [vmem:[#allocation19 + $0xac8] sm:$0xff]
      %v2646 = vld [vmem:[#allocation19 + $0xad0] sm:$0xff]
      %v2647 = vld [vmem:[#allocation19 + $0xad8] sm:$0xff]
      %v2648 = vld [vmem:[#allocation19 + $0xae0] sm:$0xff]
      %v2649 = vld [vmem:[#allocation19 + $0xae8] sm:$0xff]
      %v2650 = vld [vmem:[#allocation19 + $0xaf0] sm:$0xff]
      %v2651 = vld [vmem:[#allocation19 + $0xaf8] sm:$0xff]
      %v2652 = vld [vmem:[#allocation19 + $0xb00] sm:$0xff]
      %v2653 = vld [vmem:[#allocation19 + $0xb08] sm:$0xff]
      %v2654 = vld [vmem:[#allocation19 + $0xb10] sm:$0xff]
      %v2655 = vld [vmem:[#allocation19 + $0xb18] sm:$0xff]
      %v2656 = vld [vmem:[#allocation19 + $0xb20] sm:$0xff]
      %v2657 = vld [vmem:[#allocation19 + $0xb28] sm:$0xff]
      %v2658 = vld [vmem:[#allocation19 + $0xb30] sm:$0xff]
      %v2659 = vld [vmem:[#allocation19 + $0xb38] sm:$0xff]
      %v2660 = vld [vmem:[#allocation19 + $0xb40] sm:$0xff]
      %v2661 = vld [vmem:[#allocation19 + $0xb48] sm:$0xff]
      %v2662 = vld [vmem:[#allocation19 + $0xb50] sm:$0xff]
      %v2663 = vld [vmem:[#allocation19 + $0xb58] sm:$0xff]
      %v2664 = vld [vmem:[#allocation19 + $0xb60] sm:$0xff]
      %v2665 = vld [vmem:[#allocation19 + $0xb68] sm:$0xff]
      %v2666 = vld [vmem:[#allocation19 + $0xb70] sm:$0xff]
      %v2667 = vld [vmem:[#allocation19 + $0xb78] sm:$0xff]
      %v2668 = vld [vmem:[#allocation19 + $0xb80] sm:$0xff]
      %v2669 = vld [vmem:[#allocation19 + $0xb88] sm:$0xff]
      %v2670 = vld [vmem:[#allocation19 + $0xb90] sm:$0xff]
      %v2671 = vld [vmem:[#allocation19 + $0xb98] sm:$0xff]
      %v2672 = vld [vmem:[#allocation19 + $0xba0] sm:$0xff]
      %v2673 = vld [vmem:[#allocation19 + $0xba8] sm:$0xff]
      %v2674 = vld [vmem:[#allocation19 + $0xbb0] sm:$0xff]
      %v2675 = vld [vmem:[#allocation19 + $0xbb8] sm:$0xff]
      %v2676 = vld [vmem:[#allocation19 + $0xbc0] sm:$0xff]
      %v2677 = vld [vmem:[#allocation19 + $0xbc8] sm:$0xff]
      %v2678 = vld [vmem:[#allocation19 + $0xbd0] sm:$0xff]
      %v2679 = vld [vmem:[#allocation19 + $0xbd8] sm:$0xff]
      %v2680 = vld [vmem:[#allocation19 + $0xbe0] sm:$0xff]
      %v2681 = vld [vmem:[#allocation19 + $0xbe8] sm:$0xff]
      %v2682 = vld [vmem:[#allocation19 + $0xbf0] sm:$0xff]
      %v2683 = vld [vmem:[#allocation19 + $0xbf8] sm:$0xff]
      %v2684 = vld [vmem:[#allocation19 + $0xc00] sm:$0xff]
      %v2685 = vld [vmem:[#allocation19 + $0xc08] sm:$0xff]
      %v2686 = vld [vmem:[#allocation19 + $0xc10] sm:$0xff]
      %v2687 = vld [vmem:[#allocation19 + $0xc18] sm:$0xff]
      %v2688 = vld [vmem:[#allocation19 + $0xc20] sm:$0xff]
      %v2689 = vld [vmem:[#allocation19 + $0xc28] sm:$0xff]
      %v2690 = vld [vmem:[#allocation19 + $0xc30] sm:$0xff]
      %v2691 = vld [vmem:[#allocation19 + $0xc38] sm:$0xff]
      %v2692 = vld [vmem:[#allocation19 + $0xc40] sm:$0xff]
      %v2693 = vld [vmem:[#allocation19 + $0xc48] sm:$0xff]
      %v2694 = vld [vmem:[#allocation19 + $0xc50] sm:$0xff]
      %v2695 = vld [vmem:[#allocation19 + $0xc58] sm:$0xff]
      %v2696 = vld [vmem:[#allocation19 + $0xc60] sm:$0xff]
      %v2697 = vld [vmem:[#allocation19 + $0xc68] sm:$0xff]
      %v2698 = vld [vmem:[#allocation19 + $0xc70] sm:$0xff]
      %v2699 = vld [vmem:[#allocation19 + $0xc78] sm:$0xff]
      %v2700 = vld [vmem:[#allocation19 + $0xc80] sm:$0xff]
      %v2701 = vld [vmem:[#allocation19 + $0xc88] sm:$0xff]
      %v2702 = vld [vmem:[#allocation19 + $0xc90] sm:$0xff]
      %v2703 = vld [vmem:[#allocation19 + $0xc98] sm:$0xff]
      %v2704 = vld [vmem:[#allocation19 + $0xca0] sm:$0xff]
      %v2705 = vld [vmem:[#allocation19 + $0xca8] sm:$0xff]
      %v2706 = vld [vmem:[#allocation19 + $0xcb0] sm:$0xff]
      %v2707 = vld [vmem:[#allocation19 + $0xcb8] sm:$0xff]
      %v2708 = vld [vmem:[#allocation19 + $0xcc0] sm:$0xff]
      %v2709 = vld [vmem:[#allocation19 + $0xcc8] sm:$0xff]
      %v2710 = vld [vmem:[#allocation19 + $0xcd0] sm:$0xff]
      %v2711 = vld [vmem:[#allocation19 + $0xcd8] sm:$0xff]
      %v2712 = vld [vmem:[#allocation19 + $0xce0] sm:$0xff]
      %v2713 = vld [vmem:[#allocation19 + $0xce8] sm:$0xff]
      %v2714 = vld [vmem:[#allocation19 + $0xcf0] sm:$0xff]
      %v2715 = vld [vmem:[#allocation19 + $0xcf8] sm:$0xff]
      %v2716 = vld [vmem:[#allocation19 + $0xd00] sm:$0xff]
      %v2717 = vld [vmem:[#allocation19 + $0xd08] sm:$0xff]
      %v2718 = vld [vmem:[#allocation19 + $0xd10] sm:$0xff]
      %v2719 = vld [vmem:[#allocation19 + $0xd18] sm:$0xff]
      %v2720 = vld [vmem:[#allocation19 + $0xd20] sm:$0xff]
      %v2721 = vld [vmem:[#allocation19 + $0xd28] sm:$0xff]
      %v2722 = vld [vmem:[#allocation19 + $0xd30] sm:$0xff]
      %v2723 = vld [vmem:[#allocation19 + $0xd38] sm:$0xff]
      %v2724 = vld [vmem:[#allocation19 + $0xd40] sm:$0xff]
      %v2725 = vld [vmem:[#allocation19 + $0xd48] sm:$0xff]
      %v2726 = vld [vmem:[#allocation19 + $0xd50] sm:$0xff]
      %v2727 = vld [vmem:[#allocation19 + $0xd58] sm:$0xff]
      %v2728 = vld [vmem:[#allocation19 + $0xd60] sm:$0xff]
      %v2729 = vld [vmem:[#allocation19 + $0xd68] sm:$0xff]
      %v2730 = vld [vmem:[#allocation19 + $0xd70] sm:$0xff]
      %v2731 = vld [vmem:[#allocation19 + $0xd78] sm:$0xff]
      %v2732 = vld [vmem:[#allocation19 + $0xd80] sm:$0xff]
      %v2733 = vld [vmem:[#allocation19 + $0xd88] sm:$0xff]
      %v2734 = vld [vmem:[#allocation19 + $0xd90] sm:$0xff]
      %v2735 = vld [vmem:[#allocation19 + $0xd98] sm:$0xff]
      %v2736 = vld [vmem:[#allocation19 + $0xda0] sm:$0xff]
      %v2737 = vld [vmem:[#allocation19 + $0xda8] sm:$0xff]
      %v2738 = vld [vmem:[#allocation19 + $0xdb0] sm:$0xff]
      %v2739 = vld [vmem:[#allocation19 + $0xdb8] sm:$0xff]
      %v2740 = vld [vmem:[#allocation19 + $0xdc0] sm:$0xff]
      %v2741 = vld [vmem:[#allocation19 + $0xdc8] sm:$0xff]
      %v2742 = vld [vmem:[#allocation19 + $0xdd0] sm:$0xff]
      %v2743 = vld [vmem:[#allocation19 + $0xdd8] sm:$0xff]
      %v2744 = vld [vmem:[#allocation19 + $0xde0] sm:$0xff]
      %v2745 = vld [vmem:[#allocation19 + $0xde8] sm:$0xff]
      %v2746 = vld [vmem:[#allocation19 + $0xdf0] sm:$0xff]
      %v2747 = vld [vmem:[#allocation19 + $0xdf8] sm:$0xff]
      %v2748 = vld [vmem:[#allocation19 + $0xe00] sm:$0xff]
      %v2749 = vld [vmem:[#allocation19 + $0xe08] sm:$0xff]
      %v2750 = vld [vmem:[#allocation19 + $0xe10] sm:$0xff]
      %v2751 = vld [vmem:[#allocation19 + $0xe18] sm:$0xff]
      %v2752 = vld [vmem:[#allocation19 + $0xe20] sm:$0xff]
      %v2753 = vld [vmem:[#allocation19 + $0xe28] sm:$0xff]
      %v2754 = vld [vmem:[#allocation19 + $0xe30] sm:$0xff]
      %v2755 = vld [vmem:[#allocation19 + $0xe38] sm:$0xff]
      %v2756 = vld [vmem:[#allocation19 + $0xe40] sm:$0xff]
      %v2757 = vld [vmem:[#allocation19 + $0xe48] sm:$0xff]
      %v2758 = vld [vmem:[#allocation19 + $0xe50] sm:$0xff]
      %v2759 = vld [vmem:[#allocation19 + $0xe58] sm:$0xff]
      %v2760 = vld [vmem:[#allocation19 + $0xe60] sm:$0xff]
      %v2761 = vld [vmem:[#allocation19 + $0xe68] sm:$0xff]
      %v2762 = vld [vmem:[#allocation19 + $0xe70] sm:$0xff]
      %v2763 = vld [vmem:[#allocation19 + $0xe78] sm:$0xff]
      %v2764 = vld [vmem:[#allocation19 + $0xe80] sm:$0xff]
      %v2765 = vld [vmem:[#allocation19 + $0xe88] sm:$0xff]
      %v2766 = vld [vmem:[#allocation19 + $0xe90] sm:$0xff]
      %v2767 = vld [vmem:[#allocation19 + $0xe98] sm:$0xff]
      %v2768 = vld [vmem:[#allocation19 + $0xea0] sm:$0xff]
      %v2769 = vld [vmem:[#allocation19 + $0xea8] sm:$0xff]
      %v2770 = vld [vmem:[#allocation19 + $0xeb0] sm:$0xff]
      %v2771 = vld [vmem:[#allocation19 + $0xeb8] sm:$0xff]
      %v2772 = vld [vmem:[#allocation19 + $0xec0] sm:$0xff]
      %v2773 = vld [vmem:[#allocation19 + $0xec8] sm:$0xff]
      %v2774 = vld [vmem:[#allocation19 + $0xed0] sm:$0xff]
      %v2775 = vld [vmem:[#allocation19 + $0xed8] sm:$0xff]
      %v2776 = vld [vmem:[#allocation19 + $0xee0] sm:$0xff]
      %v2777 = vld [vmem:[#allocation19 + $0xee8] sm:$0xff]
      %v2778 = vld [vmem:[#allocation19 + $0xef0] sm:$0xff]
      %v2779 = vld [vmem:[#allocation19 + $0xef8] sm:$0xff]
      %v2780 = vld [vmem:[#allocation19 + $0xf00] sm:$0xff]
      %v2781 = vld [vmem:[#allocation19 + $0xf08] sm:$0xff]
      %v2782 = vld [vmem:[#allocation19 + $0xf10] sm:$0xff]
      %v2783 = vld [vmem:[#allocation19 + $0xf18] sm:$0xff]
      %v2784 = vld [vmem:[#allocation19 + $0xf20] sm:$0xff]
      %v2785 = vld [vmem:[#allocation19 + $0xf28] sm:$0xff]
      %v2786 = vld [vmem:[#allocation19 + $0xf30] sm:$0xff]
      %v2787 = vld [vmem:[#allocation19 + $0xf38] sm:$0xff]
      %v2788 = vld [vmem:[#allocation19 + $0xf40] sm:$0xff]
      %v2789 = vld [vmem:[#allocation19 + $0xf48] sm:$0xff]
      %v2790 = vld [vmem:[#allocation19 + $0xf50] sm:$0xff]
      %v2791 = vld [vmem:[#allocation19 + $0xf58] sm:$0xff]
      %v2792 = vld [vmem:[#allocation19 + $0xf60] sm:$0xff]
      %v2793 = vld [vmem:[#allocation19 + $0xf68] sm:$0xff]
      %v2794 = vld [vmem:[#allocation19 + $0xf70] sm:$0xff]
      %v2795 = vld [vmem:[#allocation19 + $0xf78] sm:$0xff]
      %v2796 = vld [vmem:[#allocation19 + $0xf80] sm:$0xff]
      %v2797 = vld [vmem:[#allocation19 + $0xf88] sm:$0xff]
      %v2798 = vld [vmem:[#allocation19 + $0xf90] sm:$0xff]
      %v2799 = vld [vmem:[#allocation19 + $0xf98] sm:$0xff]
      %v2800 = vld [vmem:[#allocation19 + $0xfa0] sm:$0xff]
      %v2801 = vld [vmem:[#allocation19 + $0xfa8] sm:$0xff]
      %v2802 = vld [vmem:[#allocation19 + $0xfb0] sm:$0xff]
      %v2803 = vld [vmem:[#allocation19 + $0xfb8] sm:$0xff]
      %v2804 = vld [vmem:[#allocation19 + $0xfc0] sm:$0xff]
      %v2805 = vld [vmem:[#allocation19 + $0xfc8] sm:$0xff]
      %v2806 = vld [vmem:[#allocation19 + $0xfd0] sm:$0xff]
      %v2807 = vld [vmem:[#allocation19 + $0xfd8] sm:$0xff]
      %v2808 = vld [vmem:[#allocation19 + $0xfe0] sm:$0xff]
      %v2809 = vld [vmem:[#allocation19 + $0xfe8] sm:$0xff]
      %v2810 = vld [vmem:[#allocation19 + $0xff0] sm:$0xff]
      %v2811 = vld [vmem:[#allocation19 + $0xff8] sm:$0xff]
      %v2812 = vld [vmem:[#allocation21] sm:$0xff]
      %v2814 = vperm.slane %v2812, 0
      %v2815 = vperm.slane %v2812, 1
      %v2816 = vperm.slane %v2812, 2
      %v2817 = vperm.slane %v2812, 3
      %v2818 = vperm.slane %v2812, 4
      %v2819 = vperm.slane %v2812, 5
      %v2820 = vperm.slane %v2812, 6
      %v2821 = vperm.slane %v2812, 7
      %2830 = vmatpush.msra.mxu0 %v2420
      %2831 = vmatpush.msra.mxu0 %v2412
      %2832 = vmatpush.msra.mxu0 %v2404
      %2833 = vmatpush.msra.mxu0 %v2396
      %2834 = vmatpush.msra.mxu0 %v2388
      %2835 = vmatpush.msra.mxu0 %v2380
      %2836 = vmatpush.msra.mxu0 %v2372
      %2837 = vmatpush.msra.mxu0 %v2364
      %2838 = vmatpush.msra.mxu0 %v2356
      %2839 = vmatpush.msra.mxu0 %v2348
      %2840 = vmatpush.msra.mxu0 %v2340
      %2841 = vmatpush.msra.mxu0 %v2332
      %2842 = vmatpush.msra.mxu0 %v2324
      %2843 = vmatpush.msra.mxu0 %v2316
      %2844 = vmatpush.msra.mxu0 %v2308
      %2845 = vmatpush.msra.mxu0 %v2300
      %2846 = vmatmul.f32.gmra.mxu0 %v2296
      %v2847 = vpop.f32.mrf.mxu0
      %v2848 = vadd.f32 %v2814, %v2847
      %2849 = vdwg.mxu0
      %2850 = vmatpush.msra.mxu0 %v2548
      %2851 = vmatpush.msra.mxu0 %v2540
      %2852 = vmatpush.msra.mxu0 %v2532
      %2853 = vmatpush.msra.mxu0 %v2524
      %2854 = vmatpush.msra.mxu0 %v2516
      %2855 = vmatpush.msra.mxu0 %v2508
      %2856 = vmatpush.msra.mxu0 %v2500
      %2857 = vmatpush.msra.mxu0 %v2492
      %2858 = vmatpush.msra.mxu0 %v2484
      %2859 = vmatpush.msra.mxu0 %v2476
      %2860 = vmatpush.msra.mxu0 %v2468
      %2861 = vmatpush.msra.mxu0 %v2460
      %2862 = vmatpush.msra.mxu0 %v2452
      %2863 = vmatpush.msra.mxu0 %v2444
      %2864 = vmatpush.msra.mxu0 %v2436
      %2865 = vmatpush.msra.mxu0 %v2428
      %2866 = vmatmul.f32.gmra.mxu0 %v2297
      %v2867 = vpop.f32.mrf.mxu0
      %v2868 = vadd.f32 %v2848, %v2867
      %2869 = vdwg.mxu0
      %2870 = vmatpush.msra.mxu0 %v2676
      %2871 = vmatpush.msra.mxu0 %v2668
      %2872 = vmatpush.msra.mxu0 %v2660
      %2873 = vmatpush.msra.mxu0 %v2652
      %2874 = vmatpush.msra.mxu0 %v2644
      %2875 = vmatpush.msra.mxu0 %v2636
      %2876 = vmatpush.msra.mxu0 %v2628
      %2877 = vmatpush.msra.mxu0 %v2620
      %2878 = vmatpush.msra.mxu0 %v2612
      %2879 = vmatpush.msra.mxu0 %v2604
      %2880 = vmatpush.msra.mxu0 %v2596
      %2881 = vmatpush.msra.mxu0 %v2588
      %2882 = vmatpush.msra.mxu0 %v2580
      %2883 = vmatpush.msra.mxu0 %v2572
      %2884 = vmatpush.msra.mxu0 %v2564
      %2885 = vmatpush.msra.mxu0 %v2556
      %2886 = vmatmul.f32.gmra.mxu0 %v2298
      %v2887 = vpop.f32.mrf.mxu0
      %v2888 = vadd.f32 %v2868, %v2887
      %2889 = vdwg.mxu0
      %2890 = vmatpush.msra.mxu0 %v2804
      %2891 = vmatpush.msra.mxu0 %v2796
      %2892 = vmatpush.msra.mxu0 %v2788
      %2893 = vmatpush.msra.mxu0 %v2780
      %2894 = vmatpush.msra.mxu0 %v2772
      %2895 = vmatpush.msra.mxu0 %v2764
      %2896 = vmatpush.msra.mxu0 %v2756
      %2897 = vmatpush.msra.mxu0 %v2748
      %2898 = vmatpush.msra.mxu0 %v2740
      %2899 = vmatpush.msra.mxu0 %v2732
      %2900 = vmatpush.msra.mxu0 %v2724
      %2901 = vmatpush.msra.mxu0 %v2716
      %2902 = vmatpush.msra.mxu0 %v2708
      %2903 = vmatpush.msra.mxu0 %v2700
      %2904 = vmatpush.msra.mxu0 %v2692
      %2905 = vmatpush.msra.mxu0 %v2684
      %2906 = vmatmul.f32.gmra.mxu0 %v2299
      %v2907 = vpop.f32.mrf.mxu0
      %v2908 = vadd.f32 %v2888, %v2907
      %2909 = vdwg.mxu0
      %2910 = vmatpush.msra.mxu0 %v2421
      %2911 = vmatpush.msra.mxu0 %v2413
      %2912 = vmatpush.msra.mxu0 %v2405
      %2913 = vmatpush.msra.mxu0 %v2397
      %2914 = vmatpush.msra.mxu0 %v2389
      %2915 = vmatpush.msra.mxu0 %v2381
      %2916 = vmatpush.msra.mxu0 %v2373
      %2917 = vmatpush.msra.mxu0 %v2365
      %2918 = vmatpush.msra.mxu0 %v2357
      %2919 = vmatpush.msra.mxu0 %v2349
      %2920 = vmatpush.msra.mxu0 %v2341
      %2921 = vmatpush.msra.mxu0 %v2333
      %2922 = vmatpush.msra.mxu0 %v2325
      %2923 = vmatpush.msra.mxu0 %v2317
      %2924 = vmatpush.msra.mxu0 %v2309
      %2925 = vmatpush.msra.mxu0 %v2301
      %2926 = vmatmul.f32.gmra.mxu0 %v2296
      %v2927 = vpop.f32.mrf.mxu0
      %v2928 = vadd.f32 %v2815, %v2927
      %2929 = vdwg.mxu0
      %2930 = vmatpush.msra.mxu0 %v2549
      %2931 = vmatpush.msra.mxu0 %v2541
      %2932 = vmatpush.msra.mxu0 %v2533
      %2933 = vmatpush.msra.mxu0 %v2525
      %2934 = vmatpush.msra.mxu0 %v2517
      %2935 = vmatpush.msra.mxu0 %v2509
      %2936 = vmatpush.msra.mxu0 %v2501
      %2937 = vmatpush.msra.mxu0 %v2493
      %2938 = vmatpush.msra.mxu0 %v2485
      %2939 = vmatpush.msra.mxu0 %v2477
      %2940 = vmatpush.msra.mxu0 %v2469
      %2941 = vmatpush.msra.mxu0 %v2461
      %2942 = vmatpush.msra.mxu0 %v2453
      %2943 = vmatpush.msra.mxu0 %v2445
      %2944 = vmatpush.msra.mxu0 %v2437
      %2945 = vmatpush.msra.mxu0 %v2429
      %2946 = vmatmul.f32.gmra.mxu0 %v2297
      %v2947 = vpop.f32.mrf.mxu0
      %v2948 = vadd.f32 %v2928, %v2947
      %2949 = vdwg.mxu0
      %2950 = vmatpush.msra.mxu0 %v2677
      %2951 = vmatpush.msra.mxu0 %v2669
      %2952 = vmatpush.msra.mxu0 %v2661
      %2953 = vmatpush.msra.mxu0 %v2653
      %2954 = vmatpush.msra.mxu0 %v2645
      %2955 = vmatpush.msra.mxu0 %v2637
      %2956 = vmatpush.msra.mxu0 %v2629
      %2957 = vmatpush.msra.mxu0 %v2621
      %2958 = vmatpush.msra.mxu0 %v2613
      %2959 = vmatpush.msra.mxu0 %v2605
      %2960 = vmatpush.msra.mxu0 %v2597
      %2961 = vmatpush.msra.mxu0 %v2589
      %2962 = vmatpush.msra.mxu0 %v2581
      %2963 = vmatpush.msra.mxu0 %v2573
      %2964 = vmatpush.msra.mxu0 %v2565
      %2965 = vmatpush.msra.mxu0 %v2557
      %2966 = vmatmul.f32.gmra.mxu0 %v2298
      %v2967 = vpop.f32.mrf.mxu0
      %v2968 = vadd.f32 %v2948, %v2967
      %2969 = vdwg.mxu0
      %2970 = vmatpush.msra.mxu0 %v2805
      %2971 = vmatpush.msra.mxu0 %v2797
      %2972 = vmatpush.msra.mxu0 %v2789
      %2973 = vmatpush.msra.mxu0 %v2781
      %2974 = vmatpush.msra.mxu0 %v2773
      %2975 = vmatpush.msra.mxu0 %v2765
      %2976 = vmatpush.msra.mxu0 %v2757
      %2977 = vmatpush.msra.mxu0 %v2749
      %2978 = vmatpush.msra.mxu0 %v2741
      %2979 = vmatpush.msra.mxu0 %v2733
      %2980 = vmatpush.msra.mxu0 %v2725
      %2981 = vmatpush.msra.mxu0 %v2717
      %2982 = vmatpush.msra.mxu0 %v2709
      %2983 = vmatpush.msra.mxu0 %v2701
      %2984 = vmatpush.msra.mxu0 %v2693
      %2985 = vmatpush.msra.mxu0 %v2685
      %2986 = vmatmul.f32.gmra.mxu0 %v2299
      %v2987 = vpop.f32.mrf.mxu0
      %v2988 = vadd.f32 %v2968, %v2987
      %2989 = vdwg.mxu0
      %2990 = vmatpush.msra.mxu0 %v2422
      %2991 = vmatpush.msra.mxu0 %v2414
      %2992 = vmatpush.msra.mxu0 %v2406
      %2993 = vmatpush.msra.mxu0 %v2398
      %2994 = vmatpush.msra.mxu0 %v2390
      %2995 = vmatpush.msra.mxu0 %v2382
      %2996 = vmatpush.msra.mxu0 %v2374
      %2997 = vmatpush.msra.mxu0 %v2366
      %2998 = vmatpush.msra.mxu0 %v2358
      %2999 = vmatpush.msra.mxu0 %v2350
      %3000 = vmatpush.msra.mxu0 %v2342
      %3001 = vmatpush.msra.mxu0 %v2334
      %3002 = vmatpush.msra.mxu0 %v2326
      %3003 = vmatpush.msra.mxu0 %v2318
      %3004 = vmatpush.msra.mxu0 %v2310
      %3005 = vmatpush.msra.mxu0 %v2302
      %3006 = vmatmul.f32.gmra.mxu0 %v2296
      %v3007 = vpop.f32.mrf.mxu0
      %v3008 = vadd.f32 %v2816, %v3007
      %3009 = vdwg.mxu0
      %3010 = vmatpush.msra.mxu0 %v2550
      %3011 = vmatpush.msra.mxu0 %v2542
      %3012 = vmatpush.msra.mxu0 %v2534
      %3013 = vmatpush.msra.mxu0 %v2526
      %3014 = vmatpush.msra.mxu0 %v2518
      %3015 = vmatpush.msra.mxu0 %v2510
      %3016 = vmatpush.msra.mxu0 %v2502
      %3017 = vmatpush.msra.mxu0 %v2494
      %3018 = vmatpush.msra.mxu0 %v2486
      %3019 = vmatpush.msra.mxu0 %v2478
      %3020 = vmatpush.msra.mxu0 %v2470
      %3021 = vmatpush.msra.mxu0 %v2462
      %3022 = vmatpush.msra.mxu0 %v2454
      %3023 = vmatpush.msra.mxu0 %v2446
      %3024 = vmatpush.msra.mxu0 %v2438
      %3025 = vmatpush.msra.mxu0 %v2430
      %3026 = vmatmul.f32.gmra.mxu0 %v2297
      %v3027 = vpop.f32.mrf.mxu0
      %v3028 = vadd.f32 %v3008, %v3027
      %3029 = vdwg.mxu0
      %3030 = vmatpush.msra.mxu0 %v2678
      %3031 = vmatpush.msra.mxu0 %v2670
      %3032 = vmatpush.msra.mxu0 %v2662
      %3033 = vmatpush.msra.mxu0 %v2654
      %3034 = vmatpush.msra.mxu0 %v2646
      %3035 = vmatpush.msra.mxu0 %v2638
      %3036 = vmatpush.msra.mxu0 %v2630
      %3037 = vmatpush.msra.mxu0 %v2622
      %3038 = vmatpush.msra.mxu0 %v2614
      %3039 = vmatpush.msra.mxu0 %v2606
      %3040 = vmatpush.msra.mxu0 %v2598
      %3041 = vmatpush.msra.mxu0 %v2590
      %3042 = vmatpush.msra.mxu0 %v2582
      %3043 = vmatpush.msra.mxu0 %v2574
      %3044 = vmatpush.msra.mxu0 %v2566
      %3045 = vmatpush.msra.mxu0 %v2558
      %3046 = vmatmul.f32.gmra.mxu0 %v2298
      %v3047 = vpop.f32.mrf.mxu0
      %v3048 = vadd.f32 %v3028, %v3047
      %3049 = vdwg.mxu0
      %3050 = vmatpush.msra.mxu0 %v2806
      %3051 = vmatpush.msra.mxu0 %v2798
      %3052 = vmatpush.msra.mxu0 %v2790
      %3053 = vmatpush.msra.mxu0 %v2782
      %3054 = vmatpush.msra.mxu0 %v2774
      %3055 = vmatpush.msra.mxu0 %v2766
      %3056 = vmatpush.msra.mxu0 %v2758
      %3057 = vmatpush.msra.mxu0 %v2750
      %3058 = vmatpush.msra.mxu0 %v2742
      %3059 = vmatpush.msra.mxu0 %v2734
      %3060 = vmatpush.msra.mxu0 %v2726
      %3061 = vmatpush.msra.mxu0 %v2718
      %3062 = vmatpush.msra.mxu0 %v2710
      %3063 = vmatpush.msra.mxu0 %v2702
      %3064 = vmatpush.msra.mxu0 %v2694
      %3065 = vmatpush.msra.mxu0 %v2686
      %3066 = vmatmul.f32.gmra.mxu0 %v2299
      %v3067 = vpop.f32.mrf.mxu0
      %v3068 = vadd.f32 %v3048, %v3067
      %3069 = vdwg.mxu0
      %3070 = vmatpush.msra.mxu0 %v2423
      %3071 = vmatpush.msra.mxu0 %v2415
      %3072 = vmatpush.msra.mxu0 %v2407
      %3073 = vmatpush.msra.mxu0 %v2399
      %3074 = vmatpush.msra.mxu0 %v2391
      %3075 = vmatpush.msra.mxu0 %v2383
      %3076 = vmatpush.msra.mxu0 %v2375
      %3077 = vmatpush.msra.mxu0 %v2367
      %3078 = vmatpush.msra.mxu0 %v2359
      %3079 = vmatpush.msra.mxu0 %v2351
      %3080 = vmatpush.msra.mxu0 %v2343
      %3081 = vmatpush.msra.mxu0 %v2335
      %3082 = vmatpush.msra.mxu0 %v2327
      %3083 = vmatpush.msra.mxu0 %v2319
      %3084 = vmatpush.msra.mxu0 %v2311
      %3085 = vmatpush.msra.mxu0 %v2303
      %3086 = vmatmul.f32.gmra.mxu0 %v2296
      %v3087 = vpop.f32.mrf.mxu0
      %v3088 = vadd.f32 %v2817, %v3087
      %3089 = vdwg.mxu0
      %3090 = vmatpush.msra.mxu0 %v2551
      %3091 = vmatpush.msra.mxu0 %v2543
      %3092 = vmatpush.msra.mxu0 %v2535
      %3093 = vmatpush.msra.mxu0 %v2527
      %3094 = vmatpush.msra.mxu0 %v2519
      %3095 = vmatpush.msra.mxu0 %v2511
      %3096 = vmatpush.msra.mxu0 %v2503
      %3097 = vmatpush.msra.mxu0 %v2495
      %3098 = vmatpush.msra.mxu0 %v2487
      %3099 = vmatpush.msra.mxu0 %v2479
      %3100 = vmatpush.msra.mxu0 %v2471
      %3101 = vmatpush.msra.mxu0 %v2463
      %3102 = vmatpush.msra.mxu0 %v2455
      %3103 = vmatpush.msra.mxu0 %v2447
      %3104 = vmatpush.msra.mxu0 %v2439
      %3105 = vmatpush.msra.mxu0 %v2431
      %3106 = vmatmul.f32.gmra.mxu0 %v2297
      %v3107 = vpop.f32.mrf.mxu0
      %v3108 = vadd.f32 %v3088, %v3107
      %3109 = vdwg.mxu0
      %3110 = vmatpush.msra.mxu0 %v2679
      %3111 = vmatpush.msra.mxu0 %v2671
      %3112 = vmatpush.msra.mxu0 %v2663
      %3113 = vmatpush.msra.mxu0 %v2655
      %3114 = vmatpush.msra.mxu0 %v2647
      %3115 = vmatpush.msra.mxu0 %v2639
      %3116 = vmatpush.msra.mxu0 %v2631
      %3117 = vmatpush.msra.mxu0 %v2623
      %3118 = vmatpush.msra.mxu0 %v2615
      %3119 = vmatpush.msra.mxu0 %v2607
      %3120 = vmatpush.msra.mxu0 %v2599
      %3121 = vmatpush.msra.mxu0 %v2591
      %3122 = vmatpush.msra.mxu0 %v2583
      %3123 = vmatpush.msra.mxu0 %v2575
      %3124 = vmatpush.msra.mxu0 %v2567
      %3125 = vmatpush.msra.mxu0 %v2559
      %3126 = vmatmul.f32.gmra.mxu0 %v2298
      %v3127 = vpop.f32.mrf.mxu0
      %v3128 = vadd.f32 %v3108, %v3127
      %3129 = vdwg.mxu0
      %3130 = vmatpush.msra.mxu0 %v2807
      %3131 = vmatpush.msra.mxu0 %v2799
      %3132 = vmatpush.msra.mxu0 %v2791
      %3133 = vmatpush.msra.mxu0 %v2783
      %3134 = vmatpush.msra.mxu0 %v2775
      %3135 = vmatpush.msra.mxu0 %v2767
      %3136 = vmatpush.msra.mxu0 %v2759
      %3137 = vmatpush.msra.mxu0 %v2751
      %3138 = vmatpush.msra.mxu0 %v2743
      %3139 = vmatpush.msra.mxu0 %v2735
      %3140 = vmatpush.msra.mxu0 %v2727
      %3141 = vmatpush.msra.mxu0 %v2719
      %3142 = vmatpush.msra.mxu0 %v2711
      %3143 = vmatpush.msra.mxu0 %v2703
      %3144 = vmatpush.msra.mxu0 %v2695
      %3145 = vmatpush.msra.mxu0 %v2687
      %3146 = vmatmul.f32.gmra.mxu0 %v2299
      %v3147 = vpop.f32.mrf.mxu0
      %v3148 = vadd.f32 %v3128, %v3147
      %3149 = vdwg.mxu0
      %3150 = vmatpush.msra.mxu0 %v2424
      %3151 = vmatpush.msra.mxu0 %v2416
      %3152 = vmatpush.msra.mxu0 %v2408
      %3153 = vmatpush.msra.mxu0 %v2400
      %3154 = vmatpush.msra.mxu0 %v2392
      %3155 = vmatpush.msra.mxu0 %v2384
      %3156 = vmatpush.msra.mxu0 %v2376
      %3157 = vmatpush.msra.mxu0 %v2368
      %3158 = vmatpush.msra.mxu0 %v2360
      %3159 = vmatpush.msra.mxu0 %v2352
      %3160 = vmatpush.msra.mxu0 %v2344
      %3161 = vmatpush.msra.mxu0 %v2336
      %3162 = vmatpush.msra.mxu0 %v2328
      %3163 = vmatpush.msra.mxu0 %v2320
      %3164 = vmatpush.msra.mxu0 %v2312
      %3165 = vmatpush.msra.mxu0 %v2304
      %3166 = vmatmul.f32.gmra.mxu0 %v2296
      %v3167 = vpop.f32.mrf.mxu0
      %v3168 = vadd.f32 %v2818, %v3167
      %3169 = vdwg.mxu0
      %3170 = vmatpush.msra.mxu0 %v2552
      %3171 = vmatpush.msra.mxu0 %v2544
      %3172 = vmatpush.msra.mxu0 %v2536
      %3173 = vmatpush.msra.mxu0 %v2528
      %3174 = vmatpush.msra.mxu0 %v2520
      %3175 = vmatpush.msra.mxu0 %v2512
      %3176 = vmatpush.msra.mxu0 %v2504
      %3177 = vmatpush.msra.mxu0 %v2496
      %3178 = vmatpush.msra.mxu0 %v2488
      %3179 = vmatpush.msra.mxu0 %v2480
      %3180 = vmatpush.msra.mxu0 %v2472
      %3181 = vmatpush.msra.mxu0 %v2464
      %3182 = vmatpush.msra.mxu0 %v2456
      %3183 = vmatpush.msra.mxu0 %v2448
      %3184 = vmatpush.msra.mxu0 %v2440
      %3185 = vmatpush.msra.mxu0 %v2432
      %3186 = vmatmul.f32.gmra.mxu0 %v2297
      %v3187 = vpop.f32.mrf.mxu0
      %v3188 = vadd.f32 %v3168, %v3187
      %3189 = vdwg.mxu0
      %3190 = vmatpush.msra.mxu0 %v2680
      %3191 = vmatpush.msra.mxu0 %v2672
      %3192 = vmatpush.msra.mxu0 %v2664
      %3193 = vmatpush.msra.mxu0 %v2656
      %3194 = vmatpush.msra.mxu0 %v2648
      %3195 = vmatpush.msra.mxu0 %v2640
      %3196 = vmatpush.msra.mxu0 %v2632
      %3197 = vmatpush.msra.mxu0 %v2624
      %3198 = vmatpush.msra.mxu0 %v2616
      %3199 = vmatpush.msra.mxu0 %v2608
      %3200 = vmatpush.msra.mxu0 %v2600
      %3201 = vmatpush.msra.mxu0 %v2592
      %3202 = vmatpush.msra.mxu0 %v2584
      %3203 = vmatpush.msra.mxu0 %v2576
      %3204 = vmatpush.msra.mxu0 %v2568
      %3205 = vmatpush.msra.mxu0 %v2560
      %3206 = vmatmul.f32.gmra.mxu0 %v2298
      %v3207 = vpop.f32.mrf.mxu0
      %v3208 = vadd.f32 %v3188, %v3207
      %3209 = vdwg.mxu0
      %3210 = vmatpush.msra.mxu0 %v2808
      %3211 = vmatpush.msra.mxu0 %v2800
      %3212 = vmatpush.msra.mxu0 %v2792
      %3213 = vmatpush.msra.mxu0 %v2784
      %3214 = vmatpush.msra.mxu0 %v2776
      %3215 = vmatpush.msra.mxu0 %v2768
      %3216 = vmatpush.msra.mxu0 %v2760
      %3217 = vmatpush.msra.mxu0 %v2752
      %3218 = vmatpush.msra.mxu0 %v2744
      %3219 = vmatpush.msra.mxu0 %v2736
      %3220 = vmatpush.msra.mxu0 %v2728
      %3221 = vmatpush.msra.mxu0 %v2720
      %3222 = vmatpush.msra.mxu0 %v2712
      %3223 = vmatpush.msra.mxu0 %v2704
      %3224 = vmatpush.msra.mxu0 %v2696
      %3225 = vmatpush.msra.mxu0 %v2688
      %3226 = vmatmul.f32.gmra.mxu0 %v2299
      %v3227 = vpop.f32.mrf.mxu0
      %v3228 = vadd.f32 %v3208, %v3227
      %3229 = vdwg.mxu0
      %3230 = vmatpush.msra.mxu0 %v2425
      %3231 = vmatpush.msra.mxu0 %v2417
      %3232 = vmatpush.msra.mxu0 %v2409
      %3233 = vmatpush.msra.mxu0 %v2401
      %3234 = vmatpush.msra.mxu0 %v2393
      %3235 = vmatpush.msra.mxu0 %v2385
      %3236 = vmatpush.msra.mxu0 %v2377
      %3237 = vmatpush.msra.mxu0 %v2369
      %3238 = vmatpush.msra.mxu0 %v2361
      %3239 = vmatpush.msra.mxu0 %v2353
      %3240 = vmatpush.msra.mxu0 %v2345
      %3241 = vmatpush.msra.mxu0 %v2337
      %3242 = vmatpush.msra.mxu0 %v2329
      %3243 = vmatpush.msra.mxu0 %v2321
      %3244 = vmatpush.msra.mxu0 %v2313
      %3245 = vmatpush.msra.mxu0 %v2305
      %3246 = vmatmul.f32.gmra.mxu0 %v2296
      %v3247 = vpop.f32.mrf.mxu0
      %v3248 = vadd.f32 %v2819, %v3247
      %3249 = vdwg.mxu0
      %3250 = vmatpush.msra.mxu0 %v2553
      %3251 = vmatpush.msra.mxu0 %v2545
      %3252 = vmatpush.msra.mxu0 %v2537
      %3253 = vmatpush.msra.mxu0 %v2529
      %3254 = vmatpush.msra.mxu0 %v2521
      %3255 = vmatpush.msra.mxu0 %v2513
      %3256 = vmatpush.msra.mxu0 %v2505
      %3257 = vmatpush.msra.mxu0 %v2497
      %3258 = vmatpush.msra.mxu0 %v2489
      %3259 = vmatpush.msra.mxu0 %v2481
      %3260 = vmatpush.msra.mxu0 %v2473
      %3261 = vmatpush.msra.mxu0 %v2465
      %3262 = vmatpush.msra.mxu0 %v2457
      %3263 = vmatpush.msra.mxu0 %v2449
      %3264 = vmatpush.msra.mxu0 %v2441
      %3265 = vmatpush.msra.mxu0 %v2433
      %3266 = vmatmul.f32.gmra.mxu0 %v2297
      %v3267 = vpop.f32.mrf.mxu0
      %v3268 = vadd.f32 %v3248, %v3267
      %3269 = vdwg.mxu0
      %3270 = vmatpush.msra.mxu0 %v2681
      %3271 = vmatpush.msra.mxu0 %v2673
      %3272 = vmatpush.msra.mxu0 %v2665
      %3273 = vmatpush.msra.mxu0 %v2657
      %3274 = vmatpush.msra.mxu0 %v2649
      %3275 = vmatpush.msra.mxu0 %v2641
      %3276 = vmatpush.msra.mxu0 %v2633
      %3277 = vmatpush.msra.mxu0 %v2625
      %3278 = vmatpush.msra.mxu0 %v2617
      %3279 = vmatpush.msra.mxu0 %v2609
      %3280 = vmatpush.msra.mxu0 %v2601
      %3281 = vmatpush.msra.mxu0 %v2593
      %3282 = vmatpush.msra.mxu0 %v2585
      %3283 = vmatpush.msra.mxu0 %v2577
      %3284 = vmatpush.msra.mxu0 %v2569
      %3285 = vmatpush.msra.mxu0 %v2561
      %3286 = vmatmul.f32.gmra.mxu0 %v2298
      %v3287 = vpop.f32.mrf.mxu0
      %v3288 = vadd.f32 %v3268, %v3287
      %3289 = vdwg.mxu0
      %3290 = vmatpush.msra.mxu0 %v2809
      %3291 = vmatpush.msra.mxu0 %v2801
      %3292 = vmatpush.msra.mxu0 %v2793
      %3293 = vmatpush.msra.mxu0 %v2785
      %3294 = vmatpush.msra.mxu0 %v2777
      %3295 = vmatpush.msra.mxu0 %v2769
      %3296 = vmatpush.msra.mxu0 %v2761
      %3297 = vmatpush.msra.mxu0 %v2753
      %3298 = vmatpush.msra.mxu0 %v2745
      %3299 = vmatpush.msra.mxu0 %v2737
      %3300 = vmatpush.msra.mxu0 %v2729
      %3301 = vmatpush.msra.mxu0 %v2721
      %3302 = vmatpush.msra.mxu0 %v2713
      %3303 = vmatpush.msra.mxu0 %v2705
      %3304 = vmatpush.msra.mxu0 %v2697
      %3305 = vmatpush.msra.mxu0 %v2689
      %3306 = vmatmul.f32.gmra.mxu0 %v2299
      %v3307 = vpop.f32.mrf.mxu0
      %v3308 = vadd.f32 %v3288, %v3307
      %3309 = vdwg.mxu0
      %3310 = vmatpush.msra.mxu0 %v2426
      %3311 = vmatpush.msra.mxu0 %v2418
      %3312 = vmatpush.msra.mxu0 %v2410
      %3313 = vmatpush.msra.mxu0 %v2402
      %3314 = vmatpush.msra.mxu0 %v2394
      %3315 = vmatpush.msra.mxu0 %v2386
      %3316 = vmatpush.msra.mxu0 %v2378
      %3317 = vmatpush.msra.mxu0 %v2370
      %3318 = vmatpush.msra.mxu0 %v2362
      %3319 = vmatpush.msra.mxu0 %v2354
      %3320 = vmatpush.msra.mxu0 %v2346
      %3321 = vmatpush.msra.mxu0 %v2338
      %3322 = vmatpush.msra.mxu0 %v2330
      %3323 = vmatpush.msra.mxu0 %v2322
      %3324 = vmatpush.msra.mxu0 %v2314
      %3325 = vmatpush.msra.mxu0 %v2306
      %3326 = vmatmul.f32.gmra.mxu0 %v2296
      %v3327 = vpop.f32.mrf.mxu0
      %v3328 = vadd.f32 %v2820, %v3327
      %3329 = vdwg.mxu0
      %3330 = vmatpush.msra.mxu0 %v2554
      %3331 = vmatpush.msra.mxu0 %v2546
      %3332 = vmatpush.msra.mxu0 %v2538
      %3333 = vmatpush.msra.mxu0 %v2530
      %3334 = vmatpush.msra.mxu0 %v2522
      %3335 = vmatpush.msra.mxu0 %v2514
      %3336 = vmatpush.msra.mxu0 %v2506
      %3337 = vmatpush.msra.mxu0 %v2498
      %3338 = vmatpush.msra.mxu0 %v2490
      %3339 = vmatpush.msra.mxu0 %v2482
      %3340 = vmatpush.msra.mxu0 %v2474
      %3341 = vmatpush.msra.mxu0 %v2466
      %3342 = vmatpush.msra.mxu0 %v2458
      %3343 = vmatpush.msra.mxu0 %v2450
      %3344 = vmatpush.msra.mxu0 %v2442
      %3345 = vmatpush.msra.mxu0 %v2434
      %3346 = vmatmul.f32.gmra.mxu0 %v2297
      %v3347 = vpop.f32.mrf.mxu0
      %v3348 = vadd.f32 %v3328, %v3347
      %3349 = vdwg.mxu0
      %3350 = vmatpush.msra.mxu0 %v2682
      %3351 = vmatpush.msra.mxu0 %v2674
      %3352 = vmatpush.msra.mxu0 %v2666
      %3353 = vmatpush.msra.mxu0 %v2658
      %3354 = vmatpush.msra.mxu0 %v2650
      %3355 = vmatpush.msra.mxu0 %v2642
      %3356 = vmatpush.msra.mxu0 %v2634
      %3357 = vmatpush.msra.mxu0 %v2626
      %3358 = vmatpush.msra.mxu0 %v2618
      %3359 = vmatpush.msra.mxu0 %v2610
      %3360 = vmatpush.msra.mxu0 %v2602
      %3361 = vmatpush.msra.mxu0 %v2594
      %3362 = vmatpush.msra.mxu0 %v2586
      %3363 = vmatpush.msra.mxu0 %v2578
      %3364 = vmatpush.msra.mxu0 %v2570
      %3365 = vmatpush.msra.mxu0 %v2562
      %3366 = vmatmul.f32.gmra.mxu0 %v2298
      %v3367 = vpop.f32.mrf.mxu0
      %v3368 = vadd.f32 %v3348, %v3367
      %3369 = vdwg.mxu0
      %3370 = vmatpush.msra.mxu0 %v2810
      %3371 = vmatpush.msra.mxu0 %v2802
      %3372 = vmatpush.msra.mxu0 %v2794
      %3373 = vmatpush.msra.mxu0 %v2786
      %3374 = vmatpush.msra.mxu0 %v2778
      %3375 = vmatpush.msra.mxu0 %v2770
      %3376 = vmatpush.msra.mxu0 %v2762
      %3377 = vmatpush.msra.mxu0 %v2754
      %3378 = vmatpush.msra.mxu0 %v2746
      %3379 = vmatpush.msra.mxu0 %v2738
      %3380 = vmatpush.msra.mxu0 %v2730
      %3381 = vmatpush.msra.mxu0 %v2722
      %3382 = vmatpush.msra.mxu0 %v2714
      %3383 = vmatpush.msra.mxu0 %v2706
      %3384 = vmatpush.msra.mxu0 %v2698
      %3385 = vmatpush.msra.mxu0 %v2690
      %3386 = vmatmul.f32.gmra.mxu0 %v2299
      %v3387 = vpop.f32.mrf.mxu0
      %v3388 = vadd.f32 %v3368, %v3387
      %3389 = vdwg.mxu0
      %3390 = vmatpush.msra.mxu0 %v2427
      %3391 = vmatpush.msra.mxu0 %v2419
      %3392 = vmatpush.msra.mxu0 %v2411
      %3393 = vmatpush.msra.mxu0 %v2403
      %3394 = vmatpush.msra.mxu0 %v2395
      %3395 = vmatpush.msra.mxu0 %v2387
      %3396 = vmatpush.msra.mxu0 %v2379
      %3397 = vmatpush.msra.mxu0 %v2371
      %3398 = vmatpush.msra.mxu0 %v2363
      %3399 = vmatpush.msra.mxu0 %v2355
      %3400 = vmatpush.msra.mxu0 %v2347
      %3401 = vmatpush.msra.mxu0 %v2339
      %3402 = vmatpush.msra.mxu0 %v2331
      %3403 = vmatpush.msra.mxu0 %v2323
      %3404 = vmatpush.msra.mxu0 %v2315
      %3405 = vmatpush.msra.mxu0 %v2307
      %3406 = vmatmul.f32.gmra.mxu0 %v2296
      %v3407 = vpop.f32.mrf.mxu0
      %v3408 = vadd.f32 %v2821, %v3407
      %3409 = vdwg.mxu0
      %3410 = vmatpush.msra.mxu0 %v2555
      %3411 = vmatpush.msra.mxu0 %v2547
      %3412 = vmatpush.msra.mxu0 %v2539
      %3413 = vmatpush.msra.mxu0 %v2531
      %3414 = vmatpush.msra.mxu0 %v2523
      %3415 = vmatpush.msra.mxu0 %v2515
      %3416 = vmatpush.msra.mxu0 %v2507
      %3417 = vmatpush.msra.mxu0 %v2499
      %3418 = vmatpush.msra.mxu0 %v2491
      %3419 = vmatpush.msra.mxu0 %v2483
      %3420 = vmatpush.msra.mxu0 %v2475
      %3421 = vmatpush.msra.mxu0 %v2467
      %3422 = vmatpush.msra.mxu0 %v2459
      %3423 = vmatpush.msra.mxu0 %v2451
      %3424 = vmatpush.msra.mxu0 %v2443
      %3425 = vmatpush.msra.mxu0 %v2435
      %3426 = vmatmul.f32.gmra.mxu0 %v2297
      %v3427 = vpop.f32.mrf.mxu0
      %v3428 = vadd.f32 %v3408, %v3427
      %3429 = vdwg.mxu0
      %3430 = vmatpush.msra.mxu0 %v2683
      %3431 = vmatpush.msra.mxu0 %v2675
      %3432 = vmatpush.msra.mxu0 %v2667
      %3433 = vmatpush.msra.mxu0 %v2659
      %3434 = vmatpush.msra.mxu0 %v2651
      %3435 = vmatpush.msra.mxu0 %v2643
      %3436 = vmatpush.msra.mxu0 %v2635
      %3437 = vmatpush.msra.mxu0 %v2627
      %3438 = vmatpush.msra.mxu0 %v2619
      %3439 = vmatpush.msra.mxu0 %v2611
      %3440 = vmatpush.msra.mxu0 %v2603
      %3441 = vmatpush.msra.mxu0 %v2595
      %3442 = vmatpush.msra.mxu0 %v2587
      %3443 = vmatpush.msra.mxu0 %v2579
      %3444 = vmatpush.msra.mxu0 %v2571
      %3445 = vmatpush.msra.mxu0 %v2563
      %3446 = vmatmul.f32.gmra.mxu0 %v2298
      %v3447 = vpop.f32.mrf.mxu0
      %v3448 = vadd.f32 %v3428, %v3447
      %3449 = vdwg.mxu0
      %3450 = vmatpush.msra.mxu0 %v2811
      %3451 = vmatpush.msra.mxu0 %v2803
      %3452 = vmatpush.msra.mxu0 %v2795
      %3453 = vmatpush.msra.mxu0 %v2787
      %3454 = vmatpush.msra.mxu0 %v2779
      %3455 = vmatpush.msra.mxu0 %v2771
      %3456 = vmatpush.msra.mxu0 %v2763
      %3457 = vmatpush.msra.mxu0 %v2755
      %3458 = vmatpush.msra.mxu0 %v2747
      %3459 = vmatpush.msra.mxu0 %v2739
      %3460 = vmatpush.msra.mxu0 %v2731
      %3461 = vmatpush.msra.mxu0 %v2723
      %3462 = vmatpush.msra.mxu0 %v2715
      %3463 = vmatpush.msra.mxu0 %v2707
      %3464 = vmatpush.msra.mxu0 %v2699
      %3465 = vmatpush.msra.mxu0 %v2691
      %3466 = vmatmul.f32.gmra.mxu0 %v2299
      %v3467 = vpop.f32.mrf.mxu0
      %v3468 = vadd.f32 %v3448, %v3467
      %3469 = vdwg.mxu0
      %v3470 = vld [vmem:[#allocation22] sm:$0xff]
      %v3471 = vld [vmem:[#allocation24] sm:$0xff]
      %v3472 = vsel %vm323, %v2908, 0.0
      %v3473 = vsel %vm323, %v2988, 0.0
      %v3474 = vadd.f32 %v3472, %v3473
      %v3475 = vsel %vm323, %v3068, 0.0
      %v3476 = vadd.f32 %v3474, %v3475
      %v3477 = vsel %vm323, %v3148, 0.0
      %v3478 = vadd.f32 %v3476, %v3477
      %v3479 = vsel %vm323, %v3228, 0.0
      %v3480 = vadd.f32 %v3478, %v3479
      %v3481 = vsel %vm323, %v3308, 0.0
      %v3482 = vadd.f32 %v3480, %v3481
      %v3483 = vsel %vm323, %v3388, 0.0
      %v3484 = vadd.f32 %v3482, %v3483
      %v3485 = vsel %vm323, %v3468, 0.0
      %v3486 = vadd.f32 %v3484, %v3485
      %3487 = vadd.xlane.f32.xlu0 %v3486
      %v3488 = vpop.xlane.xlu0 %3487
      %v3489 = vrcp.pop 1024.0
      %v3490 = vmul.f32 1024.0, %v3489
      %v3491 = vsub.f32 1.0, %v3490
      %v3492 = vmul.f32 %v3489, %v3491
      %v3493 = vadd.f32 %v3489, %v3492
      %vm3494 = vweird.f32 %v3489
      %v3495 = vsel %vm3494, %v3489, %v3493
      %v3496 = vmul.f32 %v3488, %v3495
      %v3497 = vsub.f32 %v2908, %v3496
      %v3498 = vsub.f32 %v2988, %v3496
      %v3499 = vsub.f32 %v3068, %v3496
      %v3500 = vsub.f32 %v3148, %v3496
      %v3501 = vsub.f32 %v3228, %v3496
      %v3502 = vsub.f32 %v3308, %v3496
      %v3503 = vsub.f32 %v3388, %v3496
      %v3504 = vsub.f32 %v3468, %v3496
      %v3505 = vmul.f32 %v3497, %v3497
      %v3506 = vmul.f32 %v3498, %v3498
      %v3507 = vmul.f32 %v3499, %v3499
      %v3508 = vmul.f32 %v3500, %v3500
      %v3509 = vmul.f32 %v3501, %v3501
      %v3510 = vmul.f32 %v3502, %v3502
      %v3511 = vmul.f32 %v3503, %v3503
      %v3512 = vmul.f32 %v3504, %v3504
      %v3513 = vsel %vm323, %v3505, 0.0
      %v3514 = vsel %vm323, %v3506, 0.0
      %v3515 = vadd.f32 %v3513, %v3514
      %v3516 = vsel %vm323, %v3507, 0.0
      %v3517 = vadd.f32 %v3515, %v3516
      %v3518 = vsel %vm323, %v3508, 0.0
      %v3519 = vadd.f32 %v3517, %v3518
      %v3520 = vsel %vm323, %v3509, 0.0
      %v3521 = vadd.f32 %v3519, %v3520
      %v3522 = vsel %vm323, %v3510, 0.0
      %v3523 = vadd.f32 %v3521, %v3522
      %v3524 = vsel %vm323, %v3511, 0.0
      %v3525 = vadd.f32 %v3523, %v3524
      %v3526 = vsel %vm323, %v3512, 0.0
      %v3527 = vadd.f32 %v3525, %v3526
      %3528 = vadd.xlane.f32.xlu0 %v3527
      %v3529 = vpop.xlane.xlu0 %3528
      %v3530 = vmul.f32 %v3529, %v3495
      %v3531 = vadd.f32 %v3530, 1e-05
      %v3532 = vrsqrt.pop %v3531
      %v3533 = vmul.f32 %v3532, %v3531
      %v3534 = vmul.f32 %v3533, %v3532
      %v3535 = vmul.f32 0.5, %v3534
      %v3536 = vsub.f32 1.5, %v3535
      %v3537 = vmul.f32 %v3532, %v3536
      %vm3538 = vweird.f32 %v3531
      %vm3539 = vweird.f32 %v3532
      %vm3540 = vmor %vm3538, %vm3539
      %v3541 = vsel %vm3540, %v3532, %v3537
      %v3542 = vmul.f32 %v3497, %v3541
      %v3543 = vmul.f32 %v3498, %v3541
      %v3544 = vmul.f32 %v3499, %v3541
      %v3545 = vmul.f32 %v3500, %v3541
      %v3546 = vmul.f32 %v3501, %v3541
      %v3547 = vmul.f32 %v3502, %v3541
      %v3548 = vmul.f32 %v3503, %v3541
      %v3549 = vmul.f32 %v3504, %v3541
      %v3551 = vperm.slane %v3470, 0
      %v3552 = vperm.slane %v3470, 1
      %v3553 = vperm.slane %v3470, 2
      %v3554 = vperm.slane %v3470, 3
      %v3555 = vperm.slane %v3470, 4
      %v3556 = vperm.slane %v3470, 5
      %v3557 = vperm.slane %v3470, 6
      %v3558 = vperm.slane %v3470, 7
      %v3567 = vmul.f32 %v3542, %v3551
      %v3568 = vmul.f32 %v3543, %v3552
      %v3569 = vmul.f32 %v3544, %v3553
      %v3570 = vmul.f32 %v3545, %v3554
      %v3571 = vmul.f32 %v3546, %v3555
      %v3572 = vmul.f32 %v3547, %v3556
      %v3573 = vmul.f32 %v3548, %v3557
      %v3574 = vmul.f32 %v3549, %v3558
      %v3576 = vperm.slane %v3471, 0
      %v3577 = vperm.slane %v3471, 1
      %v3578 = vperm.slane %v3471, 2
      %v3579 = vperm.slane %v3471, 3
      %v3580 = vperm.slane %v3471, 4
      %v3581 = vperm.slane %v3471, 5
      %v3582 = vperm.slane %v3471, 6
      %v3583 = vperm.slane %v3471, 7
      %v3592 = vadd.f32 %v3567, %v3576
      %v3593 = vadd.f32 %v3568, %v3577
      %v3594 = vadd.f32 %v3569, %v3578
      %v3595 = vadd.f32 %v3570, %v3579
      %v3596 = vadd.f32 %v3571, %v3580
      %v3597 = vadd.f32 %v3572, %v3581
      %v3598 = vadd.f32 %v3573, %v3582
      %v3599 = vadd.f32 %v3574, %v3583
      %v3608 = vrot.slane %v3593, 7
      %v3609 = vrot.slane %v3594, 6
      %v3610 = vrot.slane %v3595, 5
      %v3611 = vrot.slane %v3596, 4
      %v3612 = vrot.slane %v3597, 3
      %v3613 = vrot.slane %v3598, 2
      %v3614 = vrot.slane %v3599, 1
      %v3615 = vsel %vm323, %v3592, %v3608
      %v3616 = vsel %vm325, %v3609, %v3610
      %v3617 = vsel %vm327, %v3615, %v3616
      %v3618 = vsel %vm329, %v3611, %v3612
      %v3619 = vsel %vm331, %v3613, %v3614
      %v3620 = vsel %vm333, %v3618, %v3619
      %v3621 = vsel %vm335, %v3617, %v3620
      %3623 = vst [vmem:[#allocation25] sm:$0xff] %v3621
    $region117: #{_call_kernel.1} parent=1 // pred_fallthru
      _
    // Predicated region
    $region118: #{_call_kernel.1} parent=1 // pred_check
      _
    $region119: #{_call_kernel.1} parent=1 // pred_check_branch
      %3625 = sbr.rel (0) target = $region121
    $region120: #{_call_kernel.1} parent=1 // pred_region
      %3627 = vsyncadd [#allocation6], 0
      %s3629 = sshll.u32 [#allocation25], 4
      %s3630 = int_to_ptr.vmem [resolvable:$true] %s3629
      %s3631 = sshll.u32 %s14, 4
      %s3632 = int_to_ptr.hbm [resolvable:$true] %s3631
      %3634 = dma.vmem_to_hbm [thread:$0]  %s3630, 128, %s3632, [#allocation6]
    $region121: #{_call_kernel.1} parent=1 // pred_fallthru
      _
    // Predicated region
    $region122: #{_call_kernel.1} parent=1 // pred_check
      _
    $region123: #{_call_kernel.1} parent=1 // pred_check_branch
      %3636 = sbr.rel (0) target = $region125
    $region124: #{_call_kernel.1} parent=1 // pred_region
      %3638 = dma.done [#allocation6], 128
    $region125: #{_call_kernel.1} parent=1 // pred_fallthru
      _
    %3639 = vsyncpa [#allocation5], 1
    %3640 = vsyncpa [#allocation8], 1
    %3641 = vsyncpa [#allocation11], 1
    %3642 = vsyncpa [#allocation14], 1
    %3643 = vsyncpa [#allocation17], 1
    %3644 = vsyncpa [#allocation20], 1
    %3645 = vsyncpa [#allocation23], 1
    %3646 = vsyncpa [#allocation6], 1

</llo_original>
